<compile_context>
chip_gen: v7x
topology: tpu7x:2x2x1
jax: 0.10.0
libtpu: 0.0.40
codegen_flags: <defaults>
</compile_context>

<pallas_src>
import numpy as np
import jax
import jax.numpy as jnp
from jax import lax
from jax.experimental import pallas as pl
from jax.experimental.pallas import tpu as pltpu

# ---- static model dims ----
IN_CH = 4          # input_dim (3) + n_datasets (1)
IN_CH_PAD = 8      # pad input channels so the im2col sublane stack is 8-aligned
ENC1_CH = 8
ENC2_CH = 16
CONTENT_CH = 32
DEC1_CH = 16
DEC2_CH = 8
STYLE_DIM = 16
MLP_HID = 64
NB = 2             # samples packed along the lane axis per grid step: [x_a[i] | x_b[i]]


# --------------------------------------------------------------------------- #
# Constant 0/1 helper matrices (built once on host; tiny)
# --------------------------------------------------------------------------- #
def _tap_masks(H, W, nb):
    """[8, nb*H*W] validity masks for the 8 non-center 3x3 taps (lane-position only)."""
    HW = H * W
    q = np.arange(nb * HW) % HW
    h, w = q // W, q % W
    rows = []
    for di in (-1, 0, 1):
        for dj in (-1, 0, 1):
            if di == 0 and dj == 0:
                continue
            rows.append(((h + di >= 0) & (h + di < H) &
                         (w + dj >= 0) & (w + dj < W)).astype(np.float32))
    return jnp.asarray(np.stack(rows))


def _tap_shift_mats(H, W, nb):
    """[9, L, L] shift+mask matrices (patch_k = x @ A[k]) for the tiny 4x4 stage."""
    HW = H * W
    L = nb * HW
    A = np.zeros((9, L, L), np.float32)
    k = 0
    for di in (-1, 0, 1):
        for dj in (-1, 0, 1):
            for b in range(nb):
                for h in range(H):
                    for w in range(W):
                        hs, ws = h + di, w + dj
                        if 0 <= hs < H and 0 <= ws < W:
                            A[k, b * HW + hs * W + ws, b * HW + h * W + w] = 1.0
            k += 1
    return jnp.asarray(A)


def _swap_mat(HW, nb):
    """[L, L] permutation: swap lane blocks ((c_a|c_b) -> (c_b|c_a)) via matmul."""
    L = nb * HW
    S = np.zeros((L, L), np.float32)
    for p in range(L):
        S[(p + HW) % L, p] = 1.0
    return jnp.asarray(S)


def _block_pool_mats(HW, nb):
    """P [L, nb] (mean-pool per sample block), E [nb, L] (broadcast back)."""
    L = nb * HW
    b_of = np.arange(L) // HW
    P = np.zeros((L, nb), np.float32)
    P[np.arange(L), b_of] = 1.0 / HW
    E = np.zeros((nb, L), np.float32)
    E[b_of, np.arange(L)] = 1.0
    return jnp.asarray(P), jnp.asarray(E)


def _decim_mat(H, W, nb):
    """[L_in, L_out] 0/1: stride-2 decimation (full-res conv @ D == stride-2 conv)."""
    Ho, Wo = H // 2, W // 2
    HW, HWo = H * W, Ho * Wo
    D = np.zeros((nb * HW, nb * HWo), np.float32)
    for b in range(nb):
        for oh in range(Ho):
            for ow in range(Wo):
                D[b * HW + (2 * oh) * W + 2 * ow, b * HWo + oh * Wo + ow] = 1.0
    return jnp.asarray(D)


def _upsample_mat(H, W, nb):
    """[L_in, L_out] 0/1: nearest 2x upsample as a matmul."""
    Ho, Wo = 2 * H, 2 * W
    HW, HWo = H * W, Ho * Wo
    U = np.zeros((nb * HW, nb * HWo), np.float32)
    for b in range(nb):
        for oh in range(Ho):
            for ow in range(Wo):
                U[b * HW + (oh // 2) * W + (ow // 2), b * HWo + oh * Wo + ow] = 1.0
    return jnp.asarray(U)


def _build_constants(H, W):
    Hh, Wh = H // 2, W // 2
    Hq, Wq = H // 4, W // 4
    m_full = _tap_masks(H, W, NB)
    m_half = _tap_masks(Hh, Wh, NB)
    A_q = _tap_shift_mats(Hq, Wq, NB)
    S_q = _swap_mat(Hq * Wq, NB)
    P_f, E_f = _block_pool_mats(H * W, NB)
    P_h, E_h = _block_pool_mats(Hh * Wh, NB)
    P_q, E_q = _block_pool_mats(Hq * Wq, NB)
    D_f = _decim_mat(H, W, NB)        # full  -> half
    D_h = _decim_mat(Hh, Wh, NB)      # half  -> quarter
    U_q = _upsample_mat(Hq, Wq, NB)   # quarter -> half
    U_h = _upsample_mat(Hh, Wh, NB)   # half  -> full
    return [m_full, m_half, A_q, S_q, P_f, E_f, P_h, E_h, P_q, E_q, D_f, D_h, U_q, U_h]


# --------------------------------------------------------------------------- #
# Parameter init
# --------------------------------------------------------------------------- #
def _conv_params(key, cin, cout, cin_pad=None):
    cp = cin_pad or cin
    w9 = jax.random.normal(key, (9, cout, cin), jnp.float32) * 0.05
    if cp > cin:
        w9 = jnp.pad(w9, ((0, 0), (0, 0), (0, cp - cin)))
    w_mm = jnp.transpose(w9, (1, 0, 2)).reshape(cout, 9 * cp)      # [cout, 9*cin]
    return w_mm, jnp.zeros((cout, 1), jnp.float32)


def _linear_params_T(key, din, dout):
    w = jax.random.normal(key, (dout, din), jnp.float32) * 0.05    # pre-transposed
    return w, jnp.zeros((dout, 1), jnp.float32)


# --------------------------------------------------------------------------- #
# The single fused forward kernel
# --------------------------------------------------------------------------- #
def _make_forward_kernel(H, W):
    CC = CONTENT_CH

    def conv3x3_roll(x, m, w, b, row_w):
        # x:[cin,L]  m:[8,L] tap masks  w:[cout,9*cin]  b:[cout,1]
        L = x.shape[1]
        taps = []
        mi = 0
        for di in (-1, 0, 1):
            for dj in (-1, 0, 1):
                if di == 0 and dj == 0:
                    taps.append(x)
                else:
                    s = di * row_w + dj
                    shifted = pltpu.roll(x, (-s) % L, 1)      # shifted[p] = x[p + s]
                    taps.append(shifted * m[mi:mi + 1, :])
                    mi += 1
        patches = jnp.concatenate(taps, axis=0)               # [9*cin, L]
        return jnp.dot(w, patches, preferred_element_type=jnp.float32) + b

    def conv3x3_mat(x, A, w, b):
        # 4x4 stage: shift+mask folded into constant matrices (pure MXU, 32 lanes).
        taps = [jnp.dot(x, A[k], preferred_element_type=jnp.float32) for k in range(9)]
        patches = jnp.concatenate(taps, axis=0)
        return jnp.dot(w, patches, preferred_element_type=jnp.float32) + b

    def norm_affine(y, P, E, gamma=None, beta=None):
        # per-(sample, channel) instance-norm over each HW lane segment; mean & E[y^2]
        # fused in one [y;y*y] @ P matmul, broadcast+affine fused in one @ E matmul.
        c = y.shape[0]
        z = jnp.concatenate([y, y * y], axis=0)                        # [2c, L]
        stats = jnp.dot(z, P, preferred_element_type=jnp.float32)      # [2c, NB]
        mean = stats[:c]
        var = stats[c:] - mean * mean
        inv = lax.rsqrt(var + 1e-5)
        if gamma is None:
            scale, shift = inv, -mean * inv
        else:
            scale = inv * gamma
            shift = beta - mean * scale
        sb = jnp.concatenate([scale, shift], axis=0)                    # [2c, NB]
        full = jnp.dot(sb, E, preferred_element_type=jnp.float32)       # [2c, L]
        return y * full[:c] + full[c:]

    def kernel(x_ref, sT_ref,
               wc1, bc1, wc2, bc2, wc3, bc3,
               wm1, bm1, wm2, bm2,
               wd1, bd1, wd2, bd2,
               wu1, bu1, wu2, bu2,
               wo, bo,
               m16_ref, m8_ref, A4_ref, S4_ref,
               P16_ref, E16_ref, P8_ref, E8_ref, P4_ref, E4_ref,
               D16_ref, D8_ref, U4_ref, U8_ref,
               o_ref):
        x = x_ref[0]                                      # [IN_CH_PAD, L1]
        m16, m8 = m16_ref[...], m8_ref[...]
        A4 = A4_ref[...]
        P16, E16 = P16_ref[...], E16_ref[...]
        P8, E8 = P8_ref[...], E8_ref[...]
        P4, E4 = P4_ref[...], E4_ref[...]

        # ----- content encoder -----
        h = conv3x3_roll(x, m16, wc1[...], bc1[...], W)                       # [8, L1]
        h = jnp.maximum(norm_affine(h, P16, E16), 0.0)

        h = conv3x3_roll(h, m16, wc2[...], bc2[...], W)                       # [16, L1]
        h = jnp.dot(h, D16_ref[...], preferred_element_type=jnp.float32)      # stride-2
        h = jnp.maximum(norm_affine(h, P8, E8), 0.0)                          # [16, L2]

        h = conv3x3_roll(h, m8, wc3[...], bc3[...], W // 2)                   # [32, L2]
        h = jnp.dot(h, D8_ref[...], preferred_element_type=jnp.float32)       # stride-2
        c = jnp.maximum(norm_affine(h, P4, E4), 0.0)                          # [32, L3]

        # ----- style MLP -> AdaIN params (styles pre-transposed: [STYLE_DIM, NB]) -----
        sT = sT_ref[0]
        hm = jnp.maximum(
            jnp.dot(wm1[...], sT, preferred_element_type=jnp.float32) + bm1[...], 0.0)
        ada = jnp.dot(wm2[...], hm, preferred_element_type=jnp.float32) + bm2[...]
        g1, b1 = ada[0:CC], ada[CC:2 * CC]
        g2, b2 = ada[2 * CC:3 * CC], ada[3 * CC:4 * CC]

        # ----- decoder: swap lane blocks (c_a|c_b) -> (c_b|c_a) so block 0 decodes
        #       with s_a (=> x_ba) and block 1 with s_b (=> x_ab). -----
        c_dec = jnp.dot(c, S4_ref[...], preferred_element_type=jnp.float32)

        h = conv3x3_mat(c_dec, A4, wd1[...], bd1[...])
        h = jnp.maximum(norm_affine(h, P4, E4, g1, b1), 0.0)

        h = conv3x3_mat(h, A4, wd2[...], bd2[...])
        h = norm_affine(h, P4, E4, g2, b2) + c_dec                            # res-block
        h = jnp.dot(h, U4_ref[...], preferred_element_type=jnp.float32)       # 2x up

        h = conv3x3_roll(h, m8, wu1[...], bu1[...], W // 2)                   # [16, L2]
        h = jnp.maximum(norm_affine(h, P8, E8), 0.0)
        h = jnp.dot(h, U8_ref[...], preferred_element_type=jnp.float32)       # 2x up

        h = conv3x3_roll(h, m16, wu2[...], bu2[...], W)                       # [8, L1]
        h = jnp.maximum(norm_affine(h, P16, E16), 0.0)

        y = conv3x3_roll(h, m16, wo[...], bo[...], W)                         # [3, L1]
        o_ref[0] = jnp.tanh(y)

    return kernel


def _const_index_map(ndim):
    def imap(i):
        return (0,) * ndim
    return imap


def funit_forward(params, consts, s_a, s_b, x_a, x_b):
    B, C, H, W = x_a.shape
    HW = H * W
    L1 = NB * HW
    out_ch = params[-2].shape[0]

    def flat_pad(x):
        if C < IN_CH_PAD:
            x = jnp.concatenate(
                [x, jnp.zeros((B, IN_CH_PAD - C, H, W), x.dtype)], axis=1)
        return x.reshape(B, IN_CH_PAD, HW)

    # pair i packed along lanes: [x_a[i] | x_b[i]]
    x_in = jnp.concatenate([flat_pad(x_a), flat_pad(x_b)], axis=2)   # [B, 8, 2*HW]
    sT = jnp.stack([s_a, s_b], axis=-1)                              # [B, STYLE_DIM, 2]

    operands = [x_in, sT] + list(params) + list(consts)
    in_specs = [pl.BlockSpec((1, IN_CH_PAD, L1), lambda i: (i, 0, 0)),
                pl.BlockSpec((1, STYLE_DIM, NB), lambda i: (i, 0, 0))]
    in_specs += [pl.BlockSpec(a.shape, _const_index_map(a.ndim))
                 for a in list(params) + list(consts)]

    out = pl.pallas_call(
        _make_forward_kernel(H, W),
        out_shape=jax.ShapeDtypeStruct((B, out_ch, L1), jnp.float32),
        grid=(B,),
        in_specs=in_specs,
        out_specs=pl.BlockSpec((1, out_ch, L1), lambda i: (i, 0, 0)),
        compiler_params=pltpu.CompilerParams(dimension_semantics=("parallel",)),
    )(*operands)

    out = out.reshape(B, out_ch, NB, H, W)
    x_ba = out[:, :, 0]      # decode(c_b, s_a)
    x_ab = out[:, :, 1]      # decode(c_a, s_b)
    return x_ab, x_ba


# --------------------------------------------------------------------------- #
# FUNIT trainer forward (generator encode/decode)
# --------------------------------------------------------------------------- #
class FUNITTrainerPallas:
    def __init__(self, key, input_dim=3, n_datasets=1, batch_size=2, H=16, W=16):
        cin = input_dim + n_datasets
        assert cin <= IN_CH_PAD
        keys = jax.random.split(key, 12)
        p = []
        p += list(_conv_params(keys[0], cin, ENC1_CH, cin_pad=IN_CH_PAD))   # c1
        p += list(_conv_params(keys[1], ENC1_CH, ENC2_CH))                  # c2 (s2)
        p += list(_conv_params(keys[2], ENC2_CH, CONTENT_CH))               # c3 (s2)
        p += list(_linear_params_T(keys[3], STYLE_DIM, MLP_HID))            # mlp1
        p += list(_linear_params_T(keys[4], MLP_HID, 4 * CONTENT_CH))       # mlp2
        p += list(_conv_params(keys[5], CONTENT_CH, CONTENT_CH))            # d1
        p += list(_conv_params(keys[6], CONTENT_CH, CONTENT_CH))            # d2
        p += list(_conv_params(keys[7], CONTENT_CH, DEC1_CH))               # u1
        p += list(_conv_params(keys[8], DEC1_CH, DEC2_CH))                  # u2
        p += list(_conv_params(keys[9], DEC2_CH, input_dim))                # out
        self.params = p
        self.consts = _build_constants(H, W)
        # TODO(synk): the original forward() reads self.s_a / self.s_b which are never
        # defined in FUNIT_Trainer.__init__; synthesize deterministic style codes here.
        # The class-model (style) encoder output is unused by forward() (dead code),
        # so it is not computed.
        self.s_a = jax.random.normal(keys[10], (batch_size, STYLE_DIM), jnp.float32)
        self.s_b = jax.random.normal(keys[11], (batch_size, STYLE_DIM), jnp.float32)

    def forward(self, x_a, x_b):
        return funit_forward(self.params, self.consts, self.s_a, self.s_b, x_a, x_b)


if __name__ == "__main__":
    key = jax.random.PRNGKey(0)
    k_param, k_a, k_b = jax.random.split(key, 3)

    # small config: input_dim=3, n_datasets=1 -> generator input channels = 4
    B, C, H, W = 2, 4, 16, 16
    trainer = FUNITTrainerPallas(k_param, input_dim=3, n_datasets=1, batch_size=B)

    x_a = jax.random.normal(k_a, (B, C, H, W), jnp.float32)
    x_b = jax.random.normal(k_b, (B, C, H, W), jnp.float32)

    fwd = jax.jit(trainer.forward)
    x_ab, x_ba = fwd(x_a, x_b)
    jax.block_until_ready((x_ab, x_ba))
    assert x_ab.shape == (B, 3, H, W) and x_ba.shape == (B, 3, H, W)
    assert bool(jnp.all(jnp.isfinite(x_ab))) and bool(jnp.all(jnp.isfinite(x_ba)))
    print("KERNEL_OK")
</pallas_src>

<mosaic_0001>
module attributes {stable_mosaic.version = 11 : i64} {
  func.func @kernel(%arg0: i32, %arg1: memref<1x8x512xf32, #tpu.memory_space<vmem>>, %arg2: memref<1x16x2xf32, #tpu.memory_space<vmem>>, %arg3: memref<8x72xf32, #tpu.memory_space<vmem>>, %arg4: memref<8x1xf32, #tpu.memory_space<vmem>>, %arg5: memref<16x72xf32, #tpu.memory_space<vmem>>, %arg6: memref<16x1xf32, #tpu.memory_space<vmem>>, %arg7: memref<32x144xf32, #tpu.memory_space<vmem>>, %arg8: memref<32x1xf32, #tpu.memory_space<vmem>>, %arg9: memref<64x16xf32, #tpu.memory_space<vmem>>, %arg10: memref<64x1xf32, #tpu.memory_space<vmem>>, %arg11: memref<128x64xf32, #tpu.memory_space<vmem>>, %arg12: memref<128x1xf32, #tpu.memory_space<vmem>>, %arg13: memref<32x288xf32, #tpu.memory_space<vmem>>, %arg14: memref<32x1xf32, #tpu.memory_space<vmem>>, %arg15: memref<32x288xf32, #tpu.memory_space<vmem>>, %arg16: memref<32x1xf32, #tpu.memory_space<vmem>>, %arg17: memref<16x288xf32, #tpu.memory_space<vmem>>, %arg18: memref<16x1xf32, #tpu.memory_space<vmem>>, %arg19: memref<8x144xf32, #tpu.memory_space<vmem>>, %arg20: memref<8x1xf32, #tpu.memory_space<vmem>>, %arg21: memref<3x72xf32, #tpu.memory_space<vmem>>, %arg22: memref<3x1xf32, #tpu.memory_space<vmem>>, %arg23: memref<8x512xf32, #tpu.memory_space<vmem>>, %arg24: memref<8x128xf32, #tpu.memory_space<vmem>>, %arg25: memref<9x32x32xf32, #tpu.memory_space<vmem>>, %arg26: memref<32x32xf32, #tpu.memory_space<vmem>>, %arg27: memref<512x2xf32, #tpu.memory_space<vmem>>, %arg28: memref<2x512xf32, #tpu.memory_space<vmem>>, %arg29: memref<128x2xf32, #tpu.memory_space<vmem>>, %arg30: memref<2x128xf32, #tpu.memory_space<vmem>>, %arg31: memref<32x2xf32, #tpu.memory_space<vmem>>, %arg32: memref<2x32xf32, #tpu.memory_space<vmem>>, %arg33: memref<512x128xf32, #tpu.memory_space<vmem>>, %arg34: memref<128x32xf32, #tpu.memory_space<vmem>>, %arg35: memref<32x128xf32, #tpu.memory_space<vmem>>, %arg36: memref<128x512xf32, #tpu.memory_space<vmem>>, %arg37: memref<1x3x512xf32, #tpu.memory_space<vmem>>) attributes {dimension_semantics = [#tpu.dimension_semantics<parallel>], iteration_bounds = array<i64: 2>, scalar_prefetch = 0 : i64, scratch_operands = 0 : i64, tpu.core_type = #tpu.core_type<tc>, window_params = [{transform_indices = @transform_0, window_bounds = array<i64: 1, 8, 512>}, {transform_indices = @transform_1, window_bounds = array<i64: 1, 16, 2>}, {pipeline_mode = #tpu.pipeline_mode<synchronous>, transform_indices = @transform_2, window_bounds = array<i64: 8, 72>}, {pipeline_mode = #tpu.pipeline_mode<synchronous>, transform_indices = @transform_3, window_bounds = array<i64: 8, 1>}, {pipeline_mode = #tpu.pipeline_mode<synchronous>, transform_indices = @transform_4, window_bounds = array<i64: 16, 72>}, {pipeline_mode = #tpu.pipeline_mode<synchronous>, transform_indices = @transform_5, window_bounds = array<i64: 16, 1>}, {pipeline_mode = #tpu.pipeline_mode<synchronous>, transform_indices = @transform_6, window_bounds = array<i64: 32, 144>}, {pipeline_mode = #tpu.pipeline_mode<synchronous>, transform_indices = @transform_7, window_bounds = array<i64: 32, 1>}, {pipeline_mode = #tpu.pipeline_mode<synchronous>, transform_indices = @transform_8, window_bounds = array<i64: 64, 16>}, {pipeline_mode = #tpu.pipeline_mode<synchronous>, transform_indices = @transform_9, window_bounds = array<i64: 64, 1>}, {pipeline_mode = #tpu.pipeline_mode<synchronous>, transform_indices = @transform_10, window_bounds = array<i64: 128, 64>}, {pipeline_mode = #tpu.pipeline_mode<synchronous>, transform_indices = @transform_11, window_bounds = array<i64: 128, 1>}, {pipeline_mode = #tpu.pipeline_mode<synchronous>, transform_indices = @transform_12, window_bounds = array<i64: 32, 288>}, {pipeline_mode = #tpu.pipeline_mode<synchronous>, transform_indices = @transform_13, window_bounds = array<i64: 32, 1>}, {pipeline_mode = #tpu.pipeline_mode<synchronous>, transform_indices = @transform_14, window_bounds = array<i64: 32, 288>}, {pipeline_mode = #tpu.pipeline_mode<synchronous>, transform_indices = @transform_15, window_bounds = array<i64: 32, 1>}, {pipeline_mode = #tpu.pipeline_mode<synchronous>, transform_indices = @transform_16, window_bounds = array<i64: 16, 288>}, {pipeline_mode = #tpu.pipeline_mode<synchronous>, transform_indices = @transform_17, window_bounds = array<i64: 16, 1>}, {pipeline_mode = #tpu.pipeline_mode<synchronous>, transform_indices = @transform_18, window_bounds = array<i64: 8, 144>}, {pipeline_mode = #tpu.pipeline_mode<synchronous>, transform_indices = @transform_19, window_bounds = array<i64: 8, 1>}, {pipeline_mode = #tpu.pipeline_mode<synchronous>, transform_indices = @transform_20, window_bounds = array<i64: 3, 72>}, {pipeline_mode = #tpu.pipeline_mode<synchronous>, transform_indices = @transform_21, window_bounds = array<i64: 3, 1>}, {pipeline_mode = #tpu.pipeline_mode<synchronous>, transform_indices = @transform_22, window_bounds = array<i64: 8, 512>}, {pipeline_mode = #tpu.pipeline_mode<synchronous>, transform_indices = @transform_23, window_bounds = array<i64: 8, 128>}, {pipeline_mode = #tpu.pipeline_mode<synchronous>, transform_indices = @transform_24, window_bounds = array<i64: 9, 32, 32>}, {pipeline_mode = #tpu.pipeline_mode<synchronous>, transform_indices = @transform_25, window_bounds = array<i64: 32, 32>}, {pipeline_mode = #tpu.pipeline_mode<synchronous>, transform_indices = @transform_26, window_bounds = array<i64: 512, 2>}, {pipeline_mode = #tpu.pipeline_mode<synchronous>, transform_indices = @transform_27, window_bounds = array<i64: 2, 512>}, {pipeline_mode = #tpu.pipeline_mode<synchronous>, transform_indices = @transform_28, window_bounds = array<i64: 128, 2>}, {pipeline_mode = #tpu.pipeline_mode<synchronous>, transform_indices = @transform_29, window_bounds = array<i64: 2, 128>}, {pipeline_mode = #tpu.pipeline_mode<synchronous>, transform_indices = @transform_30, window_bounds = array<i64: 32, 2>}, {pipeline_mode = #tpu.pipeline_mode<synchronous>, transform_indices = @transform_31, window_bounds = array<i64: 2, 32>}, {pipeline_mode = #tpu.pipeline_mode<synchronous>, transform_indices = @transform_32, window_bounds = array<i64: 512, 128>}, {pipeline_mode = #tpu.pipeline_mode<synchronous>, transform_indices = @transform_33, window_bounds = array<i64: 128, 32>}, {pipeline_mode = #tpu.pipeline_mode<synchronous>, transform_indices = @transform_34, window_bounds = array<i64: 32, 128>}, {pipeline_mode = #tpu.pipeline_mode<synchronous>, transform_indices = @transform_35, window_bounds = array<i64: 128, 512>}, {transform_indices = @transform_36, window_bounds = array<i64: 1, 3, 512>}]} {
    %c0 = arith.constant 0 : index
    %c0_0 = arith.constant 0 : index
    %c0_1 = arith.constant 0 : index
    %0 = vector.load %arg1[%c0, %c0_0, %c0_1] : memref<1x8x512xf32, #tpu.memory_space<vmem>>, vector<1x8x512xf32>
    %1 = vector.shape_cast %0 : vector<1x8x512xf32> to vector<8x512xf32>
    %c0_2 = arith.constant 0 : index
    %c0_3 = arith.constant 0 : index
    %2 = vector.load %arg23[%c0_2, %c0_3] : memref<8x512xf32, #tpu.memory_space<vmem>>, vector<8x512xf32>
    %c0_4 = arith.constant 0 : index
    %c0_5 = arith.constant 0 : index
    %3 = vector.load %arg24[%c0_4, %c0_5] : memref<8x128xf32, #tpu.memory_space<vmem>>, vector<8x128xf32>
    %c0_6 = arith.constant 0 : index
    %c0_7 = arith.constant 0 : index
    %c0_8 = arith.constant 0 : index
    %4 = vector.load %arg25[%c0_6, %c0_7, %c0_8] : memref<9x32x32xf32, #tpu.memory_space<vmem>>, vector<9x32x32xf32>
    %c0_9 = arith.constant 0 : index
    %c0_10 = arith.constant 0 : index
    %5 = vector.load %arg27[%c0_9, %c0_10] : memref<512x2xf32, #tpu.memory_space<vmem>>, vector<512x2xf32>
    %c0_11 = arith.constant 0 : index
    %c0_12 = arith.constant 0 : index
    %6 = vector.load %arg28[%c0_11, %c0_12] : memref<2x512xf32, #tpu.memory_space<vmem>>, vector<2x512xf32>
    %c0_13 = arith.constant 0 : index
    %c0_14 = arith.constant 0 : index
    %7 = vector.load %arg29[%c0_13, %c0_14] : memref<128x2xf32, #tpu.memory_space<vmem>>, vector<128x2xf32>
    %c0_15 = arith.constant 0 : index
    %c0_16 = arith.constant 0 : index
    %8 = vector.load %arg30[%c0_15, %c0_16] : memref<2x128xf32, #tpu.memory_space<vmem>>, vector<2x128xf32>
    %c0_17 = arith.constant 0 : index
    %c0_18 = arith.constant 0 : index
    %9 = vector.load %arg31[%c0_17, %c0_18] : memref<32x2xf32, #tpu.memory_space<vmem>>, vector<32x2xf32>
    %c0_19 = arith.constant 0 : index
    %c0_20 = arith.constant 0 : index
    %10 = vector.load %arg32[%c0_19, %c0_20] : memref<2x32xf32, #tpu.memory_space<vmem>>, vector<2x32xf32>
    %c0_21 = arith.constant 0 : index
    %c0_22 = arith.constant 0 : index
    %11 = vector.load %arg3[%c0_21, %c0_22] : memref<8x72xf32, #tpu.memory_space<vmem>>, vector<8x72xf32>
    %c0_23 = arith.constant 0 : index
    %c0_24 = arith.constant 0 : index
    %12 = vector.load %arg4[%c0_23, %c0_24] : memref<8x1xf32, #tpu.memory_space<vmem>>, vector<8x1xf32>
    %c17_i32 = arith.constant 17 : i32
    %13 = tpu.dynamic_rotate %1 by %c17_i32 dim 1 : vector<8x512xf32>, i32 -> vector<8x512xf32>
    %14 = vector.extract_strided_slice %2 {offsets = [0, 0], sizes = [1, 512], strides = [1, 1]} : vector<8x512xf32> to vector<1x512xf32>
    %15 = vector.broadcast %14 : vector<1x512xf32> to vector<8x512xf32>
    %16 = arith.mulf %13, %15 : vector<8x512xf32>
    %c16_i32 = arith.constant 16 : i32
    %17 = tpu.dynamic_rotate %1 by %c16_i32 dim 1 : vector<8x512xf32>, i32 -> vector<8x512xf32>
    %18 = vector.extract_strided_slice %2 {offsets = [1, 0], sizes = [1, 512], strides = [1, 1]} : vector<8x512xf32> to vector<1x512xf32>
    %19 = vector.broadcast %18 : vector<1x512xf32> to vector<8x512xf32>
    %20 = arith.mulf %17, %19 : vector<8x512xf32>
    %c15_i32 = arith.constant 15 : i32
    %21 = tpu.dynamic_rotate %1 by %c15_i32 dim 1 : vector<8x512xf32>, i32 -> vector<8x512xf32>
    %22 = vector.extract_strided_slice %2 {offsets = [2, 0], sizes = [1, 512], strides = [1, 1]} : vector<8x512xf32> to vector<1x512xf32>
    %23 = vector.broadcast %22 : vector<1x512xf32> to vector<8x512xf32>
    %24 = arith.mulf %21, %23 : vector<8x512xf32>
    %c1_i32 = arith.constant 1 : i32
    %25 = tpu.dynamic_rotate %1 by %c1_i32 dim 1 : vector<8x512xf32>, i32 -> vector<8x512xf32>
    %26 = vector.extract_strided_slice %2 {offsets = [3, 0], sizes = [1, 512], strides = [1, 1]} : vector<8x512xf32> to vector<1x512xf32>
    %27 = vector.broadcast %26 : vector<1x512xf32> to vector<8x512xf32>
    %28 = arith.mulf %25, %27 : vector<8x512xf32>
    %c511_i32 = arith.constant 511 : i32
    %29 = tpu.dynamic_rotate %1 by %c511_i32 dim 1 : vector<8x512xf32>, i32 -> vector<8x512xf32>
    %30 = vector.extract_strided_slice %2 {offsets = [4, 0], sizes = [1, 512], strides = [1, 1]} : vector<8x512xf32> to vector<1x512xf32>
    %31 = vector.broadcast %30 : vector<1x512xf32> to vector<8x512xf32>
    %32 = arith.mulf %29, %31 : vector<8x512xf32>
    %c497_i32 = arith.constant 497 : i32
    %33 = tpu.dynamic_rotate %1 by %c497_i32 dim 1 : vector<8x512xf32>, i32 -> vector<8x512xf32>
    %34 = vector.extract_strided_slice %2 {offsets = [5, 0], sizes = [1, 512], strides = [1, 1]} : vector<8x512xf32> to vector<1x512xf32>
    %35 = vector.broadcast %34 : vector<1x512xf32> to vector<8x512xf32>
    %36 = arith.mulf %33, %35 : vector<8x512xf32>
    %c496_i32 = arith.constant 496 : i32
    %37 = tpu.dynamic_rotate %1 by %c496_i32 dim 1 : vector<8x512xf32>, i32 -> vector<8x512xf32>
    %38 = vector.extract_strided_slice %2 {offsets = [6, 0], sizes = [1, 512], strides = [1, 1]} : vector<8x512xf32> to vector<1x512xf32>
    %39 = vector.broadcast %38 : vector<1x512xf32> to vector<8x512xf32>
    %40 = arith.mulf %37, %39 : vector<8x512xf32>
    %c495_i32 = arith.constant 495 : i32
    %41 = tpu.dynamic_rotate %1 by %c495_i32 dim 1 : vector<8x512xf32>, i32 -> vector<8x512xf32>
    %42 = vector.extract_strided_slice %2 {offsets = [7, 0], sizes = [1, 512], strides = [1, 1]} : vector<8x512xf32> to vector<1x512xf32>
    %43 = vector.broadcast %42 : vector<1x512xf32> to vector<8x512xf32>
    %44 = arith.mulf %41, %43 : vector<8x512xf32>
    %45 = tpu.concatenate %16, %20, %24, %28, %1, %32, %36, %40, %44 in 0 : vector<8x512xf32>, vector<8x512xf32>, vector<8x512xf32>, vector<8x512xf32>, vector<8x512xf32>, vector<8x512xf32>, vector<8x512xf32>, vector<8x512xf32>, vector<8x512xf32> -> vector<72x512xf32>
    %cst = arith.constant dense<0.000000e+00> : vector<8x512xf32>
    %46 = tpu.matmul %11, %45, %cst {dimension_numbers = #tpu.dot_dimension_numbers<[1], [0], [0], [1], [0, 0, 1, 1], [], []>} : vector<8x72xf32>, vector<72x512xf32>, vector<8x512xf32> -> vector<8x512xf32>
    %47 = vector.broadcast %12 : vector<8x1xf32> to vector<8x512xf32>
    %48 = arith.addf %46, %47 : vector<8x512xf32>
    %49 = arith.mulf %48, %48 : vector<8x512xf32>
    %50 = tpu.concatenate %48, %49 in 0 : vector<8x512xf32>, vector<8x512xf32> -> vector<16x512xf32>
    %cst_25 = arith.constant dense<0.000000e+00> : vector<16x2xf32>
    %51 = tpu.matmul %50, %5, %cst_25 {dimension_numbers = #tpu.dot_dimension_numbers<[1], [0], [0], [1], [0, 0, 1, 1], [], []>} : vector<16x512xf32>, vector<512x2xf32>, vector<16x2xf32> -> vector<16x2xf32>
    %52 = vector.extract_strided_slice %51 {offsets = [0, 0], sizes = [8, 2], strides = [1, 1]} : vector<16x2xf32> to vector<8x2xf32>
    %53 = vector.extract_strided_slice %51 {offsets = [8, 0], sizes = [8, 2], strides = [1, 1]} : vector<16x2xf32> to vector<8x2xf32>
    %54 = arith.mulf %52, %52 : vector<8x2xf32>
    %55 = arith.subf %53, %54 : vector<8x2xf32>
    %cst_26 = arith.constant 9.99999974E-6 : f32
    %56 = vector.broadcast %cst_26 : f32 to vector<8x2xf32>
    %57 = arith.addf %55, %56 : vector<8x2xf32>
    %58 = math.rsqrt %57 : vector<8x2xf32>
    %cst_27 = arith.constant 0.000000e+00 : f32
    %59 = vector.broadcast %cst_27 : f32 to vector<8x2xf32>
    %60 = arith.subf %59, %52 : vector<8x2xf32>
    %61 = arith.mulf %60, %58 : vector<8x2xf32>
    %62 = tpu.concatenate %58, %61 in 0 : vector<8x2xf32>, vector<8x2xf32> -> vector<16x2xf32>
    %cst_28 = arith.constant dense<0.000000e+00> : vector<16x512xf32>
    %63 = tpu.matmul %62, %6, %cst_28 {dimension_numbers = #tpu.dot_dimension_numbers<[1], [0], [0], [1], [0, 0, 1, 1], [], []>} : vector<16x2xf32>, vector<2x512xf32>, vector<16x512xf32> -> vector<16x512xf32>
    %64 = vector.extract_strided_slice %63 {offsets = [0, 0], sizes = [8, 512], strides = [1, 1]} : vector<16x512xf32> to vector<8x512xf32>
    %65 = arith.mulf %48, %64 : vector<8x512xf32>
    %66 = vector.extract_strided_slice %63 {offsets = [8, 0], sizes = [8, 512], strides = [1, 1]} : vector<16x512xf32> to vector<8x512xf32>
    %67 = arith.addf %65, %66 : vector<8x512xf32>
    %cst_29 = arith.constant 0.000000e+00 : f32
    %68 = vector.broadcast %cst_29 : f32 to vector<8x512xf32>
    %69 = arith.maximumf %67, %68 : vector<8x512xf32>
    %c0_30 = arith.constant 0 : index
    %c0_31 = arith.constant 0 : index
    %70 = vector.load %arg5[%c0_30, %c0_31] : memref<16x72xf32, #tpu.memory_space<vmem>>, vector<16x72xf32>
    %c0_32 = arith.constant 0 : index
    %c0_33 = arith.constant 0 : index
    %71 = vector.load %arg6[%c0_32, %c0_33] : memref<16x1xf32, #tpu.memory_space<vmem>>, vector<16x1xf32>
    %c17_i32_34 = arith.constant 17 : i32
    %72 = tpu.dynamic_rotate %69 by %c17_i32_34 dim 1 : vector<8x512xf32>, i32 -> vector<8x512xf32>
    %73 = vector.extract_strided_slice %2 {offsets = [0, 0], sizes = [1, 512], strides = [1, 1]} : vector<8x512xf32> to vector<1x512xf32>
    %74 = vector.broadcast %73 : vector<1x512xf32> to vector<8x512xf32>
    %75 = arith.mulf %72, %74 : vector<8x512xf32>
    %c16_i32_35 = arith.constant 16 : i32
    %76 = tpu.dynamic_rotate %69 by %c16_i32_35 dim 1 : vector<8x512xf32>, i32 -> vector<8x512xf32>
    %77 = vector.extract_strided_slice %2 {offsets = [1, 0], sizes = [1, 512], strides = [1, 1]} : vector<8x512xf32> to vector<1x512xf32>
    %78 = vector.broadcast %77 : vector<1x512xf32> to vector<8x512xf32>
    %79 = arith.mulf %76, %78 : vector<8x512xf32>
    %c15_i32_36 = arith.constant 15 : i32
    %80 = tpu.dynamic_rotate %69 by %c15_i32_36 dim 1 : vector<8x512xf32>, i32 -> vector<8x512xf32>
    %81 = vector.extract_strided_slice %2 {offsets = [2, 0], sizes = [1, 512], strides = [1, 1]} : vector<8x512xf32> to vector<1x512xf32>
    %82 = vector.broadcast %81 : vector<1x512xf32> to vector<8x512xf32>
    %83 = arith.mulf %80, %82 : vector<8x512xf32>
    %c1_i32_37 = arith.constant 1 : i32
    %84 = tpu.dynamic_rotate %69 by %c1_i32_37 dim 1 : vector<8x512xf32>, i32 -> vector<8x512xf32>
    %85 = vector.extract_strided_slice %2 {offsets = [3, 0], sizes = [1, 512], strides = [1, 1]} : vector<8x512xf32> to vector<1x512xf32>
    %86 = vector.broadcast %85 : vector<1x512xf32> to vector<8x512xf32>
    %87 = arith.mulf %84, %86 : vector<8x512xf32>
    %c511_i32_38 = arith.constant 511 : i32
    %88 = tpu.dynamic_rotate %69 by %c511_i32_38 dim 1 : vector<8x512xf32>, i32 -> vector<8x512xf32>
    %89 = vector.extract_strided_slice %2 {offsets = [4, 0], sizes = [1, 512], strides = [1, 1]} : vector<8x512xf32> to vector<1x512xf32>
    %90 = vector.broadcast %89 : vector<1x512xf32> to vector<8x512xf32>
    %91 = arith.mulf %88, %90 : vector<8x512xf32>
    %c497_i32_39 = arith.constant 497 : i32
    %92 = tpu.dynamic_rotate %69 by %c497_i32_39 dim 1 : vector<8x512xf32>, i32 -> vector<8x512xf32>
    %93 = vector.extract_strided_slice %2 {offsets = [5, 0], sizes = [1, 512], strides = [1, 1]} : vector<8x512xf32> to vector<1x512xf32>
    %94 = vector.broadcast %93 : vector<1x512xf32> to vector<8x512xf32>
    %95 = arith.mulf %92, %94 : vector<8x512xf32>
    %c496_i32_40 = arith.constant 496 : i32
    %96 = tpu.dynamic_rotate %69 by %c496_i32_40 dim 1 : vector<8x512xf32>, i32 -> vector<8x512xf32>
    %97 = vector.extract_strided_slice %2 {offsets = [6, 0], sizes = [1, 512], strides = [1, 1]} : vector<8x512xf32> to vector<1x512xf32>
    %98 = vector.broadcast %97 : vector<1x512xf32> to vector<8x512xf32>
    %99 = arith.mulf %96, %98 : vector<8x512xf32>
    %c495_i32_41 = arith.constant 495 : i32
    %100 = tpu.dynamic_rotate %69 by %c495_i32_41 dim 1 : vector<8x512xf32>, i32 -> vector<8x512xf32>
    %101 = vector.extract_strided_slice %2 {offsets = [7, 0], sizes = [1, 512], strides = [1, 1]} : vector<8x512xf32> to vector<1x512xf32>
    %102 = vector.broadcast %101 : vector<1x512xf32> to vector<8x512xf32>
    %103 = arith.mulf %100, %102 : vector<8x512xf32>
    %104 = tpu.concatenate %75, %79, %83, %87, %69, %91, %95, %99, %103 in 0 : vector<8x512xf32>, vector<8x512xf32>, vector<8x512xf32>, vector<8x512xf32>, vector<8x512xf32>, vector<8x512xf32>, vector<8x512xf32>, vector<8x512xf32>, vector<8x512xf32> -> vector<72x512xf32>
    %cst_42 = arith.constant dense<0.000000e+00> : vector<16x512xf32>
    %105 = tpu.matmul %70, %104, %cst_42 {dimension_numbers = #tpu.dot_dimension_numbers<[1], [0], [0], [1], [0, 0, 1, 1], [], []>} : vector<16x72xf32>, vector<72x512xf32>, vector<16x512xf32> -> vector<16x512xf32>
    %106 = vector.broadcast %71 : vector<16x1xf32> to vector<16x512xf32>
    %107 = arith.addf %105, %106 : vector<16x512xf32>
    %c0_43 = arith.constant 0 : index
    %c0_44 = arith.constant 0 : index
    %108 = vector.load %arg33[%c0_43, %c0_44] : memref<512x128xf32, #tpu.memory_space<vmem>>, vector<512x128xf32>
    %cst_45 = arith.constant dense<0.000000e+00> : vector<16x128xf32>
    %109 = tpu.matmul %107, %108, %cst_45 {dimension_numbers = #tpu.dot_dimension_numbers<[1], [0], [0], [1], [0, 0, 1, 1], [], []>} : vector<16x512xf32>, vector<512x128xf32>, vector<16x128xf32> -> vector<16x128xf32>
    %110 = arith.mulf %109, %109 : vector<16x128xf32>
    %111 = tpu.concatenate %109, %110 in 0 : vector<16x128xf32>, vector<16x128xf32> -> vector<32x128xf32>
    %cst_46 = arith.constant dense<0.000000e+00> : vector<32x2xf32>
    %112 = tpu.matmul %111, %7, %cst_46 {dimension_numbers = #tpu.dot_dimension_numbers<[1], [0], [0], [1], [0, 0, 1, 1], [], []>} : vector<32x128xf32>, vector<128x2xf32>, vector<32x2xf32> -> vector<32x2xf32>
    %113 = vector.extract_strided_slice %112 {offsets = [0, 0], sizes = [16, 2], strides = [1, 1]} : vector<32x2xf32> to vector<16x2xf32>
    %114 = vector.extract_strided_slice %112 {offsets = [16, 0], sizes = [16, 2], strides = [1, 1]} : vector<32x2xf32> to vector<16x2xf32>
    %115 = arith.mulf %113, %113 : vector<16x2xf32>
    %116 = arith.subf %114, %115 : vector<16x2xf32>
    %cst_47 = arith.constant 9.99999974E-6 : f32
    %117 = vector.broadcast %cst_47 : f32 to vector<16x2xf32>
    %118 = arith.addf %116, %117 : vector<16x2xf32>
    %119 = math.rsqrt %118 : vector<16x2xf32>
    %cst_48 = arith.constant 0.000000e+00 : f32
    %120 = vector.broadcast %cst_48 : f32 to vector<16x2xf32>
    %121 = arith.subf %120, %113 : vector<16x2xf32>
    %122 = arith.mulf %121, %119 : vector<16x2xf32>
    %123 = tpu.concatenate %119, %122 in 0 : vector<16x2xf32>, vector<16x2xf32> -> vector<32x2xf32>
    %cst_49 = arith.constant dense<0.000000e+00> : vector<32x128xf32>
    %124 = tpu.matmul %123, %8, %cst_49 {dimension_numbers = #tpu.dot_dimension_numbers<[1], [0], [0], [1], [0, 0, 1, 1], [], []>} : vector<32x2xf32>, vector<2x128xf32>, vector<32x128xf32> -> vector<32x128xf32>
    %125 = vector.extract_strided_slice %124 {offsets = [0, 0], sizes = [16, 128], strides = [1, 1]} : vector<32x128xf32> to vector<16x128xf32>
    %126 = arith.mulf %109, %125 : vector<16x128xf32>
    %127 = vector.extract_strided_slice %124 {offsets = [16, 0], sizes = [16, 128], strides = [1, 1]} : vector<32x128xf32> to vector<16x128xf32>
    %128 = arith.addf %126, %127 : vector<16x128xf32>
    %cst_50 = arith.constant 0.000000e+00 : f32
    %129 = vector.broadcast %cst_50 : f32 to vector<16x128xf32>
    %130 = arith.maximumf %128, %129 : vector<16x128xf32>
    %c0_51 = arith.constant 0 : index
    %c0_52 = arith.constant 0 : index
    %131 = vector.load %arg7[%c0_51, %c0_52] : memref<32x144xf32, #tpu.memory_space<vmem>>, vector<32x144xf32>
    %c0_53 = arith.constant 0 : index
    %c0_54 = arith.constant 0 : index
    %132 = vector.load %arg8[%c0_53, %c0_54] : memref<32x1xf32, #tpu.memory_space<vmem>>, vector<32x1xf32>
    %c9_i32 = arith.constant 9 : i32
    %133 = tpu.dynamic_rotate %130 by %c9_i32 dim 1 : vector<16x128xf32>, i32 -> vector<16x128xf32>
    %134 = vector.extract_strided_slice %3 {offsets = [0, 0], sizes = [1, 128], strides = [1, 1]} : vector<8x128xf32> to vector<1x128xf32>
    %135 = vector.broadcast %134 : vector<1x128xf32> to vector<16x128xf32>
    %136 = arith.mulf %133, %135 : vector<16x128xf32>
    %c8_i32 = arith.constant 8 : i32
    %137 = tpu.dynamic_rotate %130 by %c8_i32 dim 1 : vector<16x128xf32>, i32 -> vector<16x128xf32>
    %138 = vector.extract_strided_slice %3 {offsets = [1, 0], sizes = [1, 128], strides = [1, 1]} : vector<8x128xf32> to vector<1x128xf32>
    %139 = vector.broadcast %138 : vector<1x128xf32> to vector<16x128xf32>
    %140 = arith.mulf %137, %139 : vector<16x128xf32>
    %c7_i32 = arith.constant 7 : i32
    %141 = tpu.dynamic_rotate %130 by %c7_i32 dim 1 : vector<16x128xf32>, i32 -> vector<16x128xf32>
    %142 = vector.extract_strided_slice %3 {offsets = [2, 0], sizes = [1, 128], strides = [1, 1]} : vector<8x128xf32> to vector<1x128xf32>
    %143 = vector.broadcast %142 : vector<1x128xf32> to vector<16x128xf32>
    %144 = arith.mulf %141, %143 : vector<16x128xf32>
    %c1_i32_55 = arith.constant 1 : i32
    %145 = tpu.dynamic_rotate %130 by %c1_i32_55 dim 1 : vector<16x128xf32>, i32 -> vector<16x128xf32>
    %146 = vector.extract_strided_slice %3 {offsets = [3, 0], sizes = [1, 128], strides = [1, 1]} : vector<8x128xf32> to vector<1x128xf32>
    %147 = vector.broadcast %146 : vector<1x128xf32> to vector<16x128xf32>
    %148 = arith.mulf %145, %147 : vector<16x128xf32>
    %c127_i32 = arith.constant 127 : i32
    %149 = tpu.dynamic_rotate %130 by %c127_i32 dim 1 : vector<16x128xf32>, i32 -> vector<16x128xf32>
    %150 = vector.extract_strided_slice %3 {offsets = [4, 0], sizes = [1, 128], strides = [1, 1]} : vector<8x128xf32> to vector<1x128xf32>
    %151 = vector.broadcast %150 : vector<1x128xf32> to vector<16x128xf32>
    %152 = arith.mulf %149, %151 : vector<16x128xf32>
    %c121_i32 = arith.constant 121 : i32
    %153 = tpu.dynamic_rotate %130 by %c121_i32 dim 1 : vector<16x128xf32>, i32 -> vector<16x128xf32>
    %154 = vector.extract_strided_slice %3 {offsets = [5, 0], sizes = [1, 128], strides = [1, 1]} : vector<8x128xf32> to vector<1x128xf32>
    %155 = vector.broadcast %154 : vector<1x128xf32> to vector<16x128xf32>
    %156 = arith.mulf %153, %155 : vector<16x128xf32>
    %c120_i32 = arith.constant 120 : i32
    %157 = tpu.dynamic_rotate %130 by %c120_i32 dim 1 : vector<16x128xf32>, i32 -> vector<16x128xf32>
    %158 = vector.extract_strided_slice %3 {offsets = [6, 0], sizes = [1, 128], strides = [1, 1]} : vector<8x128xf32> to vector<1x128xf32>
    %159 = vector.broadcast %158 : vector<1x128xf32> to vector<16x128xf32>
    %160 = arith.mulf %157, %159 : vector<16x128xf32>
    %c119_i32 = arith.constant 119 : i32
    %161 = tpu.dynamic_rotate %130 by %c119_i32 dim 1 : vector<16x128xf32>, i32 -> vector<16x128xf32>
    %162 = vector.extract_strided_slice %3 {offsets = [7, 0], sizes = [1, 128], strides = [1, 1]} : vector<8x128xf32> to vector<1x128xf32>
    %163 = vector.broadcast %162 : vector<1x128xf32> to vector<16x128xf32>
    %164 = arith.mulf %161, %163 : vector<16x128xf32>
    %165 = tpu.concatenate %136, %140, %144, %148, %130, %152, %156, %160, %164 in 0 : vector<16x128xf32>, vector<16x128xf32>, vector<16x128xf32>, vector<16x128xf32>, vector<16x128xf32>, vector<16x128xf32>, vector<16x128xf32>, vector<16x128xf32>, vector<16x128xf32> -> vector<144x128xf32>
    %cst_56 = arith.constant dense<0.000000e+00> : vector<32x128xf32>
    %166 = tpu.matmul %131, %165, %cst_56 {dimension_numbers = #tpu.dot_dimension_numbers<[1], [0], [0], [1], [0, 0, 1, 1], [], []>} : vector<32x144xf32>, vector<144x128xf32>, vector<32x128xf32> -> vector<32x128xf32>
    %167 = vector.broadcast %132 : vector<32x1xf32> to vector<32x128xf32>
    %168 = arith.addf %166, %167 : vector<32x128xf32>
    %c0_57 = arith.constant 0 : index
    %c0_58 = arith.constant 0 : index
    %169 = vector.load %arg34[%c0_57, %c0_58] : memref<128x32xf32, #tpu.memory_space<vmem>>, vector<128x32xf32>
    %cst_59 = arith.constant dense<0.000000e+00> : vector<32x32xf32>
    %170 = tpu.matmul %168, %169, %cst_59 {dimension_numbers = #tpu.dot_dimension_numbers<[1], [0], [0], [1], [0, 0, 1, 1], [], []>} : vector<32x128xf32>, vector<128x32xf32>, vector<32x32xf32> -> vector<32x32xf32>
    %171 = arith.mulf %170, %170 : vector<32x32xf32>
    %172 = tpu.concatenate %170, %171 in 0 : vector<32x32xf32>, vector<32x32xf32> -> vector<64x32xf32>
    %cst_60 = arith.constant dense<0.000000e+00> : vector<64x2xf32>
    %173 = tpu.matmul %172, %9, %cst_60 {dimension_numbers = #tpu.dot_dimension_numbers<[1], [0], [0], [1], [0, 0, 1, 1], [], []>} : vector<64x32xf32>, vector<32x2xf32>, vector<64x2xf32> -> vector<64x2xf32>
    %174 = vector.extract_strided_slice %173 {offsets = [0, 0], sizes = [32, 2], strides = [1, 1]} : vector<64x2xf32> to vector<32x2xf32>
    %175 = vector.extract_strided_slice %173 {offsets = [32, 0], sizes = [32, 2], strides = [1, 1]} : vector<64x2xf32> to vector<32x2xf32>
    %176 = arith.mulf %174, %174 : vector<32x2xf32>
    %177 = arith.subf %175, %176 : vector<32x2xf32>
    %cst_61 = arith.constant 9.99999974E-6 : f32
    %178 = vector.broadcast %cst_61 : f32 to vector<32x2xf32>
    %179 = arith.addf %177, %178 : vector<32x2xf32>
    %180 = math.rsqrt %179 : vector<32x2xf32>
    %cst_62 = arith.constant 0.000000e+00 : f32
    %181 = vector.broadcast %cst_62 : f32 to vector<32x2xf32>
    %182 = arith.subf %181, %174 : vector<32x2xf32>
    %183 = arith.mulf %182, %180 : vector<32x2xf32>
    %184 = tpu.concatenate %180, %183 in 0 : vector<32x2xf32>, vector<32x2xf32> -> vector<64x2xf32>
    %cst_63 = arith.constant dense<0.000000e+00> : vector<64x32xf32>
    %185 = tpu.matmul %184, %10, %cst_63 {dimension_numbers = #tpu.dot_dimension_numbers<[1], [0], [0], [1], [0, 0, 1, 1], [], []>} : vector<64x2xf32>, vector<2x32xf32>, vector<64x32xf32> -> vector<64x32xf32>
    %186 = vector.extract_strided_slice %185 {offsets = [0, 0], sizes = [32, 32], strides = [1, 1]} : vector<64x32xf32> to vector<32x32xf32>
    %187 = arith.mulf %170, %186 : vector<32x32xf32>
    %188 = vector.extract_strided_slice %185 {offsets = [32, 0], sizes = [32, 32], strides = [1, 1]} : vector<64x32xf32> to vector<32x32xf32>
    %189 = arith.addf %187, %188 : vector<32x32xf32>
    %cst_64 = arith.constant 0.000000e+00 : f32
    %190 = vector.broadcast %cst_64 : f32 to vector<32x32xf32>
    %191 = arith.maximumf %189, %190 : vector<32x32xf32>
    %c0_65 = arith.constant 0 : index
    %c0_66 = arith.constant 0 : index
    %c0_67 = arith.constant 0 : index
    %192 = vector.load %arg2[%c0_65, %c0_66, %c0_67] : memref<1x16x2xf32, #tpu.memory_space<vmem>>, vector<1x16x2xf32>
    %193 = vector.shape_cast %192 : vector<1x16x2xf32> to vector<16x2xf32>
    %c0_68 = arith.constant 0 : index
    %c0_69 = arith.constant 0 : index
    %194 = vector.load %arg9[%c0_68, %c0_69] : memref<64x16xf32, #tpu.memory_space<vmem>>, vector<64x16xf32>
    %cst_70 = arith.constant dense<0.000000e+00> : vector<64x2xf32>
    %195 = tpu.matmul %194, %193, %cst_70 {dimension_numbers = #tpu.dot_dimension_numbers<[1], [0], [0], [1], [0, 0, 1, 1], [], []>} : vector<64x16xf32>, vector<16x2xf32>, vector<64x2xf32> -> vector<64x2xf32>
    %c0_71 = arith.constant 0 : index
    %c0_72 = arith.constant 0 : index
    %196 = vector.load %arg10[%c0_71, %c0_72] : memref<64x1xf32, #tpu.memory_space<vmem>>, vector<64x1xf32>
    %197 = vector.broadcast %196 : vector<64x1xf32> to vector<64x2xf32>
    %198 = arith.addf %195, %197 : vector<64x2xf32>
    %cst_73 = arith.constant 0.000000e+00 : f32
    %199 = vector.broadcast %cst_73 : f32 to vector<64x2xf32>
    %200 = arith.maximumf %198, %199 : vector<64x2xf32>
    %c0_74 = arith.constant 0 : index
    %c0_75 = arith.constant 0 : index
    %201 = vector.load %arg11[%c0_74, %c0_75] : memref<128x64xf32, #tpu.memory_space<vmem>>, vector<128x64xf32>
    %cst_76 = arith.constant dense<0.000000e+00> : vector<128x2xf32>
    %202 = tpu.matmul %201, %200, %cst_76 {dimension_numbers = #tpu.dot_dimension_numbers<[1], [0], [0], [1], [0, 0, 1, 1], [], []>} : vector<128x64xf32>, vector<64x2xf32>, vector<128x2xf32> -> vector<128x2xf32>
    %c0_77 = arith.constant 0 : index
    %c0_78 = arith.constant 0 : index
    %203 = vector.load %arg12[%c0_77, %c0_78] : memref<128x1xf32, #tpu.memory_space<vmem>>, vector<128x1xf32>
    %204 = vector.broadcast %203 : vector<128x1xf32> to vector<128x2xf32>
    %205 = arith.addf %202, %204 : vector<128x2xf32>
    %206 = vector.extract_strided_slice %205 {offsets = [0, 0], sizes = [32, 2], strides = [1, 1]} : vector<128x2xf32> to vector<32x2xf32>
    %207 = vector.extract_strided_slice %205 {offsets = [32, 0], sizes = [32, 2], strides = [1, 1]} : vector<128x2xf32> to vector<32x2xf32>
    %208 = vector.extract_strided_slice %205 {offsets = [64, 0], sizes = [32, 2], strides = [1, 1]} : vector<128x2xf32> to vector<32x2xf32>
    %209 = vector.extract_strided_slice %205 {offsets = [96, 0], sizes = [32, 2], strides = [1, 1]} : vector<128x2xf32> to vector<32x2xf32>
    %c0_79 = arith.constant 0 : index
    %c0_80 = arith.constant 0 : index
    %210 = vector.load %arg26[%c0_79, %c0_80] : memref<32x32xf32, #tpu.memory_space<vmem>>, vector<32x32xf32>
    %cst_81 = arith.constant dense<0.000000e+00> : vector<32x32xf32>
    %211 = tpu.matmul %191, %210, %cst_81 {dimension_numbers = #tpu.dot_dimension_numbers<[1], [0], [0], [1], [0, 0, 1, 1], [], []>} : vector<32x32xf32>, vector<32x32xf32>, vector<32x32xf32> -> vector<32x32xf32>
    %c0_82 = arith.constant 0 : index
    %c0_83 = arith.constant 0 : index
    %212 = vector.load %arg13[%c0_82, %c0_83] : memref<32x288xf32, #tpu.memory_space<vmem>>, vector<32x288xf32>
    %c0_84 = arith.constant 0 : index
    %c0_85 = arith.constant 0 : index
    %213 = vector.load %arg14[%c0_84, %c0_85] : memref<32x1xf32, #tpu.memory_space<vmem>>, vector<32x1xf32>
    %214 = vector.extract_strided_slice %4 {offsets = [0, 0, 0], sizes = [1, 32, 32], strides = [1, 1, 1]} : vector<9x32x32xf32> to vector<1x32x32xf32>
    %215 = vector.shape_cast %214 : vector<1x32x32xf32> to vector<32x32xf32>
    %cst_86 = arith.constant dense<0.000000e+00> : vector<32x32xf32>
    %216 = tpu.matmul %211, %215, %cst_86 {dimension_numbers = #tpu.dot_dimension_numbers<[1], [0], [0], [1], [0, 0, 1, 1], [], []>} : vector<32x32xf32>, vector<32x32xf32>, vector<32x32xf32> -> vector<32x32xf32>
    %217 = vector.extract_strided_slice %4 {offsets = [1, 0, 0], sizes = [1, 32, 32], strides = [1, 1, 1]} : vector<9x32x32xf32> to vector<1x32x32xf32>
    %218 = vector.shape_cast %217 : vector<1x32x32xf32> to vector<32x32xf32>
    %cst_87 = arith.constant dense<0.000000e+00> : vector<32x32xf32>
    %219 = tpu.matmul %211, %218, %cst_87 {dimension_numbers = #tpu.dot_dimension_numbers<[1], [0], [0], [1], [0, 0, 1, 1], [], []>} : vector<32x32xf32>, vector<32x32xf32>, vector<32x32xf32> -> vector<32x32xf32>
    %220 = vector.extract_strided_slice %4 {offsets = [2, 0, 0], sizes = [1, 32, 32], strides = [1, 1, 1]} : vector<9x32x32xf32> to vector<1x32x32xf32>
    %221 = vector.shape_cast %220 : vector<1x32x32xf32> to vector<32x32xf32>
    %cst_88 = arith.constant dense<0.000000e+00> : vector<32x32xf32>
    %222 = tpu.matmul %211, %221, %cst_88 {dimension_numbers = #tpu.dot_dimension_numbers<[1], [0], [0], [1], [0, 0, 1, 1], [], []>} : vector<32x32xf32>, vector<32x32xf32>, vector<32x32xf32> -> vector<32x32xf32>
    %223 = vector.extract_strided_slice %4 {offsets = [3, 0, 0], sizes = [1, 32, 32], strides = [1, 1, 1]} : vector<9x32x32xf32> to vector<1x32x32xf32>
    %224 = vector.shape_cast %223 : vector<1x32x32xf32> to vector<32x32xf32>
    %cst_89 = arith.constant dense<0.000000e+00> : vector<32x32xf32>
    %225 = tpu.matmul %211, %224, %cst_89 {dimension_numbers = #tpu.dot_dimension_numbers<[1], [0], [0], [1], [0, 0, 1, 1], [], []>} : vector<32x32xf32>, vector<32x32xf32>, vector<32x32xf32> -> vector<32x32xf32>
    %226 = vector.extract_strided_slice %4 {offsets = [4, 0, 0], sizes = [1, 32, 32], strides = [1, 1, 1]} : vector<9x32x32xf32> to vector<1x32x32xf32>
    %227 = vector.shape_cast %226 : vector<1x32x32xf32> to vector<32x32xf32>
    %cst_90 = arith.constant dense<0.000000e+00> : vector<32x32xf32>
    %228 = tpu.matmul %211, %227, %cst_90 {dimension_numbers = #tpu.dot_dimension_numbers<[1], [0], [0], [1], [0, 0, 1, 1], [], []>} : vector<32x32xf32>, vector<32x32xf32>, vector<32x32xf32> -> vector<32x32xf32>
    %229 = vector.extract_strided_slice %4 {offsets = [5, 0, 0], sizes = [1, 32, 32], strides = [1, 1, 1]} : vector<9x32x32xf32> to vector<1x32x32xf32>
    %230 = vector.shape_cast %229 : vector<1x32x32xf32> to vector<32x32xf32>
    %cst_91 = arith.constant dense<0.000000e+00> : vector<32x32xf32>
    %231 = tpu.matmul %211, %230, %cst_91 {dimension_numbers = #tpu.dot_dimension_numbers<[1], [0], [0], [1], [0, 0, 1, 1], [], []>} : vector<32x32xf32>, vector<32x32xf32>, vector<32x32xf32> -> vector<32x32xf32>
    %232 = vector.extract_strided_slice %4 {offsets = [6, 0, 0], sizes = [1, 32, 32], strides = [1, 1, 1]} : vector<9x32x32xf32> to vector<1x32x32xf32>
    %233 = vector.shape_cast %232 : vector<1x32x32xf32> to vector<32x32xf32>
    %cst_92 = arith.constant dense<0.000000e+00> : vector<32x32xf32>
    %234 = tpu.matmul %211, %233, %cst_92 {dimension_numbers = #tpu.dot_dimension_numbers<[1], [0], [0], [1], [0, 0, 1, 1], [], []>} : vector<32x32xf32>, vector<32x32xf32>, vector<32x32xf32> -> vector<32x32xf32>
    %235 = vector.extract_strided_slice %4 {offsets = [7, 0, 0], sizes = [1, 32, 32], strides = [1, 1, 1]} : vector<9x32x32xf32> to vector<1x32x32xf32>
    %236 = vector.shape_cast %235 : vector<1x32x32xf32> to vector<32x32xf32>
    %cst_93 = arith.constant dense<0.000000e+00> : vector<32x32xf32>
    %237 = tpu.matmul %211, %236, %cst_93 {dimension_numbers = #tpu.dot_dimension_numbers<[1], [0], [0], [1], [0, 0, 1, 1], [], []>} : vector<32x32xf32>, vector<32x32xf32>, vector<32x32xf32> -> vector<32x32xf32>
    %238 = vector.extract_strided_slice %4 {offsets = [8, 0, 0], sizes = [1, 32, 32], strides = [1, 1, 1]} : vector<9x32x32xf32> to vector<1x32x32xf32>
    %239 = vector.shape_cast %238 : vector<1x32x32xf32> to vector<32x32xf32>
    %cst_94 = arith.constant dense<0.000000e+00> : vector<32x32xf32>
    %240 = tpu.matmul %211, %239, %cst_94 {dimension_numbers = #tpu.dot_dimension_numbers<[1], [0], [0], [1], [0, 0, 1, 1], [], []>} : vector<32x32xf32>, vector<32x32xf32>, vector<32x32xf32> -> vector<32x32xf32>
    %241 = tpu.concatenate %216, %219, %222, %225, %228, %231, %234, %237, %240 in 0 : vector<32x32xf32>, vector<32x32xf32>, vector<32x32xf32>, vector<32x32xf32>, vector<32x32xf32>, vector<32x32xf32>, vector<32x32xf32>, vector<32x32xf32>, vector<32x32xf32> -> vector<288x32xf32>
    %cst_95 = arith.constant dense<0.000000e+00> : vector<32x32xf32>
    %242 = tpu.matmul %212, %241, %cst_95 {dimension_numbers = #tpu.dot_dimension_numbers<[1], [0], [0], [1], [0, 0, 1, 1], [], []>} : vector<32x288xf32>, vector<288x32xf32>, vector<32x32xf32> -> vector<32x32xf32>
    %243 = vector.broadcast %213 : vector<32x1xf32> to vector<32x32xf32>
    %244 = arith.addf %242, %243 : vector<32x32xf32>
    %245 = arith.mulf %244, %244 : vector<32x32xf32>
    %246 = tpu.concatenate %244, %245 in 0 : vector<32x32xf32>, vector<32x32xf32> -> vector<64x32xf32>
    %cst_96 = arith.constant dense<0.000000e+00> : vector<64x2xf32>
    %247 = tpu.matmul %246, %9, %cst_96 {dimension_numbers = #tpu.dot_dimension_numbers<[1], [0], [0], [1], [0, 0, 1, 1], [], []>} : vector<64x32xf32>, vector<32x2xf32>, vector<64x2xf32> -> vector<64x2xf32>
    %248 = vector.extract_strided_slice %247 {offsets = [0, 0], sizes = [32, 2], strides = [1, 1]} : vector<64x2xf32> to vector<32x2xf32>
    %249 = vector.extract_strided_slice %247 {offsets = [32, 0], sizes = [32, 2], strides = [1, 1]} : vector<64x2xf32> to vector<32x2xf32>
    %250 = arith.mulf %248, %248 : vector<32x2xf32>
    %251 = arith.subf %249, %250 : vector<32x2xf32>
    %cst_97 = arith.constant 9.99999974E-6 : f32
    %252 = vector.broadcast %cst_97 : f32 to vector<32x2xf32>
    %253 = arith.addf %251, %252 : vector<32x2xf32>
    %254 = math.rsqrt %253 : vector<32x2xf32>
    %255 = arith.mulf %254, %206 : vector<32x2xf32>
    %256 = arith.mulf %248, %255 : vector<32x2xf32>
    %257 = arith.subf %207, %256 : vector<32x2xf32>
    %258 = tpu.concatenate %255, %257 in 0 : vector<32x2xf32>, vector<32x2xf32> -> vector<64x2xf32>
    %cst_98 = arith.constant dense<0.000000e+00> : vector<64x32xf32>
    %259 = tpu.matmul %258, %10, %cst_98 {dimension_numbers = #tpu.dot_dimension_numbers<[1], [0], [0], [1], [0, 0, 1, 1], [], []>} : vector<64x2xf32>, vector<2x32xf32>, vector<64x32xf32> -> vector<64x32xf32>
    %260 = vector.extract_strided_slice %259 {offsets = [0, 0], sizes = [32, 32], strides = [1, 1]} : vector<64x32xf32> to vector<32x32xf32>
    %261 = arith.mulf %244, %260 : vector<32x32xf32>
    %262 = vector.extract_strided_slice %259 {offsets = [32, 0], sizes = [32, 32], strides = [1, 1]} : vector<64x32xf32> to vector<32x32xf32>
    %263 = arith.addf %261, %262 : vector<32x32xf32>
    %cst_99 = arith.constant 0.000000e+00 : f32
    %264 = vector.broadcast %cst_99 : f32 to vector<32x32xf32>
    %265 = arith.maximumf %263, %264 : vector<32x32xf32>
    %c0_100 = arith.constant 0 : index
    %c0_101 = arith.constant 0 : index
    %266 = vector.load %arg15[%c0_100, %c0_101] : memref<32x288xf32, #tpu.memory_space<vmem>>, vector<32x288xf32>
    %c0_102 = arith.constant 0 : index
    %c0_103 = arith.constant 0 : index
    %267 = vector.load %arg16[%c0_102, %c0_103] : memref<32x1xf32, #tpu.memory_space<vmem>>, vector<32x1xf32>
    %268 = vector.extract_strided_slice %4 {offsets = [0, 0, 0], sizes = [1, 32, 32], strides = [1, 1, 1]} : vector<9x32x32xf32> to vector<1x32x32xf32>
    %269 = vector.shape_cast %268 : vector<1x32x32xf32> to vector<32x32xf32>
    %cst_104 = arith.constant dense<0.000000e+00> : vector<32x32xf32>
    %270 = tpu.matmul %265, %269, %cst_104 {dimension_numbers = #tpu.dot_dimension_numbers<[1], [0], [0], [1], [0, 0, 1, 1], [], []>} : vector<32x32xf32>, vector<32x32xf32>, vector<32x32xf32> -> vector<32x32xf32>
    %271 = vector.extract_strided_slice %4 {offsets = [1, 0, 0], sizes = [1, 32, 32], strides = [1, 1, 1]} : vector<9x32x32xf32> to vector<1x32x32xf32>
    %272 = vector.shape_cast %271 : vector<1x32x32xf32> to vector<32x32xf32>
    %cst_105 = arith.constant dense<0.000000e+00> : vector<32x32xf32>
    %273 = tpu.matmul %265, %272, %cst_105 {dimension_numbers = #tpu.dot_dimension_numbers<[1], [0], [0], [1], [0, 0, 1, 1], [], []>} : vector<32x32xf32>, vector<32x32xf32>, vector<32x32xf32> -> vector<32x32xf32>
    %274 = vector.extract_strided_slice %4 {offsets = [2, 0, 0], sizes = [1, 32, 32], strides = [1, 1, 1]} : vector<9x32x32xf32> to vector<1x32x32xf32>
    %275 = vector.shape_cast %274 : vector<1x32x32xf32> to vector<32x32xf32>
    %cst_106 = arith.constant dense<0.000000e+00> : vector<32x32xf32>
    %276 = tpu.matmul %265, %275, %cst_106 {dimension_numbers = #tpu.dot_dimension_numbers<[1], [0], [0], [1], [0, 0, 1, 1], [], []>} : vector<32x32xf32>, vector<32x32xf32>, vector<32x32xf32> -> vector<32x32xf32>
    %277 = vector.extract_strided_slice %4 {offsets = [3, 0, 0], sizes = [1, 32, 32], strides = [1, 1, 1]} : vector<9x32x32xf32> to vector<1x32x32xf32>
    %278 = vector.shape_cast %277 : vector<1x32x32xf32> to vector<32x32xf32>
    %cst_107 = arith.constant dense<0.000000e+00> : vector<32x32xf32>
    %279 = tpu.matmul %265, %278, %cst_107 {dimension_numbers = #tpu.dot_dimension_numbers<[1], [0], [0], [1], [0, 0, 1, 1], [], []>} : vector<32x32xf32>, vector<32x32xf32>, vector<32x32xf32> -> vector<32x32xf32>
    %280 = vector.extract_strided_slice %4 {offsets = [4, 0, 0], sizes = [1, 32, 32], strides = [1, 1, 1]} : vector<9x32x32xf32> to vector<1x32x32xf32>
    %281 = vector.shape_cast %280 : vector<1x32x32xf32> to vector<32x32xf32>
    %cst_108 = arith.constant dense<0.000000e+00> : vector<32x32xf32>
    %282 = tpu.matmul %265, %281, %cst_108 {dimension_numbers = #tpu.dot_dimension_numbers<[1], [0], [0], [1], [0, 0, 1, 1], [], []>} : vector<32x32xf32>, vector<32x32xf32>, vector<32x32xf32> -> vector<32x32xf32>
    %283 = vector.extract_strided_slice %4 {offsets = [5, 0, 0], sizes = [1, 32, 32], strides = [1, 1, 1]} : vector<9x32x32xf32> to vector<1x32x32xf32>
    %284 = vector.shape_cast %283 : vector<1x32x32xf32> to vector<32x32xf32>
    %cst_109 = arith.constant dense<0.000000e+00> : vector<32x32xf32>
    %285 = tpu.matmul %265, %284, %cst_109 {dimension_numbers = #tpu.dot_dimension_numbers<[1], [0], [0], [1], [0, 0, 1, 1], [], []>} : vector<32x32xf32>, vector<32x32xf32>, vector<32x32xf32> -> vector<32x32xf32>
    %286 = vector.extract_strided_slice %4 {offsets = [6, 0, 0], sizes = [1, 32, 32], strides = [1, 1, 1]} : vector<9x32x32xf32> to vector<1x32x32xf32>
    %287 = vector.shape_cast %286 : vector<1x32x32xf32> to vector<32x32xf32>
    %cst_110 = arith.constant dense<0.000000e+00> : vector<32x32xf32>
    %288 = tpu.matmul %265, %287, %cst_110 {dimension_numbers = #tpu.dot_dimension_numbers<[1], [0], [0], [1], [0, 0, 1, 1], [], []>} : vector<32x32xf32>, vector<32x32xf32>, vector<32x32xf32> -> vector<32x32xf32>
    %289 = vector.extract_strided_slice %4 {offsets = [7, 0, 0], sizes = [1, 32, 32], strides = [1, 1, 1]} : vector<9x32x32xf32> to vector<1x32x32xf32>
    %290 = vector.shape_cast %289 : vector<1x32x32xf32> to vector<32x32xf32>
    %cst_111 = arith.constant dense<0.000000e+00> : vector<32x32xf32>
    %291 = tpu.matmul %265, %290, %cst_111 {dimension_numbers = #tpu.dot_dimension_numbers<[1], [0], [0], [1], [0, 0, 1, 1], [], []>} : vector<32x32xf32>, vector<32x32xf32>, vector<32x32xf32> -> vector<32x32xf32>
    %292 = vector.extract_strided_slice %4 {offsets = [8, 0, 0], sizes = [1, 32, 32], strides = [1, 1, 1]} : vector<9x32x32xf32> to vector<1x32x32xf32>
    %293 = vector.shape_cast %292 : vector<1x32x32xf32> to vector<32x32xf32>
    %cst_112 = arith.constant dense<0.000000e+00> : vector<32x32xf32>
    %294 = tpu.matmul %265, %293, %cst_112 {dimension_numbers = #tpu.dot_dimension_numbers<[1], [0], [0], [1], [0, 0, 1, 1], [], []>} : vector<32x32xf32>, vector<32x32xf32>, vector<32x32xf32> -> vector<32x32xf32>
    %295 = tpu.concatenate %270, %273, %276, %279, %282, %285, %288, %291, %294 in 0 : vector<32x32xf32>, vector<32x32xf32>, vector<32x32xf32>, vector<32x32xf32>, vector<32x32xf32>, vector<32x32xf32>, vector<32x32xf32>, vector<32x32xf32>, vector<32x32xf32> -> vector<288x32xf32>
    %cst_113 = arith.constant dense<0.000000e+00> : vector<32x32xf32>
    %296 = tpu.matmul %266, %295, %cst_113 {dimension_numbers = #tpu.dot_dimension_numbers<[1], [0], [0], [1], [0, 0, 1, 1], [], []>} : vector<32x288xf32>, vector<288x32xf32>, vector<32x32xf32> -> vector<32x32xf32>
    %297 = vector.broadcast %267 : vector<32x1xf32> to vector<32x32xf32>
    %298 = arith.addf %296, %297 : vector<32x32xf32>
    %299 = arith.mulf %298, %298 : vector<32x32xf32>
    %300 = tpu.concatenate %298, %299 in 0 : vector<32x32xf32>, vector<32x32xf32> -> vector<64x32xf32>
    %cst_114 = arith.constant dense<0.000000e+00> : vector<64x2xf32>
    %301 = tpu.matmul %300, %9, %cst_114 {dimension_numbers = #tpu.dot_dimension_numbers<[1], [0], [0], [1], [0, 0, 1, 1], [], []>} : vector<64x32xf32>, vector<32x2xf32>, vector<64x2xf32> -> vector<64x2xf32>
    %302 = vector.extract_strided_slice %301 {offsets = [0, 0], sizes = [32, 2], strides = [1, 1]} : vector<64x2xf32> to vector<32x2xf32>
    %303 = vector.extract_strided_slice %301 {offsets = [32, 0], sizes = [32, 2], strides = [1, 1]} : vector<64x2xf32> to vector<32x2xf32>
    %304 = arith.mulf %302, %302 : vector<32x2xf32>
    %305 = arith.subf %303, %304 : vector<32x2xf32>
    %cst_115 = arith.constant 9.99999974E-6 : f32
    %306 = vector.broadcast %cst_115 : f32 to vector<32x2xf32>
    %307 = arith.addf %305, %306 : vector<32x2xf32>
    %308 = math.rsqrt %307 : vector<32x2xf32>
    %309 = arith.mulf %308, %208 : vector<32x2xf32>
    %310 = arith.mulf %302, %309 : vector<32x2xf32>
    %311 = arith.subf %209, %310 : vector<32x2xf32>
    %312 = tpu.concatenate %309, %311 in 0 : vector<32x2xf32>, vector<32x2xf32> -> vector<64x2xf32>
    %cst_116 = arith.constant dense<0.000000e+00> : vector<64x32xf32>
    %313 = tpu.matmul %312, %10, %cst_116 {dimension_numbers = #tpu.dot_dimension_numbers<[1], [0], [0], [1], [0, 0, 1, 1], [], []>} : vector<64x2xf32>, vector<2x32xf32>, vector<64x32xf32> -> vector<64x32xf32>
    %314 = vector.extract_strided_slice %313 {offsets = [0, 0], sizes = [32, 32], strides = [1, 1]} : vector<64x32xf32> to vector<32x32xf32>
    %315 = arith.mulf %298, %314 : vector<32x32xf32>
    %316 = vector.extract_strided_slice %313 {offsets = [32, 0], sizes = [32, 32], strides = [1, 1]} : vector<64x32xf32> to vector<32x32xf32>
    %317 = arith.addf %315, %316 : vector<32x32xf32>
    %318 = arith.addf %317, %211 : vector<32x32xf32>
    %c0_117 = arith.constant 0 : index
    %c0_118 = arith.constant 0 : index
    %319 = vector.load %arg35[%c0_117, %c0_118] : memref<32x128xf32, #tpu.memory_space<vmem>>, vector<32x128xf32>
    %cst_119 = arith.constant dense<0.000000e+00> : vector<32x128xf32>
    %320 = tpu.matmul %318, %319, %cst_119 {dimension_numbers = #tpu.dot_dimension_numbers<[1], [0], [0], [1], [0, 0, 1, 1], [], []>} : vector<32x32xf32>, vector<32x128xf32>, vector<32x128xf32> -> vector<32x128xf32>
    %c0_120 = arith.constant 0 : index
    %c0_121 = arith.constant 0 : index
    %321 = vector.load %arg17[%c0_120, %c0_121] : memref<16x288xf32, #tpu.memory_space<vmem>>, vector<16x288xf32>
    %c0_122 = arith.constant 0 : index
    %c0_123 = arith.constant 0 : index
    %322 = vector.load %arg18[%c0_122, %c0_123] : memref<16x1xf32, #tpu.memory_space<vmem>>, vector<16x1xf32>
    %c9_i32_124 = arith.constant 9 : i32
    %323 = tpu.dynamic_rotate %320 by %c9_i32_124 dim 1 : vector<32x128xf32>, i32 -> vector<32x128xf32>
    %324 = vector.extract_strided_slice %3 {offsets = [0, 0], sizes = [1, 128], strides = [1, 1]} : vector<8x128xf32> to vector<1x128xf32>
    %325 = vector.broadcast %324 : vector<1x128xf32> to vector<32x128xf32>
    %326 = arith.mulf %323, %325 : vector<32x128xf32>
    %c8_i32_125 = arith.constant 8 : i32
    %327 = tpu.dynamic_rotate %320 by %c8_i32_125 dim 1 : vector<32x128xf32>, i32 -> vector<32x128xf32>
    %328 = vector.extract_strided_slice %3 {offsets = [1, 0], sizes = [1, 128], strides = [1, 1]} : vector<8x128xf32> to vector<1x128xf32>
    %329 = vector.broadcast %328 : vector<1x128xf32> to vector<32x128xf32>
    %330 = arith.mulf %327, %329 : vector<32x128xf32>
    %c7_i32_126 = arith.constant 7 : i32
    %331 = tpu.dynamic_rotate %320 by %c7_i32_126 dim 1 : vector<32x128xf32>, i32 -> vector<32x128xf32>
    %332 = vector.extract_strided_slice %3 {offsets = [2, 0], sizes = [1, 128], strides = [1, 1]} : vector<8x128xf32> to vector<1x128xf32>
    %333 = vector.broadcast %332 : vector<1x128xf32> to vector<32x128xf32>
    %334 = arith.mulf %331, %333 : vector<32x128xf32>
    %c1_i32_127 = arith.constant 1 : i32
    %335 = tpu.dynamic_rotate %320 by %c1_i32_127 dim 1 : vector<32x128xf32>, i32 -> vector<32x128xf32>
    %336 = vector.extract_strided_slice %3 {offsets = [3, 0], sizes = [1, 128], strides = [1, 1]} : vector<8x128xf32> to vector<1x128xf32>
    %337 = vector.broadcast %336 : vector<1x128xf32> to vector<32x128xf32>
    %338 = arith.mulf %335, %337 : vector<32x128xf32>
    %c127_i32_128 = arith.constant 127 : i32
    %339 = tpu.dynamic_rotate %320 by %c127_i32_128 dim 1 : vector<32x128xf32>, i32 -> vector<32x128xf32>
    %340 = vector.extract_strided_slice %3 {offsets = [4, 0], sizes = [1, 128], strides = [1, 1]} : vector<8x128xf32> to vector<1x128xf32>
    %341 = vector.broadcast %340 : vector<1x128xf32> to vector<32x128xf32>
    %342 = arith.mulf %339, %341 : vector<32x128xf32>
    %c121_i32_129 = arith.constant 121 : i32
    %343 = tpu.dynamic_rotate %320 by %c121_i32_129 dim 1 : vector<32x128xf32>, i32 -> vector<32x128xf32>
    %344 = vector.extract_strided_slice %3 {offsets = [5, 0], sizes = [1, 128], strides = [1, 1]} : vector<8x128xf32> to vector<1x128xf32>
    %345 = vector.broadcast %344 : vector<1x128xf32> to vector<32x128xf32>
    %346 = arith.mulf %343, %345 : vector<32x128xf32>
    %c120_i32_130 = arith.constant 120 : i32
    %347 = tpu.dynamic_rotate %320 by %c120_i32_130 dim 1 : vector<32x128xf32>, i32 -> vector<32x128xf32>
    %348 = vector.extract_strided_slice %3 {offsets = [6, 0], sizes = [1, 128], strides = [1, 1]} : vector<8x128xf32> to vector<1x128xf32>
    %349 = vector.broadcast %348 : vector<1x128xf32> to vector<32x128xf32>
    %350 = arith.mulf %347, %349 : vector<32x128xf32>
    %c119_i32_131 = arith.constant 119 : i32
    %351 = tpu.dynamic_rotate %320 by %c119_i32_131 dim 1 : vector<32x128xf32>, i32 -> vector<32x128xf32>
    %352 = vector.extract_strided_slice %3 {offsets = [7, 0], sizes = [1, 128], strides = [1, 1]} : vector<8x128xf32> to vector<1x128xf32>
    %353 = vector.broadcast %352 : vector<1x128xf32> to vector<32x128xf32>
    %354 = arith.mulf %351, %353 : vector<32x128xf32>
    %355 = tpu.concatenate %326, %330, %334, %338, %320, %342, %346, %350, %354 in 0 : vector<32x128xf32>, vector<32x128xf32>, vector<32x128xf32>, vector<32x128xf32>, vector<32x128xf32>, vector<32x128xf32>, vector<32x128xf32>, vector<32x128xf32>, vector<32x128xf32> -> vector<288x128xf32>
    %cst_132 = arith.constant dense<0.000000e+00> : vector<16x128xf32>
    %356 = tpu.matmul %321, %355, %cst_132 {dimension_numbers = #tpu.dot_dimension_numbers<[1], [0], [0], [1], [0, 0, 1, 1], [], []>} : vector<16x288xf32>, vector<288x128xf32>, vector<16x128xf32> -> vector<16x128xf32>
    %357 = vector.broadcast %322 : vector<16x1xf32> to vector<16x128xf32>
    %358 = arith.addf %356, %357 : vector<16x128xf32>
    %359 = arith.mulf %358, %358 : vector<16x128xf32>
    %360 = tpu.concatenate %358, %359 in 0 : vector<16x128xf32>, vector<16x128xf32> -> vector<32x128xf32>
    %cst_133 = arith.constant dense<0.000000e+00> : vector<32x2xf32>
    %361 = tpu.matmul %360, %7, %cst_133 {dimension_numbers = #tpu.dot_dimension_numbers<[1], [0], [0], [1], [0, 0, 1, 1], [], []>} : vector<32x128xf32>, vector<128x2xf32>, vector<32x2xf32> -> vector<32x2xf32>
    %362 = vector.extract_strided_slice %361 {offsets = [0, 0], sizes = [16, 2], strides = [1, 1]} : vector<32x2xf32> to vector<16x2xf32>
    %363 = vector.extract_strided_slice %361 {offsets = [16, 0], sizes = [16, 2], strides = [1, 1]} : vector<32x2xf32> to vector<16x2xf32>
    %364 = arith.mulf %362, %362 : vector<16x2xf32>
    %365 = arith.subf %363, %364 : vector<16x2xf32>
    %cst_134 = arith.constant 9.99999974E-6 : f32
    %366 = vector.broadcast %cst_134 : f32 to vector<16x2xf32>
    %367 = arith.addf %365, %366 : vector<16x2xf32>
    %368 = math.rsqrt %367 : vector<16x2xf32>
    %cst_135 = arith.constant 0.000000e+00 : f32
    %369 = vector.broadcast %cst_135 : f32 to vector<16x2xf32>
    %370 = arith.subf %369, %362 : vector<16x2xf32>
    %371 = arith.mulf %370, %368 : vector<16x2xf32>
    %372 = tpu.concatenate %368, %371 in 0 : vector<16x2xf32>, vector<16x2xf32> -> vector<32x2xf32>
    %cst_136 = arith.constant dense<0.000000e+00> : vector<32x128xf32>
    %373 = tpu.matmul %372, %8, %cst_136 {dimension_numbers = #tpu.dot_dimension_numbers<[1], [0], [0], [1], [0, 0, 1, 1], [], []>} : vector<32x2xf32>, vector<2x128xf32>, vector<32x128xf32> -> vector<32x128xf32>
    %374 = vector.extract_strided_slice %373 {offsets = [0, 0], sizes = [16, 128], strides = [1, 1]} : vector<32x128xf32> to vector<16x128xf32>
    %375 = arith.mulf %358, %374 : vector<16x128xf32>
    %376 = vector.extract_strided_slice %373 {offsets = [16, 0], sizes = [16, 128], strides = [1, 1]} : vector<32x128xf32> to vector<16x128xf32>
    %377 = arith.addf %375, %376 : vector<16x128xf32>
    %cst_137 = arith.constant 0.000000e+00 : f32
    %378 = vector.broadcast %cst_137 : f32 to vector<16x128xf32>
    %379 = arith.maximumf %377, %378 : vector<16x128xf32>
    %c0_138 = arith.constant 0 : index
    %c0_139 = arith.constant 0 : index
    %380 = vector.load %arg36[%c0_138, %c0_139] : memref<128x512xf32, #tpu.memory_space<vmem>>, vector<128x512xf32>
    %cst_140 = arith.constant dense<0.000000e+00> : vector<16x512xf32>
    %381 = tpu.matmul %379, %380, %cst_140 {dimension_numbers = #tpu.dot_dimension_numbers<[1], [0], [0], [1], [0, 0, 1, 1], [], []>} : vector<16x128xf32>, vector<128x512xf32>, vector<16x512xf32> -> vector<16x512xf32>
    %c0_141 = arith.constant 0 : index
    %c0_142 = arith.constant 0 : index
    %382 = vector.load %arg19[%c0_141, %c0_142] : memref<8x144xf32, #tpu.memory_space<vmem>>, vector<8x144xf32>
    %c0_143 = arith.constant 0 : index
    %c0_144 = arith.constant 0 : index
    %383 = vector.load %arg20[%c0_143, %c0_144] : memref<8x1xf32, #tpu.memory_space<vmem>>, vector<8x1xf32>
    %c17_i32_145 = arith.constant 17 : i32
    %384 = tpu.dynamic_rotate %381 by %c17_i32_145 dim 1 : vector<16x512xf32>, i32 -> vector<16x512xf32>
    %385 = vector.extract_strided_slice %2 {offsets = [0, 0], sizes = [1, 512], strides = [1, 1]} : vector<8x512xf32> to vector<1x512xf32>
    %386 = vector.broadcast %385 : vector<1x512xf32> to vector<16x512xf32>
    %387 = arith.mulf %384, %386 : vector<16x512xf32>
    %c16_i32_146 = arith.constant 16 : i32
    %388 = tpu.dynamic_rotate %381 by %c16_i32_146 dim 1 : vector<16x512xf32>, i32 -> vector<16x512xf32>
    %389 = vector.extract_strided_slice %2 {offsets = [1, 0], sizes = [1, 512], strides = [1, 1]} : vector<8x512xf32> to vector<1x512xf32>
    %390 = vector.broadcast %389 : vector<1x512xf32> to vector<16x512xf32>
    %391 = arith.mulf %388, %390 : vector<16x512xf32>
    %c15_i32_147 = arith.constant 15 : i32
    %392 = tpu.dynamic_rotate %381 by %c15_i32_147 dim 1 : vector<16x512xf32>, i32 -> vector<16x512xf32>
    %393 = vector.extract_strided_slice %2 {offsets = [2, 0], sizes = [1, 512], strides = [1, 1]} : vector<8x512xf32> to vector<1x512xf32>
    %394 = vector.broadcast %393 : vector<1x512xf32> to vector<16x512xf32>
    %395 = arith.mulf %392, %394 : vector<16x512xf32>
    %c1_i32_148 = arith.constant 1 : i32
    %396 = tpu.dynamic_rotate %381 by %c1_i32_148 dim 1 : vector<16x512xf32>, i32 -> vector<16x512xf32>
    %397 = vector.extract_strided_slice %2 {offsets = [3, 0], sizes = [1, 512], strides = [1, 1]} : vector<8x512xf32> to vector<1x512xf32>
    %398 = vector.broadcast %397 : vector<1x512xf32> to vector<16x512xf32>
    %399 = arith.mulf %396, %398 : vector<16x512xf32>
    %c511_i32_149 = arith.constant 511 : i32
    %400 = tpu.dynamic_rotate %381 by %c511_i32_149 dim 1 : vector<16x512xf32>, i32 -> vector<16x512xf32>
    %401 = vector.extract_strided_slice %2 {offsets = [4, 0], sizes = [1, 512], strides = [1, 1]} : vector<8x512xf32> to vector<1x512xf32>
    %402 = vector.broadcast %401 : vector<1x512xf32> to vector<16x512xf32>
    %403 = arith.mulf %400, %402 : vector<16x512xf32>
    %c497_i32_150 = arith.constant 497 : i32
    %404 = tpu.dynamic_rotate %381 by %c497_i32_150 dim 1 : vector<16x512xf32>, i32 -> vector<16x512xf32>
    %405 = vector.extract_strided_slice %2 {offsets = [5, 0], sizes = [1, 512], strides = [1, 1]} : vector<8x512xf32> to vector<1x512xf32>
    %406 = vector.broadcast %405 : vector<1x512xf32> to vector<16x512xf32>
    %407 = arith.mulf %404, %406 : vector<16x512xf32>
    %c496_i32_151 = arith.constant 496 : i32
    %408 = tpu.dynamic_rotate %381 by %c496_i32_151 dim 1 : vector<16x512xf32>, i32 -> vector<16x512xf32>
    %409 = vector.extract_strided_slice %2 {offsets = [6, 0], sizes = [1, 512], strides = [1, 1]} : vector<8x512xf32> to vector<1x512xf32>
    %410 = vector.broadcast %409 : vector<1x512xf32> to vector<16x512xf32>
    %411 = arith.mulf %408, %410 : vector<16x512xf32>
    %c495_i32_152 = arith.constant 495 : i32
    %412 = tpu.dynamic_rotate %381 by %c495_i32_152 dim 1 : vector<16x512xf32>, i32 -> vector<16x512xf32>
    %413 = vector.extract_strided_slice %2 {offsets = [7, 0], sizes = [1, 512], strides = [1, 1]} : vector<8x512xf32> to vector<1x512xf32>
    %414 = vector.broadcast %413 : vector<1x512xf32> to vector<16x512xf32>
    %415 = arith.mulf %412, %414 : vector<16x512xf32>
    %416 = tpu.concatenate %387, %391, %395, %399, %381, %403, %407, %411, %415 in 0 : vector<16x512xf32>, vector<16x512xf32>, vector<16x512xf32>, vector<16x512xf32>, vector<16x512xf32>, vector<16x512xf32>, vector<16x512xf32>, vector<16x512xf32>, vector<16x512xf32> -> vector<144x512xf32>
    %cst_153 = arith.constant dense<0.000000e+00> : vector<8x512xf32>
    %417 = tpu.matmul %382, %416, %cst_153 {dimension_numbers = #tpu.dot_dimension_numbers<[1], [0], [0], [1], [0, 0, 1, 1], [], []>} : vector<8x144xf32>, vector<144x512xf32>, vector<8x512xf32> -> vector<8x512xf32>
    %418 = vector.broadcast %383 : vector<8x1xf32> to vector<8x512xf32>
    %419 = arith.addf %417, %418 : vector<8x512xf32>
    %420 = arith.mulf %419, %419 : vector<8x512xf32>
    %421 = tpu.concatenate %419, %420 in 0 : vector<8x512xf32>, vector<8x512xf32> -> vector<16x512xf32>
    %cst_154 = arith.constant dense<0.000000e+00> : vector<16x2xf32>
    %422 = tpu.matmul %421, %5, %cst_154 {dimension_numbers = #tpu.dot_dimension_numbers<[1], [0], [0], [1], [0, 0, 1, 1], [], []>} : vector<16x512xf32>, vector<512x2xf32>, vector<16x2xf32> -> vector<16x2xf32>
    %423 = vector.extract_strided_slice %422 {offsets = [0, 0], sizes = [8, 2], strides = [1, 1]} : vector<16x2xf32> to vector<8x2xf32>
    %424 = vector.extract_strided_slice %422 {offsets = [8, 0], sizes = [8, 2], strides = [1, 1]} : vector<16x2xf32> to vector<8x2xf32>
    %425 = arith.mulf %423, %423 : vector<8x2xf32>
    %426 = arith.subf %424, %425 : vector<8x2xf32>
    %cst_155 = arith.constant 9.99999974E-6 : f32
    %427 = vector.broadcast %cst_155 : f32 to vector<8x2xf32>
    %428 = arith.addf %426, %427 : vector<8x2xf32>
    %429 = math.rsqrt %428 : vector<8x2xf32>
    %cst_156 = arith.constant 0.000000e+00 : f32
    %430 = vector.broadcast %cst_156 : f32 to vector<8x2xf32>
    %431 = arith.subf %430, %423 : vector<8x2xf32>
    %432 = arith.mulf %431, %429 : vector<8x2xf32>
    %433 = tpu.concatenate %429, %432 in 0 : vector<8x2xf32>, vector<8x2xf32> -> vector<16x2xf32>
    %cst_157 = arith.constant dense<0.000000e+00> : vector<16x512xf32>
    %434 = tpu.matmul %433, %6, %cst_157 {dimension_numbers = #tpu.dot_dimension_numbers<[1], [0], [0], [1], [0, 0, 1, 1], [], []>} : vector<16x2xf32>, vector<2x512xf32>, vector<16x512xf32> -> vector<16x512xf32>
    %435 = vector.extract_strided_slice %434 {offsets = [0, 0], sizes = [8, 512], strides = [1, 1]} : vector<16x512xf32> to vector<8x512xf32>
    %436 = arith.mulf %419, %435 : vector<8x512xf32>
    %437 = vector.extract_strided_slice %434 {offsets = [8, 0], sizes = [8, 512], strides = [1, 1]} : vector<16x512xf32> to vector<8x512xf32>
    %438 = arith.addf %436, %437 : vector<8x512xf32>
    %cst_158 = arith.constant 0.000000e+00 : f32
    %439 = vector.broadcast %cst_158 : f32 to vector<8x512xf32>
    %440 = arith.maximumf %438, %439 : vector<8x512xf32>
    %c0_159 = arith.constant 0 : index
    %c0_160 = arith.constant 0 : index
    %441 = vector.load %arg21[%c0_159, %c0_160] : memref<3x72xf32, #tpu.memory_space<vmem>>, vector<3x72xf32>
    %c0_161 = arith.constant 0 : index
    %c0_162 = arith.constant 0 : index
    %442 = vector.load %arg22[%c0_161, %c0_162] : memref<3x1xf32, #tpu.memory_space<vmem>>, vector<3x1xf32>
    %c17_i32_163 = arith.constant 17 : i32
    %443 = tpu.dynamic_rotate %440 by %c17_i32_163 dim 1 : vector<8x512xf32>, i32 -> vector<8x512xf32>
    %444 = vector.extract_strided_slice %2 {offsets = [0, 0], sizes = [1, 512], strides = [1, 1]} : vector<8x512xf32> to vector<1x512xf32>
    %445 = vector.broadcast %444 : vector<1x512xf32> to vector<8x512xf32>
    %446 = arith.mulf %443, %445 : vector<8x512xf32>
    %c16_i32_164 = arith.constant 16 : i32
    %447 = tpu.dynamic_rotate %440 by %c16_i32_164 dim 1 : vector<8x512xf32>, i32 -> vector<8x512xf32>
    %448 = vector.extract_strided_slice %2 {offsets = [1, 0], sizes = [1, 512], strides = [1, 1]} : vector<8x512xf32> to vector<1x512xf32>
    %449 = vector.broadcast %448 : vector<1x512xf32> to vector<8x512xf32>
    %450 = arith.mulf %447, %449 : vector<8x512xf32>
    %c15_i32_165 = arith.constant 15 : i32
    %451 = tpu.dynamic_rotate %440 by %c15_i32_165 dim 1 : vector<8x512xf32>, i32 -> vector<8x512xf32>
    %452 = vector.extract_strided_slice %2 {offsets = [2, 0], sizes = [1, 512], strides = [1, 1]} : vector<8x512xf32> to vector<1x512xf32>
    %453 = vector.broadcast %452 : vector<1x512xf32> to vector<8x512xf32>
    %454 = arith.mulf %451, %453 : vector<8x512xf32>
    %c1_i32_166 = arith.constant 1 : i32
    %455 = tpu.dynamic_rotate %440 by %c1_i32_166 dim 1 : vector<8x512xf32>, i32 -> vector<8x512xf32>
    %456 = vector.extract_strided_slice %2 {offsets = [3, 0], sizes = [1, 512], strides = [1, 1]} : vector<8x512xf32> to vector<1x512xf32>
    %457 = vector.broadcast %456 : vector<1x512xf32> to vector<8x512xf32>
    %458 = arith.mulf %455, %457 : vector<8x512xf32>
    %c511_i32_167 = arith.constant 511 : i32
    %459 = tpu.dynamic_rotate %440 by %c511_i32_167 dim 1 : vector<8x512xf32>, i32 -> vector<8x512xf32>
    %460 = vector.extract_strided_slice %2 {offsets = [4, 0], sizes = [1, 512], strides = [1, 1]} : vector<8x512xf32> to vector<1x512xf32>
    %461 = vector.broadcast %460 : vector<1x512xf32> to vector<8x512xf32>
    %462 = arith.mulf %459, %461 : vector<8x512xf32>
    %c497_i32_168 = arith.constant 497 : i32
    %463 = tpu.dynamic_rotate %440 by %c497_i32_168 dim 1 : vector<8x512xf32>, i32 -> vector<8x512xf32>
    %464 = vector.extract_strided_slice %2 {offsets = [5, 0], sizes = [1, 512], strides = [1, 1]} : vector<8x512xf32> to vector<1x512xf32>
    %465 = vector.broadcast %464 : vector<1x512xf32> to vector<8x512xf32>
    %466 = arith.mulf %463, %465 : vector<8x512xf32>
    %c496_i32_169 = arith.constant 496 : i32
    %467 = tpu.dynamic_rotate %440 by %c496_i32_169 dim 1 : vector<8x512xf32>, i32 -> vector<8x512xf32>
    %468 = vector.extract_strided_slice %2 {offsets = [6, 0], sizes = [1, 512], strides = [1, 1]} : vector<8x512xf32> to vector<1x512xf32>
    %469 = vector.broadcast %468 : vector<1x512xf32> to vector<8x512xf32>
    %470 = arith.mulf %467, %469 : vector<8x512xf32>
    %c495_i32_170 = arith.constant 495 : i32
    %471 = tpu.dynamic_rotate %440 by %c495_i32_170 dim 1 : vector<8x512xf32>, i32 -> vector<8x512xf32>
    %472 = vector.extract_strided_slice %2 {offsets = [7, 0], sizes = [1, 512], strides = [1, 1]} : vector<8x512xf32> to vector<1x512xf32>
    %473 = vector.broadcast %472 : vector<1x512xf32> to vector<8x512xf32>
    %474 = arith.mulf %471, %473 : vector<8x512xf32>
    %475 = tpu.concatenate %446, %450, %454, %458, %440, %462, %466, %470, %474 in 0 : vector<8x512xf32>, vector<8x512xf32>, vector<8x512xf32>, vector<8x512xf32>, vector<8x512xf32>, vector<8x512xf32>, vector<8x512xf32>, vector<8x512xf32>, vector<8x512xf32> -> vector<72x512xf32>
    %cst_171 = arith.constant dense<0.000000e+00> : vector<3x512xf32>
    %476 = tpu.matmul %441, %475, %cst_171 {dimension_numbers = #tpu.dot_dimension_numbers<[1], [0], [0], [1], [0, 0, 1, 1], [], []>} : vector<3x72xf32>, vector<72x512xf32>, vector<3x512xf32> -> vector<3x512xf32>
    %477 = vector.broadcast %442 : vector<3x1xf32> to vector<3x512xf32>
    %478 = arith.addf %476, %477 : vector<3x512xf32>
    %479 = math.tanh %478 : vector<3x512xf32>
    %c0_172 = arith.constant 0 : index
    %c0_173 = arith.constant 0 : index
    %c0_174 = arith.constant 0 : index
    %480 = vector.load %arg37[%c0_172, %c0_173, %c0_174] : memref<1x3x512xf32, #tpu.memory_space<vmem>>, vector<1x3x512xf32>
    %481 = vector.shape_cast %480 : vector<1x3x512xf32> to vector<3x512xf32>
    %482 = vector.shape_cast %479 : vector<3x512xf32> to vector<1x3x512xf32>
    tpu.vector_store %arg37[%c0_172, %c0_173, %c0_174], %482 {strides = array<i32>} : memref<1x3x512xf32, #tpu.memory_space<vmem>>, vector<1x3x512xf32>,
    return
  }
  func.func @transform_0(%arg0: i32) -> (i32, i32, i32) {
    %c0_i32 = arith.constant 0 : i32
    %c0_i32_0 = arith.constant 0 : i32
    %c0_i32_1 = arith.constant 0 : i32
    return %arg0, %c0_i32, %c0_i32_0 : i32, i32, i32
  }
  func.func @transform_1(%arg0: i32) -> (i32, i32, i32) {
    %c0_i32 = arith.constant 0 : i32
    %c0_i32_0 = arith.constant 0 : i32
    %c0_i32_1 = arith.constant 0 : i32
    return %arg0, %c0_i32, %c0_i32_0 : i32, i32, i32
  }
  func.func @transform_2(%arg0: i32) -> (i32, i32) {
    %c0_i32 = arith.constant 0 : i32
    %c0_i32_0 = arith.constant 0 : i32
    %c0_i32_1 = arith.constant 0 : i32
    return %c0_i32, %c0_i32_0 : i32, i32
  }
  func.func @transform_3(%arg0: i32) -> (i32, i32) {
    %c0_i32 = arith.constant 0 : i32
    %c0_i32_0 = arith.constant 0 : i32
    %c0_i32_1 = arith.constant 0 : i32
    return %c0_i32, %c0_i32_0 : i32, i32
  }
  func.func @transform_4(%arg0: i32) -> (i32, i32) {
    %c0_i32 = arith.constant 0 : i32
    %c0_i32_0 = arith.constant 0 : i32
    %c0_i32_1 = arith.constant 0 : i32
    return %c0_i32, %c0_i32_0 : i32, i32
  }
  func.func @transform_5(%arg0: i32) -> (i32, i32) {
    %c0_i32 = arith.constant 0 : i32
    %c0_i32_0 = arith.constant 0 : i32
    %c0_i32_1 = arith.constant 0 : i32
    return %c0_i32, %c0_i32_0 : i32, i32
  }
  func.func @transform_6(%arg0: i32) -> (i32, i32) {
    %c0_i32 = arith.constant 0 : i32
    %c0_i32_0 = arith.constant 0 : i32
    %c0_i32_1 = arith.constant 0 : i32
    return %c0_i32, %c0_i32_0 : i32, i32
  }
  func.func @transform_7(%arg0: i32) -> (i32, i32) {
    %c0_i32 = arith.constant 0 : i32
    %c0_i32_0 = arith.constant 0 : i32
    %c0_i32_1 = arith.constant 0 : i32
    return %c0_i32, %c0_i32_0 : i32, i32
  }
  func.func @transform_8(%arg0: i32) -> (i32, i32) {
    %c0_i32 = arith.constant 0 : i32
    %c0_i32_0 = arith.constant 0 : i32
    %c0_i32_1 = arith.constant 0 : i32
    return %c0_i32, %c0_i32_0 : i32, i32
  }
  func.func @transform_9(%arg0: i32) -> (i32, i32) {
    %c0_i32 = arith.constant 0 : i32
    %c0_i32_0 = arith.constant 0 : i32
    %c0_i32_1 = arith.constant 0 : i32
    return %c0_i32, %c0_i32_0 : i32, i32
  }
  func.func @transform_10(%arg0: i32) -> (i32, i32) {
    %c0_i32 = arith.constant 0 : i32
    %c0_i32_0 = arith.constant 0 : i32
    %c0_i32_1 = arith.constant 0 : i32
    return %c0_i32, %c0_i32_0 : i32, i32
  }
  func.func @transform_11(%arg0: i32) -> (i32, i32) {
    %c0_i32 = arith.constant 0 : i32
    %c0_i32_0 = arith.constant 0 : i32
    %c0_i32_1 = arith.constant 0 : i32
    return %c0_i32, %c0_i32_0 : i32, i32
  }
  func.func @transform_12(%arg0: i32) -> (i32, i32) {
    %c0_i32 = arith.constant 0 : i32
    %c0_i32_0 = arith.constant 0 : i32
    %c0_i32_1 = arith.constant 0 : i32
    return %c0_i32, %c0_i32_0 : i32, i32
  }
  func.func @transform_13(%arg0: i32) -> (i32, i32) {
    %c0_i32 = arith.constant 0 : i32
    %c0_i32_0 = arith.constant 0 : i32
    %c0_i32_1 = arith.constant 0 : i32
    return %c0_i32, %c0_i32_0 : i32, i32
  }
  func.func @transform_14(%arg0: i32) -> (i32, i32) {
    %c0_i32 = arith.constant 0 : i32
    %c0_i32_0 = arith.constant 0 : i32
    %c0_i32_1 = arith.constant 0 : i32
    return %c0_i32, %c0_i32_0 : i32, i32
  }
  func.func @transform_15(%arg0: i32) -> (i32, i32) {
    %c0_i32 = arith.constant 0 : i32
    %c0_i32_0 = arith.constant 0 : i32
    %c0_i32_1 = arith.constant 0 : i32
    return %c0_i32, %c0_i32_0 : i32, i32
  }
  func.func @transform_16(%arg0: i32) -> (i32, i32) {
    %c0_i32 = arith.constant 0 : i32
    %c0_i32_0 = arith.constant 0 : i32
    %c0_i32_1 = arith.constant 0 : i32
    return %c0_i32, %c0_i32_0 : i32, i32
  }
  func.func @transform_17(%arg0: i32) -> (i32, i32) {
    %c0_i32 = arith.constant 0 : i32
    %c0_i32_0 = arith.constant 0 : i32
    %c0_i32_1 = arith.constant 0 : i32
    return %c0_i32, %c0_i32_0 : i32, i32
  }
  func.func @transform_18(%arg0: i32) -> (i32, i32) {
    %c0_i32 = arith.constant 0 : i32
    %c0_i32_0 = arith.constant 0 : i32
    %c0_i32_1 = arith.constant 0 : i32
    return %c0_i32, %c0_i32_0 : i32, i32
  }
  func.func @transform_19(%arg0: i32) -> (i32, i32) {
    %c0_i32 = arith.constant 0 : i32
    %c0_i32_0 = arith.constant 0 : i32
    %c0_i32_1 = arith.constant 0 : i32
    return %c0_i32, %c0_i32_0 : i32, i32
  }
  func.func @transform_20(%arg0: i32) -> (i32, i32) {
    %c0_i32 = arith.constant 0 : i32
    %c0_i32_0 = arith.constant 0 : i32
    %c0_i32_1 = arith.constant 0 : i32
    return %c0_i32, %c0_i32_0 : i32, i32
  }
  func.func @transform_21(%arg0: i32) -> (i32, i32) {
    %c0_i32 = arith.constant 0 : i32
    %c0_i32_0 = arith.constant 0 : i32
    %c0_i32_1 = arith.constant 0 : i32
    return %c0_i32, %c0_i32_0 : i32, i32
  }
  func.func @transform_22(%arg0: i32) -> (i32, i32) {
    %c0_i32 = arith.constant 0 : i32
    %c0_i32_0 = arith.constant 0 : i32
    %c0_i32_1 = arith.constant 0 : i32
    return %c0_i32, %c0_i32_0 : i32, i32
  }
  func.func @transform_23(%arg0: i32) -> (i32, i32) {
    %c0_i32 = arith.constant 0 : i32
    %c0_i32_0 = arith.constant 0 : i32
    %c0_i32_1 = arith.constant 0 : i32
    return %c0_i32, %c0_i32_0 : i32, i32
  }
  func.func @transform_24(%arg0: i32) -> (i32, i32, i32) {
    %c0_i32 = arith.constant 0 : i32
    %c0_i32_0 = arith.constant 0 : i32
    %c0_i32_1 = arith.constant 0 : i32
    %c0_i32_2 = arith.constant 0 : i32
    return %c0_i32, %c0_i32_0, %c0_i32_1 : i32, i32, i32
  }
  func.func @transform_25(%arg0: i32) -> (i32, i32) {
    %c0_i32 = arith.constant 0 : i32
    %c0_i32_0 = arith.constant 0 : i32
    %c0_i32_1 = arith.constant 0 : i32
    return %c0_i32, %c0_i32_0 : i32, i32
  }
  func.func @transform_26(%arg0: i32) -> (i32, i32) {
    %c0_i32 = arith.constant 0 : i32
    %c0_i32_0 = arith.constant 0 : i32
    %c0_i32_1 = arith.constant 0 : i32
    return %c0_i32, %c0_i32_0 : i32, i32
  }
  func.func @transform_27(%arg0: i32) -> (i32, i32) {
    %c0_i32 = arith.constant 0 : i32
    %c0_i32_0 = arith.constant 0 : i32
    %c0_i32_1 = arith.constant 0 : i32
    return %c0_i32, %c0_i32_0 : i32, i32
  }
  func.func @transform_28(%arg0: i32) -> (i32, i32) {
    %c0_i32 = arith.constant 0 : i32
    %c0_i32_0 = arith.constant 0 : i32
    %c0_i32_1 = arith.constant 0 : i32
    return %c0_i32, %c0_i32_0 : i32, i32
  }
  func.func @transform_29(%arg0: i32) -> (i32, i32) {
    %c0_i32 = arith.constant 0 : i32
    %c0_i32_0 = arith.constant 0 : i32
    %c0_i32_1 = arith.constant 0 : i32
    return %c0_i32, %c0_i32_0 : i32, i32
  }
  func.func @transform_30(%arg0: i32) -> (i32, i32) {
    %c0_i32 = arith.constant 0 : i32
    %c0_i32_0 = arith.constant 0 : i32
    %c0_i32_1 = arith.constant 0 : i32
    return %c0_i32, %c0_i32_0 : i32, i32
  }
  func.func @transform_31(%arg0: i32) -> (i32, i32) {
    %c0_i32 = arith.constant 0 : i32
    %c0_i32_0 = arith.constant 0 : i32
    %c0_i32_1 = arith.constant 0 : i32
    return %c0_i32, %c0_i32_0 : i32, i32
  }
  func.func @transform_32(%arg0: i32) -> (i32, i32) {
    %c0_i32 = arith.constant 0 : i32
    %c0_i32_0 = arith.constant 0 : i32
    %c0_i32_1 = arith.constant 0 : i32
    return %c0_i32, %c0_i32_0 : i32, i32
  }
  func.func @transform_33(%arg0: i32) -> (i32, i32) {
    %c0_i32 = arith.constant 0 : i32
    %c0_i32_0 = arith.constant 0 : i32
    %c0_i32_1 = arith.constant 0 : i32
    return %c0_i32, %c0_i32_0 : i32, i32
  }
  func.func @transform_34(%arg0: i32) -> (i32, i32) {
    %c0_i32 = arith.constant 0 : i32
    %c0_i32_0 = arith.constant 0 : i32
    %c0_i32_1 = arith.constant 0 : i32
    return %c0_i32, %c0_i32_0 : i32, i32
  }
  func.func @transform_35(%arg0: i32) -> (i32, i32) {
    %c0_i32 = arith.constant 0 : i32
    %c0_i32_0 = arith.constant 0 : i32
    %c0_i32_1 = arith.constant 0 : i32
    return %c0_i32, %c0_i32_0 : i32, i32
  }
  func.func @transform_36(%arg0: i32) -> (i32, i32, i32) {
    %c0_i32 = arith.constant 0 : i32
    %c0_i32_0 = arith.constant 0 : i32
    %c0_i32_1 = arith.constant 0 : i32
    return %arg0, %c0_i32, %c0_i32_0 : i32, i32, i32
  }
}

</mosaic_0001>

<llo_original>
// kernel: forward.1
$region0: #{forward.1}
  #allocation0 [shape = 'u32[]', space=smem, size = 0x4, offset = 0x4, fixed_abs, tag = 'smem constant byte address 0x4 - core index']
  #allocation1 [shape = 'u32[144,128]{1,0:T(1,128)}', space=vmem, size = 0x12000, scoped, tag = 'internal scratch']
  %s0 = inlined_call_operand.smem [shape: u32[37], index: -1, kind: input, shape index: {}]
  %s1 = sld [smem:[%s0]]
  %s2 = scalar_lea.smem %s0, 1
  %s3 = sld [smem:[%s2]]
  %s4 = scalar_lea.smem %s0, 2
  %s5 = sld [smem:[%s4]]
  %s6 = scalar_lea.smem %s0, 3
  %s7 = sld [smem:[%s6]]
  %s8 = scalar_lea.smem %s0, 4
  %s9 = sld [smem:[%s8]]
  %s10 = scalar_lea.smem %s0, 5
  %s11 = sld [smem:[%s10]]
  %s12 = scalar_lea.smem %s0, 6
  %s13 = sld [smem:[%s12]]
  %s14 = scalar_lea.smem %s0, 7
  %s15 = sld [smem:[%s14]]
  %s16 = scalar_lea.smem %s0, 8
  %s17 = sld [smem:[%s16]]
  %s18 = scalar_lea.smem %s0, 9
  %s19 = sld [smem:[%s18]]
  %s20 = scalar_lea.smem %s0, 10
  %s21 = sld [smem:[%s20]]
  %s22 = scalar_lea.smem %s0, 11
  %s23 = sld [smem:[%s22]]
  %s24 = scalar_lea.smem %s0, 12
  %s25 = sld [smem:[%s24]]
  %s26 = scalar_lea.smem %s0, 13
  %s27 = sld [smem:[%s26]]
  %s28 = scalar_lea.smem %s0, 14
  %s29 = sld [smem:[%s28]]
  %s30 = scalar_lea.smem %s0, 15
  %s31 = sld [smem:[%s30]]
  %s32 = scalar_lea.smem %s0, 16
  %s33 = sld [smem:[%s32]]
  %s34 = scalar_lea.smem %s0, 17
  %s35 = sld [smem:[%s34]]
  %s36 = scalar_lea.smem %s0, 18
  %s37 = sld [smem:[%s36]]
  %s38 = scalar_lea.smem %s0, 19
  %s39 = sld [smem:[%s38]]
  %s40 = scalar_lea.smem %s0, 20
  %s41 = sld [smem:[%s40]]
  %s42 = scalar_lea.smem %s0, 21
  %s43 = sld [smem:[%s42]]
  %s44 = scalar_lea.smem %s0, 22
  %s45 = sld [smem:[%s44]]
  %s46 = scalar_lea.smem %s0, 23
  %s47 = sld [smem:[%s46]]
  %s48 = scalar_lea.smem %s0, 24
  %s49 = sld [smem:[%s48]]
  %s50 = scalar_lea.smem %s0, 25
  %s51 = sld [smem:[%s50]]
  %s52 = scalar_lea.smem %s0, 26
  %s53 = sld [smem:[%s52]]
  %s54 = scalar_lea.smem %s0, 27
  %s55 = sld [smem:[%s54]]
  %s56 = scalar_lea.smem %s0, 28
  %s57 = sld [smem:[%s56]]
  %s58 = scalar_lea.smem %s0, 29
  %s59 = sld [smem:[%s58]]
  %s60 = scalar_lea.smem %s0, 30
  %s61 = sld [smem:[%s60]]
  %s62 = scalar_lea.smem %s0, 31
  %s63 = sld [smem:[%s62]]
  %s64 = scalar_lea.smem %s0, 32
  %s65 = sld [smem:[%s64]]
  %s66 = scalar_lea.smem %s0, 33
  %s67 = sld [smem:[%s66]]
  %s68 = scalar_lea.smem %s0, 34
  %s69 = sld [smem:[%s68]]
  %s70 = scalar_lea.smem %s0, 35
  %s71 = sld [smem:[%s70]]
  %s72 = scalar_lea.smem %s0, 36
  %s73 = sld [smem:[%s72]]
  %s74 = sld [smem:[#allocation0]]
  $region245: #{forward.1} parent=0
    _
  %s76 = ssub.s32 1, %s74
  %s77 = scalar_select 0, %s76, %s74
  $region1: #{forward.1} parent=0
    #allocation2 [shape = 'u8[8192]{0}', space=vmem, size = 0x2000, scoped, tag = 'input window, operand 4, single buffered']
    #allocation3 [shape = 's32[2]{0}', space=sflag, size = 0x8, scoped, tag = 'scoped memory for forward.1']
    #allocation4 [shape = 'u8[32768]{0}', space=vmem, size = 0x8000, scoped, tag = 'input window, operand 6, single buffered']
    #allocation5 [shape = 's32[1]{0}', space=sflag, size = 0x4, scoped, tag = 'scoped memory for forward.1']
    #allocation6 [shape = 'u8[32768]{0}', space=vmem, size = 0x8000, scoped, tag = 'input window, operand 8, single buffered']
    #allocation7 [shape = 'u8[65536]{0}', space=vmem, size = 0x10000, scoped, tag = 'input window, operand 10, single buffered']
    #allocation8 [shape = 's32[1]{0}', space=sflag, size = 0x4, scoped, tag = 'scoped memory for forward.1']
    #allocation9 [shape = 'u8[49152]{0}', space=vmem, size = 0xc000, scoped, tag = 'input window, operand 14, single buffered']
    #allocation10 [shape = 'u8[24576]{0}', space=vmem, size = 0x6000, scoped, tag = 'input window, operand 16, single buffered']
    #allocation11 [shape = 's32[1]{0}', space=sflag, size = 0x4, scoped, tag = 'scoped memory for forward.1']
    #allocation12 [shape = 'u8[8192]{0}', space=vmem, size = 0x2000, scoped, tag = 'input window, operand 18, single buffered']
    #allocation13 [shape = 'u8[16384]{0}', space=vmem, size = 0x4000, scoped, tag = 'input window, operand 22, single buffered']
    #allocation14 [shape = 's32[1]{0}', space=sflag, size = 0x4, scoped, tag = 'scoped memory for forward.1']
    #allocation15 [shape = 'u8[4096]{0}', space=vmem, size = 0x1000, scoped, tag = 'input window, operand 23, single buffered']
    #allocation16 [shape = 'u8[147456]{0}', space=vmem, size = 0x24000, scoped, tag = 'input window, operand 24, single buffered']
    #allocation17 [shape = 's32[1]{0}', space=sflag, size = 0x4, scoped, tag = 'scoped memory for forward.1']
    #allocation18 [shape = 'u8[16384]{0}', space=vmem, size = 0x4000, scoped, tag = 'input window, operand 25, single buffered']
    #allocation19 [shape = 'u8[4096]{0}', space=vmem, size = 0x1000, scoped, tag = 'input window, operand 27, single buffered']
    #allocation20 [shape = 's32[1]{0}', space=sflag, size = 0x4, scoped, tag = 'scoped memory for forward.1']
    #allocation21 [shape = 'u8[65536]{0}', space=vmem, size = 0x10000, scoped, tag = 'input window, operand 28, single buffered']
    #allocation22 [shape = 'u8[16384]{0}', space=vmem, size = 0x4000, scoped, tag = 'input window, operand 30, single buffered']
    #allocation23 [shape = 's32[1]{0}', space=sflag, size = 0x4, scoped, tag = 'scoped memory for forward.1']
    #allocation24 [shape = 'u8[1024]{0}', space=vmem, size = 0x400, scoped, tag = 'input window, operand 31, single buffered']
    #allocation25 [shape = 'u8[65536]{0}', space=vmem, size = 0x10000, scoped, tag = 'input window, operand 33, single buffered']
    #allocation26 [shape = 's32[1]{0}', space=sflag, size = 0x4, scoped, tag = 'scoped memory for forward.1']
    #allocation27 [shape = 'u8[16384]{0}', space=vmem, size = 0x4000, scoped, tag = 'input window, operand 34, single buffered']
    %78 = vsyncpa [#allocation3], 0
    %79 = vsyncpa [#allocation5], 0
    %80 = vsyncpa [#allocation8], 0
    %81 = vsyncpa [#allocation11], 0
    %82 = vsyncpa [#allocation14], 0
    %83 = vsyncpa [#allocation17], 0
    %84 = vsyncpa [#allocation20], 0
    %85 = vsyncpa [#allocation23], 0
    %86 = vsyncpa [#allocation26], 0
    loop: start=0, step=1, limit=4
    $region2: #{forward.1} parent=1 // loop_pre_header
      _
    $region3: #{forward.1} parent=1 // loop_header
      %s88 = sphi 0, %s92
      %p89 = scmp.ge.s32.totalorder %s88, 4
      %s98 = sphi 0, %s100
      %s101 = sphi 0, %s98
      %s102 = sphi 0, %s101
      %s118 = sphi 0, %s102
      %s124 = sphi 0, %s126
      %s127 = sphi 0, %s124
      %s128 = sphi 0, %s127
      %s144 = sphi 0, %s128
      %s148 = sphi 0, %s148
      %s150 = sphi 0, %s148
      %s151 = sphi 0, %s150
      %s165 = sphi 0, %s151
      %s169 = sphi 0, %s169
      %s171 = sphi 0, %s169
      %s172 = sphi 0, %s171
      %s186 = sphi 0, %s172
      %s190 = sphi 0, %s190
      %s192 = sphi 0, %s190
      %s193 = sphi 0, %s192
      %s207 = sphi 0, %s193
      %s211 = sphi 0, %s211
      %s213 = sphi 0, %s211
      %s214 = sphi 0, %s213
      %s228 = sphi 0, %s214
      %s232 = sphi 0, %s232
      %s234 = sphi 0, %s232
      %s235 = sphi 0, %s234
      %s249 = sphi 0, %s235
      %s253 = sphi 0, %s253
      %s255 = sphi 0, %s253
      %s256 = sphi 0, %s255
      %s270 = sphi 0, %s256
      %s274 = sphi 0, %s274
      %s276 = sphi 0, %s274
      %s277 = sphi 0, %s276
      %s291 = sphi 0, %s277
      %s295 = sphi 0, %s295
      %s297 = sphi 0, %s295
      %s298 = sphi 0, %s297
      %s312 = sphi 0, %s298
      %s316 = sphi 0, %s316
      %s318 = sphi 0, %s316
      %s319 = sphi 0, %s318
      %s333 = sphi 0, %s319
      %s337 = sphi 0, %s337
      %s339 = sphi 0, %s337
      %s340 = sphi 0, %s339
      %s354 = sphi 0, %s340
      %s358 = sphi 0, %s358
      %s360 = sphi 0, %s358
      %s361 = sphi 0, %s360
      %s375 = sphi 0, %s361
      %s379 = sphi 0, %s379
      %s381 = sphi 0, %s379
      %s382 = sphi 0, %s381
      %s396 = sphi 0, %s382
      %s400 = sphi 0, %s400
      %s402 = sphi 0, %s400
      %s403 = sphi 0, %s402
      %s417 = sphi 0, %s403
      %s421 = sphi 0, %s421
      %s423 = sphi 0, %s421
      %s424 = sphi 0, %s423
      %s438 = sphi 0, %s424
      %s442 = sphi 0, %s442
      %s444 = sphi 0, %s442
      %s445 = sphi 0, %s444
      %s459 = sphi 0, %s445
      %s463 = sphi 0, %s463
      %s465 = sphi 0, %s463
      %s466 = sphi 0, %s465
      %s480 = sphi 0, %s466
      %s484 = sphi 0, %s484
      %s486 = sphi 0, %s484
      %s487 = sphi 0, %s486
      %s501 = sphi 0, %s487
      %s505 = sphi 0, %s505
      %s507 = sphi 0, %s505
      %s508 = sphi 0, %s507
      %s522 = sphi 0, %s508
      %s526 = sphi 0, %s526
      %s528 = sphi 0, %s526
      %s529 = sphi 0, %s528
      %s543 = sphi 0, %s529
      %s547 = sphi 0, %s547
      %s549 = sphi 0, %s547
      %s550 = sphi 0, %s549
      %s564 = sphi 0, %s550
      %s568 = sphi 0, %s568
      %s570 = sphi 0, %s568
      %s571 = sphi 0, %s570
      %s585 = sphi 0, %s571
      %s589 = sphi 0, %s589
      %s591 = sphi 0, %s589
      %s592 = sphi 0, %s591
      %s606 = sphi 0, %s592
      %s610 = sphi 0, %s610
      %s612 = sphi 0, %s610
      %s613 = sphi 0, %s612
      %s627 = sphi 0, %s613
      %s631 = sphi 0, %s631
      %s633 = sphi 0, %s631
      %s634 = sphi 0, %s633
      %s648 = sphi 0, %s634
      %s652 = sphi 0, %s652
      %s654 = sphi 0, %s652
      %s655 = sphi 0, %s654
      %s669 = sphi 0, %s655
      %s673 = sphi 0, %s673
      %s675 = sphi 0, %s673
      %s676 = sphi 0, %s675
      %s690 = sphi 0, %s676
      %s694 = sphi 0, %s694
      %s696 = sphi 0, %s694
      %s697 = sphi 0, %s696
      %s711 = sphi 0, %s697
      %s715 = sphi 0, %s715
      %s717 = sphi 0, %s715
      %s718 = sphi 0, %s717
      %s732 = sphi 0, %s718
      %s736 = sphi 0, %s736
      %s738 = sphi 0, %s736
      %s739 = sphi 0, %s738
      %s753 = sphi 0, %s739
      %s757 = sphi 0, %s757
      %s759 = sphi 0, %s757
      %s760 = sphi 0, %s759
      %s774 = sphi 0, %s760
      %s778 = sphi 0, %s778
      %s780 = sphi 0, %s778
      %s781 = sphi 0, %s780
      %s795 = sphi 0, %s781
      %s799 = sphi 0, %s799
      %s801 = sphi 0, %s799
      %s802 = sphi 0, %s801
      %s816 = sphi 0, %s802
      %s820 = sphi 0, %s820
      %s822 = sphi 0, %s820
      %s823 = sphi 0, %s822
      %s837 = sphi 0, %s823
      %s841 = sphi 0, %s841
      %s843 = sphi 0, %s841
      %s844 = sphi 0, %s843
      %s858 = sphi 0, %s844
      %s864 = sphi 0, %s866
      %s867 = sphi 0, %s864
      %s868 = sphi 0, %s867
      %s884 = sphi 0, %s868
    $region4: #{forward.1} parent=1 // loop_header_branch
      %91 = sbr.rel (%p89) target = $region8
    $region5: #{forward.1} parent=1 // loop_body
      %s93 = ssub.s32 %s88, 1
      %s94 = ssub.s32 %s88, 2
      %s95 = sadd.s32 %s88, 1
      %s96 = ssub.s32 %s88, %s95
      %p97 = scmp.eq.s32.totalorder %s96, 0
      %s99 = sadd.s32 %s98, 1
      %s100 = scalar_select %p97, %s98, %s99
      %p103 = pneg %p97
      %p104 = scmp.eq.s32.totalorder %s88, 1
      %p105 = por %p103, %p104
      %p106 = scmp.ne.s32.totalorder %s98, %s101
      %p107 = scmp.eq.s32.totalorder %s88, 0
      %p108 = por %p106, %p107
      %p109 = scmp.ne.s32.totalorder %s98, %s101
      %p110 = scmp.eq.s32.totalorder %s93, 1
      %p111 = por %p109, %p110
      %p112 = scmp.ne.s32.totalorder %s101, %s102
      %p113 = scmp.eq.s32.totalorder %s93, 0
      %p114 = por %p112, %p113
      %p115 = scmp.ne.s32.totalorder %s101, %s102
      %p116 = scmp.eq.s32.totalorder %s94, 1
      %p117 = por %p115, %p116
      %p119 = scmp.ne.s32.totalorder %s102, %s118
      %p120 = scmp.eq.s32.totalorder %s94, 0
      %p121 = por %p119, %p120
      %s122 = ssub.s32 %s88, %s95
      %p123 = scmp.eq.s32.totalorder %s122, 0
      %s125 = sadd.s32 %s124, 1
      %s126 = scalar_select %p123, %s124, %s125
      %p129 = pneg %p123
      %p130 = scmp.eq.s32.totalorder %s88, 1
      %p131 = por %p129, %p130
      %p132 = scmp.ne.s32.totalorder %s124, %s127
      %p133 = scmp.eq.s32.totalorder %s88, 0
      %p134 = por %p132, %p133
      %p135 = scmp.ne.s32.totalorder %s124, %s127
      %p136 = scmp.eq.s32.totalorder %s93, 1
      %p137 = por %p135, %p136
      %p138 = scmp.ne.s32.totalorder %s127, %s128
      %p139 = scmp.eq.s32.totalorder %s93, 0
      %p140 = por %p138, %p139
      %p141 = scmp.ne.s32.totalorder %s127, %s128
      %p142 = scmp.eq.s32.totalorder %s94, 1
      %p143 = por %p141, %p142
      %p145 = scmp.ne.s32.totalorder %s128, %s144
      %p146 = scmp.eq.s32.totalorder %s94, 0
      %p147 = por %p145, %p146
      %s149 = sadd.s32 %s148, 1
      %p152 = scmp.eq.s32.totalorder %s88, 1
      %p153 = scmp.ne.s32.totalorder %s148, %s150
      %p154 = scmp.eq.s32.totalorder %s88, 0
      %p155 = por %p153, %p154
      %p156 = scmp.ne.s32.totalorder %s148, %s150
      %p157 = scmp.eq.s32.totalorder %s93, 1
      %p158 = por %p156, %p157
      %p159 = scmp.ne.s32.totalorder %s150, %s151
      %p160 = scmp.eq.s32.totalorder %s93, 0
      %p161 = por %p159, %p160
      %p162 = scmp.ne.s32.totalorder %s150, %s151
      %p163 = scmp.eq.s32.totalorder %s94, 1
      %p164 = por %p162, %p163
      %p166 = scmp.ne.s32.totalorder %s151, %s165
      %p167 = scmp.eq.s32.totalorder %s94, 0
      %p168 = por %p166, %p167
      %s170 = sadd.s32 %s169, 1
      %p173 = scmp.eq.s32.totalorder %s88, 1
      %p174 = scmp.ne.s32.totalorder %s169, %s171
      %p175 = scmp.eq.s32.totalorder %s88, 0
      %p176 = por %p174, %p175
      %p177 = scmp.ne.s32.totalorder %s169, %s171
      %p178 = scmp.eq.s32.totalorder %s93, 1
      %p179 = por %p177, %p178
      %p180 = scmp.ne.s32.totalorder %s171, %s172
      %p181 = scmp.eq.s32.totalorder %s93, 0
      %p182 = por %p180, %p181
      %p183 = scmp.ne.s32.totalorder %s171, %s172
      %p184 = scmp.eq.s32.totalorder %s94, 1
      %p185 = por %p183, %p184
      %p187 = scmp.ne.s32.totalorder %s172, %s186
      %p188 = scmp.eq.s32.totalorder %s94, 0
      %p189 = por %p187, %p188
      %s191 = sadd.s32 %s190, 1
      %p194 = scmp.eq.s32.totalorder %s88, 1
      %p195 = scmp.ne.s32.totalorder %s190, %s192
      %p196 = scmp.eq.s32.totalorder %s88, 0
      %p197 = por %p195, %p196
      %p198 = scmp.ne.s32.totalorder %s190, %s192
      %p199 = scmp.eq.s32.totalorder %s93, 1
      %p200 = por %p198, %p199
      %p201 = scmp.ne.s32.totalorder %s192, %s193
      %p202 = scmp.eq.s32.totalorder %s93, 0
      %p203 = por %p201, %p202
      %p204 = scmp.ne.s32.totalorder %s192, %s193
      %p205 = scmp.eq.s32.totalorder %s94, 1
      %p206 = por %p204, %p205
      %p208 = scmp.ne.s32.totalorder %s193, %s207
      %p209 = scmp.eq.s32.totalorder %s94, 0
      %p210 = por %p208, %p209
      %s212 = sadd.s32 %s211, 1
      %p215 = scmp.eq.s32.totalorder %s88, 1
      %p216 = scmp.ne.s32.totalorder %s211, %s213
      %p217 = scmp.eq.s32.totalorder %s88, 0
      %p218 = por %p216, %p217
      %p219 = scmp.ne.s32.totalorder %s211, %s213
      %p220 = scmp.eq.s32.totalorder %s93, 1
      %p221 = por %p219, %p220
      %p222 = scmp.ne.s32.totalorder %s213, %s214
      %p223 = scmp.eq.s32.totalorder %s93, 0
      %p224 = por %p222, %p223
      %p225 = scmp.ne.s32.totalorder %s213, %s214
      %p226 = scmp.eq.s32.totalorder %s94, 1
      %p227 = por %p225, %p226
      %p229 = scmp.ne.s32.totalorder %s214, %s228
      %p230 = scmp.eq.s32.totalorder %s94, 0
      %p231 = por %p229, %p230
      %s233 = sadd.s32 %s232, 1
      %p236 = scmp.eq.s32.totalorder %s88, 1
      %p237 = scmp.ne.s32.totalorder %s232, %s234
      %p238 = scmp.eq.s32.totalorder %s88, 0
      %p239 = por %p237, %p238
      %p240 = scmp.ne.s32.totalorder %s232, %s234
      %p241 = scmp.eq.s32.totalorder %s93, 1
      %p242 = por %p240, %p241
      %p243 = scmp.ne.s32.totalorder %s234, %s235
      %p244 = scmp.eq.s32.totalorder %s93, 0
      %p245 = por %p243, %p244
      %p246 = scmp.ne.s32.totalorder %s234, %s235
      %p247 = scmp.eq.s32.totalorder %s94, 1
      %p248 = por %p246, %p247
      %p250 = scmp.ne.s32.totalorder %s235, %s249
      %p251 = scmp.eq.s32.totalorder %s94, 0
      %p252 = por %p250, %p251
      %s254 = sadd.s32 %s253, 1
      %p257 = scmp.eq.s32.totalorder %s88, 1
      %p258 = scmp.ne.s32.totalorder %s253, %s255
      %p259 = scmp.eq.s32.totalorder %s88, 0
      %p260 = por %p258, %p259
      %p261 = scmp.ne.s32.totalorder %s253, %s255
      %p262 = scmp.eq.s32.totalorder %s93, 1
      %p263 = por %p261, %p262
      %p264 = scmp.ne.s32.totalorder %s255, %s256
      %p265 = scmp.eq.s32.totalorder %s93, 0
      %p266 = por %p264, %p265
      %p267 = scmp.ne.s32.totalorder %s255, %s256
      %p268 = scmp.eq.s32.totalorder %s94, 1
      %p269 = por %p267, %p268
      %p271 = scmp.ne.s32.totalorder %s256, %s270
      %p272 = scmp.eq.s32.totalorder %s94, 0
      %p273 = por %p271, %p272
      %s275 = sadd.s32 %s274, 1
      %p278 = scmp.eq.s32.totalorder %s88, 1
      %p279 = scmp.ne.s32.totalorder %s274, %s276
      %p280 = scmp.eq.s32.totalorder %s88, 0
      %p281 = por %p279, %p280
      %p282 = scmp.ne.s32.totalorder %s274, %s276
      %p283 = scmp.eq.s32.totalorder %s93, 1
      %p284 = por %p282, %p283
      %p285 = scmp.ne.s32.totalorder %s276, %s277
      %p286 = scmp.eq.s32.totalorder %s93, 0
      %p287 = por %p285, %p286
      %p288 = scmp.ne.s32.totalorder %s276, %s277
      %p289 = scmp.eq.s32.totalorder %s94, 1
      %p290 = por %p288, %p289
      %p292 = scmp.ne.s32.totalorder %s277, %s291
      %p293 = scmp.eq.s32.totalorder %s94, 0
      %p294 = por %p292, %p293
      %s296 = sadd.s32 %s295, 1
      %p299 = scmp.eq.s32.totalorder %s88, 1
      %p300 = scmp.ne.s32.totalorder %s295, %s297
      %p301 = scmp.eq.s32.totalorder %s88, 0
      %p302 = por %p300, %p301
      %p303 = scmp.ne.s32.totalorder %s295, %s297
      %p304 = scmp.eq.s32.totalorder %s93, 1
      %p305 = por %p303, %p304
      %p306 = scmp.ne.s32.totalorder %s297, %s298
      %p307 = scmp.eq.s32.totalorder %s93, 0
      %p308 = por %p306, %p307
      %p309 = scmp.ne.s32.totalorder %s297, %s298
      %p310 = scmp.eq.s32.totalorder %s94, 1
      %p311 = por %p309, %p310
      %p313 = scmp.ne.s32.totalorder %s298, %s312
      %p314 = scmp.eq.s32.totalorder %s94, 0
      %p315 = por %p313, %p314
      %s317 = sadd.s32 %s316, 1
      %p320 = scmp.eq.s32.totalorder %s88, 1
      %p321 = scmp.ne.s32.totalorder %s316, %s318
      %p322 = scmp.eq.s32.totalorder %s88, 0
      %p323 = por %p321, %p322
      %p324 = scmp.ne.s32.totalorder %s316, %s318
      %p325 = scmp.eq.s32.totalorder %s93, 1
      %p326 = por %p324, %p325
      %p327 = scmp.ne.s32.totalorder %s318, %s319
      %p328 = scmp.eq.s32.totalorder %s93, 0
      %p329 = por %p327, %p328
      %p330 = scmp.ne.s32.totalorder %s318, %s319
      %p331 = scmp.eq.s32.totalorder %s94, 1
      %p332 = por %p330, %p331
      %p334 = scmp.ne.s32.totalorder %s319, %s333
      %p335 = scmp.eq.s32.totalorder %s94, 0
      %p336 = por %p334, %p335
      %s338 = sadd.s32 %s337, 1
      %p341 = scmp.eq.s32.totalorder %s88, 1
      %p342 = scmp.ne.s32.totalorder %s337, %s339
      %p343 = scmp.eq.s32.totalorder %s88, 0
      %p344 = por %p342, %p343
      %p345 = scmp.ne.s32.totalorder %s337, %s339
      %p346 = scmp.eq.s32.totalorder %s93, 1
      %p347 = por %p345, %p346
      %p348 = scmp.ne.s32.totalorder %s339, %s340
      %p349 = scmp.eq.s32.totalorder %s93, 0
      %p350 = por %p348, %p349
      %p351 = scmp.ne.s32.totalorder %s339, %s340
      %p352 = scmp.eq.s32.totalorder %s94, 1
      %p353 = por %p351, %p352
      %p355 = scmp.ne.s32.totalorder %s340, %s354
      %p356 = scmp.eq.s32.totalorder %s94, 0
      %p357 = por %p355, %p356
      %s359 = sadd.s32 %s358, 1
      %p362 = scmp.eq.s32.totalorder %s88, 1
      %p363 = scmp.ne.s32.totalorder %s358, %s360
      %p364 = scmp.eq.s32.totalorder %s88, 0
      %p365 = por %p363, %p364
      %p366 = scmp.ne.s32.totalorder %s358, %s360
      %p367 = scmp.eq.s32.totalorder %s93, 1
      %p368 = por %p366, %p367
      %p369 = scmp.ne.s32.totalorder %s360, %s361
      %p370 = scmp.eq.s32.totalorder %s93, 0
      %p371 = por %p369, %p370
      %p372 = scmp.ne.s32.totalorder %s360, %s361
      %p373 = scmp.eq.s32.totalorder %s94, 1
      %p374 = por %p372, %p373
      %p376 = scmp.ne.s32.totalorder %s361, %s375
      %p377 = scmp.eq.s32.totalorder %s94, 0
      %p378 = por %p376, %p377
      %s380 = sadd.s32 %s379, 1
      %p383 = scmp.eq.s32.totalorder %s88, 1
      %p384 = scmp.ne.s32.totalorder %s379, %s381
      %p385 = scmp.eq.s32.totalorder %s88, 0
      %p386 = por %p384, %p385
      %p387 = scmp.ne.s32.totalorder %s379, %s381
      %p388 = scmp.eq.s32.totalorder %s93, 1
      %p389 = por %p387, %p388
      %p390 = scmp.ne.s32.totalorder %s381, %s382
      %p391 = scmp.eq.s32.totalorder %s93, 0
      %p392 = por %p390, %p391
      %p393 = scmp.ne.s32.totalorder %s381, %s382
      %p394 = scmp.eq.s32.totalorder %s94, 1
      %p395 = por %p393, %p394
      %p397 = scmp.ne.s32.totalorder %s382, %s396
      %p398 = scmp.eq.s32.totalorder %s94, 0
      %p399 = por %p397, %p398
      %s401 = sadd.s32 %s400, 1
      %p404 = scmp.eq.s32.totalorder %s88, 1
      %p405 = scmp.ne.s32.totalorder %s400, %s402
      %p406 = scmp.eq.s32.totalorder %s88, 0
      %p407 = por %p405, %p406
      %p408 = scmp.ne.s32.totalorder %s400, %s402
      %p409 = scmp.eq.s32.totalorder %s93, 1
      %p410 = por %p408, %p409
      %p411 = scmp.ne.s32.totalorder %s402, %s403
      %p412 = scmp.eq.s32.totalorder %s93, 0
      %p413 = por %p411, %p412
      %p414 = scmp.ne.s32.totalorder %s402, %s403
      %p415 = scmp.eq.s32.totalorder %s94, 1
      %p416 = por %p414, %p415
      %p418 = scmp.ne.s32.totalorder %s403, %s417
      %p419 = scmp.eq.s32.totalorder %s94, 0
      %p420 = por %p418, %p419
      %s422 = sadd.s32 %s421, 1
      %p425 = scmp.eq.s32.totalorder %s88, 1
      %p426 = scmp.ne.s32.totalorder %s421, %s423
      %p427 = scmp.eq.s32.totalorder %s88, 0
      %p428 = por %p426, %p427
      %p429 = scmp.ne.s32.totalorder %s421, %s423
      %p430 = scmp.eq.s32.totalorder %s93, 1
      %p431 = por %p429, %p430
      %p432 = scmp.ne.s32.totalorder %s423, %s424
      %p433 = scmp.eq.s32.totalorder %s93, 0
      %p434 = por %p432, %p433
      %p435 = scmp.ne.s32.totalorder %s423, %s424
      %p436 = scmp.eq.s32.totalorder %s94, 1
      %p437 = por %p435, %p436
      %p439 = scmp.ne.s32.totalorder %s424, %s438
      %p440 = scmp.eq.s32.totalorder %s94, 0
      %p441 = por %p439, %p440
      %s443 = sadd.s32 %s442, 1
      %p446 = scmp.eq.s32.totalorder %s88, 1
      %p447 = scmp.ne.s32.totalorder %s442, %s444
      %p448 = scmp.eq.s32.totalorder %s88, 0
      %p449 = por %p447, %p448
      %p450 = scmp.ne.s32.totalorder %s442, %s444
      %p451 = scmp.eq.s32.totalorder %s93, 1
      %p452 = por %p450, %p451
      %p453 = scmp.ne.s32.totalorder %s444, %s445
      %p454 = scmp.eq.s32.totalorder %s93, 0
      %p455 = por %p453, %p454
      %p456 = scmp.ne.s32.totalorder %s444, %s445
      %p457 = scmp.eq.s32.totalorder %s94, 1
      %p458 = por %p456, %p457
      %p460 = scmp.ne.s32.totalorder %s445, %s459
      %p461 = scmp.eq.s32.totalorder %s94, 0
      %p462 = por %p460, %p461
      %s464 = sadd.s32 %s463, 1
      %p467 = scmp.eq.s32.totalorder %s88, 1
      %p468 = scmp.ne.s32.totalorder %s463, %s465
      %p469 = scmp.eq.s32.totalorder %s88, 0
      %p470 = por %p468, %p469
      %p471 = scmp.ne.s32.totalorder %s463, %s465
      %p472 = scmp.eq.s32.totalorder %s93, 1
      %p473 = por %p471, %p472
      %p474 = scmp.ne.s32.totalorder %s465, %s466
      %p475 = scmp.eq.s32.totalorder %s93, 0
      %p476 = por %p474, %p475
      %p477 = scmp.ne.s32.totalorder %s465, %s466
      %p478 = scmp.eq.s32.totalorder %s94, 1
      %p479 = por %p477, %p478
      %p481 = scmp.ne.s32.totalorder %s466, %s480
      %p482 = scmp.eq.s32.totalorder %s94, 0
      %p483 = por %p481, %p482
      %s485 = sadd.s32 %s484, 1
      %p488 = scmp.eq.s32.totalorder %s88, 1
      %p489 = scmp.ne.s32.totalorder %s484, %s486
      %p490 = scmp.eq.s32.totalorder %s88, 0
      %p491 = por %p489, %p490
      %p492 = scmp.ne.s32.totalorder %s484, %s486
      %p493 = scmp.eq.s32.totalorder %s93, 1
      %p494 = por %p492, %p493
      %p495 = scmp.ne.s32.totalorder %s486, %s487
      %p496 = scmp.eq.s32.totalorder %s93, 0
      %p497 = por %p495, %p496
      %p498 = scmp.ne.s32.totalorder %s486, %s487
      %p499 = scmp.eq.s32.totalorder %s94, 1
      %p500 = por %p498, %p499
      %p502 = scmp.ne.s32.totalorder %s487, %s501
      %p503 = scmp.eq.s32.totalorder %s94, 0
      %p504 = por %p502, %p503
      %s506 = sadd.s32 %s505, 1
      %p509 = scmp.eq.s32.totalorder %s88, 1
      %p510 = scmp.ne.s32.totalorder %s505, %s507
      %p511 = scmp.eq.s32.totalorder %s88, 0
      %p512 = por %p510, %p511
      %p513 = scmp.ne.s32.totalorder %s505, %s507
      %p514 = scmp.eq.s32.totalorder %s93, 1
      %p515 = por %p513, %p514
      %p516 = scmp.ne.s32.totalorder %s507, %s508
      %p517 = scmp.eq.s32.totalorder %s93, 0
      %p518 = por %p516, %p517
      %p519 = scmp.ne.s32.totalorder %s507, %s508
      %p520 = scmp.eq.s32.totalorder %s94, 1
      %p521 = por %p519, %p520
      %p523 = scmp.ne.s32.totalorder %s508, %s522
      %p524 = scmp.eq.s32.totalorder %s94, 0
      %p525 = por %p523, %p524
      %s527 = sadd.s32 %s526, 1
      %p530 = scmp.eq.s32.totalorder %s88, 1
      %p531 = scmp.ne.s32.totalorder %s526, %s528
      %p532 = scmp.eq.s32.totalorder %s88, 0
      %p533 = por %p531, %p532
      %p534 = scmp.ne.s32.totalorder %s526, %s528
      %p535 = scmp.eq.s32.totalorder %s93, 1
      %p536 = por %p534, %p535
      %p537 = scmp.ne.s32.totalorder %s528, %s529
      %p538 = scmp.eq.s32.totalorder %s93, 0
      %p539 = por %p537, %p538
      %p540 = scmp.ne.s32.totalorder %s528, %s529
      %p541 = scmp.eq.s32.totalorder %s94, 1
      %p542 = por %p540, %p541
      %p544 = scmp.ne.s32.totalorder %s529, %s543
      %p545 = scmp.eq.s32.totalorder %s94, 0
      %p546 = por %p544, %p545
      %s548 = sadd.s32 %s547, 1
      %p551 = scmp.eq.s32.totalorder %s88, 1
      %p552 = scmp.ne.s32.totalorder %s547, %s549
      %p553 = scmp.eq.s32.totalorder %s88, 0
      %p554 = por %p552, %p553
      %p555 = scmp.ne.s32.totalorder %s547, %s549
      %p556 = scmp.eq.s32.totalorder %s93, 1
      %p557 = por %p555, %p556
      %p558 = scmp.ne.s32.totalorder %s549, %s550
      %p559 = scmp.eq.s32.totalorder %s93, 0
      %p560 = por %p558, %p559
      %p561 = scmp.ne.s32.totalorder %s549, %s550
      %p562 = scmp.eq.s32.totalorder %s94, 1
      %p563 = por %p561, %p562
      %p565 = scmp.ne.s32.totalorder %s550, %s564
      %p566 = scmp.eq.s32.totalorder %s94, 0
      %p567 = por %p565, %p566
      %s569 = sadd.s32 %s568, 1
      %p572 = scmp.eq.s32.totalorder %s88, 1
      %p573 = scmp.ne.s32.totalorder %s568, %s570
      %p574 = scmp.eq.s32.totalorder %s88, 0
      %p575 = por %p573, %p574
      %p576 = scmp.ne.s32.totalorder %s568, %s570
      %p577 = scmp.eq.s32.totalorder %s93, 1
      %p578 = por %p576, %p577
      %p579 = scmp.ne.s32.totalorder %s570, %s571
      %p580 = scmp.eq.s32.totalorder %s93, 0
      %p581 = por %p579, %p580
      %p582 = scmp.ne.s32.totalorder %s570, %s571
      %p583 = scmp.eq.s32.totalorder %s94, 1
      %p584 = por %p582, %p583
      %p586 = scmp.ne.s32.totalorder %s571, %s585
      %p587 = scmp.eq.s32.totalorder %s94, 0
      %p588 = por %p586, %p587
      %s590 = sadd.s32 %s589, 1
      %p593 = scmp.eq.s32.totalorder %s88, 1
      %p594 = scmp.ne.s32.totalorder %s589, %s591
      %p595 = scmp.eq.s32.totalorder %s88, 0
      %p596 = por %p594, %p595
      %p597 = scmp.ne.s32.totalorder %s589, %s591
      %p598 = scmp.eq.s32.totalorder %s93, 1
      %p599 = por %p597, %p598
      %p600 = scmp.ne.s32.totalorder %s591, %s592
      %p601 = scmp.eq.s32.totalorder %s93, 0
      %p602 = por %p600, %p601
      %p603 = scmp.ne.s32.totalorder %s591, %s592
      %p604 = scmp.eq.s32.totalorder %s94, 1
      %p605 = por %p603, %p604
      %p607 = scmp.ne.s32.totalorder %s592, %s606
      %p608 = scmp.eq.s32.totalorder %s94, 0
      %p609 = por %p607, %p608
      %s611 = sadd.s32 %s610, 1
      %p614 = scmp.eq.s32.totalorder %s88, 1
      %p615 = scmp.ne.s32.totalorder %s610, %s612
      %p616 = scmp.eq.s32.totalorder %s88, 0
      %p617 = por %p615, %p616
      %p618 = scmp.ne.s32.totalorder %s610, %s612
      %p619 = scmp.eq.s32.totalorder %s93, 1
      %p620 = por %p618, %p619
      %p621 = scmp.ne.s32.totalorder %s612, %s613
      %p622 = scmp.eq.s32.totalorder %s93, 0
      %p623 = por %p621, %p622
      %p624 = scmp.ne.s32.totalorder %s612, %s613
      %p625 = scmp.eq.s32.totalorder %s94, 1
      %p626 = por %p624, %p625
      %p628 = scmp.ne.s32.totalorder %s613, %s627
      %p629 = scmp.eq.s32.totalorder %s94, 0
      %p630 = por %p628, %p629
      %s632 = sadd.s32 %s631, 1
      %p635 = scmp.eq.s32.totalorder %s88, 1
      %p636 = scmp.ne.s32.totalorder %s631, %s633
      %p637 = scmp.eq.s32.totalorder %s88, 0
      %p638 = por %p636, %p637
      %p639 = scmp.ne.s32.totalorder %s631, %s633
      %p640 = scmp.eq.s32.totalorder %s93, 1
      %p641 = por %p639, %p640
      %p642 = scmp.ne.s32.totalorder %s633, %s634
      %p643 = scmp.eq.s32.totalorder %s93, 0
      %p644 = por %p642, %p643
      %p645 = scmp.ne.s32.totalorder %s633, %s634
      %p646 = scmp.eq.s32.totalorder %s94, 1
      %p647 = por %p645, %p646
      %p649 = scmp.ne.s32.totalorder %s634, %s648
      %p650 = scmp.eq.s32.totalorder %s94, 0
      %p651 = por %p649, %p650
      %s653 = sadd.s32 %s652, 1
      %p656 = scmp.eq.s32.totalorder %s88, 1
      %p657 = scmp.ne.s32.totalorder %s652, %s654
      %p658 = scmp.eq.s32.totalorder %s88, 0
      %p659 = por %p657, %p658
      %p660 = scmp.ne.s32.totalorder %s652, %s654
      %p661 = scmp.eq.s32.totalorder %s93, 1
      %p662 = por %p660, %p661
      %p663 = scmp.ne.s32.totalorder %s654, %s655
      %p664 = scmp.eq.s32.totalorder %s93, 0
      %p665 = por %p663, %p664
      %p666 = scmp.ne.s32.totalorder %s654, %s655
      %p667 = scmp.eq.s32.totalorder %s94, 1
      %p668 = por %p666, %p667
      %p670 = scmp.ne.s32.totalorder %s655, %s669
      %p671 = scmp.eq.s32.totalorder %s94, 0
      %p672 = por %p670, %p671
      %s674 = sadd.s32 %s673, 1
      %p677 = scmp.eq.s32.totalorder %s88, 1
      %p678 = scmp.ne.s32.totalorder %s673, %s675
      %p679 = scmp.eq.s32.totalorder %s88, 0
      %p680 = por %p678, %p679
      %p681 = scmp.ne.s32.totalorder %s673, %s675
      %p682 = scmp.eq.s32.totalorder %s93, 1
      %p683 = por %p681, %p682
      %p684 = scmp.ne.s32.totalorder %s675, %s676
      %p685 = scmp.eq.s32.totalorder %s93, 0
      %p686 = por %p684, %p685
      %p687 = scmp.ne.s32.totalorder %s675, %s676
      %p688 = scmp.eq.s32.totalorder %s94, 1
      %p689 = por %p687, %p688
      %p691 = scmp.ne.s32.totalorder %s676, %s690
      %p692 = scmp.eq.s32.totalorder %s94, 0
      %p693 = por %p691, %p692
      %s695 = sadd.s32 %s694, 1
      %p698 = scmp.eq.s32.totalorder %s88, 1
      %p699 = scmp.ne.s32.totalorder %s694, %s696
      %p700 = scmp.eq.s32.totalorder %s88, 0
      %p701 = por %p699, %p700
      %p702 = scmp.ne.s32.totalorder %s694, %s696
      %p703 = scmp.eq.s32.totalorder %s93, 1
      %p704 = por %p702, %p703
      %p705 = scmp.ne.s32.totalorder %s696, %s697
      %p706 = scmp.eq.s32.totalorder %s93, 0
      %p707 = por %p705, %p706
      %p708 = scmp.ne.s32.totalorder %s696, %s697
      %p709 = scmp.eq.s32.totalorder %s94, 1
      %p710 = por %p708, %p709
      %p712 = scmp.ne.s32.totalorder %s697, %s711
      %p713 = scmp.eq.s32.totalorder %s94, 0
      %p714 = por %p712, %p713
      %s716 = sadd.s32 %s715, 1
      %p719 = scmp.eq.s32.totalorder %s88, 1
      %p720 = scmp.ne.s32.totalorder %s715, %s717
      %p721 = scmp.eq.s32.totalorder %s88, 0
      %p722 = por %p720, %p721
      %p723 = scmp.ne.s32.totalorder %s715, %s717
      %p724 = scmp.eq.s32.totalorder %s93, 1
      %p725 = por %p723, %p724
      %p726 = scmp.ne.s32.totalorder %s717, %s718
      %p727 = scmp.eq.s32.totalorder %s93, 0
      %p728 = por %p726, %p727
      %p729 = scmp.ne.s32.totalorder %s717, %s718
      %p730 = scmp.eq.s32.totalorder %s94, 1
      %p731 = por %p729, %p730
      %p733 = scmp.ne.s32.totalorder %s718, %s732
      %p734 = scmp.eq.s32.totalorder %s94, 0
      %p735 = por %p733, %p734
      %s737 = sadd.s32 %s736, 1
      %p740 = scmp.eq.s32.totalorder %s88, 1
      %p741 = scmp.ne.s32.totalorder %s736, %s738
      %p742 = scmp.eq.s32.totalorder %s88, 0
      %p743 = por %p741, %p742
      %p744 = scmp.ne.s32.totalorder %s736, %s738
      %p745 = scmp.eq.s32.totalorder %s93, 1
      %p746 = por %p744, %p745
      %p747 = scmp.ne.s32.totalorder %s738, %s739
      %p748 = scmp.eq.s32.totalorder %s93, 0
      %p749 = por %p747, %p748
      %p750 = scmp.ne.s32.totalorder %s738, %s739
      %p751 = scmp.eq.s32.totalorder %s94, 1
      %p752 = por %p750, %p751
      %p754 = scmp.ne.s32.totalorder %s739, %s753
      %p755 = scmp.eq.s32.totalorder %s94, 0
      %p756 = por %p754, %p755
      %s758 = sadd.s32 %s757, 1
      %p761 = scmp.eq.s32.totalorder %s88, 1
      %p762 = scmp.ne.s32.totalorder %s757, %s759
      %p763 = scmp.eq.s32.totalorder %s88, 0
      %p764 = por %p762, %p763
      %p765 = scmp.ne.s32.totalorder %s757, %s759
      %p766 = scmp.eq.s32.totalorder %s93, 1
      %p767 = por %p765, %p766
      %p768 = scmp.ne.s32.totalorder %s759, %s760
      %p769 = scmp.eq.s32.totalorder %s93, 0
      %p770 = por %p768, %p769
      %p771 = scmp.ne.s32.totalorder %s759, %s760
      %p772 = scmp.eq.s32.totalorder %s94, 1
      %p773 = por %p771, %p772
      %p775 = scmp.ne.s32.totalorder %s760, %s774
      %p776 = scmp.eq.s32.totalorder %s94, 0
      %p777 = por %p775, %p776
      %s779 = sadd.s32 %s778, 1
      %p782 = scmp.eq.s32.totalorder %s88, 1
      %p783 = scmp.ne.s32.totalorder %s778, %s780
      %p784 = scmp.eq.s32.totalorder %s88, 0
      %p785 = por %p783, %p784
      %p786 = scmp.ne.s32.totalorder %s778, %s780
      %p787 = scmp.eq.s32.totalorder %s93, 1
      %p788 = por %p786, %p787
      %p789 = scmp.ne.s32.totalorder %s780, %s781
      %p790 = scmp.eq.s32.totalorder %s93, 0
      %p791 = por %p789, %p790
      %p792 = scmp.ne.s32.totalorder %s780, %s781
      %p793 = scmp.eq.s32.totalorder %s94, 1
      %p794 = por %p792, %p793
      %p796 = scmp.ne.s32.totalorder %s781, %s795
      %p797 = scmp.eq.s32.totalorder %s94, 0
      %p798 = por %p796, %p797
      %s800 = sadd.s32 %s799, 1
      %p803 = scmp.eq.s32.totalorder %s88, 1
      %p804 = scmp.ne.s32.totalorder %s799, %s801
      %p805 = scmp.eq.s32.totalorder %s88, 0
      %p806 = por %p804, %p805
      %p807 = scmp.ne.s32.totalorder %s799, %s801
      %p808 = scmp.eq.s32.totalorder %s93, 1
      %p809 = por %p807, %p808
      %p810 = scmp.ne.s32.totalorder %s801, %s802
      %p811 = scmp.eq.s32.totalorder %s93, 0
      %p812 = por %p810, %p811
      %p813 = scmp.ne.s32.totalorder %s801, %s802
      %p814 = scmp.eq.s32.totalorder %s94, 1
      %p815 = por %p813, %p814
      %p817 = scmp.ne.s32.totalorder %s802, %s816
      %p818 = scmp.eq.s32.totalorder %s94, 0
      %p819 = por %p817, %p818
      %s821 = sadd.s32 %s820, 1
      %p824 = scmp.eq.s32.totalorder %s88, 1
      %p825 = scmp.ne.s32.totalorder %s820, %s822
      %p826 = scmp.eq.s32.totalorder %s88, 0
      %p827 = por %p825, %p826
      %p828 = scmp.ne.s32.totalorder %s820, %s822
      %p829 = scmp.eq.s32.totalorder %s93, 1
      %p830 = por %p828, %p829
      %p831 = scmp.ne.s32.totalorder %s822, %s823
      %p832 = scmp.eq.s32.totalorder %s93, 0
      %p833 = por %p831, %p832
      %p834 = scmp.ne.s32.totalorder %s822, %s823
      %p835 = scmp.eq.s32.totalorder %s94, 1
      %p836 = por %p834, %p835
      %p838 = scmp.ne.s32.totalorder %s823, %s837
      %p839 = scmp.eq.s32.totalorder %s94, 0
      %p840 = por %p838, %p839
      %s842 = sadd.s32 %s841, 1
      %p845 = scmp.eq.s32.totalorder %s88, 1
      %p846 = scmp.ne.s32.totalorder %s841, %s843
      %p847 = scmp.eq.s32.totalorder %s88, 0
      %p848 = por %p846, %p847
      %p849 = scmp.ne.s32.totalorder %s841, %s843
      %p850 = scmp.eq.s32.totalorder %s93, 1
      %p851 = por %p849, %p850
      %p852 = scmp.ne.s32.totalorder %s843, %s844
      %p853 = scmp.eq.s32.totalorder %s93, 0
      %p854 = por %p852, %p853
      %p855 = scmp.ne.s32.totalorder %s843, %s844
      %p856 = scmp.eq.s32.totalorder %s94, 1
      %p857 = por %p855, %p856
      %p859 = scmp.ne.s32.totalorder %s844, %s858
      %p860 = scmp.eq.s32.totalorder %s94, 0
      %p861 = por %p859, %p860
      %s862 = ssub.s32 %s88, %s95
      %p863 = scmp.eq.s32.totalorder %s862, 0
      %s865 = sadd.s32 %s864, 1
      %s866 = scalar_select %p863, %s864, %s865
      %p869 = pneg %p863
      %p870 = scmp.eq.s32.totalorder %s88, 1
      %p871 = por %p869, %p870
      %p872 = scmp.ne.s32.totalorder %s864, %s867
      %p873 = scmp.eq.s32.totalorder %s88, 0
      %p874 = por %p872, %p873
      %p875 = scmp.ne.s32.totalorder %s864, %s867
      %p876 = scmp.eq.s32.totalorder %s93, 1
      %p877 = por %p875, %p876
      %p878 = scmp.ne.s32.totalorder %s867, %s868
      %p879 = scmp.eq.s32.totalorder %s93, 0
      %p880 = por %p878, %p879
      %p881 = scmp.ne.s32.totalorder %s867, %s868
      %p882 = scmp.eq.s32.totalorder %s94, 1
      %p883 = por %p881, %p882
      %p885 = scmp.ne.s32.totalorder %s868, %s884
      %p886 = scmp.eq.s32.totalorder %s94, 0
      %p887 = por %p885, %p886
      %p888 = scmp.le.s32.totalorder 1, %s88
      %p889 = scmp.lt.s32.totalorder %s88, 3
      %p890 = pnand %p888, %p889
      %p891 = pneg %p890
      // Predicated region
      $region9: #{forward.1} parent=5 // pred_check
        _
      $region10: #{forward.1} parent=5 // pred_check_branch
        %893 = sbr.rel (%p890) target = $region12
      $region11: #{forward.1} parent=5 // pred_region
        %s894 = ssub.s32 %s88, 1
        // Predicated region
        $region13: #{forward.1} parent=11 // pred_check
          %p895 = pneg %p161
        $region14: #{forward.1} parent=11 // pred_check_branch
          %897 = sbr.rel (%p895) target = $region16
        $region15: #{forward.1} parent=11 // pred_region
          _
        $region16: #{forward.1} parent=11 // pred_fallthru
          _
        // Predicated region
        $region17: #{forward.1} parent=11 // pred_check
          %p898 = pneg %p182
        $region18: #{forward.1} parent=11 // pred_check_branch
          %900 = sbr.rel (%p898) target = $region20
        $region19: #{forward.1} parent=11 // pred_region
          _
        $region20: #{forward.1} parent=11 // pred_fallthru
          _
        // Predicated region
        $region21: #{forward.1} parent=11 // pred_check
          %p901 = pneg %p203
        $region22: #{forward.1} parent=11 // pred_check_branch
          %903 = sbr.rel (%p901) target = $region24
        $region23: #{forward.1} parent=11 // pred_region
          %s905 = ssub.s32 256, 256
          %906 = vsyncadd [#allocation3], %s905
          %s907 = sshll.u32 [#allocation2], 4
          %s908 = int_to_ptr.vmem [resolvable:$true] %s907
          %913 = dma.hbm_to_vmem [thread:$0]  %s9, 256, %s908, [#allocation3], 128, 128, 8
        $region24: #{forward.1} parent=11 // pred_fallthru
          _
        // Predicated region
        $region25: #{forward.1} parent=11 // pred_check
          %p914 = pneg %p224
        $region26: #{forward.1} parent=11 // pred_check_branch
          %916 = sbr.rel (%p914) target = $region28
        $region27: #{forward.1} parent=11 // pred_region
          _
        $region28: #{forward.1} parent=11 // pred_fallthru
          _
        // Predicated region
        $region29: #{forward.1} parent=11 // pred_check
          %p917 = pneg %p245
        $region30: #{forward.1} parent=11 // pred_check_branch
          %919 = sbr.rel (%p917) target = $region32
        $region31: #{forward.1} parent=11 // pred_region
          %s921 = ssub.s32 1024, 1024
          %922 = vsyncadd [#allocation5], %s921
          %s923 = sshll.u32 [#allocation4], 4
          %s924 = int_to_ptr.vmem [resolvable:$true] %s923
          %929 = dma.hbm_to_vmem [thread:$0]  %s13, 1024, %s924, [#allocation5], 256, 256, 16
        $region32: #{forward.1} parent=11 // pred_fallthru
          _
        // Predicated region
        $region33: #{forward.1} parent=11 // pred_check
          %p930 = pneg %p266
        $region34: #{forward.1} parent=11 // pred_check_branch
          %932 = sbr.rel (%p930) target = $region36
        $region35: #{forward.1} parent=11 // pred_region
          _
        $region36: #{forward.1} parent=11 // pred_fallthru
          _
        // Predicated region
        $region37: #{forward.1} parent=11 // pred_check
          %p933 = pneg %p287
        $region38: #{forward.1} parent=11 // pred_check_branch
          %935 = sbr.rel (%p933) target = $region40
        $region39: #{forward.1} parent=11 // pred_region
          %s937 = ssub.s32 1024, 1024
          %938 = vsyncadd [#allocation5], %s937
          %s939 = sshll.u32 [#allocation6], 4
          %s940 = int_to_ptr.vmem [resolvable:$true] %s939
          %945 = dma.hbm_to_vmem [thread:$0]  %s17, 1024, %s940, [#allocation5], 128, 128, 8
        $region40: #{forward.1} parent=11 // pred_fallthru
          _
        // Predicated region
        $region41: #{forward.1} parent=11 // pred_check
          %p946 = pneg %p308
        $region42: #{forward.1} parent=11 // pred_check_branch
          %948 = sbr.rel (%p946) target = $region44
        $region43: #{forward.1} parent=11 // pred_region
          _
        $region44: #{forward.1} parent=11 // pred_fallthru
          _
        // Predicated region
        $region45: #{forward.1} parent=11 // pred_check
          %p949 = pneg %p329
        $region46: #{forward.1} parent=11 // pred_check_branch
          %951 = sbr.rel (%p949) target = $region48
        $region47: #{forward.1} parent=11 // pred_region
          %s953 = ssub.s32 2048, 2048
          %954 = vsyncadd [#allocation8], %s953
          %s955 = sshll.u32 [#allocation7], 4
          %s956 = int_to_ptr.vmem [resolvable:$true] %s955
          %961 = dma.hbm_to_vmem [thread:$0]  %s21, 2048, %s956, [#allocation8], 128, 128, 8
        $region48: #{forward.1} parent=11 // pred_fallthru
          _
        // Predicated region
        $region49: #{forward.1} parent=11 // pred_check
          %p962 = pneg %p350
        $region50: #{forward.1} parent=11 // pred_check_branch
          %964 = sbr.rel (%p962) target = $region52
        $region51: #{forward.1} parent=11 // pred_region
          _
        $region52: #{forward.1} parent=11 // pred_fallthru
          _
        // Predicated region
        $region53: #{forward.1} parent=11 // pred_check
          %p965 = pneg %p371
        $region54: #{forward.1} parent=11 // pred_check_branch
          %967 = sbr.rel (%p965) target = $region56
        $region55: #{forward.1} parent=11 // pred_region
          _
        $region56: #{forward.1} parent=11 // pred_fallthru
          _
        // Predicated region
        $region57: #{forward.1} parent=11 // pred_check
          %p968 = pneg %p392
        $region58: #{forward.1} parent=11 // pred_check_branch
          %970 = sbr.rel (%p968) target = $region60
        $region59: #{forward.1} parent=11 // pred_region
          _
        $region60: #{forward.1} parent=11 // pred_fallthru
          _
        // Predicated region
        $region61: #{forward.1} parent=11 // pred_check
          %p971 = pneg %p413
        $region62: #{forward.1} parent=11 // pred_check_branch
          %973 = sbr.rel (%p971) target = $region64
        $region63: #{forward.1} parent=11 // pred_region
          %s975 = ssub.s32 1536, 1536
          %976 = vsyncadd [#allocation8], %s975
          %s977 = sshll.u32 [#allocation9], 4
          %s978 = int_to_ptr.vmem [resolvable:$true] %s977
          %983 = dma.hbm_to_vmem [thread:$0]  %s29, 1536, %s978, [#allocation8], 384, 384, 24
        $region64: #{forward.1} parent=11 // pred_fallthru
          _
        // Predicated region
        $region65: #{forward.1} parent=11 // pred_check
          %p984 = pneg %p434
        $region66: #{forward.1} parent=11 // pred_check_branch
          %986 = sbr.rel (%p984) target = $region68
        $region67: #{forward.1} parent=11 // pred_region
          _
        $region68: #{forward.1} parent=11 // pred_fallthru
          _
        // Predicated region
        $region69: #{forward.1} parent=11 // pred_check
          %p987 = pneg %p455
        $region70: #{forward.1} parent=11 // pred_check_branch
          %989 = sbr.rel (%p987) target = $region72
        $region71: #{forward.1} parent=11 // pred_region
          %s991 = ssub.s32 768, 768
          %992 = vsyncadd [#allocation11], %s991
          %s993 = sshll.u32 [#allocation10], 4
          %s994 = int_to_ptr.vmem [resolvable:$true] %s993
          %999 = dma.hbm_to_vmem [thread:$0]  %s33, 768, %s994, [#allocation11], 384, 384, 24
        $region72: #{forward.1} parent=11 // pred_fallthru
          _
        // Predicated region
        $region73: #{forward.1} parent=11 // pred_check
          %p1000 = pneg %p476
        $region74: #{forward.1} parent=11 // pred_check_branch
          %1002 = sbr.rel (%p1000) target = $region76
        $region75: #{forward.1} parent=11 // pred_region
          _
        $region76: #{forward.1} parent=11 // pred_fallthru
          _
        // Predicated region
        $region77: #{forward.1} parent=11 // pred_check
          %p1003 = pneg %p497
        $region78: #{forward.1} parent=11 // pred_check_branch
          %1005 = sbr.rel (%p1003) target = $region80
        $region79: #{forward.1} parent=11 // pred_region
          %s1007 = ssub.s32 256, 256
          %1008 = vsyncadd [#allocation11], %s1007
          %s1010 = sshll.u32 [#allocation12], 4
          %s1011 = int_to_ptr.vmem [resolvable:$true] %s1010
          %1013 = dma.hbm_to_vmem [thread:$0]  %s37, 256, %s1011, [#allocation11]
        $region80: #{forward.1} parent=11 // pred_fallthru
          _
        // Predicated region
        $region81: #{forward.1} parent=11 // pred_check
          %p1014 = pneg %p518
        $region82: #{forward.1} parent=11 // pred_check_branch
          %1016 = sbr.rel (%p1014) target = $region84
        $region83: #{forward.1} parent=11 // pred_region
          _
        $region84: #{forward.1} parent=11 // pred_fallthru
          _
        // Predicated region
        $region85: #{forward.1} parent=11 // pred_check
          %p1017 = pneg %p539
        $region86: #{forward.1} parent=11 // pred_check_branch
          %1019 = sbr.rel (%p1017) target = $region88
        $region87: #{forward.1} parent=11 // pred_region
          _
        $region88: #{forward.1} parent=11 // pred_fallthru
          _
        // Predicated region
        $region89: #{forward.1} parent=11 // pred_check
          %p1020 = pneg %p560
        $region90: #{forward.1} parent=11 // pred_check_branch
          %1022 = sbr.rel (%p1020) target = $region92
        $region91: #{forward.1} parent=11 // pred_region
          _
        $region92: #{forward.1} parent=11 // pred_fallthru
          _
        // Predicated region
        $region93: #{forward.1} parent=11 // pred_check
          %p1023 = pneg %p581
        $region94: #{forward.1} parent=11 // pred_check_branch
          %1025 = sbr.rel (%p1023) target = $region96
        $region95: #{forward.1} parent=11 // pred_region
          %s1027 = ssub.s32 512, 512
          %1028 = vsyncadd [#allocation14], %s1027
          %s1030 = sshll.u32 [#allocation13], 4
          %s1031 = int_to_ptr.vmem [resolvable:$true] %s1030
          %1033 = dma.hbm_to_vmem [thread:$0]  %s45, 512, %s1031, [#allocation14]
        $region96: #{forward.1} parent=11 // pred_fallthru
          _
        // Predicated region
        $region97: #{forward.1} parent=11 // pred_check
          %p1034 = pneg %p602
        $region98: #{forward.1} parent=11 // pred_check_branch
          %1036 = sbr.rel (%p1034) target = $region100
        $region99: #{forward.1} parent=11 // pred_region
          %s1038 = ssub.s32 128, 128
          %1039 = vsyncadd [#allocation14], %s1038
          %s1041 = sshll.u32 [#allocation15], 4
          %s1042 = int_to_ptr.vmem [resolvable:$true] %s1041
          %1044 = dma.hbm_to_vmem [thread:$0]  %s47, 128, %s1042, [#allocation14]
        $region100: #{forward.1} parent=11 // pred_fallthru
          _
        // Predicated region
        $region101: #{forward.1} parent=11 // pred_check
          %p1045 = pneg %p623
        $region102: #{forward.1} parent=11 // pred_check_branch
          %1047 = sbr.rel (%p1045) target = $region104
        $region103: #{forward.1} parent=11 // pred_region
          %s1049 = ssub.s32 4608, 4608
          %1050 = vsyncadd [#allocation17], %s1049
          %s1051 = sshll.u32 [#allocation16], 4
          %s1052 = int_to_ptr.vmem [resolvable:$true] %s1051
          %1057 = dma.hbm_to_vmem [thread:$0]  %s49, 4608, %s1052, [#allocation17], 128, 128, 8
        $region104: #{forward.1} parent=11 // pred_fallthru
          _
        // Predicated region
        $region105: #{forward.1} parent=11 // pred_check
          %p1058 = pneg %p644
        $region106: #{forward.1} parent=11 // pred_check_branch
          %1060 = sbr.rel (%p1058) target = $region108
        $region107: #{forward.1} parent=11 // pred_region
          %s1062 = ssub.s32 512, 512
          %1063 = vsyncadd [#allocation17], %s1062
          %s1064 = sshll.u32 [#allocation18], 4
          %s1065 = int_to_ptr.vmem [resolvable:$true] %s1064
          %1070 = dma.hbm_to_vmem [thread:$0]  %s51, 512, %s1065, [#allocation17], 128, 128, 8
        $region108: #{forward.1} parent=11 // pred_fallthru
          _
        // Predicated region
        $region109: #{forward.1} parent=11 // pred_check
          %p1071 = pneg %p665
        $region110: #{forward.1} parent=11 // pred_check_branch
          %1073 = sbr.rel (%p1071) target = $region112
        $region111: #{forward.1} parent=11 // pred_region
          _
        $region112: #{forward.1} parent=11 // pred_fallthru
          _
        // Predicated region
        $region113: #{forward.1} parent=11 // pred_check
          %p1074 = pneg %p686
        $region114: #{forward.1} parent=11 // pred_check_branch
          %1076 = sbr.rel (%p1074) target = $region116
        $region115: #{forward.1} parent=11 // pred_region
          %s1078 = ssub.s32 128, 128
          %1079 = vsyncadd [#allocation20], %s1078
          %s1081 = sshll.u32 [#allocation19], 4
          %s1082 = int_to_ptr.vmem [resolvable:$true] %s1081
          %1084 = dma.hbm_to_vmem [thread:$0]  %s55, 128, %s1082, [#allocation20]
        $region116: #{forward.1} parent=11 // pred_fallthru
          _
        // Predicated region
        $region117: #{forward.1} parent=11 // pred_check
          %p1085 = pneg %p707
        $region118: #{forward.1} parent=11 // pred_check_branch
          %1087 = sbr.rel (%p1085) target = $region120
        $region119: #{forward.1} parent=11 // pred_region
          %s1089 = ssub.s32 2048, 2048
          %1090 = vsyncadd [#allocation20], %s1089
          %s1091 = sshll.u32 [#allocation21], 4
          %s1092 = int_to_ptr.vmem [resolvable:$true] %s1091
          %1097 = dma.hbm_to_vmem [thread:$0]  %s57, 2048, %s1092, [#allocation20], 128, 128, 8
        $region120: #{forward.1} parent=11 // pred_fallthru
          _
        // Predicated region
        $region121: #{forward.1} parent=11 // pred_check
          %p1098 = pneg %p728
        $region122: #{forward.1} parent=11 // pred_check_branch
          %1100 = sbr.rel (%p1098) target = $region124
        $region123: #{forward.1} parent=11 // pred_region
          _
        $region124: #{forward.1} parent=11 // pred_fallthru
          _
        // Predicated region
        $region125: #{forward.1} parent=11 // pred_check
          %p1101 = pneg %p749
        $region126: #{forward.1} parent=11 // pred_check_branch
          %1103 = sbr.rel (%p1101) target = $region128
        $region127: #{forward.1} parent=11 // pred_region
          %s1105 = ssub.s32 512, 512
          %1106 = vsyncadd [#allocation23], %s1105
          %s1107 = sshll.u32 [#allocation22], 4
          %s1108 = int_to_ptr.vmem [resolvable:$true] %s1107
          %1113 = dma.hbm_to_vmem [thread:$0]  %s61, 512, %s1108, [#allocation23], 128, 128, 8
        $region128: #{forward.1} parent=11 // pred_fallthru
          _
        // Predicated region
        $region129: #{forward.1} parent=11 // pred_check
          %p1114 = pneg %p770
        $region130: #{forward.1} parent=11 // pred_check_branch
          %1116 = sbr.rel (%p1114) target = $region132
        $region131: #{forward.1} parent=11 // pred_region
          %s1118 = ssub.s32 32, 32
          %1119 = vsyncadd [#allocation23], %s1118
          %s1121 = sshll.u32 [#allocation24], 4
          %s1122 = int_to_ptr.vmem [resolvable:$true] %s1121
          %1124 = dma.hbm_to_vmem [thread:$0]  %s63, 32, %s1122, [#allocation23]
        $region132: #{forward.1} parent=11 // pred_fallthru
          _
        // Predicated region
        $region133: #{forward.1} parent=11 // pred_check
          %p1125 = pneg %p791
        $region134: #{forward.1} parent=11 // pred_check_branch
          %1127 = sbr.rel (%p1125) target = $region136
        $region135: #{forward.1} parent=11 // pred_region
          _
        $region136: #{forward.1} parent=11 // pred_fallthru
          _
        // Predicated region
        $region137: #{forward.1} parent=11 // pred_check
          %p1128 = pneg %p812
        $region138: #{forward.1} parent=11 // pred_check_branch
          %1130 = sbr.rel (%p1128) target = $region140
        $region139: #{forward.1} parent=11 // pred_region
          %s1132 = ssub.s32 2048, 2048
          %1133 = vsyncadd [#allocation26], %s1132
          %s1134 = sshll.u32 [#allocation25], 4
          %s1135 = int_to_ptr.vmem [resolvable:$true] %s1134
          %1140 = dma.hbm_to_vmem [thread:$0]  %s67, 2048, %s1135, [#allocation26], 128, 128, 8
        $region140: #{forward.1} parent=11 // pred_fallthru
          _
        // Predicated region
        $region141: #{forward.1} parent=11 // pred_check
          %p1141 = pneg %p833
        $region142: #{forward.1} parent=11 // pred_check_branch
          %1143 = sbr.rel (%p1141) target = $region144
        $region143: #{forward.1} parent=11 // pred_region
          %s1145 = ssub.s32 512, 512
          %1146 = vsyncadd [#allocation26], %s1145
          %s1147 = sshll.u32 [#allocation27], 4
          %s1148 = int_to_ptr.vmem [resolvable:$true] %s1147
          %1153 = dma.hbm_to_vmem [thread:$0]  %s69, 512, %s1148, [#allocation26], 128, 128, 8
        $region144: #{forward.1} parent=11 // pred_fallthru
          _
        // Predicated region
        $region145: #{forward.1} parent=11 // pred_check
          %p1154 = pneg %p854
        $region146: #{forward.1} parent=11 // pred_check_branch
          %1156 = sbr.rel (%p1154) target = $region148
        $region147: #{forward.1} parent=11 // pred_region
          _
        $region148: #{forward.1} parent=11 // pred_fallthru
          _
      $region12: #{forward.1} parent=5 // pred_fallthru
        _
      %p1157 = scmp.lt.s32.totalorder %s88, 2
      // Predicated region
      $region149: #{forward.1} parent=5 // pred_check
        %p1158 = pneg %p1157
      $region150: #{forward.1} parent=5 // pred_check_branch
        %1160 = sbr.rel (%p1158) target = $region152
      $region151: #{forward.1} parent=5 // pred_region
        // Predicated region
        $region153: #{forward.1} parent=151 // pred_check
          %p1161 = pneg %p108
        $region154: #{forward.1} parent=151 // pred_check_branch
          %1163 = sbr.rel (%p1161) target = $region156
        $region155: #{forward.1} parent=151 // pred_region
          %p1164 = scmp.lt.s32.totalorder %s88, 1
          %s1165 = scalar_select %p1164, %s88, 1
          %s1166 = smul.addr %s1165, 4
          %s1167 = smul.addr %s1166, 8
          %s1168 = scalar_lea.vmem %s1, %s1167
        $region156: #{forward.1} parent=151 // pred_fallthru
          _
        // Predicated region
        $region157: #{forward.1} parent=151 // pred_check
          %p1169 = pneg %p134
        $region158: #{forward.1} parent=151 // pred_check_branch
          %1171 = sbr.rel (%p1169) target = $region160
        $region159: #{forward.1} parent=151 // pred_region
          %p1172 = scmp.lt.s32.totalorder %s88, 1
          %s1173 = scalar_select %p1172, %s88, 1
          %s1174 = smul.addr %s1173, 2
          %s1175 = smul.addr %s1174, 8
          %s1176 = scalar_lea.vmem %s3, %s1175
        $region160: #{forward.1} parent=151 // pred_fallthru
          _
      $region152: #{forward.1} parent=5 // pred_fallthru
        _
      %p1177 = scmp.le.s32.totalorder 1, %s88
      %p1178 = scmp.lt.s32.totalorder %s88, 3
      %p1179 = pnand %p1177, %p1178
      %p1180 = pneg %p1179
      // Predicated region
      $region161: #{forward.1} parent=5 // pred_check
        _
      $region162: #{forward.1} parent=5 // pred_check_branch
        %1182 = sbr.rel (%p1179) target = $region164
      $region163: #{forward.1} parent=5 // pred_region
        %s1183 = ssub.s32 %s88, 1
        // Predicated region
        $region165: #{forward.1} parent=163 // pred_check
          %p1184 = pneg %p203
        $region166: #{forward.1} parent=163 // pred_check_branch
          %1186 = sbr.rel (%p1184) target = $region168
        $region167: #{forward.1} parent=163 // pred_region
          %1187 = dma.done [#allocation3], 256
        $region168: #{forward.1} parent=163 // pred_fallthru
          _
        // Predicated region
        $region169: #{forward.1} parent=163 // pred_check
          %p1188 = pneg %p245
        $region170: #{forward.1} parent=163 // pred_check_branch
          %1190 = sbr.rel (%p1188) target = $region172
        $region171: #{forward.1} parent=163 // pred_region
          %1191 = dma.done [#allocation5], 1024
        $region172: #{forward.1} parent=163 // pred_fallthru
          _
        // Predicated region
        $region173: #{forward.1} parent=163 // pred_check
          %p1192 = pneg %p287
        $region174: #{forward.1} parent=163 // pred_check_branch
          %1194 = sbr.rel (%p1192) target = $region176
        $region175: #{forward.1} parent=163 // pred_region
          %1195 = dma.done [#allocation5], 1024
        $region176: #{forward.1} parent=163 // pred_fallthru
          _
        // Predicated region
        $region177: #{forward.1} parent=163 // pred_check
          %p1196 = pneg %p329
        $region178: #{forward.1} parent=163 // pred_check_branch
          %1198 = sbr.rel (%p1196) target = $region180
        $region179: #{forward.1} parent=163 // pred_region
          %1199 = dma.done [#allocation8], 2048
        $region180: #{forward.1} parent=163 // pred_fallthru
          _
        // Predicated region
        $region181: #{forward.1} parent=163 // pred_check
          %p1200 = pneg %p413
        $region182: #{forward.1} parent=163 // pred_check_branch
          %1202 = sbr.rel (%p1200) target = $region184
        $region183: #{forward.1} parent=163 // pred_region
          %1203 = dma.done [#allocation8], 1536
        $region184: #{forward.1} parent=163 // pred_fallthru
          _
        // Predicated region
        $region185: #{forward.1} parent=163 // pred_check
          %p1204 = pneg %p455
        $region186: #{forward.1} parent=163 // pred_check_branch
          %1206 = sbr.rel (%p1204) target = $region188
        $region187: #{forward.1} parent=163 // pred_region
          %1207 = dma.done [#allocation11], 768
        $region188: #{forward.1} parent=163 // pred_fallthru
          _
        // Predicated region
        $region189: #{forward.1} parent=163 // pred_check
          %p1208 = pneg %p497
        $region190: #{forward.1} parent=163 // pred_check_branch
          %1210 = sbr.rel (%p1208) target = $region192
        $region191: #{forward.1} parent=163 // pred_region
          %1211 = dma.done [#allocation11], 256
        $region192: #{forward.1} parent=163 // pred_fallthru
          _
        // Predicated region
        $region193: #{forward.1} parent=163 // pred_check
          %p1212 = pneg %p581
        $region194: #{forward.1} parent=163 // pred_check_branch
          %1214 = sbr.rel (%p1212) target = $region196
        $region195: #{forward.1} parent=163 // pred_region
          %1215 = dma.done [#allocation14], 512
        $region196: #{forward.1} parent=163 // pred_fallthru
          _
        // Predicated region
        $region197: #{forward.1} parent=163 // pred_check
          %p1216 = pneg %p602
        $region198: #{forward.1} parent=163 // pred_check_branch
          %1218 = sbr.rel (%p1216) target = $region200
        $region199: #{forward.1} parent=163 // pred_region
          %1219 = dma.done [#allocation14], 128
        $region200: #{forward.1} parent=163 // pred_fallthru
          _
        // Predicated region
        $region201: #{forward.1} parent=163 // pred_check
          %p1220 = pneg %p623
        $region202: #{forward.1} parent=163 // pred_check_branch
          %1222 = sbr.rel (%p1220) target = $region204
        $region203: #{forward.1} parent=163 // pred_region
          %1223 = dma.done [#allocation17], 4608
        $region204: #{forward.1} parent=163 // pred_fallthru
          _
        // Predicated region
        $region205: #{forward.1} parent=163 // pred_check
          %p1224 = pneg %p644
        $region206: #{forward.1} parent=163 // pred_check_branch
          %1226 = sbr.rel (%p1224) target = $region208
        $region207: #{forward.1} parent=163 // pred_region
          %1227 = dma.done [#allocation17], 512
        $region208: #{forward.1} parent=163 // pred_fallthru
          _
        // Predicated region
        $region209: #{forward.1} parent=163 // pred_check
          %p1228 = pneg %p686
        $region210: #{forward.1} parent=163 // pred_check_branch
          %1230 = sbr.rel (%p1228) target = $region212
        $region211: #{forward.1} parent=163 // pred_region
          %1231 = dma.done [#allocation20], 128
        $region212: #{forward.1} parent=163 // pred_fallthru
          _
        // Predicated region
        $region213: #{forward.1} parent=163 // pred_check
          %p1232 = pneg %p707
        $region214: #{forward.1} parent=163 // pred_check_branch
          %1234 = sbr.rel (%p1232) target = $region216
        $region215: #{forward.1} parent=163 // pred_region
          %1235 = dma.done [#allocation20], 2048
        $region216: #{forward.1} parent=163 // pred_fallthru
          _
        // Predicated region
        $region217: #{forward.1} parent=163 // pred_check
          %p1236 = pneg %p749
        $region218: #{forward.1} parent=163 // pred_check_branch
          %1238 = sbr.rel (%p1236) target = $region220
        $region219: #{forward.1} parent=163 // pred_region
          %1239 = dma.done [#allocation23], 512
        $region220: #{forward.1} parent=163 // pred_fallthru
          _
        // Predicated region
        $region221: #{forward.1} parent=163 // pred_check
          %p1240 = pneg %p770
        $region222: #{forward.1} parent=163 // pred_check_branch
          %1242 = sbr.rel (%p1240) target = $region224
        $region223: #{forward.1} parent=163 // pred_region
          %1243 = dma.done [#allocation23], 32
        $region224: #{forward.1} parent=163 // pred_fallthru
          _
        // Predicated region
        $region225: #{forward.1} parent=163 // pred_check
          %p1244 = pneg %p812
        $region226: #{forward.1} parent=163 // pred_check_branch
          %1246 = sbr.rel (%p1244) target = $region228
        $region227: #{forward.1} parent=163 // pred_region
          %1247 = dma.done [#allocation26], 2048
        $region228: #{forward.1} parent=163 // pred_fallthru
          _
        // Predicated region
        $region229: #{forward.1} parent=163 // pred_check
          %p1248 = pneg %p833
        $region230: #{forward.1} parent=163 // pred_check_branch
          %1250 = sbr.rel (%p1248) target = $region232
        $region231: #{forward.1} parent=163 // pred_region
          %1251 = dma.done [#allocation26], 512
        $region232: #{forward.1} parent=163 // pred_fallthru
          _
        %p1252 = scmp.lt.s32.totalorder %s93, 1
        %s1253 = scalar_select %p1252, %s93, 1
        %s1254 = smul.addr %s1253, 4
        %s1255 = smul.addr %s1254, 8
        %s1256 = scalar_lea.vmem %s1, %s1255
        %p1257 = pneg %p114
        %p1258 = pneg %p111
        %p1259 = scmp.lt.s32.totalorder %s93, 1
        %s1260 = scalar_select %p1259, %s93, 1
        %s1261 = smul.addr %s1260, 2
        %s1262 = smul.addr %s1261, 8
        %s1263 = scalar_lea.vmem %s3, %s1262
        %p1264 = pneg %p140
        %p1265 = pneg %p137
        %p1266 = pneg %p161
        %p1267 = pneg %p158
        %p1268 = pneg %p182
        %p1269 = pneg %p179
        %p1270 = pneg %p203
        %p1271 = pneg %p200
        %p1272 = pneg %p224
        %p1273 = pneg %p221
        %p1274 = pneg %p245
        %p1275 = pneg %p242
        %p1276 = pneg %p266
        %p1277 = pneg %p263
        %p1278 = pneg %p287
        %p1279 = pneg %p284
        %p1280 = pneg %p308
        %p1281 = pneg %p305
        %p1282 = pneg %p329
        %p1283 = pneg %p326
        %p1284 = pneg %p350
        %p1285 = pneg %p347
        %p1286 = pneg %p371
        %p1287 = pneg %p368
        %p1288 = pneg %p392
        %p1289 = pneg %p389
        %p1290 = pneg %p413
        %p1291 = pneg %p410
        %p1292 = pneg %p434
        %p1293 = pneg %p431
        %p1294 = pneg %p455
        %p1295 = pneg %p452
        %p1296 = pneg %p476
        %p1297 = pneg %p473
        %p1298 = pneg %p497
        %p1299 = pneg %p494
        %p1300 = pneg %p518
        %p1301 = pneg %p515
        %p1302 = pneg %p539
        %p1303 = pneg %p536
        %p1304 = pneg %p560
        %p1305 = pneg %p557
        %p1306 = pneg %p581
        %p1307 = pneg %p578
        %p1308 = pneg %p602
        %p1309 = pneg %p599
        %p1310 = pneg %p623
        %p1311 = pneg %p620
        %p1312 = pneg %p644
        %p1313 = pneg %p641
        %p1314 = pneg %p665
        %p1315 = pneg %p662
        %p1316 = pneg %p686
        %p1317 = pneg %p683
        %p1318 = pneg %p707
        %p1319 = pneg %p704
        %p1320 = pneg %p728
        %p1321 = pneg %p725
        %p1322 = pneg %p749
        %p1323 = pneg %p746
        %p1324 = pneg %p770
        %p1325 = pneg %p767
        %p1326 = pneg %p791
        %p1327 = pneg %p788
        %p1328 = pneg %p812
        %p1329 = pneg %p809
        %p1330 = pneg %p833
        %p1331 = pneg %p830
        %p1332 = pneg %p854
        %p1333 = pneg %p851
        %p1334 = pneg %p880
        %p1335 = pneg %p877
        %p1336 = scmp.lt.s32.totalorder %s93, 1
        %s1337 = scalar_select %p1336, %s93, 1
        %s1338 = smul.addr %s1337, 4
        %s1339 = smul.addr %s1338, 4
        %s1340 = scalar_lea.vmem %s73, %s1339
        %p1341 = scmp.lt.s32.totalorder %s93, 1
        %s1342 = scalar_select %p1341, %s93, 1
        %s1343 = smul.addr %s1342, 4
        %s1344 = smul.addr %s1343, 8
        %s1345 = scalar_lea.vmem %s1, %s1344
        %p1346 = scmp.lt.s32.totalorder %s93, 1
        %s1347 = scalar_select %p1346, %s93, 1
        %s1348 = smul.addr %s1347, 2
        %s1349 = smul.addr %s1348, 8
        %s1350 = scalar_lea.vmem %s3, %s1349
        %p1351 = scmp.lt.s32.totalorder %s93, 1
        %s1352 = scalar_select %p1351, %s93, 1
        %s1353 = smul.addr %s1352, 4
        %s1354 = smul.addr %s1353, 4
        %s1355 = scalar_lea.vmem %s73, %s1354
        %v1356 = vld [vmem:[%s1345] sm:$0xff]
        %v1357 = vld [vmem:[%s1345 + $0x8] sm:$0xff]
        %v1358 = vld [vmem:[%s1345 + $0x10] sm:$0xff]
        %v1359 = vld [vmem:[%s1345 + $0x18] sm:$0xff]
        %v1360 = vld [vmem:[#allocation13] sm:$0xff]
        %v1361 = vld [vmem:[#allocation13 + $0x8] sm:$0xff]
        %v1362 = vld [vmem:[#allocation13 + $0x10] sm:$0xff]
        %v1363 = vld [vmem:[#allocation13 + $0x18] sm:$0xff]
        %v1364 = vld [vmem:[#allocation15] sm:$0xff]
        %v1365 = vld [vmem:[#allocation16] sm:$0xff]
        %v1366 = vld [vmem:[#allocation16 + $0x8] sm:$0xff]
        %v1367 = vld [vmem:[#allocation16 + $0x10] sm:$0xff]
        %v1368 = vld [vmem:[#allocation16 + $0x18] sm:$0xff]
        %v1369 = vld [vmem:[#allocation16 + $0x20] sm:$0xff]
        %v1370 = vld [vmem:[#allocation16 + $0x28] sm:$0xff]
        %v1371 = vld [vmem:[#allocation16 + $0x30] sm:$0xff]
        %v1372 = vld [vmem:[#allocation16 + $0x38] sm:$0xff]
        %v1373 = vld [vmem:[#allocation16 + $0x40] sm:$0xff]
        %v1374 = vld [vmem:[#allocation16 + $0x48] sm:$0xff]
        %v1375 = vld [vmem:[#allocation16 + $0x50] sm:$0xff]
        %v1376 = vld [vmem:[#allocation16 + $0x58] sm:$0xff]
        %v1377 = vld [vmem:[#allocation16 + $0x60] sm:$0xff]
        %v1378 = vld [vmem:[#allocation16 + $0x68] sm:$0xff]
        %v1379 = vld [vmem:[#allocation16 + $0x70] sm:$0xff]
        %v1380 = vld [vmem:[#allocation16 + $0x78] sm:$0xff]
        %v1381 = vld [vmem:[#allocation16 + $0x80] sm:$0xff]
        %v1382 = vld [vmem:[#allocation16 + $0x88] sm:$0xff]
        %v1383 = vld [vmem:[#allocation16 + $0x90] sm:$0xff]
        %v1384 = vld [vmem:[#allocation16 + $0x98] sm:$0xff]
        %v1385 = vld [vmem:[#allocation16 + $0xa0] sm:$0xff]
        %v1386 = vld [vmem:[#allocation16 + $0xa8] sm:$0xff]
        %v1387 = vld [vmem:[#allocation16 + $0xb0] sm:$0xff]
        %v1388 = vld [vmem:[#allocation16 + $0xb8] sm:$0xff]
        %v1389 = vld [vmem:[#allocation16 + $0xc0] sm:$0xff]
        %v1390 = vld [vmem:[#allocation16 + $0xc8] sm:$0xff]
        %v1391 = vld [vmem:[#allocation16 + $0xd0] sm:$0xff]
        %v1392 = vld [vmem:[#allocation16 + $0xd8] sm:$0xff]
        %v1393 = vld [vmem:[#allocation16 + $0xe0] sm:$0xff]
        %v1394 = vld [vmem:[#allocation16 + $0xe8] sm:$0xff]
        %v1395 = vld [vmem:[#allocation16 + $0xf0] sm:$0xff]
        %v1396 = vld [vmem:[#allocation16 + $0xf8] sm:$0xff]
        %v1397 = vld [vmem:[#allocation16 + $0x100] sm:$0xff]
        %v1398 = vld [vmem:[#allocation16 + $0x108] sm:$0xff]
        %v1399 = vld [vmem:[#allocation16 + $0x110] sm:$0xff]
        %v1400 = vld [vmem:[#allocation16 + $0x118] sm:$0xff]
        %v1401 = vld [vmem:[%s53] sm:$0xff]
        %v1402 = vld [vmem:[%s53 + $0x8] sm:$0xff]
        %v1403 = vld [vmem:[%s53 + $0x10] sm:$0xff]
        %v1404 = vld [vmem:[%s53 + $0x18] sm:$0xff]
        %v1405 = vld [vmem:[%s53 + $0x20] sm:$0xff]
        %v1406 = vld [vmem:[%s53 + $0x28] sm:$0xff]
        %v1407 = vld [vmem:[%s53 + $0x30] sm:$0xff]
        %v1408 = vld [vmem:[%s53 + $0x38] sm:$0xff]
        %v1409 = vld [vmem:[%s53 + $0x40] sm:$0xff]
        %v1410 = vld [vmem:[%s53 + $0x48] sm:$0xff]
        %v1411 = vld [vmem:[%s53 + $0x50] sm:$0xff]
        %v1412 = vld [vmem:[%s53 + $0x58] sm:$0xff]
        %v1413 = vld [vmem:[%s53 + $0x60] sm:$0xff]
        %v1414 = vld [vmem:[%s53 + $0x68] sm:$0xff]
        %v1415 = vld [vmem:[%s53 + $0x70] sm:$0xff]
        %v1416 = vld [vmem:[%s53 + $0x78] sm:$0xff]
        %v1417 = vld [vmem:[%s53 + $0x80] sm:$0xff]
        %v1418 = vld [vmem:[%s53 + $0x88] sm:$0xff]
        %v1419 = vld [vmem:[%s53 + $0x90] sm:$0xff]
        %v1420 = vld [vmem:[%s53 + $0x98] sm:$0xff]
        %v1421 = vld [vmem:[%s53 + $0xa0] sm:$0xff]
        %v1422 = vld [vmem:[%s53 + $0xa8] sm:$0xff]
        %v1423 = vld [vmem:[%s53 + $0xb0] sm:$0xff]
        %v1424 = vld [vmem:[%s53 + $0xb8] sm:$0xff]
        %v1425 = vld [vmem:[%s53 + $0xc0] sm:$0xff]
        %v1426 = vld [vmem:[%s53 + $0xc8] sm:$0xff]
        %v1427 = vld [vmem:[%s53 + $0xd0] sm:$0xff]
        %v1428 = vld [vmem:[%s53 + $0xd8] sm:$0xff]
        %v1429 = vld [vmem:[%s53 + $0xe0] sm:$0xff]
        %v1430 = vld [vmem:[%s53 + $0xe8] sm:$0xff]
        %v1431 = vld [vmem:[%s53 + $0xf0] sm:$0xff]
        %v1432 = vld [vmem:[%s53 + $0xf8] sm:$0xff]
        %v1433 = vld [vmem:[%s53 + $0x100] sm:$0xff]
        %v1434 = vld [vmem:[%s53 + $0x108] sm:$0xff]
        %v1435 = vld [vmem:[%s53 + $0x110] sm:$0xff]
        %v1436 = vld [vmem:[%s53 + $0x118] sm:$0xff]
        %v1437 = vld [vmem:[%s53 + $0x120] sm:$0xff]
        %v1438 = vld [vmem:[%s53 + $0x128] sm:$0xff]
        %v1439 = vld [vmem:[%s53 + $0x130] sm:$0xff]
        %v1440 = vld [vmem:[%s53 + $0x138] sm:$0xff]
        %v1441 = vld [vmem:[%s53 + $0x140] sm:$0xff]
        %v1442 = vld [vmem:[%s53 + $0x148] sm:$0xff]
        %v1443 = vld [vmem:[%s53 + $0x150] sm:$0xff]
        %v1444 = vld [vmem:[%s53 + $0x158] sm:$0xff]
        %v1445 = vld [vmem:[%s53 + $0x160] sm:$0xff]
        %v1446 = vld [vmem:[%s53 + $0x168] sm:$0xff]
        %v1447 = vld [vmem:[%s53 + $0x170] sm:$0xff]
        %v1448 = vld [vmem:[%s53 + $0x178] sm:$0xff]
        %v1449 = vld [vmem:[%s53 + $0x180] sm:$0xff]
        %v1450 = vld [vmem:[%s53 + $0x188] sm:$0xff]
        %v1451 = vld [vmem:[%s53 + $0x190] sm:$0xff]
        %v1452 = vld [vmem:[%s53 + $0x198] sm:$0xff]
        %v1453 = vld [vmem:[%s53 + $0x1a0] sm:$0xff]
        %v1454 = vld [vmem:[%s53 + $0x1a8] sm:$0xff]
        %v1455 = vld [vmem:[%s53 + $0x1b0] sm:$0xff]
        %v1456 = vld [vmem:[%s53 + $0x1b8] sm:$0xff]
        %v1457 = vld [vmem:[%s53 + $0x1c0] sm:$0xff]
        %v1458 = vld [vmem:[%s53 + $0x1c8] sm:$0xff]
        %v1459 = vld [vmem:[%s53 + $0x1d0] sm:$0xff]
        %v1460 = vld [vmem:[%s53 + $0x1d8] sm:$0xff]
        %v1461 = vld [vmem:[%s53 + $0x1e0] sm:$0xff]
        %v1462 = vld [vmem:[%s53 + $0x1e8] sm:$0xff]
        %v1463 = vld [vmem:[%s53 + $0x1f0] sm:$0xff]
        %v1464 = vld [vmem:[%s53 + $0x1f8] sm:$0xff]
        %v1465 = vld [vmem:[#allocation19] sm:$0xff]
        %v1466 = vld [vmem:[#allocation21] sm:$0xff]
        %v1467 = vld [vmem:[#allocation21 + $0x8] sm:$0xff]
        %v1468 = vld [vmem:[#allocation21 + $0x10] sm:$0xff]
        %v1469 = vld [vmem:[#allocation21 + $0x18] sm:$0xff]
        %v1470 = vld [vmem:[#allocation21 + $0x20] sm:$0xff]
        %v1471 = vld [vmem:[#allocation21 + $0x28] sm:$0xff]
        %v1472 = vld [vmem:[#allocation21 + $0x30] sm:$0xff]
        %v1473 = vld [vmem:[#allocation21 + $0x38] sm:$0xff]
        %v1474 = vld [vmem:[#allocation21 + $0x40] sm:$0xff]
        %v1475 = vld [vmem:[#allocation21 + $0x48] sm:$0xff]
        %v1476 = vld [vmem:[#allocation21 + $0x50] sm:$0xff]
        %v1477 = vld [vmem:[#allocation21 + $0x58] sm:$0xff]
        %v1478 = vld [vmem:[#allocation21 + $0x60] sm:$0xff]
        %v1479 = vld [vmem:[#allocation21 + $0x68] sm:$0xff]
        %v1480 = vld [vmem:[#allocation21 + $0x70] sm:$0xff]
        %v1481 = vld [vmem:[#allocation21 + $0x78] sm:$0xff]
        %v1482 = vld [vmem:[%s59] sm:$0x3]
        %v1483 = vld [vmem:[#allocation22] sm:$0xff]
        %v1484 = vld [vmem:[#allocation22 + $0x8] sm:$0xff]
        %v1485 = vld [vmem:[#allocation22 + $0x10] sm:$0xff]
        %v1486 = vld [vmem:[#allocation22 + $0x18] sm:$0xff]
        %v1487 = vld [vmem:[#allocation24] sm:$0x3]
        %v1488 = vld [vmem:[%s5] sm:$0xff]
        %v1489 = vld [vmem:[%s7] sm:$0xff]
        %1490 = vrot.lane.b32.xlu0 %v1356, 17
        %v1491 = vpop.permute.xlu0 %1490
        %1492 = vrot.lane.b32.xlu0 %v1357, 17
        %v1493 = vpop.permute.xlu0 %1492
        %1494 = vrot.lane.b32.xlu0 %v1358, 17
        %v1495 = vpop.permute.xlu0 %1494
        %1496 = vrot.lane.b32.xlu0 %v1359, 17
        %v1497 = vpop.permute.xlu0 %1496
        %v1498 = vlaneseq
        %v1499 = vand.u32 %v1498, 127
        %vm1500 = vcmp.lt.s32.totalorder %v1499, 17
        %v1501 = vsel %vm1500, %v1495, %v1497
        %v1502 = vsel %vm1500, %v1493, %v1495
        %v1503 = vsel %vm1500, %v1491, %v1493
        %v1504 = vsel %vm1500, %v1497, %v1491
        %v1505 = vlaneseq
        %v1506 = vshrl.u32 %v1505, 7
        %v1507 = vsub.s32 0, %v1506
        %v1508 = vrot.slane %v1360, %v1507
        %v1509 = vlaneseq
        %v1510 = vshrl.u32 %v1509, 7
        %v1511 = vsub.s32 0, %v1510
        %v1512 = vrot.slane %v1361, %v1511
        %v1513 = vlaneseq
        %v1514 = vshrl.u32 %v1513, 7
        %v1515 = vsub.s32 0, %v1514
        %v1516 = vrot.slane %v1362, %v1515
        %v1517 = vlaneseq
        %v1518 = vshrl.u32 %v1517, 7
        %v1519 = vsub.s32 0, %v1518
        %v1520 = vrot.slane %v1363, %v1519
        %v1521 = vmul.f32 %v1504, %v1508
        %v1522 = vmul.f32 %v1503, %v1512
        %v1523 = vmul.f32 %v1502, %v1516
        %v1524 = vmul.f32 %v1501, %v1520
        %1525 = vrot.lane.b32.xlu0 %v1356, 16
        %v1526 = vpop.permute.xlu0 %1525
        %1527 = vrot.lane.b32.xlu0 %v1357, 16
        %v1528 = vpop.permute.xlu0 %1527
        %1529 = vrot.lane.b32.xlu0 %v1358, 16
        %v1530 = vpop.permute.xlu0 %1529
        %1531 = vrot.lane.b32.xlu0 %v1359, 16
        %v1532 = vpop.permute.xlu0 %1531
        %vm1533 = vcmp.lt.s32.totalorder %v1499, 16
        %v1534 = vsel %vm1533, %v1530, %v1532
        %v1535 = vsel %vm1533, %v1528, %v1530
        %v1536 = vsel %vm1533, %v1526, %v1528
        %v1537 = vsel %vm1533, %v1532, %v1526
        %v1538 = vlaneseq
        %v1539 = vshrl.u32 %v1538, 7
        %v1540 = vsub.s32 1, %v1539
        %v1541 = vrot.slane %v1360, %v1540
        %v1542 = vlaneseq
        %v1543 = vshrl.u32 %v1542, 7
        %v1544 = vsub.s32 1, %v1543
        %v1545 = vrot.slane %v1361, %v1544
        %v1546 = vlaneseq
        %v1547 = vshrl.u32 %v1546, 7
        %v1548 = vsub.s32 1, %v1547
        %v1549 = vrot.slane %v1362, %v1548
        %v1550 = vlaneseq
        %v1551 = vshrl.u32 %v1550, 7
        %v1552 = vsub.s32 1, %v1551
        %v1553 = vrot.slane %v1363, %v1552
        %v1554 = vmul.f32 %v1537, %v1541
        %v1555 = vmul.f32 %v1536, %v1545
        %v1556 = vmul.f32 %v1535, %v1549
        %v1557 = vmul.f32 %v1534, %v1553
        %1558 = vrot.lane.b32.xlu0 %v1356, 15
        %v1559 = vpop.permute.xlu0 %1558
        %1560 = vrot.lane.b32.xlu0 %v1357, 15
        %v1561 = vpop.permute.xlu0 %1560
        %1562 = vrot.lane.b32.xlu0 %v1358, 15
        %v1563 = vpop.permute.xlu0 %1562
        %1564 = vrot.lane.b32.xlu0 %v1359, 15
        %v1565 = vpop.permute.xlu0 %1564
        %vm1566 = vcmp.lt.s32.totalorder %v1499, 15
        %v1567 = vsel %vm1566, %v1563, %v1565
        %v1568 = vsel %vm1566, %v1561, %v1563
        %v1569 = vsel %vm1566, %v1559, %v1561
        %v1570 = vsel %vm1566, %v1565, %v1559
        %v1571 = vlaneseq
        %v1572 = vshrl.u32 %v1571, 7
        %v1573 = vsub.s32 2, %v1572
        %v1574 = vrot.slane %v1360, %v1573
        %v1575 = vlaneseq
        %v1576 = vshrl.u32 %v1575, 7
        %v1577 = vsub.s32 2, %v1576
        %v1578 = vrot.slane %v1361, %v1577
        %v1579 = vlaneseq
        %v1580 = vshrl.u32 %v1579, 7
        %v1581 = vsub.s32 2, %v1580
        %v1582 = vrot.slane %v1362, %v1581
        %v1583 = vlaneseq
        %v1584 = vshrl.u32 %v1583, 7
        %v1585 = vsub.s32 2, %v1584
        %v1586 = vrot.slane %v1363, %v1585
        %v1587 = vmul.f32 %v1570, %v1574
        %v1588 = vmul.f32 %v1569, %v1578
        %v1589 = vmul.f32 %v1568, %v1582
        %v1590 = vmul.f32 %v1567, %v1586
        %1591 = vrot.lane.b32.xlu0 %v1356, 1
        %v1592 = vpop.permute.xlu0 %1591
        %1593 = vrot.lane.b32.xlu0 %v1357, 1
        %v1594 = vpop.permute.xlu0 %1593
        %1595 = vrot.lane.b32.xlu0 %v1358, 1
        %v1596 = vpop.permute.xlu0 %1595
        %1597 = vrot.lane.b32.xlu0 %v1359, 1
        %v1598 = vpop.permute.xlu0 %1597
        %vm1599 = vcmp.lt.s32.totalorder %v1499, 1
        %v1600 = vsel %vm1599, %v1596, %v1598
        %v1601 = vsel %vm1599, %v1594, %v1596
        %v1602 = vsel %vm1599, %v1592, %v1594
        %v1603 = vsel %vm1599, %v1598, %v1592
        %v1604 = vlaneseq
        %v1605 = vshrl.u32 %v1604, 7
        %v1606 = vsub.s32 3, %v1605
        %v1607 = vrot.slane %v1360, %v1606
        %v1608 = vlaneseq
        %v1609 = vshrl.u32 %v1608, 7
        %v1610 = vsub.s32 3, %v1609
        %v1611 = vrot.slane %v1361, %v1610
        %v1612 = vlaneseq
        %v1613 = vshrl.u32 %v1612, 7
        %v1614 = vsub.s32 3, %v1613
        %v1615 = vrot.slane %v1362, %v1614
        %v1616 = vlaneseq
        %v1617 = vshrl.u32 %v1616, 7
        %v1618 = vsub.s32 3, %v1617
        %v1619 = vrot.slane %v1363, %v1618
        %v1620 = vmul.f32 %v1603, %v1607
        %v1621 = vmul.f32 %v1602, %v1611
        %v1622 = vmul.f32 %v1601, %v1615
        %v1623 = vmul.f32 %v1600, %v1619
        %1624 = vrot.lane.b32.xlu0 %v1356, 127
        %v1625 = vpop.permute.xlu0 %1624
        %1626 = vrot.lane.b32.xlu0 %v1357, 127
        %v1627 = vpop.permute.xlu0 %1626
        %1628 = vrot.lane.b32.xlu0 %v1358, 127
        %v1629 = vpop.permute.xlu0 %1628
        %1630 = vrot.lane.b32.xlu0 %v1359, 127
        %v1631 = vpop.permute.xlu0 %1630
        %vm1632 = vcmp.lt.s32.totalorder %v1499, 127
        %v1633 = vsel %vm1632, %v1629, %v1631
        %v1634 = vsel %vm1632, %v1627, %v1629
        %v1635 = vsel %vm1632, %v1625, %v1627
        %v1636 = vsel %vm1632, %v1631, %v1625
        %v1637 = vlaneseq
        %v1638 = vshrl.u32 %v1637, 7
        %v1639 = vsub.s32 4, %v1638
        %v1640 = vrot.slane %v1360, %v1639
        %v1641 = vlaneseq
        %v1642 = vshrl.u32 %v1641, 7
        %v1643 = vsub.s32 4, %v1642
        %v1644 = vrot.slane %v1361, %v1643
        %v1645 = vlaneseq
        %v1646 = vshrl.u32 %v1645, 7
        %v1647 = vsub.s32 4, %v1646
        %v1648 = vrot.slane %v1362, %v1647
        %v1649 = vlaneseq
        %v1650 = vshrl.u32 %v1649, 7
        %v1651 = vsub.s32 4, %v1650
        %v1652 = vrot.slane %v1363, %v1651
        %v1653 = vmul.f32 %v1635, %v1640
        %v1654 = vmul.f32 %v1634, %v1644
        %v1655 = vmul.f32 %v1633, %v1648
        %v1656 = vmul.f32 %v1636, %v1652
        %1657 = vrot.lane.b32.xlu0 %v1356, 113
        %v1658 = vpop.permute.xlu0 %1657
        %1659 = vrot.lane.b32.xlu0 %v1357, 113
        %v1660 = vpop.permute.xlu0 %1659
        %1661 = vrot.lane.b32.xlu0 %v1358, 113
        %v1662 = vpop.permute.xlu0 %1661
        %1663 = vrot.lane.b32.xlu0 %v1359, 113
        %v1664 = vpop.permute.xlu0 %1663
        %vm1665 = vcmp.lt.s32.totalorder %v1499, 113
        %v1666 = vsel %vm1665, %v1662, %v1664
        %v1667 = vsel %vm1665, %v1660, %v1662
        %v1668 = vsel %vm1665, %v1658, %v1660
        %v1669 = vsel %vm1665, %v1664, %v1658
        %v1670 = vlaneseq
        %v1671 = vshrl.u32 %v1670, 7
        %v1672 = vsub.s32 5, %v1671
        %v1673 = vrot.slane %v1360, %v1672
        %v1674 = vlaneseq
        %v1675 = vshrl.u32 %v1674, 7
        %v1676 = vsub.s32 5, %v1675
        %v1677 = vrot.slane %v1361, %v1676
        %v1678 = vlaneseq
        %v1679 = vshrl.u32 %v1678, 7
        %v1680 = vsub.s32 5, %v1679
        %v1681 = vrot.slane %v1362, %v1680
        %v1682 = vlaneseq
        %v1683 = vshrl.u32 %v1682, 7
        %v1684 = vsub.s32 5, %v1683
        %v1685 = vrot.slane %v1363, %v1684
        %v1686 = vmul.f32 %v1668, %v1673
        %v1687 = vmul.f32 %v1667, %v1677
        %v1688 = vmul.f32 %v1666, %v1681
        %v1689 = vmul.f32 %v1669, %v1685
        %1690 = vrot.lane.b32.xlu0 %v1356, 112
        %v1691 = vpop.permute.xlu0 %1690
        %1692 = vrot.lane.b32.xlu0 %v1357, 112
        %v1693 = vpop.permute.xlu0 %1692
        %1694 = vrot.lane.b32.xlu0 %v1358, 112
        %v1695 = vpop.permute.xlu0 %1694
        %1696 = vrot.lane.b32.xlu0 %v1359, 112
        %v1697 = vpop.permute.xlu0 %1696
        %vm1698 = vcmp.lt.s32.totalorder %v1499, 112
        %v1699 = vsel %vm1698, %v1695, %v1697
        %v1700 = vsel %vm1698, %v1693, %v1695
        %v1701 = vsel %vm1698, %v1691, %v1693
        %v1702 = vsel %vm1698, %v1697, %v1691
        %v1703 = vlaneseq
        %v1704 = vshrl.u32 %v1703, 7
        %v1705 = vsub.s32 6, %v1704
        %v1706 = vrot.slane %v1360, %v1705
        %v1707 = vlaneseq
        %v1708 = vshrl.u32 %v1707, 7
        %v1709 = vsub.s32 6, %v1708
        %v1710 = vrot.slane %v1361, %v1709
        %v1711 = vlaneseq
        %v1712 = vshrl.u32 %v1711, 7
        %v1713 = vsub.s32 6, %v1712
        %v1714 = vrot.slane %v1362, %v1713
        %v1715 = vlaneseq
        %v1716 = vshrl.u32 %v1715, 7
        %v1717 = vsub.s32 6, %v1716
        %v1718 = vrot.slane %v1363, %v1717
        %v1719 = vmul.f32 %v1701, %v1706
        %v1720 = vmul.f32 %v1700, %v1710
        %v1721 = vmul.f32 %v1699, %v1714
        %v1722 = vmul.f32 %v1702, %v1718
        %1723 = vrot.lane.b32.xlu0 %v1356, 111
        %v1724 = vpop.permute.xlu0 %1723
        %1725 = vrot.lane.b32.xlu0 %v1357, 111
        %v1726 = vpop.permute.xlu0 %1725
        %1727 = vrot.lane.b32.xlu0 %v1358, 111
        %v1728 = vpop.permute.xlu0 %1727
        %1729 = vrot.lane.b32.xlu0 %v1359, 111
        %v1730 = vpop.permute.xlu0 %1729
        %vm1731 = vcmp.lt.s32.totalorder %v1499, 111
        %v1732 = vsel %vm1731, %v1728, %v1730
        %v1733 = vsel %vm1731, %v1726, %v1728
        %v1734 = vsel %vm1731, %v1724, %v1726
        %v1735 = vsel %vm1731, %v1730, %v1724
        %v1736 = vlaneseq
        %v1737 = vshrl.u32 %v1736, 7
        %v1738 = vsub.s32 7, %v1737
        %v1739 = vrot.slane %v1360, %v1738
        %v1740 = vlaneseq
        %v1741 = vshrl.u32 %v1740, 7
        %v1742 = vsub.s32 7, %v1741
        %v1743 = vrot.slane %v1361, %v1742
        %v1744 = vlaneseq
        %v1745 = vshrl.u32 %v1744, 7
        %v1746 = vsub.s32 7, %v1745
        %v1747 = vrot.slane %v1362, %v1746
        %v1748 = vlaneseq
        %v1749 = vshrl.u32 %v1748, 7
        %v1750 = vsub.s32 7, %v1749
        %v1751 = vrot.slane %v1363, %v1750
        %v1752 = vmul.f32 %v1734, %v1739
        %v1753 = vmul.f32 %v1733, %v1743
        %v1754 = vmul.f32 %v1732, %v1747
        %v1755 = vmul.f32 %v1735, %v1751
        %1757 = vset.pattern.permute.xlu0 0
        %1758 = vperm.xlu0 %1757, %v1489
        %v1759 = vpop.permute.xlu0 %1758
        %vm1761 = vcmask 588800
        %v1763 = vsel %vm1761, %v1488, 0
        %1765 = vmatprep.subr.mxu0 %v1522
        %1766 = vmatpush1.msra.mxu0 %v1521
        %1767 = vmatprep.subr.mxu0 %v1555
        %1768 = vmatpush1.msra.mxu0 %v1554
        %1769 = vmatprep.subr.mxu0 %v1588
        %1770 = vmatpush1.msra.mxu0 %v1587
        %1771 = vmatprep.subr.mxu0 %v1621
        %1772 = vmatpush1.msra.mxu0 %v1620
        %1773 = vmatprep.subr.mxu0 %v1357
        %1774 = vmatpush1.msra.mxu0 %v1356
        %1775 = vmatprep.subr.mxu0 %v1654
        %1776 = vmatpush1.msra.mxu0 %v1653
        %1777 = vmatprep.subr.mxu0 %v1687
        %1778 = vmatpush1.msra.mxu0 %v1686
        %1779 = vmatprep.subr.mxu0 %v1720
        %1780 = vmatpush1.msra.mxu0 %v1719
        %1781 = vmatprep.subr.mxu0 %v1753
        %1782 = vmatpush1.msra.mxu0 %v1752
        %1783 = vmatprep.subr.mxu0 0.0
        %1784 = vmatpush1.msra.mxu0 0.0
        %1785 = vmatprep.subr.mxu0 0.0
        %1786 = vmatpush1.msra.mxu0 0.0
        %1787 = vmatprep.subr.mxu0 0.0
        %1788 = vmatpush1.msra.mxu0 0.0
        %1789 = vmatprep.subr.mxu0 0.0
        %1790 = vmatpush1.msra.mxu0 0.0
        %1791 = vmatprep.subr.mxu0 0.0
        %1792 = vmatpush1.msra.mxu0 0.0
        %1793 = vmatprep.subr.mxu0 0.0
        %1794 = vmatpush1.msra.mxu0 0.0
        %1795 = vmatprep.subr.mxu0 0.0
        %1796 = vmatpush1.msra.mxu0 0.0
        %1797 = vmatprep.subr.mxu0 0.0
        %1798 = vmatpush1.msra.mxu0 0.0
        %1799 = vmatprep.subr.mxu0 0.0
        %1800 = vmatpush1.msra.mxu0 0.0
        %1801 = vmatprep.subr.mxu0 0.0
        %1802 = vmatpush1.msra.mxu0 0.0
        %1803 = vmatprep.subr.mxu0 0.0
        %1804 = vmatpush1.msra.mxu0 0.0
        %1805 = vmatprep.subr.mxu0 0.0
        %1806 = vmatpush1.msra.mxu0 0.0
        %1807 = vmatprep.subr.mxu0 0.0
        %1808 = vmatpush1.msra.mxu0 0.0
        %1809 = vmatprep.subr.mxu0 0.0
        %1810 = vmatpush1.msra.mxu0 0.0
        %1811 = vmatprep.subr.mxu0 0.0
        %1812 = vmatpush1.msra.mxu0 0.0
        %1813 = vmatprep.subr.mxu0 0.0
        %1814 = vmatpush1.msra.mxu0 0.0
        %1815 = vmatprep.subr.mxu0 0.0
        %1816 = vmatpush1.msra.mxu0 0.0
        %1817 = vmatprep.subr.mxu0 0.0
        %1818 = vmatpush1.msra.mxu0 0.0
        %1819 = vmatprep.subr.mxu0 0.0
        %1820 = vmatpush1.msra.mxu0 0.0
        %1821 = vmatprep.subr.mxu0 0.0
        %1822 = vmatpush1.msra.mxu0 0.0
        %1823 = vmatprep.subr.mxu0 0.0
        %1824 = vmatpush1.msra.mxu0 0.0
        %1825 = vmatprep.subr.mxu0 0.0
        %1826 = vmatpush1.msra.mxu0 0.0
        %1827 = vmatprep.subr.mxu0 0.0
        %1828 = vmatpush1.msra.mxu0 0.0
        %1829 = vmatprep.mubr.f32.mxu0 0.0
        %1830 = vmatmul.mubr.f32.gmra.mrb[0].mxu0 %v1763
        %v1831 = vpop.f32.mrb[0].mxu0
        %v1832 = vadd.f32 %v1759, %v1831
        %v1833 = vpop.f32.mrb[0].mxu0
        %v1834 = vadd.f32 %v1759, %v1833
        %1835 = vdwg.mxu0
        %1836 = vmatprep.subr.mxu0 %v1524
        %1837 = vmatpush1.msra.mxu0 %v1523
        %1838 = vmatprep.subr.mxu0 %v1557
        %1839 = vmatpush1.msra.mxu0 %v1556
        %1840 = vmatprep.subr.mxu0 %v1590
        %1841 = vmatpush1.msra.mxu0 %v1589
        %1842 = vmatprep.subr.mxu0 %v1623
        %1843 = vmatpush1.msra.mxu0 %v1622
        %1844 = vmatprep.subr.mxu0 %v1359
        %1845 = vmatpush1.msra.mxu0 %v1358
        %1846 = vmatprep.subr.mxu0 %v1656
        %1847 = vmatpush1.msra.mxu0 %v1655
        %1848 = vmatprep.subr.mxu0 %v1689
        %1849 = vmatpush1.msra.mxu0 %v1688
        %1850 = vmatprep.subr.mxu0 %v1722
        %1851 = vmatpush1.msra.mxu0 %v1721
        %1852 = vmatprep.subr.mxu0 %v1755
        %1853 = vmatpush1.msra.mxu0 %v1754
        %1854 = vmatprep.subr.mxu0 0.0
        %1855 = vmatpush1.msra.mxu0 0.0
        %1856 = vmatprep.subr.mxu0 0.0
        %1857 = vmatpush1.msra.mxu0 0.0
        %1858 = vmatprep.subr.mxu0 0.0
        %1859 = vmatpush1.msra.mxu0 0.0
        %1860 = vmatprep.subr.mxu0 0.0
        %1861 = vmatpush1.msra.mxu0 0.0
        %1862 = vmatprep.subr.mxu0 0.0
        %1863 = vmatpush1.msra.mxu0 0.0
        %1864 = vmatprep.subr.mxu0 0.0
        %1865 = vmatpush1.msra.mxu0 0.0
        %1866 = vmatprep.subr.mxu0 0.0
        %1867 = vmatpush1.msra.mxu0 0.0
        %1868 = vmatprep.subr.mxu0 0.0
        %1869 = vmatpush1.msra.mxu0 0.0
        %1870 = vmatprep.subr.mxu0 0.0
        %1871 = vmatpush1.msra.mxu0 0.0
        %1872 = vmatprep.subr.mxu0 0.0
        %1873 = vmatpush1.msra.mxu0 0.0
        %1874 = vmatprep.subr.mxu0 0.0
        %1875 = vmatpush1.msra.mxu0 0.0
        %1876 = vmatprep.subr.mxu0 0.0
        %1877 = vmatpush1.msra.mxu0 0.0
        %1878 = vmatprep.subr.mxu0 0.0
        %1879 = vmatpush1.msra.mxu0 0.0
        %1880 = vmatprep.subr.mxu0 0.0
        %1881 = vmatpush1.msra.mxu0 0.0
        %1882 = vmatprep.subr.mxu0 0.0
        %1883 = vmatpush1.msra.mxu0 0.0
        %1884 = vmatprep.subr.mxu0 0.0
        %1885 = vmatpush1.msra.mxu0 0.0
        %1886 = vmatprep.subr.mxu0 0.0
        %1887 = vmatpush1.msra.mxu0 0.0
        %1888 = vmatprep.subr.mxu0 0.0
        %1889 = vmatpush1.msra.mxu0 0.0
        %1890 = vmatprep.subr.mxu0 0.0
        %1891 = vmatpush1.msra.mxu0 0.0
        %1892 = vmatprep.subr.mxu0 0.0
        %1893 = vmatpush1.msra.mxu0 0.0
        %1894 = vmatprep.subr.mxu0 0.0
        %1895 = vmatpush1.msra.mxu0 0.0
        %1896 = vmatprep.subr.mxu0 0.0
        %1897 = vmatpush1.msra.mxu0 0.0
        %1898 = vmatprep.subr.mxu0 0.0
        %1899 = vmatpush1.msra.mxu0 0.0
        %1900 = vmatprep.mubr.f32.mxu0 0.0
        %1901 = vmatmul.mubr.f32.gmra.mrb[0].mxu0 %v1763
        %v1902 = vpop.f32.mrb[0].mxu0
        %v1903 = vadd.f32 %v1759, %v1902
        %v1904 = vpop.f32.mrb[0].mxu0
        %v1905 = vadd.f32 %v1759, %v1904
        %1906 = vdwg.mxu0
        %v1907 = vmul.f32 %v1832, %v1832
        %v1908 = vmul.f32 %v1834, %v1834
        %v1909 = vmul.f32 %v1903, %v1903
        %v1910 = vmul.f32 %v1905, %v1905
        %1911 = vmatprep.subr.mxu0 0.0
        %1912 = vmatpush1.msra.mxu0 %v1401
        %1913 = vmatprep.subr.mxu0 0.0
        %1914 = vmatpush1.msra.mxu0 %v1402
        %1915 = vmatprep.subr.mxu0 0.0
        %1916 = vmatpush1.msra.mxu0 %v1403
        %1917 = vmatprep.subr.mxu0 0.0
        %1918 = vmatpush1.msra.mxu0 %v1404
        %1919 = vmatprep.subr.mxu0 0.0
        %1920 = vmatpush1.msra.mxu0 %v1405
        %1921 = vmatprep.subr.mxu0 0.0
        %1922 = vmatpush1.msra.mxu0 %v1406
        %1923 = vmatprep.subr.mxu0 0.0
        %1924 = vmatpush1.msra.mxu0 %v1407
        %1925 = vmatprep.subr.mxu0 0.0
        %1926 = vmatpush1.msra.mxu0 %v1408
        %1927 = vmatprep.subr.mxu0 0.0
        %1928 = vmatpush1.msra.mxu0 %v1409
        %1929 = vmatprep.subr.mxu0 0.0
        %1930 = vmatpush1.msra.mxu0 %v1410
        %1931 = vmatprep.subr.mxu0 0.0
        %1932 = vmatpush1.msra.mxu0 %v1411
        %1933 = vmatprep.subr.mxu0 0.0
        %1934 = vmatpush1.msra.mxu0 %v1412
        %1935 = vmatprep.subr.mxu0 0.0
        %1936 = vmatpush1.msra.mxu0 %v1413
        %1937 = vmatprep.subr.mxu0 0.0
        %1938 = vmatpush1.msra.mxu0 %v1414
        %1939 = vmatprep.subr.mxu0 0.0
        %1940 = vmatpush1.msra.mxu0 %v1415
        %1941 = vmatprep.subr.mxu0 0.0
        %1942 = vmatpush1.msra.mxu0 %v1416
        %1943 = vmatprep.subr.mxu0 0.0
        %1944 = vmatpush1.msra.mxu0 %v1417
        %1945 = vmatprep.subr.mxu0 0.0
        %1946 = vmatpush1.msra.mxu0 %v1418
        %1947 = vmatprep.subr.mxu0 0.0
        %1948 = vmatpush1.msra.mxu0 %v1419
        %1949 = vmatprep.subr.mxu0 0.0
        %1950 = vmatpush1.msra.mxu0 %v1420
        %1951 = vmatprep.subr.mxu0 0.0
        %1952 = vmatpush1.msra.mxu0 %v1421
        %1953 = vmatprep.subr.mxu0 0.0
        %1954 = vmatpush1.msra.mxu0 %v1422
        %1955 = vmatprep.subr.mxu0 0.0
        %1956 = vmatpush1.msra.mxu0 %v1423
        %1957 = vmatprep.subr.mxu0 0.0
        %1958 = vmatpush1.msra.mxu0 %v1424
        %1959 = vmatprep.subr.mxu0 0.0
        %1960 = vmatpush1.msra.mxu0 %v1425
        %1961 = vmatprep.subr.mxu0 0.0
        %1962 = vmatpush1.msra.mxu0 %v1426
        %1963 = vmatprep.subr.mxu0 0.0
        %1964 = vmatpush1.msra.mxu0 %v1427
        %1965 = vmatprep.subr.mxu0 0.0
        %1966 = vmatpush1.msra.mxu0 %v1428
        %1967 = vmatprep.subr.mxu0 0.0
        %1968 = vmatpush1.msra.mxu0 %v1429
        %1969 = vmatprep.subr.mxu0 0.0
        %1970 = vmatpush1.msra.mxu0 %v1430
        %1971 = vmatprep.subr.mxu0 0.0
        %1972 = vmatpush1.msra.mxu0 %v1431
        %1973 = vmatprep.subr.mxu0 0.0
        %1974 = vmatpush1.msra.mxu0 %v1432
        %1975 = vmatprep.mubr.f32.mxu0 %v1834
        %1976 = vmatmul.mubr.f32.gmra.mrb[0].mxu0 %v1832
        %v1977 = vpop.f32.mrb[0].mxu0
        %v1978 = vadd.f32 0.0, %v1977
        %v1979 = vpop.f32.mrb[0].mxu0
        %1980 = vmatprep.mubr.f32.mxu0 %v1908
        %1981 = vmatmul.mubr.f32.gmra.mrb[0].mxu0 %v1907
        %v1982 = vpop.f32.mrb[0].mxu0
        %v1983 = vadd.f32 0.0, %v1982
        %v1984 = vpop.f32.mrb[0].mxu0
        %1985 = vdwg.mxu0
        %1986 = vmatprep.subr.mxu0 0.0
        %1987 = vmatpush1.msra.mxu0 %v1433
        %1988 = vmatprep.subr.mxu0 0.0
        %1989 = vmatpush1.msra.mxu0 %v1434
        %1990 = vmatprep.subr.mxu0 0.0
        %1991 = vmatpush1.msra.mxu0 %v1435
        %1992 = vmatprep.subr.mxu0 0.0
        %1993 = vmatpush1.msra.mxu0 %v1436
        %1994 = vmatprep.subr.mxu0 0.0
        %1995 = vmatpush1.msra.mxu0 %v1437
        %1996 = vmatprep.subr.mxu0 0.0
        %1997 = vmatpush1.msra.mxu0 %v1438
        %1998 = vmatprep.subr.mxu0 0.0
        %1999 = vmatpush1.msra.mxu0 %v1439
        %2000 = vmatprep.subr.mxu0 0.0
        %2001 = vmatpush1.msra.mxu0 %v1440
        %2002 = vmatprep.subr.mxu0 0.0
        %2003 = vmatpush1.msra.mxu0 %v1441
        %2004 = vmatprep.subr.mxu0 0.0
        %2005 = vmatpush1.msra.mxu0 %v1442
        %2006 = vmatprep.subr.mxu0 0.0
        %2007 = vmatpush1.msra.mxu0 %v1443
        %2008 = vmatprep.subr.mxu0 0.0
        %2009 = vmatpush1.msra.mxu0 %v1444
        %2010 = vmatprep.subr.mxu0 0.0
        %2011 = vmatpush1.msra.mxu0 %v1445
        %2012 = vmatprep.subr.mxu0 0.0
        %2013 = vmatpush1.msra.mxu0 %v1446
        %2014 = vmatprep.subr.mxu0 0.0
        %2015 = vmatpush1.msra.mxu0 %v1447
        %2016 = vmatprep.subr.mxu0 0.0
        %2017 = vmatpush1.msra.mxu0 %v1448
        %2018 = vmatprep.subr.mxu0 0.0
        %2019 = vmatpush1.msra.mxu0 %v1449
        %2020 = vmatprep.subr.mxu0 0.0
        %2021 = vmatpush1.msra.mxu0 %v1450
        %2022 = vmatprep.subr.mxu0 0.0
        %2023 = vmatpush1.msra.mxu0 %v1451
        %2024 = vmatprep.subr.mxu0 0.0
        %2025 = vmatpush1.msra.mxu0 %v1452
        %2026 = vmatprep.subr.mxu0 0.0
        %2027 = vmatpush1.msra.mxu0 %v1453
        %2028 = vmatprep.subr.mxu0 0.0
        %2029 = vmatpush1.msra.mxu0 %v1454
        %2030 = vmatprep.subr.mxu0 0.0
        %2031 = vmatpush1.msra.mxu0 %v1455
        %2032 = vmatprep.subr.mxu0 0.0
        %2033 = vmatpush1.msra.mxu0 %v1456
        %2034 = vmatprep.subr.mxu0 0.0
        %2035 = vmatpush1.msra.mxu0 %v1457
        %2036 = vmatprep.subr.mxu0 0.0
        %2037 = vmatpush1.msra.mxu0 %v1458
        %2038 = vmatprep.subr.mxu0 0.0
        %2039 = vmatpush1.msra.mxu0 %v1459
        %2040 = vmatprep.subr.mxu0 0.0
        %2041 = vmatpush1.msra.mxu0 %v1460
        %2042 = vmatprep.subr.mxu0 0.0
        %2043 = vmatpush1.msra.mxu0 %v1461
        %2044 = vmatprep.subr.mxu0 0.0
        %2045 = vmatpush1.msra.mxu0 %v1462
        %2046 = vmatprep.subr.mxu0 0.0
        %2047 = vmatpush1.msra.mxu0 %v1463
        %2048 = vmatprep.subr.mxu0 0.0
        %2049 = vmatpush1.msra.mxu0 %v1464
        %2050 = vmatprep.mubr.f32.mxu0 %v1905
        %2051 = vmatmul.mubr.f32.gmra.mrb[0].mxu0 %v1903
        %v2052 = vpop.f32.mrb[0].mxu0
        %v2053 = vadd.f32 %v1978, %v2052
        %v2054 = vpop.f32.mrb[0].mxu0
        %2055 = vmatprep.mubr.f32.mxu0 %v1910
        %2056 = vmatmul.mubr.f32.gmra.mrb[0].mxu0 %v1909
        %v2057 = vpop.f32.mrb[0].mxu0
        %v2058 = vadd.f32 %v1983, %v2057
        %v2059 = vpop.f32.mrb[0].mxu0
        %2060 = vdwg.mxu0
        %v2061 = vmul.f32 %v2053, %v2053
        %v2062 = vsub.f32 %v2058, %v2061
        %v2063 = vadd.f32 %v2062, 1e-05
        %v2064 = vrsqrt.pop %v2063
        %v2065 = vsub.f32 0.0, %v2053
        %v2066 = vmul.f32 %v2065, %v2064
        %v2068 = vcombine.high %v1465, %v1465
        %v2070 = vunpack.c.l.s4 1983009808
        %v2071 = vunpack.c.0.s8 %v2070
        %v2072 = vlaneseq
        %v2073 = vshrl.u32 %v2072, 7
        %v2074 = vsub.s32 %v2071, %v2073
        %v2075 = vrot.slane %v1465, %v2074
        %v2077 = vunpack.c.l.s4 1983009808
        %v2078 = vunpack.c.0.s8 %v2077
        %v2079 = vlaneseq
        %v2080 = vshrl.u32 %v2079, 7
        %v2081 = vsub.s32 %v2078, %v2080
        %v2082 = vrot.slane %v2068, %v2081
        %v2083 = vcombine.high %v2075, %v2075
        %v2084 = vcombine.high %v2082, %v2082
        %vm2085 = vcmask 15360
        %v2087 = vsel %vm2085, %v2064, 0
        %v2090 = vsel %vm2085, %v2066, 0
        %vm2092 = vcmask 1041408
        %v2093 = vsel %vm2092, %v2075, 0
        %v2095 = vsel %vm2092, %v2083, 0
        %v2097 = vsel %vm2092, %v2082, 0
        %v2099 = vsel %vm2092, %v2084, 0
        %2101 = vmatprep.subr.mxu0 %v2095
        %2102 = vmatpush1.msra.mxu0 %v2093
        %2103 = vmatprep.subr.mxu0 0.0
        %2104 = vmatpush1.msra.mxu0 0.0
        %2105 = vmatprep.subr.mxu0 0.0
        %2106 = vmatpush1.msra.mxu0 0.0
        %2107 = vmatprep.subr.mxu0 0.0
        %2108 = vmatpush1.msra.mxu0 0.0
        %2109 = vmatprep.subr.mxu0 0.0
        %2110 = vmatpush1.msra.mxu0 0.0
        %2111 = vmatprep.subr.mxu0 0.0
        %2112 = vmatpush1.msra.mxu0 0.0
        %2113 = vmatprep.subr.mxu0 0.0
        %2114 = vmatpush1.msra.mxu0 0.0
        %2115 = vmatprep.subr.mxu0 0.0
        %2116 = vmatpush1.msra.mxu0 0.0
        %2117 = vmatprep.subr.mxu0 0.0
        %2118 = vmatpush1.msra.mxu0 0.0
        %2119 = vmatprep.subr.mxu0 0.0
        %2120 = vmatpush1.msra.mxu0 0.0
        %2121 = vmatprep.subr.mxu0 0.0
        %2122 = vmatpush1.msra.mxu0 0.0
        %2123 = vmatprep.subr.mxu0 0.0
        %2124 = vmatpush1.msra.mxu0 0.0
        %2125 = vmatprep.subr.mxu0 0.0
        %2126 = vmatpush1.msra.mxu0 0.0
        %2127 = vmatprep.subr.mxu0 0.0
        %2128 = vmatpush1.msra.mxu0 0.0
        %2129 = vmatprep.subr.mxu0 0.0
        %2130 = vmatpush1.msra.mxu0 0.0
        %2131 = vmatprep.subr.mxu0 0.0
        %2132 = vmatpush1.msra.mxu0 0.0
        %2133 = vmatprep.subr.mxu0 0.0
        %2134 = vmatpush1.msra.mxu0 0.0
        %2135 = vmatprep.subr.mxu0 0.0
        %2136 = vmatpush1.msra.mxu0 0.0
        %2137 = vmatprep.subr.mxu0 0.0
        %2138 = vmatpush1.msra.mxu0 0.0
        %2139 = vmatprep.subr.mxu0 0.0
        %2140 = vmatpush1.msra.mxu0 0.0
        %2141 = vmatprep.subr.mxu0 0.0
        %2142 = vmatpush1.msra.mxu0 0.0
        %2143 = vmatprep.subr.mxu0 0.0
        %2144 = vmatpush1.msra.mxu0 0.0
        %2145 = vmatprep.subr.mxu0 0.0
        %2146 = vmatpush1.msra.mxu0 0.0
        %2147 = vmatprep.subr.mxu0 0.0
        %2148 = vmatpush1.msra.mxu0 0.0
        %2149 = vmatprep.subr.mxu0 0.0
        %2150 = vmatpush1.msra.mxu0 0.0
        %2151 = vmatprep.subr.mxu0 0.0
        %2152 = vmatpush1.msra.mxu0 0.0
        %2153 = vmatprep.subr.mxu0 0.0
        %2154 = vmatpush1.msra.mxu0 0.0
        %2155 = vmatprep.subr.mxu0 0.0
        %2156 = vmatpush1.msra.mxu0 0.0
        %2157 = vmatprep.subr.mxu0 0.0
        %2158 = vmatpush1.msra.mxu0 0.0
        %2159 = vmatprep.subr.mxu0 0.0
        %2160 = vmatpush1.msra.mxu0 0.0
        %2161 = vmatprep.subr.mxu0 0.0
        %2162 = vmatpush1.msra.mxu0 0.0
        %2163 = vmatprep.subr.mxu0 0.0
        %2164 = vmatpush1.msra.mxu0 0.0
        %2165 = vmatprep.mubr.f32.mxu0 0.0
        %2166 = vmatmul.mubr.f32.gmra.mrb[0].mxu0 %v2087
        %v2167 = vpop.f32.mrb[0].mxu0
        %v2168 = vadd.f32 0.0, %v2167
        %v2169 = vpop.f32.mrb[0].mxu0
        %v2170 = vadd.f32 0.0, %v2169
        %2171 = vmatprep.mubr.f32.mxu0 0.0
        %2172 = vmatmul.mubr.f32.gmra.mrb[0].mxu0 %v2090
        %v2173 = vpop.f32.mrb[0].mxu0
        %v2174 = vadd.f32 0.0, %v2173
        %v2175 = vpop.f32.mrb[0].mxu0
        %v2176 = vadd.f32 0.0, %v2175
        %2177 = vdwg.mxu0
        %2178 = vmatprep.subr.mxu0 %v2099
        %2179 = vmatpush1.msra.mxu0 %v2097
        %2180 = vmatprep.subr.mxu0 0.0
        %2181 = vmatpush1.msra.mxu0 0.0
        %2182 = vmatprep.subr.mxu0 0.0
        %2183 = vmatpush1.msra.mxu0 0.0
        %2184 = vmatprep.subr.mxu0 0.0
        %2185 = vmatpush1.msra.mxu0 0.0
        %2186 = vmatprep.subr.mxu0 0.0
        %2187 = vmatpush1.msra.mxu0 0.0
        %2188 = vmatprep.subr.mxu0 0.0
        %2189 = vmatpush1.msra.mxu0 0.0
        %2190 = vmatprep.subr.mxu0 0.0
        %2191 = vmatpush1.msra.mxu0 0.0
        %2192 = vmatprep.subr.mxu0 0.0
        %2193 = vmatpush1.msra.mxu0 0.0
        %2194 = vmatprep.subr.mxu0 0.0
        %2195 = vmatpush1.msra.mxu0 0.0
        %2196 = vmatprep.subr.mxu0 0.0
        %2197 = vmatpush1.msra.mxu0 0.0
        %2198 = vmatprep.subr.mxu0 0.0
        %2199 = vmatpush1.msra.mxu0 0.0
        %2200 = vmatprep.subr.mxu0 0.0
        %2201 = vmatpush1.msra.mxu0 0.0
        %2202 = vmatprep.subr.mxu0 0.0
        %2203 = vmatpush1.msra.mxu0 0.0
        %2204 = vmatprep.subr.mxu0 0.0
        %2205 = vmatpush1.msra.mxu0 0.0
        %2206 = vmatprep.subr.mxu0 0.0
        %2207 = vmatpush1.msra.mxu0 0.0
        %2208 = vmatprep.subr.mxu0 0.0
        %2209 = vmatpush1.msra.mxu0 0.0
        %2210 = vmatprep.subr.mxu0 0.0
        %2211 = vmatpush1.msra.mxu0 0.0
        %2212 = vmatprep.subr.mxu0 0.0
        %2213 = vmatpush1.msra.mxu0 0.0
        %2214 = vmatprep.subr.mxu0 0.0
        %2215 = vmatpush1.msra.mxu0 0.0
        %2216 = vmatprep.subr.mxu0 0.0
        %2217 = vmatpush1.msra.mxu0 0.0
        %2218 = vmatprep.subr.mxu0 0.0
        %2219 = vmatpush1.msra.mxu0 0.0
        %2220 = vmatprep.subr.mxu0 0.0
        %2221 = vmatpush1.msra.mxu0 0.0
        %2222 = vmatprep.subr.mxu0 0.0
        %2223 = vmatpush1.msra.mxu0 0.0
        %2224 = vmatprep.subr.mxu0 0.0
        %2225 = vmatpush1.msra.mxu0 0.0
        %2226 = vmatprep.subr.mxu0 0.0
        %2227 = vmatpush1.msra.mxu0 0.0
        %2228 = vmatprep.subr.mxu0 0.0
        %2229 = vmatpush1.msra.mxu0 0.0
        %2230 = vmatprep.subr.mxu0 0.0
        %2231 = vmatpush1.msra.mxu0 0.0
        %2232 = vmatprep.subr.mxu0 0.0
        %2233 = vmatpush1.msra.mxu0 0.0
        %2234 = vmatprep.subr.mxu0 0.0
        %2235 = vmatpush1.msra.mxu0 0.0
        %2236 = vmatprep.subr.mxu0 0.0
        %2237 = vmatpush1.msra.mxu0 0.0
        %2238 = vmatprep.subr.mxu0 0.0
        %2239 = vmatpush1.msra.mxu0 0.0
        %2240 = vmatprep.subr.mxu0 0.0
        %2241 = vmatpush1.msra.mxu0 0.0
        %2242 = vmatprep.mubr.f32.mxu0 0.0
        %2243 = vmatmul.mubr.f32.gmra.mrb[0].mxu0 %v2087
        %v2244 = vpop.f32.mrb[0].mxu0
        %v2245 = vadd.f32 0.0, %v2244
        %v2246 = vpop.f32.mrb[0].mxu0
        %v2247 = vadd.f32 0.0, %v2246
        %2248 = vmatprep.mubr.f32.mxu0 0.0
        %2249 = vmatmul.mubr.f32.gmra.mrb[0].mxu0 %v2090
        %v2250 = vpop.f32.mrb[0].mxu0
        %v2251 = vadd.f32 0.0, %v2250
        %v2252 = vpop.f32.mrb[0].mxu0
        %v2253 = vadd.f32 0.0, %v2252
        %2254 = vdwg.mxu0
        %v2255 = vmul.f32 %v1832, %v2168
        %v2256 = vmul.f32 %v1834, %v2170
        %v2257 = vmul.f32 %v1903, %v2245
        %v2258 = vmul.f32 %v1905, %v2247
        %v2259 = vadd.f32 %v2255, %v2174
        %v2260 = vadd.f32 %v2256, %v2176
        %v2261 = vadd.f32 %v2257, %v2251
        %v2262 = vadd.f32 %v2258, %v2253
        %v2263 = vmax.f32 %v2259, 0.0
        %v2264 = vmax.f32 %v2260, 0.0
        %v2265 = vmax.f32 %v2261, 0.0
        %v2266 = vmax.f32 %v2262, 0.0
        %v2267 = vld [vmem:[#allocation2] sm:$0xff]
        %v2268 = vld [vmem:[#allocation2 + $0x8] sm:$0xff]
        %v2269 = vld [vmem:[%s11] sm:$0xff]
        %v2270 = vld [vmem:[%s11 + $0x8] sm:$0xff]
        %2271 = vrot.lane.b32.xlu0 %v2263, 17
        %v2272 = vpop.permute.xlu0 %2271
        %2273 = vrot.lane.b32.xlu0 %v2264, 17
        %v2274 = vpop.permute.xlu0 %2273
        %2275 = vrot.lane.b32.xlu0 %v2265, 17
        %v2276 = vpop.permute.xlu0 %2275
        %2277 = vrot.lane.b32.xlu0 %v2266, 17
        %v2278 = vpop.permute.xlu0 %2277
        %v2279 = vsel %vm1500, %v2276, %v2278
        %v2280 = vsel %vm1500, %v2274, %v2276
        %v2281 = vsel %vm1500, %v2272, %v2274
        %v2282 = vsel %vm1500, %v2278, %v2272
        %v2283 = vmul.f32 %v2282, %v1508
        %v2284 = vmul.f32 %v2281, %v1512
        %v2285 = vmul.f32 %v2280, %v1516
        %v2286 = vmul.f32 %v2279, %v1520
        %2287 = vrot.lane.b32.xlu0 %v2263, 16
        %v2288 = vpop.permute.xlu0 %2287
        %2289 = vrot.lane.b32.xlu0 %v2264, 16
        %v2290 = vpop.permute.xlu0 %2289
        %2291 = vrot.lane.b32.xlu0 %v2265, 16
        %v2292 = vpop.permute.xlu0 %2291
        %2293 = vrot.lane.b32.xlu0 %v2266, 16
        %v2294 = vpop.permute.xlu0 %2293
        %v2295 = vsel %vm1533, %v2292, %v2294
        %v2296 = vsel %vm1533, %v2290, %v2292
        %v2297 = vsel %vm1533, %v2288, %v2290
        %v2298 = vsel %vm1533, %v2294, %v2288
        %v2299 = vmul.f32 %v2298, %v1541
        %v2300 = vmul.f32 %v2297, %v1545
        %v2301 = vmul.f32 %v2296, %v1549
        %v2302 = vmul.f32 %v2295, %v1553
        %2303 = vrot.lane.b32.xlu0 %v2263, 15
        %v2304 = vpop.permute.xlu0 %2303
        %2305 = vrot.lane.b32.xlu0 %v2264, 15
        %v2306 = vpop.permute.xlu0 %2305
        %2307 = vrot.lane.b32.xlu0 %v2265, 15
        %v2308 = vpop.permute.xlu0 %2307
        %2309 = vrot.lane.b32.xlu0 %v2266, 15
        %v2310 = vpop.permute.xlu0 %2309
        %v2311 = vsel %vm1566, %v2308, %v2310
        %v2312 = vsel %vm1566, %v2306, %v2308
        %v2313 = vsel %vm1566, %v2304, %v2306
        %v2314 = vsel %vm1566, %v2310, %v2304
        %v2315 = vmul.f32 %v2314, %v1574
        %v2316 = vmul.f32 %v2313, %v1578
        %v2317 = vmul.f32 %v2312, %v1582
        %v2318 = vmul.f32 %v2311, %v1586
        %2319 = vrot.lane.b32.xlu0 %v2263, 1
        %v2320 = vpop.permute.xlu0 %2319
        %2321 = vrot.lane.b32.xlu0 %v2264, 1
        %v2322 = vpop.permute.xlu0 %2321
        %2323 = vrot.lane.b32.xlu0 %v2265, 1
        %v2324 = vpop.permute.xlu0 %2323
        %2325 = vrot.lane.b32.xlu0 %v2266, 1
        %v2326 = vpop.permute.xlu0 %2325
        %v2327 = vsel %vm1599, %v2324, %v2326
        %v2328 = vsel %vm1599, %v2322, %v2324
        %v2329 = vsel %vm1599, %v2320, %v2322
        %v2330 = vsel %vm1599, %v2326, %v2320
        %v2331 = vmul.f32 %v2330, %v1607
        %v2332 = vmul.f32 %v2329, %v1611
        %v2333 = vmul.f32 %v2328, %v1615
        %v2334 = vmul.f32 %v2327, %v1619
        %2335 = vrot.lane.b32.xlu0 %v2263, 127
        %v2336 = vpop.permute.xlu0 %2335
        %2337 = vrot.lane.b32.xlu0 %v2264, 127
        %v2338 = vpop.permute.xlu0 %2337
        %2339 = vrot.lane.b32.xlu0 %v2265, 127
        %v2340 = vpop.permute.xlu0 %2339
        %2341 = vrot.lane.b32.xlu0 %v2266, 127
        %v2342 = vpop.permute.xlu0 %2341
        %v2343 = vsel %vm1632, %v2340, %v2342
        %v2344 = vsel %vm1632, %v2338, %v2340
        %v2345 = vsel %vm1632, %v2336, %v2338
        %v2346 = vsel %vm1632, %v2342, %v2336
        %v2347 = vmul.f32 %v2345, %v1640
        %v2348 = vmul.f32 %v2344, %v1644
        %v2349 = vmul.f32 %v2343, %v1648
        %v2350 = vmul.f32 %v2346, %v1652
        %2351 = vrot.lane.b32.xlu0 %v2263, 113
        %v2352 = vpop.permute.xlu0 %2351
        %2353 = vrot.lane.b32.xlu0 %v2264, 113
        %v2354 = vpop.permute.xlu0 %2353
        %2355 = vrot.lane.b32.xlu0 %v2265, 113
        %v2356 = vpop.permute.xlu0 %2355
        %2357 = vrot.lane.b32.xlu0 %v2266, 113
        %v2358 = vpop.permute.xlu0 %2357
        %v2359 = vsel %vm1665, %v2356, %v2358
        %v2360 = vsel %vm1665, %v2354, %v2356
        %v2361 = vsel %vm1665, %v2352, %v2354
        %v2362 = vsel %vm1665, %v2358, %v2352
        %v2363 = vmul.f32 %v2361, %v1673
        %v2364 = vmul.f32 %v2360, %v1677
        %v2365 = vmul.f32 %v2359, %v1681
        %v2366 = vmul.f32 %v2362, %v1685
        %2367 = vrot.lane.b32.xlu0 %v2263, 112
        %v2368 = vpop.permute.xlu0 %2367
        %2369 = vrot.lane.b32.xlu0 %v2264, 112
        %v2370 = vpop.permute.xlu0 %2369
        %2371 = vrot.lane.b32.xlu0 %v2265, 112
        %v2372 = vpop.permute.xlu0 %2371
        %2373 = vrot.lane.b32.xlu0 %v2266, 112
        %v2374 = vpop.permute.xlu0 %2373
        %v2375 = vsel %vm1698, %v2372, %v2374
        %v2376 = vsel %vm1698, %v2370, %v2372
        %v2377 = vsel %vm1698, %v2368, %v2370
        %v2378 = vsel %vm1698, %v2374, %v2368
        %v2379 = vmul.f32 %v2377, %v1706
        %v2380 = vmul.f32 %v2376, %v1710
        %v2381 = vmul.f32 %v2375, %v1714
        %v2382 = vmul.f32 %v2378, %v1718
        %2383 = vrot.lane.b32.xlu0 %v2263, 111
        %v2384 = vpop.permute.xlu0 %2383
        %2385 = vrot.lane.b32.xlu0 %v2264, 111
        %v2386 = vpop.permute.xlu0 %2385
        %2387 = vrot.lane.b32.xlu0 %v2265, 111
        %v2388 = vpop.permute.xlu0 %2387
        %2389 = vrot.lane.b32.xlu0 %v2266, 111
        %v2390 = vpop.permute.xlu0 %2389
        %v2391 = vsel %vm1731, %v2388, %v2390
        %v2392 = vsel %vm1731, %v2386, %v2388
        %v2393 = vsel %vm1731, %v2384, %v2386
        %v2394 = vsel %vm1731, %v2390, %v2384
        %v2395 = vmul.f32 %v2393, %v1739
        %v2396 = vmul.f32 %v2392, %v1743
        %v2397 = vmul.f32 %v2391, %v1747
        %v2398 = vmul.f32 %v2394, %v1751
        %2400 = vset.pattern.permute.xlu0 0
        %2401 = vperm.xlu0 %2400, %v2269
        %v2402 = vpop.permute.xlu0 %2401
        %2405 = vset.pattern.permute.xlu0 0
        %2406 = vperm.xlu0 %2405, %v2270
        %v2407 = vpop.permute.xlu0 %2406
        %v2410 = vsel %vm1761, %v2267, 0
        %v2413 = vsel %vm1761, %v2268, 0
        %2415 = vmatprep.subr.mxu0 %v2284
        %2416 = vmatpush1.msra.mxu0 %v2283
        %2417 = vmatprep.subr.mxu0 %v2300
        %2418 = vmatpush1.msra.mxu0 %v2299
        %2419 = vmatprep.subr.mxu0 %v2316
        %2420 = vmatpush1.msra.mxu0 %v2315
        %2421 = vmatprep.subr.mxu0 %v2332
        %2422 = vmatpush1.msra.mxu0 %v2331
        %2423 = vmatprep.subr.mxu0 %v2264
        %2424 = vmatpush1.msra.mxu0 %v2263
        %2425 = vmatprep.subr.mxu0 %v2348
        %2426 = vmatpush1.msra.mxu0 %v2347
        %2427 = vmatprep.subr.mxu0 %v2364
        %2428 = vmatpush1.msra.mxu0 %v2363
        %2429 = vmatprep.subr.mxu0 %v2380
        %2430 = vmatpush1.msra.mxu0 %v2379
        %2431 = vmatprep.subr.mxu0 %v2396
        %2432 = vmatpush1.msra.mxu0 %v2395
        %2433 = vmatprep.subr.mxu0 0.0
        %2434 = vmatpush1.msra.mxu0 0.0
        %2435 = vmatprep.subr.mxu0 0.0
        %2436 = vmatpush1.msra.mxu0 0.0
        %2437 = vmatprep.subr.mxu0 0.0
        %2438 = vmatpush1.msra.mxu0 0.0
        %2439 = vmatprep.subr.mxu0 0.0
        %2440 = vmatpush1.msra.mxu0 0.0
        %2441 = vmatprep.subr.mxu0 0.0
        %2442 = vmatpush1.msra.mxu0 0.0
        %2443 = vmatprep.subr.mxu0 0.0
        %2444 = vmatpush1.msra.mxu0 0.0
        %2445 = vmatprep.subr.mxu0 0.0
        %2446 = vmatpush1.msra.mxu0 0.0
        %2447 = vmatprep.subr.mxu0 0.0
        %2448 = vmatpush1.msra.mxu0 0.0
        %2449 = vmatprep.subr.mxu0 0.0
        %2450 = vmatpush1.msra.mxu0 0.0
        %2451 = vmatprep.subr.mxu0 0.0
        %2452 = vmatpush1.msra.mxu0 0.0
        %2453 = vmatprep.subr.mxu0 0.0
        %2454 = vmatpush1.msra.mxu0 0.0
        %2455 = vmatprep.subr.mxu0 0.0
        %2456 = vmatpush1.msra.mxu0 0.0
        %2457 = vmatprep.subr.mxu0 0.0
        %2458 = vmatpush1.msra.mxu0 0.0
        %2459 = vmatprep.subr.mxu0 0.0
        %2460 = vmatpush1.msra.mxu0 0.0
        %2461 = vmatprep.subr.mxu0 0.0
        %2462 = vmatpush1.msra.mxu0 0.0
        %2463 = vmatprep.subr.mxu0 0.0
        %2464 = vmatpush1.msra.mxu0 0.0
        %2465 = vmatprep.subr.mxu0 0.0
        %2466 = vmatpush1.msra.mxu0 0.0
        %2467 = vmatprep.subr.mxu0 0.0
        %2468 = vmatpush1.msra.mxu0 0.0
        %2469 = vmatprep.subr.mxu0 0.0
        %2470 = vmatpush1.msra.mxu0 0.0
        %2471 = vmatprep.subr.mxu0 0.0
        %2472 = vmatpush1.msra.mxu0 0.0
        %2473 = vmatprep.subr.mxu0 0.0
        %2474 = vmatpush1.msra.mxu0 0.0
        %2475 = vmatprep.subr.mxu0 0.0
        %2476 = vmatpush1.msra.mxu0 0.0
        %2477 = vmatprep.subr.mxu0 0.0
        %2478 = vmatpush1.msra.mxu0 0.0
        %2479 = vmatprep.mubr.f32.mxu0 0.0
        %2480 = vmatmul.mubr.f32.gmra.mrb[0].mxu0 %v2410
        %v2481 = vpop.f32.mrb[0].mxu0
        %v2482 = vadd.f32 %v2402, %v2481
        %v2483 = vpop.f32.mrb[0].mxu0
        %v2484 = vadd.f32 %v2402, %v2483
        %2485 = vmatprep.mubr.f32.mxu0 0.0
        %2486 = vmatmul.mubr.f32.gmra.mrb[0].mxu0 %v2413
        %v2487 = vpop.f32.mrb[0].mxu0
        %v2488 = vadd.f32 %v2407, %v2487
        %v2489 = vpop.f32.mrb[0].mxu0
        %v2490 = vadd.f32 %v2407, %v2489
        %2491 = vdwg.mxu0
        %2492 = vmatprep.subr.mxu0 %v2286
        %2493 = vmatpush1.msra.mxu0 %v2285
        %2494 = vmatprep.subr.mxu0 %v2302
        %2495 = vmatpush1.msra.mxu0 %v2301
        %2496 = vmatprep.subr.mxu0 %v2318
        %2497 = vmatpush1.msra.mxu0 %v2317
        %2498 = vmatprep.subr.mxu0 %v2334
        %2499 = vmatpush1.msra.mxu0 %v2333
        %2500 = vmatprep.subr.mxu0 %v2266
        %2501 = vmatpush1.msra.mxu0 %v2265
        %2502 = vmatprep.subr.mxu0 %v2350
        %2503 = vmatpush1.msra.mxu0 %v2349
        %2504 = vmatprep.subr.mxu0 %v2366
        %2505 = vmatpush1.msra.mxu0 %v2365
        %2506 = vmatprep.subr.mxu0 %v2382
        %2507 = vmatpush1.msra.mxu0 %v2381
        %2508 = vmatprep.subr.mxu0 %v2398
        %2509 = vmatpush1.msra.mxu0 %v2397
        %2510 = vmatprep.subr.mxu0 0.0
        %2511 = vmatpush1.msra.mxu0 0.0
        %2512 = vmatprep.subr.mxu0 0.0
        %2513 = vmatpush1.msra.mxu0 0.0
        %2514 = vmatprep.subr.mxu0 0.0
        %2515 = vmatpush1.msra.mxu0 0.0
        %2516 = vmatprep.subr.mxu0 0.0
        %2517 = vmatpush1.msra.mxu0 0.0
        %2518 = vmatprep.subr.mxu0 0.0
        %2519 = vmatpush1.msra.mxu0 0.0
        %2520 = vmatprep.subr.mxu0 0.0
        %2521 = vmatpush1.msra.mxu0 0.0
        %2522 = vmatprep.subr.mxu0 0.0
        %2523 = vmatpush1.msra.mxu0 0.0
        %2524 = vmatprep.subr.mxu0 0.0
        %2525 = vmatpush1.msra.mxu0 0.0
        %2526 = vmatprep.subr.mxu0 0.0
        %2527 = vmatpush1.msra.mxu0 0.0
        %2528 = vmatprep.subr.mxu0 0.0
        %2529 = vmatpush1.msra.mxu0 0.0
        %2530 = vmatprep.subr.mxu0 0.0
        %2531 = vmatpush1.msra.mxu0 0.0
        %2532 = vmatprep.subr.mxu0 0.0
        %2533 = vmatpush1.msra.mxu0 0.0
        %2534 = vmatprep.subr.mxu0 0.0
        %2535 = vmatpush1.msra.mxu0 0.0
        %2536 = vmatprep.subr.mxu0 0.0
        %2537 = vmatpush1.msra.mxu0 0.0
        %2538 = vmatprep.subr.mxu0 0.0
        %2539 = vmatpush1.msra.mxu0 0.0
        %2540 = vmatprep.subr.mxu0 0.0
        %2541 = vmatpush1.msra.mxu0 0.0
        %2542 = vmatprep.subr.mxu0 0.0
        %2543 = vmatpush1.msra.mxu0 0.0
        %2544 = vmatprep.subr.mxu0 0.0
        %2545 = vmatpush1.msra.mxu0 0.0
        %2546 = vmatprep.subr.mxu0 0.0
        %2547 = vmatpush1.msra.mxu0 0.0
        %2548 = vmatprep.subr.mxu0 0.0
        %2549 = vmatpush1.msra.mxu0 0.0
        %2550 = vmatprep.subr.mxu0 0.0
        %2551 = vmatpush1.msra.mxu0 0.0
        %2552 = vmatprep.subr.mxu0 0.0
        %2553 = vmatpush1.msra.mxu0 0.0
        %2554 = vmatprep.subr.mxu0 0.0
        %2555 = vmatpush1.msra.mxu0 0.0
        %2556 = vmatprep.mubr.f32.mxu0 0.0
        %2557 = vmatmul.mubr.f32.gmra.mrb[0].mxu0 %v2410
        %v2558 = vpop.f32.mrb[0].mxu0
        %v2559 = vadd.f32 %v2402, %v2558
        %v2560 = vpop.f32.mrb[0].mxu0
        %v2561 = vadd.f32 %v2402, %v2560
        %2562 = vmatprep.mubr.f32.mxu0 0.0
        %2563 = vmatmul.mubr.f32.gmra.mrb[0].mxu0 %v2413
        %v2564 = vpop.f32.mrb[0].mxu0
        %v2565 = vadd.f32 %v2407, %v2564
        %v2566 = vpop.f32.mrb[0].mxu0
        %v2567 = vadd.f32 %v2407, %v2566
        %2568 = vdwg.mxu0
        %v2569 = vld [vmem:[%s65] sm:$0xff]
        %v2570 = vld [vmem:[%s65 + $0x8] sm:$0xff]
        %v2571 = vld [vmem:[%s65 + $0x10] sm:$0xff]
        %v2572 = vld [vmem:[%s65 + $0x18] sm:$0xff]
        %v2573 = vld [vmem:[%s65 + $0x20] sm:$0xff]
        %v2574 = vld [vmem:[%s65 + $0x28] sm:$0xff]
        %v2575 = vld [vmem:[%s65 + $0x30] sm:$0xff]
        %v2576 = vld [vmem:[%s65 + $0x38] sm:$0xff]
        %v2577 = vld [vmem:[%s65 + $0x40] sm:$0xff]
        %v2578 = vld [vmem:[%s65 + $0x48] sm:$0xff]
        %v2579 = vld [vmem:[%s65 + $0x50] sm:$0xff]
        %v2580 = vld [vmem:[%s65 + $0x58] sm:$0xff]
        %v2581 = vld [vmem:[%s65 + $0x60] sm:$0xff]
        %v2582 = vld [vmem:[%s65 + $0x68] sm:$0xff]
        %v2583 = vld [vmem:[%s65 + $0x70] sm:$0xff]
        %v2584 = vld [vmem:[%s65 + $0x78] sm:$0xff]
        %v2585 = vld [vmem:[%s65 + $0x80] sm:$0xff]
        %v2586 = vld [vmem:[%s65 + $0x88] sm:$0xff]
        %v2587 = vld [vmem:[%s65 + $0x90] sm:$0xff]
        %v2588 = vld [vmem:[%s65 + $0x98] sm:$0xff]
        %v2589 = vld [vmem:[%s65 + $0xa0] sm:$0xff]
        %v2590 = vld [vmem:[%s65 + $0xa8] sm:$0xff]
        %v2591 = vld [vmem:[%s65 + $0xb0] sm:$0xff]
        %v2592 = vld [vmem:[%s65 + $0xb8] sm:$0xff]
        %v2593 = vld [vmem:[%s65 + $0xc0] sm:$0xff]
        %v2594 = vld [vmem:[%s65 + $0xc8] sm:$0xff]
        %v2595 = vld [vmem:[%s65 + $0xd0] sm:$0xff]
        %v2596 = vld [vmem:[%s65 + $0xd8] sm:$0xff]
        %v2597 = vld [vmem:[%s65 + $0xe0] sm:$0xff]
        %v2598 = vld [vmem:[%s65 + $0xe8] sm:$0xff]
        %v2599 = vld [vmem:[%s65 + $0xf0] sm:$0xff]
        %v2600 = vld [vmem:[%s65 + $0xf8] sm:$0xff]
        %v2601 = vld [vmem:[%s65 + $0x100] sm:$0xff]
        %v2602 = vld [vmem:[%s65 + $0x108] sm:$0xff]
        %v2603 = vld [vmem:[%s65 + $0x110] sm:$0xff]
        %v2604 = vld [vmem:[%s65 + $0x118] sm:$0xff]
        %v2605 = vld [vmem:[%s65 + $0x120] sm:$0xff]
        %v2606 = vld [vmem:[%s65 + $0x128] sm:$0xff]
        %v2607 = vld [vmem:[%s65 + $0x130] sm:$0xff]
        %v2608 = vld [vmem:[%s65 + $0x138] sm:$0xff]
        %v2609 = vld [vmem:[%s65 + $0x140] sm:$0xff]
        %v2610 = vld [vmem:[%s65 + $0x148] sm:$0xff]
        %v2611 = vld [vmem:[%s65 + $0x150] sm:$0xff]
        %v2612 = vld [vmem:[%s65 + $0x158] sm:$0xff]
        %v2613 = vld [vmem:[%s65 + $0x160] sm:$0xff]
        %v2614 = vld [vmem:[%s65 + $0x168] sm:$0xff]
        %v2615 = vld [vmem:[%s65 + $0x170] sm:$0xff]
        %v2616 = vld [vmem:[%s65 + $0x178] sm:$0xff]
        %v2617 = vld [vmem:[%s65 + $0x180] sm:$0xff]
        %v2618 = vld [vmem:[%s65 + $0x188] sm:$0xff]
        %v2619 = vld [vmem:[%s65 + $0x190] sm:$0xff]
        %v2620 = vld [vmem:[%s65 + $0x198] sm:$0xff]
        %v2621 = vld [vmem:[%s65 + $0x1a0] sm:$0xff]
        %v2622 = vld [vmem:[%s65 + $0x1a8] sm:$0xff]
        %v2623 = vld [vmem:[%s65 + $0x1b0] sm:$0xff]
        %v2624 = vld [vmem:[%s65 + $0x1b8] sm:$0xff]
        %v2625 = vld [vmem:[%s65 + $0x1c0] sm:$0xff]
        %v2626 = vld [vmem:[%s65 + $0x1c8] sm:$0xff]
        %v2627 = vld [vmem:[%s65 + $0x1d0] sm:$0xff]
        %v2628 = vld [vmem:[%s65 + $0x1d8] sm:$0xff]
        %v2629 = vld [vmem:[%s65 + $0x1e0] sm:$0xff]
        %v2630 = vld [vmem:[%s65 + $0x1e8] sm:$0xff]
        %v2631 = vld [vmem:[%s65 + $0x1f0] sm:$0xff]
        %v2632 = vld [vmem:[%s65 + $0x1f8] sm:$0xff]
        %2633 = vmatprep.subr.mxu0 0.0
        %2634 = vmatpush1.msra.mxu0 %v2569
        %2635 = vmatprep.subr.mxu0 0.0
        %2636 = vmatpush1.msra.mxu0 %v2570
        %2637 = vmatprep.subr.mxu0 0.0
        %2638 = vmatpush1.msra.mxu0 %v2571
        %2639 = vmatprep.subr.mxu0 0.0
        %2640 = vmatpush1.msra.mxu0 %v2572
        %2641 = vmatprep.subr.mxu0 0.0
        %2642 = vmatpush1.msra.mxu0 %v2573
        %2643 = vmatprep.subr.mxu0 0.0
        %2644 = vmatpush1.msra.mxu0 %v2574
        %2645 = vmatprep.subr.mxu0 0.0
        %2646 = vmatpush1.msra.mxu0 %v2575
        %2647 = vmatprep.subr.mxu0 0.0
        %2648 = vmatpush1.msra.mxu0 %v2576
        %2649 = vmatprep.subr.mxu0 0.0
        %2650 = vmatpush1.msra.mxu0 %v2577
        %2651 = vmatprep.subr.mxu0 0.0
        %2652 = vmatpush1.msra.mxu0 %v2578
        %2653 = vmatprep.subr.mxu0 0.0
        %2654 = vmatpush1.msra.mxu0 %v2579
        %2655 = vmatprep.subr.mxu0 0.0
        %2656 = vmatpush1.msra.mxu0 %v2580
        %2657 = vmatprep.subr.mxu0 0.0
        %2658 = vmatpush1.msra.mxu0 %v2581
        %2659 = vmatprep.subr.mxu0 0.0
        %2660 = vmatpush1.msra.mxu0 %v2582
        %2661 = vmatprep.subr.mxu0 0.0
        %2662 = vmatpush1.msra.mxu0 %v2583
        %2663 = vmatprep.subr.mxu0 0.0
        %2664 = vmatpush1.msra.mxu0 %v2584
        %2665 = vmatprep.subr.mxu0 0.0
        %2666 = vmatpush1.msra.mxu0 %v2585
        %2667 = vmatprep.subr.mxu0 0.0
        %2668 = vmatpush1.msra.mxu0 %v2586
        %2669 = vmatprep.subr.mxu0 0.0
        %2670 = vmatpush1.msra.mxu0 %v2587
        %2671 = vmatprep.subr.mxu0 0.0
        %2672 = vmatpush1.msra.mxu0 %v2588
        %2673 = vmatprep.subr.mxu0 0.0
        %2674 = vmatpush1.msra.mxu0 %v2589
        %2675 = vmatprep.subr.mxu0 0.0
        %2676 = vmatpush1.msra.mxu0 %v2590
        %2677 = vmatprep.subr.mxu0 0.0
        %2678 = vmatpush1.msra.mxu0 %v2591
        %2679 = vmatprep.subr.mxu0 0.0
        %2680 = vmatpush1.msra.mxu0 %v2592
        %2681 = vmatprep.subr.mxu0 0.0
        %2682 = vmatpush1.msra.mxu0 %v2593
        %2683 = vmatprep.subr.mxu0 0.0
        %2684 = vmatpush1.msra.mxu0 %v2594
        %2685 = vmatprep.subr.mxu0 0.0
        %2686 = vmatpush1.msra.mxu0 %v2595
        %2687 = vmatprep.subr.mxu0 0.0
        %2688 = vmatpush1.msra.mxu0 %v2596
        %2689 = vmatprep.subr.mxu0 0.0
        %2690 = vmatpush1.msra.mxu0 %v2597
        %2691 = vmatprep.subr.mxu0 0.0
        %2692 = vmatpush1.msra.mxu0 %v2598
        %2693 = vmatprep.subr.mxu0 0.0
        %2694 = vmatpush1.msra.mxu0 %v2599
        %2695 = vmatprep.subr.mxu0 0.0
        %2696 = vmatpush1.msra.mxu0 %v2600
        %2697 = vmatprep.mubr.f32.mxu0 %v2484
        %2698 = vmatmul.mubr.f32.gmra.mrb[0].mxu0 %v2482
        %v2699 = vpop.f32.mrb[0].mxu0
        %v2700 = vadd.f32 0.0, %v2699
        %v2701 = vpop.f32.mrb[0].mxu0
        %2702 = vmatprep.mubr.f32.mxu0 %v2490
        %2703 = vmatmul.mubr.f32.gmra.mrb[0].mxu0 %v2488
        %v2704 = vpop.f32.mrb[0].mxu0
        %v2705 = vadd.f32 0.0, %v2704
        %v2706 = vpop.f32.mrb[0].mxu0
        %2707 = vdwg.mxu0
        %2708 = vmatprep.subr.mxu0 0.0
        %2709 = vmatpush1.msra.mxu0 %v2601
        %2710 = vmatprep.subr.mxu0 0.0
        %2711 = vmatpush1.msra.mxu0 %v2602
        %2712 = vmatprep.subr.mxu0 0.0
        %2713 = vmatpush1.msra.mxu0 %v2603
        %2714 = vmatprep.subr.mxu0 0.0
        %2715 = vmatpush1.msra.mxu0 %v2604
        %2716 = vmatprep.subr.mxu0 0.0
        %2717 = vmatpush1.msra.mxu0 %v2605
        %2718 = vmatprep.subr.mxu0 0.0
        %2719 = vmatpush1.msra.mxu0 %v2606
        %2720 = vmatprep.subr.mxu0 0.0
        %2721 = vmatpush1.msra.mxu0 %v2607
        %2722 = vmatprep.subr.mxu0 0.0
        %2723 = vmatpush1.msra.mxu0 %v2608
        %2724 = vmatprep.subr.mxu0 0.0
        %2725 = vmatpush1.msra.mxu0 %v2609
        %2726 = vmatprep.subr.mxu0 0.0
        %2727 = vmatpush1.msra.mxu0 %v2610
        %2728 = vmatprep.subr.mxu0 0.0
        %2729 = vmatpush1.msra.mxu0 %v2611
        %2730 = vmatprep.subr.mxu0 0.0
        %2731 = vmatpush1.msra.mxu0 %v2612
        %2732 = vmatprep.subr.mxu0 0.0
        %2733 = vmatpush1.msra.mxu0 %v2613
        %2734 = vmatprep.subr.mxu0 0.0
        %2735 = vmatpush1.msra.mxu0 %v2614
        %2736 = vmatprep.subr.mxu0 0.0
        %2737 = vmatpush1.msra.mxu0 %v2615
        %2738 = vmatprep.subr.mxu0 0.0
        %2739 = vmatpush1.msra.mxu0 %v2616
        %2740 = vmatprep.subr.mxu0 0.0
        %2741 = vmatpush1.msra.mxu0 %v2617
        %2742 = vmatprep.subr.mxu0 0.0
        %2743 = vmatpush1.msra.mxu0 %v2618
        %2744 = vmatprep.subr.mxu0 0.0
        %2745 = vmatpush1.msra.mxu0 %v2619
        %2746 = vmatprep.subr.mxu0 0.0
        %2747 = vmatpush1.msra.mxu0 %v2620
        %2748 = vmatprep.subr.mxu0 0.0
        %2749 = vmatpush1.msra.mxu0 %v2621
        %2750 = vmatprep.subr.mxu0 0.0
        %2751 = vmatpush1.msra.mxu0 %v2622
        %2752 = vmatprep.subr.mxu0 0.0
        %2753 = vmatpush1.msra.mxu0 %v2623
        %2754 = vmatprep.subr.mxu0 0.0
        %2755 = vmatpush1.msra.mxu0 %v2624
        %2756 = vmatprep.subr.mxu0 0.0
        %2757 = vmatpush1.msra.mxu0 %v2625
        %2758 = vmatprep.subr.mxu0 0.0
        %2759 = vmatpush1.msra.mxu0 %v2626
        %2760 = vmatprep.subr.mxu0 0.0
        %2761 = vmatpush1.msra.mxu0 %v2627
        %2762 = vmatprep.subr.mxu0 0.0
        %2763 = vmatpush1.msra.mxu0 %v2628
        %2764 = vmatprep.subr.mxu0 0.0
        %2765 = vmatpush1.msra.mxu0 %v2629
        %2766 = vmatprep.subr.mxu0 0.0
        %2767 = vmatpush1.msra.mxu0 %v2630
        %2768 = vmatprep.subr.mxu0 0.0
        %2769 = vmatpush1.msra.mxu0 %v2631
        %2770 = vmatprep.subr.mxu0 0.0
        %2771 = vmatpush1.msra.mxu0 %v2632
        %2772 = vmatprep.mubr.f32.mxu0 %v2561
        %2773 = vmatmul.mubr.f32.gmra.mrb[0].mxu0 %v2559
        %v2774 = vpop.f32.mrb[0].mxu0
        %v2775 = vadd.f32 %v2700, %v2774
        %v2776 = vpop.f32.mrb[0].mxu0
        %2777 = vmatprep.mubr.f32.mxu0 %v2567
        %2778 = vmatmul.mubr.f32.gmra.mrb[0].mxu0 %v2565
        %v2779 = vpop.f32.mrb[0].mxu0
        %v2780 = vadd.f32 %v2705, %v2779
        %v2781 = vpop.f32.mrb[0].mxu0
        %2782 = vdwg.mxu0
        %v2783 = vmul.f32 %v2775, %v2775
        %v2784 = vmul.f32 %v2780, %v2780
        %2785 = vmatprep.subr.mxu0 0.0
        %2786 = vmatpush1.msra.mxu0 %v1466
        %2787 = vmatprep.subr.mxu0 0.0
        %2788 = vmatpush1.msra.mxu0 %v1467
        %2789 = vmatprep.subr.mxu0 0.0
        %2790 = vmatpush1.msra.mxu0 %v1468
        %2791 = vmatprep.subr.mxu0 0.0
        %2792 = vmatpush1.msra.mxu0 %v1469
        %2793 = vmatprep.subr.mxu0 0.0
        %2794 = vmatpush1.msra.mxu0 %v1470
        %2795 = vmatprep.subr.mxu0 0.0
        %2796 = vmatpush1.msra.mxu0 %v1471
        %2797 = vmatprep.subr.mxu0 0.0
        %2798 = vmatpush1.msra.mxu0 %v1472
        %2799 = vmatprep.subr.mxu0 0.0
        %2800 = vmatpush1.msra.mxu0 %v1473
        %2801 = vmatprep.subr.mxu0 0.0
        %2802 = vmatpush1.msra.mxu0 %v1474
        %2803 = vmatprep.subr.mxu0 0.0
        %2804 = vmatpush1.msra.mxu0 %v1475
        %2805 = vmatprep.subr.mxu0 0.0
        %2806 = vmatpush1.msra.mxu0 %v1476
        %2807 = vmatprep.subr.mxu0 0.0
        %2808 = vmatpush1.msra.mxu0 %v1477
        %2809 = vmatprep.subr.mxu0 0.0
        %2810 = vmatpush1.msra.mxu0 %v1478
        %2811 = vmatprep.subr.mxu0 0.0
        %2812 = vmatpush1.msra.mxu0 %v1479
        %2813 = vmatprep.subr.mxu0 0.0
        %2814 = vmatpush1.msra.mxu0 %v1480
        %2815 = vmatprep.subr.mxu0 0.0
        %2816 = vmatpush1.msra.mxu0 %v1481
        %2817 = vmatprep.subr.mxu0 0.0
        %2818 = vmatpush1.msra.mxu0 0.0
        %2819 = vmatprep.subr.mxu0 0.0
        %2820 = vmatpush1.msra.mxu0 0.0
        %2821 = vmatprep.subr.mxu0 0.0
        %2822 = vmatpush1.msra.mxu0 0.0
        %2823 = vmatprep.subr.mxu0 0.0
        %2824 = vmatpush1.msra.mxu0 0.0
        %2825 = vmatprep.subr.mxu0 0.0
        %2826 = vmatpush1.msra.mxu0 0.0
        %2827 = vmatprep.subr.mxu0 0.0
        %2828 = vmatpush1.msra.mxu0 0.0
        %2829 = vmatprep.subr.mxu0 0.0
        %2830 = vmatpush1.msra.mxu0 0.0
        %2831 = vmatprep.subr.mxu0 0.0
        %2832 = vmatpush1.msra.mxu0 0.0
        %2833 = vmatprep.subr.mxu0 0.0
        %2834 = vmatpush1.msra.mxu0 0.0
        %2835 = vmatprep.subr.mxu0 0.0
        %2836 = vmatpush1.msra.mxu0 0.0
        %2837 = vmatprep.subr.mxu0 0.0
        %2838 = vmatpush1.msra.mxu0 0.0
        %2839 = vmatprep.subr.mxu0 0.0
        %2840 = vmatpush1.msra.mxu0 0.0
        %2841 = vmatprep.subr.mxu0 0.0
        %2842 = vmatpush1.msra.mxu0 0.0
        %2843 = vmatprep.subr.mxu0 0.0
        %2844 = vmatpush1.msra.mxu0 0.0
        %2845 = vmatprep.subr.mxu0 0.0
        %2846 = vmatpush1.msra.mxu0 0.0
        %2847 = vmatprep.subr.mxu0 0.0
        %2848 = vmatpush1.msra.mxu0 0.0
        %2849 = vmatprep.mubr.f32.mxu0 0.0
        %2850 = vmatmul.mubr.f32.gmra.mrb[0].mxu0 %v2775
        %v2851 = vpop.f32.mrb[0].mxu0
        %v2852 = vadd.f32 0.0, %v2851
        %v2853 = vpop.f32.mrb[0].mxu0
        %2854 = vmatprep.mubr.f32.mxu0 0.0
        %2855 = vmatmul.mubr.f32.gmra.mrb[0].mxu0 %v2780
        %v2856 = vpop.f32.mrb[0].mxu0
        %v2857 = vadd.f32 0.0, %v2856
        %v2858 = vpop.f32.mrb[0].mxu0
        %2859 = vmatprep.mubr.f32.mxu0 0.0
        %2860 = vmatmul.mubr.f32.gmra.mrb[0].mxu0 %v2783
        %v2861 = vpop.f32.mrb[0].mxu0
        %v2862 = vadd.f32 0.0, %v2861
        %v2863 = vpop.f32.mrb[0].mxu0
        %2864 = vmatprep.mubr.f32.mxu0 0.0
        %2865 = vmatmul.mubr.f32.gmra.mrb[0].mxu0 %v2784
        %v2866 = vpop.f32.mrb[0].mxu0
        %v2867 = vadd.f32 0.0, %v2866
        %v2868 = vpop.f32.mrb[0].mxu0
        %2869 = vdwg.mxu0
        %v2870 = vmul.f32 %v2852, %v2852
        %v2871 = vmul.f32 %v2857, %v2857
        %v2872 = vsub.f32 %v2862, %v2870
        %v2873 = vsub.f32 %v2867, %v2871
        %v2874 = vadd.f32 %v2872, 1e-05
        %v2875 = vadd.f32 %v2873, 1e-05
        %v2876 = vrsqrt.pop %v2874
        %v2877 = vrsqrt.pop %v2875
        %v2878 = vsub.f32 0.0, %v2852
        %v2879 = vsub.f32 0.0, %v2857
        %v2880 = vmul.f32 %v2878, %v2876
        %v2881 = vmul.f32 %v2879, %v2877
        %v2883 = vsel %vm2085, %v2876, 0
        %v2886 = vsel %vm2085, %v2877, 0
        %v2889 = vsel %vm2085, %v2880, 0
        %v2892 = vsel %vm2085, %v2881, 0
        %v2895 = vsel %vm2092, %v1482, 0
        %2897 = vmatprep.subr.mxu0 0.0
        %2898 = vmatpush1.msra.mxu0 %v2895
        %2899 = vmatprep.subr.mxu0 0.0
        %2900 = vmatpush1.msra.mxu0 0.0
        %2901 = vmatprep.subr.mxu0 0.0
        %2902 = vmatpush1.msra.mxu0 0.0
        %2903 = vmatprep.subr.mxu0 0.0
        %2904 = vmatpush1.msra.mxu0 0.0
        %2905 = vmatprep.subr.mxu0 0.0
        %2906 = vmatpush1.msra.mxu0 0.0
        %2907 = vmatprep.subr.mxu0 0.0
        %2908 = vmatpush1.msra.mxu0 0.0
        %2909 = vmatprep.subr.mxu0 0.0
        %2910 = vmatpush1.msra.mxu0 0.0
        %2911 = vmatprep.subr.mxu0 0.0
        %2912 = vmatpush1.msra.mxu0 0.0
        %2913 = vmatprep.subr.mxu0 0.0
        %2914 = vmatpush1.msra.mxu0 0.0
        %2915 = vmatprep.subr.mxu0 0.0
        %2916 = vmatpush1.msra.mxu0 0.0
        %2917 = vmatprep.subr.mxu0 0.0
        %2918 = vmatpush1.msra.mxu0 0.0
        %2919 = vmatprep.subr.mxu0 0.0
        %2920 = vmatpush1.msra.mxu0 0.0
        %2921 = vmatprep.subr.mxu0 0.0
        %2922 = vmatpush1.msra.mxu0 0.0
        %2923 = vmatprep.subr.mxu0 0.0
        %2924 = vmatpush1.msra.mxu0 0.0
        %2925 = vmatprep.subr.mxu0 0.0
        %2926 = vmatpush1.msra.mxu0 0.0
        %2927 = vmatprep.subr.mxu0 0.0
        %2928 = vmatpush1.msra.mxu0 0.0
        %2929 = vmatprep.subr.mxu0 0.0
        %2930 = vmatpush1.msra.mxu0 0.0
        %2931 = vmatprep.subr.mxu0 0.0
        %2932 = vmatpush1.msra.mxu0 0.0
        %2933 = vmatprep.subr.mxu0 0.0
        %2934 = vmatpush1.msra.mxu0 0.0
        %2935 = vmatprep.subr.mxu0 0.0
        %2936 = vmatpush1.msra.mxu0 0.0
        %2937 = vmatprep.subr.mxu0 0.0
        %2938 = vmatpush1.msra.mxu0 0.0
        %2939 = vmatprep.subr.mxu0 0.0
        %2940 = vmatpush1.msra.mxu0 0.0
        %2941 = vmatprep.subr.mxu0 0.0
        %2942 = vmatpush1.msra.mxu0 0.0
        %2943 = vmatprep.subr.mxu0 0.0
        %2944 = vmatpush1.msra.mxu0 0.0
        %2945 = vmatprep.subr.mxu0 0.0
        %2946 = vmatpush1.msra.mxu0 0.0
        %2947 = vmatprep.subr.mxu0 0.0
        %2948 = vmatpush1.msra.mxu0 0.0
        %2949 = vmatprep.subr.mxu0 0.0
        %2950 = vmatpush1.msra.mxu0 0.0
        %2951 = vmatprep.subr.mxu0 0.0
        %2952 = vmatpush1.msra.mxu0 0.0
        %2953 = vmatprep.subr.mxu0 0.0
        %2954 = vmatpush1.msra.mxu0 0.0
        %2955 = vmatprep.subr.mxu0 0.0
        %2956 = vmatpush1.msra.mxu0 0.0
        %2957 = vmatprep.subr.mxu0 0.0
        %2958 = vmatpush1.msra.mxu0 0.0
        %2959 = vmatprep.subr.mxu0 0.0
        %2960 = vmatpush1.msra.mxu0 0.0
        %2961 = vmatprep.mubr.f32.mxu0 0.0
        %2962 = vmatmul.mubr.f32.gmra.mrb[0].mxu0 %v2883
        %v2963 = vpop.f32.mrb[0].mxu0
        %v2964 = vadd.f32 0.0, %v2963
        %v2965 = vpop.f32.mrb[0].mxu0
        %2966 = vmatprep.mubr.f32.mxu0 0.0
        %2967 = vmatmul.mubr.f32.gmra.mrb[0].mxu0 %v2886
        %v2968 = vpop.f32.mrb[0].mxu0
        %v2969 = vadd.f32 0.0, %v2968
        %v2970 = vpop.f32.mrb[0].mxu0
        %2971 = vmatprep.mubr.f32.mxu0 0.0
        %2972 = vmatmul.mubr.f32.gmra.mrb[0].mxu0 %v2889
        %v2973 = vpop.f32.mrb[0].mxu0
        %v2974 = vadd.f32 0.0, %v2973
        %v2975 = vpop.f32.mrb[0].mxu0
        %2976 = vmatprep.mubr.f32.mxu0 0.0
        %2977 = vmatmul.mubr.f32.gmra.mrb[0].mxu0 %v2892
        %v2978 = vpop.f32.mrb[0].mxu0
        %v2979 = vadd.f32 0.0, %v2978
        %v2980 = vpop.f32.mrb[0].mxu0
        %2981 = vdwg.mxu0
        %v2982 = vmul.f32 %v2775, %v2964
        %v2983 = vmul.f32 %v2780, %v2969
        %v2984 = vadd.f32 %v2982, %v2974
        %v2985 = vadd.f32 %v2983, %v2979
        %v2986 = vmax.f32 %v2984, 0.0
        %v2987 = vmax.f32 %v2985, 0.0
        %v2988 = vld [vmem:[#allocation4] sm:$0xff]
        %v2989 = vld [vmem:[#allocation4 + $0x8] sm:$0xff]
        %v2990 = vld [vmem:[#allocation4 + $0x10] sm:$0xff]
        %v2991 = vld [vmem:[#allocation4 + $0x18] sm:$0xff]
        %v2992 = vld [vmem:[#allocation4 + $0x20] sm:$0xff]
        %v2993 = vld [vmem:[#allocation4 + $0x28] sm:$0xff]
        %v2994 = vld [vmem:[#allocation4 + $0x30] sm:$0xff]
        %v2995 = vld [vmem:[#allocation4 + $0x38] sm:$0xff]
        %v2996 = vld [vmem:[%s15] sm:$0xff]
        %v2997 = vld [vmem:[%s15 + $0x8] sm:$0xff]
        %v2998 = vld [vmem:[%s15 + $0x10] sm:$0xff]
        %v2999 = vld [vmem:[%s15 + $0x18] sm:$0xff]
        %3000 = vrot.lane.b32.xlu0 %v2986, 9
        %v3001 = vpop.permute.xlu0 %3000
        %3002 = vrot.lane.b32.xlu0 %v2987, 9
        %v3003 = vpop.permute.xlu0 %3002
        %v3004 = vlaneseq
        %v3005 = vshrl.u32 %v3004, 7
        %v3006 = vsub.s32 0, %v3005
        %v3007 = vrot.slane %v1364, %v3006
        %v3008 = vmul.f32 %v3001, %v3007
        %v3009 = vmul.f32 %v3003, %v3007
        %3010 = vrot.lane.b32.xlu0 %v2986, 8
        %v3011 = vpop.permute.xlu0 %3010
        %3012 = vrot.lane.b32.xlu0 %v2987, 8
        %v3013 = vpop.permute.xlu0 %3012
        %v3014 = vlaneseq
        %v3015 = vshrl.u32 %v3014, 7
        %v3016 = vsub.s32 1, %v3015
        %v3017 = vrot.slane %v1364, %v3016
        %v3018 = vmul.f32 %v3011, %v3017
        %v3019 = vmul.f32 %v3013, %v3017
        %3020 = vrot.lane.b32.xlu0 %v2986, 7
        %v3021 = vpop.permute.xlu0 %3020
        %3022 = vrot.lane.b32.xlu0 %v2987, 7
        %v3023 = vpop.permute.xlu0 %3022
        %v3024 = vlaneseq
        %v3025 = vshrl.u32 %v3024, 7
        %v3026 = vsub.s32 2, %v3025
        %v3027 = vrot.slane %v1364, %v3026
        %v3028 = vmul.f32 %v3021, %v3027
        %v3029 = vmul.f32 %v3023, %v3027
        %3030 = vrot.lane.b32.xlu0 %v2986, 1
        %v3031 = vpop.permute.xlu0 %3030
        %3032 = vrot.lane.b32.xlu0 %v2987, 1
        %v3033 = vpop.permute.xlu0 %3032
        %v3034 = vlaneseq
        %v3035 = vshrl.u32 %v3034, 7
        %v3036 = vsub.s32 3, %v3035
        %v3037 = vrot.slane %v1364, %v3036
        %v3038 = vmul.f32 %v3031, %v3037
        %v3039 = vmul.f32 %v3033, %v3037
        %3040 = vrot.lane.b32.xlu0 %v2986, 127
        %v3041 = vpop.permute.xlu0 %3040
        %3042 = vrot.lane.b32.xlu0 %v2987, 127
        %v3043 = vpop.permute.xlu0 %3042
        %v3044 = vlaneseq
        %v3045 = vshrl.u32 %v3044, 7
        %v3046 = vsub.s32 4, %v3045
        %v3047 = vrot.slane %v1364, %v3046
        %v3048 = vmul.f32 %v3041, %v3047
        %v3049 = vmul.f32 %v3043, %v3047
        %3050 = vrot.lane.b32.xlu0 %v2986, 121
        %v3051 = vpop.permute.xlu0 %3050
        %3052 = vrot.lane.b32.xlu0 %v2987, 121
        %v3053 = vpop.permute.xlu0 %3052
        %v3054 = vlaneseq
        %v3055 = vshrl.u32 %v3054, 7
        %v3056 = vsub.s32 5, %v3055
        %v3057 = vrot.slane %v1364, %v3056
        %v3058 = vmul.f32 %v3051, %v3057
        %v3059 = vmul.f32 %v3053, %v3057
        %3060 = vrot.lane.b32.xlu0 %v2986, 120
        %v3061 = vpop.permute.xlu0 %3060
        %3062 = vrot.lane.b32.xlu0 %v2987, 120
        %v3063 = vpop.permute.xlu0 %3062
        %v3064 = vlaneseq
        %v3065 = vshrl.u32 %v3064, 7
        %v3066 = vsub.s32 6, %v3065
        %v3067 = vrot.slane %v1364, %v3066
        %v3068 = vmul.f32 %v3061, %v3067
        %v3069 = vmul.f32 %v3063, %v3067
        %3070 = vrot.lane.b32.xlu0 %v2986, 119
        %v3071 = vpop.permute.xlu0 %3070
        %3072 = vrot.lane.b32.xlu0 %v2987, 119
        %v3073 = vpop.permute.xlu0 %3072
        %v3074 = vlaneseq
        %v3075 = vshrl.u32 %v3074, 7
        %v3076 = vsub.s32 7, %v3075
        %v3077 = vrot.slane %v1364, %v3076
        %v3078 = vmul.f32 %v3071, %v3077
        %v3079 = vmul.f32 %v3073, %v3077
        %3081 = vset.pattern.permute.xlu0 0
        %3082 = vperm.xlu0 %3081, %v2996
        %v3083 = vpop.permute.xlu0 %3082
        %3086 = vset.pattern.permute.xlu0 0
        %3087 = vperm.xlu0 %3086, %v2997
        %v3088 = vpop.permute.xlu0 %3087
        %3091 = vset.pattern.permute.xlu0 0
        %3092 = vperm.xlu0 %3091, %v2998
        %v3093 = vpop.permute.xlu0 %3092
        %3096 = vset.pattern.permute.xlu0 0
        %3097 = vperm.xlu0 %3096, %v2999
        %v3098 = vpop.permute.xlu0 %3097
        %vm3100 = vcmask 130048
        %v3102 = vsel %vm3100, %v2989, 0
        %v3105 = vsel %vm3100, %v2991, 0
        %v3108 = vsel %vm3100, %v2993, 0
        %v3111 = vsel %vm3100, %v2995, 0
        %3113 = vmatprep.subr.mxu0 0.0
        %3114 = vmatpush1.msra.mxu0 %v3008
        %3115 = vmatprep.subr.mxu0 0.0
        %3116 = vmatpush1.msra.mxu0 %v3009
        %3117 = vmatprep.subr.mxu0 0.0
        %3118 = vmatpush1.msra.mxu0 %v3018
        %3119 = vmatprep.subr.mxu0 0.0
        %3120 = vmatpush1.msra.mxu0 %v3019
        %3121 = vmatprep.subr.mxu0 0.0
        %3122 = vmatpush1.msra.mxu0 %v3028
        %3123 = vmatprep.subr.mxu0 0.0
        %3124 = vmatpush1.msra.mxu0 %v3029
        %3125 = vmatprep.subr.mxu0 0.0
        %3126 = vmatpush1.msra.mxu0 %v3038
        %3127 = vmatprep.subr.mxu0 0.0
        %3128 = vmatpush1.msra.mxu0 %v3039
        %3129 = vmatprep.subr.mxu0 0.0
        %3130 = vmatpush1.msra.mxu0 %v2986
        %3131 = vmatprep.subr.mxu0 0.0
        %3132 = vmatpush1.msra.mxu0 %v2987
        %3133 = vmatprep.subr.mxu0 0.0
        %3134 = vmatpush1.msra.mxu0 %v3048
        %3135 = vmatprep.subr.mxu0 0.0
        %3136 = vmatpush1.msra.mxu0 %v3049
        %3137 = vmatprep.subr.mxu0 0.0
        %3138 = vmatpush1.msra.mxu0 %v3058
        %3139 = vmatprep.subr.mxu0 0.0
        %3140 = vmatpush1.msra.mxu0 %v3059
        %3141 = vmatprep.subr.mxu0 0.0
        %3142 = vmatpush1.msra.mxu0 %v3068
        %3143 = vmatprep.subr.mxu0 0.0
        %3144 = vmatpush1.msra.mxu0 %v3069
        %3145 = vmatprep.subr.mxu0 0.0
        %3146 = vmatpush1.msra.mxu0 %v3078
        %3147 = vmatprep.subr.mxu0 0.0
        %3148 = vmatpush1.msra.mxu0 %v3079
        %3149 = vmatprep.subr.mxu0 0.0
        %3150 = vmatpush1.msra.mxu0 0.0
        %3151 = vmatprep.subr.mxu0 0.0
        %3152 = vmatpush1.msra.mxu0 0.0
        %3153 = vmatprep.subr.mxu0 0.0
        %3154 = vmatpush1.msra.mxu0 0.0
        %3155 = vmatprep.subr.mxu0 0.0
        %3156 = vmatpush1.msra.mxu0 0.0
        %3157 = vmatprep.subr.mxu0 0.0
        %3158 = vmatpush1.msra.mxu0 0.0
        %3159 = vmatprep.subr.mxu0 0.0
        %3160 = vmatpush1.msra.mxu0 0.0
        %3161 = vmatprep.subr.mxu0 0.0
        %3162 = vmatpush1.msra.mxu0 0.0
        %3163 = vmatprep.subr.mxu0 0.0
        %3164 = vmatpush1.msra.mxu0 0.0
        %3165 = vmatprep.subr.mxu0 0.0
        %3166 = vmatpush1.msra.mxu0 0.0
        %3167 = vmatprep.subr.mxu0 0.0
        %3168 = vmatpush1.msra.mxu0 0.0
        %3169 = vmatprep.subr.mxu0 0.0
        %3170 = vmatpush1.msra.mxu0 0.0
        %3171 = vmatprep.subr.mxu0 0.0
        %3172 = vmatpush1.msra.mxu0 0.0
        %3173 = vmatprep.subr.mxu0 0.0
        %3174 = vmatpush1.msra.mxu0 0.0
        %3175 = vmatprep.subr.mxu0 0.0
        %3176 = vmatpush1.msra.mxu0 0.0
        %3177 = vmatprep.mubr.f32.mxu0 %v3102
        %3178 = vmatmul.mubr.f32.gmra.mrb[0].mxu0 %v2988
        %v3179 = vpop.f32.mrb[0].mxu0
        %v3180 = vadd.f32 %v3083, %v3179
        %v3181 = vpop.f32.mrb[0].mxu0
        %3182 = vmatprep.mubr.f32.mxu0 %v3105
        %3183 = vmatmul.mubr.f32.gmra.mrb[0].mxu0 %v2990
        %v3184 = vpop.f32.mrb[0].mxu0
        %v3185 = vadd.f32 %v3088, %v3184
        %v3186 = vpop.f32.mrb[0].mxu0
        %3187 = vmatprep.mubr.f32.mxu0 %v3108
        %3188 = vmatmul.mubr.f32.gmra.mrb[0].mxu0 %v2992
        %v3189 = vpop.f32.mrb[0].mxu0
        %v3190 = vadd.f32 %v3093, %v3189
        %v3191 = vpop.f32.mrb[0].mxu0
        %3192 = vmatprep.mubr.f32.mxu0 %v3111
        %3193 = vmatmul.mubr.f32.gmra.mrb[0].mxu0 %v2994
        %v3194 = vpop.f32.mrb[0].mxu0
        %v3195 = vadd.f32 %v3098, %v3194
        %v3196 = vpop.f32.mrb[0].mxu0
        %3197 = vdwg.mxu0
        %v3198 = vld [vmem:[#allocation25] sm:$0xff]
        %v3199 = vld [vmem:[#allocation25 + $0x8] sm:$0xff]
        %v3200 = vld [vmem:[#allocation25 + $0x10] sm:$0xff]
        %v3201 = vld [vmem:[#allocation25 + $0x18] sm:$0xff]
        %v3202 = vld [vmem:[#allocation25 + $0x20] sm:$0xff]
        %v3203 = vld [vmem:[#allocation25 + $0x28] sm:$0xff]
        %v3204 = vld [vmem:[#allocation25 + $0x30] sm:$0xff]
        %v3205 = vld [vmem:[#allocation25 + $0x38] sm:$0xff]
        %v3206 = vld [vmem:[#allocation25 + $0x40] sm:$0xff]
        %v3207 = vld [vmem:[#allocation25 + $0x48] sm:$0xff]
        %v3208 = vld [vmem:[#allocation25 + $0x50] sm:$0xff]
        %v3209 = vld [vmem:[#allocation25 + $0x58] sm:$0xff]
        %v3210 = vld [vmem:[#allocation25 + $0x60] sm:$0xff]
        %v3211 = vld [vmem:[#allocation25 + $0x68] sm:$0xff]
        %v3212 = vld [vmem:[#allocation25 + $0x70] sm:$0xff]
        %v3213 = vld [vmem:[#allocation25 + $0x78] sm:$0xff]
        %3214 = vmatprep.subr.mxu0 0.0
        %3215 = vmatpush1.msra.mxu0 %v3198
        %3216 = vmatprep.subr.mxu0 0.0
        %3217 = vmatpush1.msra.mxu0 %v3199
        %3218 = vmatprep.subr.mxu0 0.0
        %3219 = vmatpush1.msra.mxu0 %v3200
        %3220 = vmatprep.subr.mxu0 0.0
        %3221 = vmatpush1.msra.mxu0 %v3201
        %3222 = vmatprep.subr.mxu0 0.0
        %3223 = vmatpush1.msra.mxu0 %v3202
        %3224 = vmatprep.subr.mxu0 0.0
        %3225 = vmatpush1.msra.mxu0 %v3203
        %3226 = vmatprep.subr.mxu0 0.0
        %3227 = vmatpush1.msra.mxu0 %v3204
        %3228 = vmatprep.subr.mxu0 0.0
        %3229 = vmatpush1.msra.mxu0 %v3205
        %3230 = vmatprep.subr.mxu0 0.0
        %3231 = vmatpush1.msra.mxu0 %v3206
        %3232 = vmatprep.subr.mxu0 0.0
        %3233 = vmatpush1.msra.mxu0 %v3207
        %3234 = vmatprep.subr.mxu0 0.0
        %3235 = vmatpush1.msra.mxu0 %v3208
        %3236 = vmatprep.subr.mxu0 0.0
        %3237 = vmatpush1.msra.mxu0 %v3209
        %3238 = vmatprep.subr.mxu0 0.0
        %3239 = vmatpush1.msra.mxu0 %v3210
        %3240 = vmatprep.subr.mxu0 0.0
        %3241 = vmatpush1.msra.mxu0 %v3211
        %3242 = vmatprep.subr.mxu0 0.0
        %3243 = vmatpush1.msra.mxu0 %v3212
        %3244 = vmatprep.subr.mxu0 0.0
        %3245 = vmatpush1.msra.mxu0 %v3213
        %3246 = vmatprep.subr.mxu0 0.0
        %3247 = vmatpush1.msra.mxu0 0.0
        %3248 = vmatprep.subr.mxu0 0.0
        %3249 = vmatpush1.msra.mxu0 0.0
        %3250 = vmatprep.subr.mxu0 0.0
        %3251 = vmatpush1.msra.mxu0 0.0
        %3252 = vmatprep.subr.mxu0 0.0
        %3253 = vmatpush1.msra.mxu0 0.0
        %3254 = vmatprep.subr.mxu0 0.0
        %3255 = vmatpush1.msra.mxu0 0.0
        %3256 = vmatprep.subr.mxu0 0.0
        %3257 = vmatpush1.msra.mxu0 0.0
        %3258 = vmatprep.subr.mxu0 0.0
        %3259 = vmatpush1.msra.mxu0 0.0
        %3260 = vmatprep.subr.mxu0 0.0
        %3261 = vmatpush1.msra.mxu0 0.0
        %3262 = vmatprep.subr.mxu0 0.0
        %3263 = vmatpush1.msra.mxu0 0.0
        %3264 = vmatprep.subr.mxu0 0.0
        %3265 = vmatpush1.msra.mxu0 0.0
        %3266 = vmatprep.subr.mxu0 0.0
        %3267 = vmatpush1.msra.mxu0 0.0
        %3268 = vmatprep.subr.mxu0 0.0
        %3269 = vmatpush1.msra.mxu0 0.0
        %3270 = vmatprep.subr.mxu0 0.0
        %3271 = vmatpush1.msra.mxu0 0.0
        %3272 = vmatprep.subr.mxu0 0.0
        %3273 = vmatpush1.msra.mxu0 0.0
        %3274 = vmatprep.subr.mxu0 0.0
        %3275 = vmatpush1.msra.mxu0 0.0
        %3276 = vmatprep.subr.mxu0 0.0
        %3277 = vmatpush1.msra.mxu0 0.0
        %3278 = vmatprep.mubr.f32.mxu0 0.0
        %3279 = vmatmul.mubr.f32.gmra.mrb[0].mxu0 %v3180
        %v3280 = vpop.f32.mrb[0].mxu0
        %v3281 = vadd.f32 0.0, %v3280
        %v3282 = vpop.f32.mrb[0].mxu0
        %3283 = vmatprep.mubr.f32.mxu0 0.0
        %3284 = vmatmul.mubr.f32.gmra.mrb[0].mxu0 %v3185
        %v3285 = vpop.f32.mrb[0].mxu0
        %v3286 = vadd.f32 0.0, %v3285
        %v3287 = vpop.f32.mrb[0].mxu0
        %3288 = vmatprep.mubr.f32.mxu0 0.0
        %3289 = vmatmul.mubr.f32.gmra.mrb[0].mxu0 %v3190
        %v3290 = vpop.f32.mrb[0].mxu0
        %v3291 = vadd.f32 0.0, %v3290
        %v3292 = vpop.f32.mrb[0].mxu0
        %3293 = vmatprep.mubr.f32.mxu0 0.0
        %3294 = vmatmul.mubr.f32.gmra.mrb[0].mxu0 %v3195
        %v3295 = vpop.f32.mrb[0].mxu0
        %v3296 = vadd.f32 0.0, %v3295
        %v3297 = vpop.f32.mrb[0].mxu0
        %3298 = vdwg.mxu0
        %v3299 = vmul.f32 %v3281, %v3281
        %v3300 = vmul.f32 %v3286, %v3286
        %v3301 = vmul.f32 %v3291, %v3291
        %v3302 = vmul.f32 %v3296, %v3296
        %vm3303 = vcmask 261120
        %v3305 = vsel %vm3303, %v3281, 0
        %v3308 = vsel %vm3303, %v3286, 0
        %v3311 = vsel %vm3303, %v3291, 0
        %v3314 = vsel %vm3303, %v3296, 0
        %v3317 = vsel %vm3303, %v3299, 0
        %v3320 = vsel %vm3303, %v3300, 0
        %v3323 = vsel %vm3303, %v3301, 0
        %v3326 = vsel %vm3303, %v3302, 0
        %3328 = vmatprep.subr.mxu0 0.0
        %3329 = vmatpush1.msra.mxu0 %v1483
        %3330 = vmatprep.subr.mxu0 0.0
        %3331 = vmatpush1.msra.mxu0 %v1484
        %3332 = vmatprep.subr.mxu0 0.0
        %3333 = vmatpush1.msra.mxu0 %v1485
        %3334 = vmatprep.subr.mxu0 0.0
        %3335 = vmatpush1.msra.mxu0 %v1486
        %3336 = vmatprep.subr.mxu0 0.0
        %3337 = vmatpush1.msra.mxu0 0.0
        %3338 = vmatprep.subr.mxu0 0.0
        %3339 = vmatpush1.msra.mxu0 0.0
        %3340 = vmatprep.subr.mxu0 0.0
        %3341 = vmatpush1.msra.mxu0 0.0
        %3342 = vmatprep.subr.mxu0 0.0
        %3343 = vmatpush1.msra.mxu0 0.0
        %3344 = vmatprep.subr.mxu0 0.0
        %3345 = vmatpush1.msra.mxu0 0.0
        %3346 = vmatprep.subr.mxu0 0.0
        %3347 = vmatpush1.msra.mxu0 0.0
        %3348 = vmatprep.subr.mxu0 0.0
        %3349 = vmatpush1.msra.mxu0 0.0
        %3350 = vmatprep.subr.mxu0 0.0
        %3351 = vmatpush1.msra.mxu0 0.0
        %3352 = vmatprep.subr.mxu0 0.0
        %3353 = vmatpush1.msra.mxu0 0.0
        %3354 = vmatprep.subr.mxu0 0.0
        %3355 = vmatpush1.msra.mxu0 0.0
        %3356 = vmatprep.subr.mxu0 0.0
        %3357 = vmatpush1.msra.mxu0 0.0
        %3358 = vmatprep.subr.mxu0 0.0
        %3359 = vmatpush1.msra.mxu0 0.0
        %3360 = vmatprep.subr.mxu0 0.0
        %3361 = vmatpush1.msra.mxu0 0.0
        %3362 = vmatprep.subr.mxu0 0.0
        %3363 = vmatpush1.msra.mxu0 0.0
        %3364 = vmatprep.subr.mxu0 0.0
        %3365 = vmatpush1.msra.mxu0 0.0
        %3366 = vmatprep.subr.mxu0 0.0
        %3367 = vmatpush1.msra.mxu0 0.0
        %3368 = vmatprep.subr.mxu0 0.0
        %3369 = vmatpush1.msra.mxu0 0.0
        %3370 = vmatprep.subr.mxu0 0.0
        %3371 = vmatpush1.msra.mxu0 0.0
        %3372 = vmatprep.subr.mxu0 0.0
        %3373 = vmatpush1.msra.mxu0 0.0
        %3374 = vmatprep.subr.mxu0 0.0
        %3375 = vmatpush1.msra.mxu0 0.0
        %3376 = vmatprep.subr.mxu0 0.0
        %3377 = vmatpush1.msra.mxu0 0.0
        %3378 = vmatprep.subr.mxu0 0.0
        %3379 = vmatpush1.msra.mxu0 0.0
        %3380 = vmatprep.subr.mxu0 0.0
        %3381 = vmatpush1.msra.mxu0 0.0
        %3382 = vmatprep.subr.mxu0 0.0
        %3383 = vmatpush1.msra.mxu0 0.0
        %3384 = vmatprep.subr.mxu0 0.0
        %3385 = vmatpush1.msra.mxu0 0.0
        %3386 = vmatprep.subr.mxu0 0.0
        %3387 = vmatpush1.msra.mxu0 0.0
        %3388 = vmatprep.subr.mxu0 0.0
        %3389 = vmatpush1.msra.mxu0 0.0
        %3390 = vmatprep.subr.mxu0 0.0
        %3391 = vmatpush1.msra.mxu0 0.0
        %3392 = vmatprep.mubr.f32.mxu0 0.0
        %3393 = vmatmul.mubr.f32.gmra.mrb[0].mxu0 %v3305
        %v3394 = vpop.f32.mrb[0].mxu0
        %v3395 = vadd.f32 0.0, %v3394
        %v3396 = vpop.f32.mrb[0].mxu0
        %3397 = vmatprep.mubr.f32.mxu0 0.0
        %3398 = vmatmul.mubr.f32.gmra.mrb[0].mxu0 %v3308
        %v3399 = vpop.f32.mrb[0].mxu0
        %v3400 = vadd.f32 0.0, %v3399
        %v3401 = vpop.f32.mrb[0].mxu0
        %3402 = vmatprep.mubr.f32.mxu0 0.0
        %3403 = vmatmul.mubr.f32.gmra.mrb[0].mxu0 %v3311
        %v3404 = vpop.f32.mrb[0].mxu0
        %v3405 = vadd.f32 0.0, %v3404
        %v3406 = vpop.f32.mrb[0].mxu0
        %3407 = vmatprep.mubr.f32.mxu0 0.0
        %3408 = vmatmul.mubr.f32.gmra.mrb[0].mxu0 %v3314
        %v3409 = vpop.f32.mrb[0].mxu0
        %v3410 = vadd.f32 0.0, %v3409
        %v3411 = vpop.f32.mrb[0].mxu0
        %3412 = vmatprep.mubr.f32.mxu0 0.0
        %3413 = vmatmul.mubr.f32.gmra.mrb[0].mxu0 %v3317
        %v3414 = vpop.f32.mrb[0].mxu0
        %v3415 = vadd.f32 0.0, %v3414
        %v3416 = vpop.f32.mrb[0].mxu0
        %3417 = vmatprep.mubr.f32.mxu0 0.0
        %3418 = vmatmul.mubr.f32.gmra.mrb[0].mxu0 %v3320
        %v3419 = vpop.f32.mrb[0].mxu0
        %v3420 = vadd.f32 0.0, %v3419
        %v3421 = vpop.f32.mrb[0].mxu0
        %3422 = vmatprep.mubr.f32.mxu0 0.0
        %3423 = vmatmul.mubr.f32.gmra.mrb[0].mxu0 %v3323
        %v3424 = vpop.f32.mrb[0].mxu0
        %v3425 = vadd.f32 0.0, %v3424
        %v3426 = vpop.f32.mrb[0].mxu0
        %3427 = vmatprep.mubr.f32.mxu0 0.0
        %3428 = vmatmul.mubr.f32.gmra.mrb[0].mxu0 %v3326
        %v3429 = vpop.f32.mrb[0].mxu0
        %v3430 = vadd.f32 0.0, %v3429
        %v3431 = vpop.f32.mrb[0].mxu0
        %3432 = vdwg.mxu0
        %v3433 = vmul.f32 %v3395, %v3395
        %v3434 = vmul.f32 %v3400, %v3400
        %v3435 = vmul.f32 %v3405, %v3405
        %v3436 = vmul.f32 %v3410, %v3410
        %v3437 = vsub.f32 %v3415, %v3433
        %v3438 = vsub.f32 %v3420, %v3434
        %v3439 = vsub.f32 %v3425, %v3435
        %v3440 = vsub.f32 %v3430, %v3436
        %v3441 = vadd.f32 %v3437, 1e-05
        %v3442 = vadd.f32 %v3438, 1e-05
        %v3443 = vadd.f32 %v3439, 1e-05
        %v3444 = vadd.f32 %v3440, 1e-05
        %v3445 = vrsqrt.pop %v3441
        %v3446 = vrsqrt.pop %v3442
        %v3447 = vrsqrt.pop %v3443
        %v3448 = vrsqrt.pop %v3444
        %v3449 = vsub.f32 0.0, %v3395
        %v3450 = vsub.f32 0.0, %v3400
        %v3451 = vsub.f32 0.0, %v3405
        %v3452 = vsub.f32 0.0, %v3410
        %v3453 = vmul.f32 %v3449, %v3445
        %v3454 = vmul.f32 %v3450, %v3446
        %v3455 = vmul.f32 %v3451, %v3447
        %v3456 = vmul.f32 %v3452, %v3448
        %v3458 = vsel %vm2085, %v3445, 0
        %v3461 = vsel %vm2085, %v3446, 0
        %v3464 = vsel %vm2085, %v3447, 0
        %v3467 = vsel %vm2085, %v3448, 0
        %v3470 = vsel %vm2085, %v3453, 0
        %v3473 = vsel %vm2085, %v3454, 0
        %v3476 = vsel %vm2085, %v3455, 0
        %v3479 = vsel %vm2085, %v3456, 0
        %v3482 = vsel %vm2092, %v1487, 0
        %3484 = vmatprep.subr.mxu0 0.0
        %3485 = vmatpush1.msra.mxu0 %v3482
        %3486 = vmatprep.subr.mxu0 0.0
        %3487 = vmatpush1.msra.mxu0 0.0
        %3488 = vmatprep.subr.mxu0 0.0
        %3489 = vmatpush1.msra.mxu0 0.0
        %3490 = vmatprep.subr.mxu0 0.0
        %3491 = vmatpush1.msra.mxu0 0.0
        %3492 = vmatprep.subr.mxu0 0.0
        %3493 = vmatpush1.msra.mxu0 0.0
        %3494 = vmatprep.subr.mxu0 0.0
        %3495 = vmatpush1.msra.mxu0 0.0
        %3496 = vmatprep.subr.mxu0 0.0
        %3497 = vmatpush1.msra.mxu0 0.0
        %3498 = vmatprep.subr.mxu0 0.0
        %3499 = vmatpush1.msra.mxu0 0.0
        %3500 = vmatprep.subr.mxu0 0.0
        %3501 = vmatpush1.msra.mxu0 0.0
        %3502 = vmatprep.subr.mxu0 0.0
        %3503 = vmatpush1.msra.mxu0 0.0
        %3504 = vmatprep.subr.mxu0 0.0
        %3505 = vmatpush1.msra.mxu0 0.0
        %3506 = vmatprep.subr.mxu0 0.0
        %3507 = vmatpush1.msra.mxu0 0.0
        %3508 = vmatprep.subr.mxu0 0.0
        %3509 = vmatpush1.msra.mxu0 0.0
        %3510 = vmatprep.subr.mxu0 0.0
        %3511 = vmatpush1.msra.mxu0 0.0
        %3512 = vmatprep.subr.mxu0 0.0
        %3513 = vmatpush1.msra.mxu0 0.0
        %3514 = vmatprep.subr.mxu0 0.0
        %3515 = vmatpush1.msra.mxu0 0.0
        %3516 = vmatprep.subr.mxu0 0.0
        %3517 = vmatpush1.msra.mxu0 0.0
        %3518 = vmatprep.subr.mxu0 0.0
        %3519 = vmatpush1.msra.mxu0 0.0
        %3520 = vmatprep.subr.mxu0 0.0
        %3521 = vmatpush1.msra.mxu0 0.0
        %3522 = vmatprep.subr.mxu0 0.0
        %3523 = vmatpush1.msra.mxu0 0.0
        %3524 = vmatprep.subr.mxu0 0.0
        %3525 = vmatpush1.msra.mxu0 0.0
        %3526 = vmatprep.subr.mxu0 0.0
        %3527 = vmatpush1.msra.mxu0 0.0
        %3528 = vmatprep.subr.mxu0 0.0
        %3529 = vmatpush1.msra.mxu0 0.0
        %3530 = vmatprep.subr.mxu0 0.0
        %3531 = vmatpush1.msra.mxu0 0.0
        %3532 = vmatprep.subr.mxu0 0.0
        %3533 = vmatpush1.msra.mxu0 0.0
        %3534 = vmatprep.subr.mxu0 0.0
        %3535 = vmatpush1.msra.mxu0 0.0
        %3536 = vmatprep.subr.mxu0 0.0
        %3537 = vmatpush1.msra.mxu0 0.0
        %3538 = vmatprep.subr.mxu0 0.0
        %3539 = vmatpush1.msra.mxu0 0.0
        %3540 = vmatprep.subr.mxu0 0.0
        %3541 = vmatpush1.msra.mxu0 0.0
        %3542 = vmatprep.subr.mxu0 0.0
        %3543 = vmatpush1.msra.mxu0 0.0
        %3544 = vmatprep.subr.mxu0 0.0
        %3545 = vmatpush1.msra.mxu0 0.0
        %3546 = vmatprep.subr.mxu0 0.0
        %3547 = vmatpush1.msra.mxu0 0.0
        %3548 = vmatprep.mubr.f32.mxu0 0.0
        %3549 = vmatmul.mubr.f32.gmra.mrb[0].mxu0 %v3458
        %v3550 = vpop.f32.mrb[0].mxu0
        %v3551 = vadd.f32 0.0, %v3550
        %v3552 = vpop.f32.mrb[0].mxu0
        %3553 = vmatprep.mubr.f32.mxu0 0.0
        %3554 = vmatmul.mubr.f32.gmra.mrb[0].mxu0 %v3461
        %v3555 = vpop.f32.mrb[0].mxu0
        %v3556 = vadd.f32 0.0, %v3555
        %v3557 = vpop.f32.mrb[0].mxu0
        %3558 = vmatprep.mubr.f32.mxu0 0.0
        %3559 = vmatmul.mubr.f32.gmra.mrb[0].mxu0 %v3464
        %v3560 = vpop.f32.mrb[0].mxu0
        %v3561 = vadd.f32 0.0, %v3560
        %v3562 = vpop.f32.mrb[0].mxu0
        %3563 = vmatprep.mubr.f32.mxu0 0.0
        %3564 = vmatmul.mubr.f32.gmra.mrb[0].mxu0 %v3467
        %v3565 = vpop.f32.mrb[0].mxu0
        %v3566 = vadd.f32 0.0, %v3565
        %v3567 = vpop.f32.mrb[0].mxu0
        %3568 = vmatprep.mubr.f32.mxu0 0.0
        %3569 = vmatmul.mubr.f32.gmra.mrb[0].mxu0 %v3470
        %v3570 = vpop.f32.mrb[0].mxu0
        %v3571 = vadd.f32 0.0, %v3570
        %v3572 = vpop.f32.mrb[0].mxu0
        %3573 = vmatprep.mubr.f32.mxu0 0.0
        %3574 = vmatmul.mubr.f32.gmra.mrb[0].mxu0 %v3473
        %v3575 = vpop.f32.mrb[0].mxu0
        %v3576 = vadd.f32 0.0, %v3575
        %v3577 = vpop.f32.mrb[0].mxu0
        %3578 = vmatprep.mubr.f32.mxu0 0.0
        %3579 = vmatmul.mubr.f32.gmra.mrb[0].mxu0 %v3476
        %v3580 = vpop.f32.mrb[0].mxu0
        %v3581 = vadd.f32 0.0, %v3580
        %v3582 = vpop.f32.mrb[0].mxu0
        %3583 = vmatprep.mubr.f32.mxu0 0.0
        %3584 = vmatmul.mubr.f32.gmra.mrb[0].mxu0 %v3479
        %v3585 = vpop.f32.mrb[0].mxu0
        %v3586 = vadd.f32 0.0, %v3585
        %v3587 = vpop.f32.mrb[0].mxu0
        %3588 = vdwg.mxu0
        %v3589 = vmul.f32 %v3281, %v3551
        %v3590 = vmul.f32 %v3286, %v3556
        %v3591 = vmul.f32 %v3291, %v3561
        %v3592 = vmul.f32 %v3296, %v3566
        %v3593 = vadd.f32 %v3589, %v3571
        %v3594 = vadd.f32 %v3590, %v3576
        %v3595 = vadd.f32 %v3591, %v3581
        %v3596 = vadd.f32 %v3592, %v3586
        %v3597 = vmax.f32 %v3593, 0.0
        %v3598 = vmax.f32 %v3594, 0.0
        %v3599 = vmax.f32 %v3595, 0.0
        %v3600 = vmax.f32 %v3596, 0.0
        %v3601 = vld [vmem:[%s1350] sm:$0xff]
        %v3602 = vld [vmem:[%s1350 + $0x8] sm:$0xff]
        %v3603 = vld [vmem:[#allocation6] sm:$0xff]
        %v3604 = vld [vmem:[#allocation6 + $0x8] sm:$0xff]
        %v3605 = vld [vmem:[#allocation6 + $0x10] sm:$0xff]
        %v3606 = vld [vmem:[#allocation6 + $0x18] sm:$0xff]
        %v3607 = vld [vmem:[#allocation6 + $0x20] sm:$0xff]
        %v3608 = vld [vmem:[#allocation6 + $0x28] sm:$0xff]
        %v3609 = vld [vmem:[#allocation6 + $0x30] sm:$0xff]
        %v3610 = vld [vmem:[#allocation6 + $0x38] sm:$0xff]
        %v3611 = vld [vmem:[%s19] sm:$0xff]
        %v3612 = vld [vmem:[%s19 + $0x8] sm:$0xff]
        %v3613 = vld [vmem:[%s19 + $0x10] sm:$0xff]
        %v3614 = vld [vmem:[%s19 + $0x18] sm:$0xff]
        %v3615 = vld [vmem:[%s19 + $0x20] sm:$0xff]
        %v3616 = vld [vmem:[%s19 + $0x28] sm:$0xff]
        %v3617 = vld [vmem:[%s19 + $0x30] sm:$0xff]
        %v3618 = vld [vmem:[%s19 + $0x38] sm:$0xff]
        %3620 = vset.pattern.permute.xlu0 0
        %3621 = vperm.xlu0 %3620, %v3611
        %v3622 = vpop.permute.xlu0 %3621
        %3625 = vset.pattern.permute.xlu0 0
        %3626 = vperm.xlu0 %3625, %v3612
        %v3627 = vpop.permute.xlu0 %3626
        %3630 = vset.pattern.permute.xlu0 0
        %3631 = vperm.xlu0 %3630, %v3613
        %v3632 = vpop.permute.xlu0 %3631
        %3635 = vset.pattern.permute.xlu0 0
        %3636 = vperm.xlu0 %3635, %v3614
        %v3637 = vpop.permute.xlu0 %3636
        %3640 = vset.pattern.permute.xlu0 0
        %3641 = vperm.xlu0 %3640, %v3615
        %v3642 = vpop.permute.xlu0 %3641
        %3645 = vset.pattern.permute.xlu0 0
        %3646 = vperm.xlu0 %3645, %v3616
        %v3647 = vpop.permute.xlu0 %3646
        %3650 = vset.pattern.permute.xlu0 0
        %3651 = vperm.xlu0 %3650, %v3617
        %v3652 = vpop.permute.xlu0 %3651
        %3655 = vset.pattern.permute.xlu0 0
        %3656 = vperm.xlu0 %3655, %v3618
        %v3657 = vpop.permute.xlu0 %3656
        %v3660 = vsel %vm3100, %v3603, 0
        %v3663 = vsel %vm3100, %v3604, 0
        %v3666 = vsel %vm3100, %v3605, 0
        %v3669 = vsel %vm3100, %v3606, 0
        %v3672 = vsel %vm3100, %v3607, 0
        %v3675 = vsel %vm3100, %v3608, 0
        %v3678 = vsel %vm3100, %v3609, 0
        %v3681 = vsel %vm3100, %v3610, 0
        %3683 = vmatprep.subr.mxu0 0.0
        %3684 = vmatpush1.msra.mxu0 %v3601
        %3685 = vmatprep.subr.mxu0 0.0
        %3686 = vmatpush1.msra.mxu0 %v3602
        %3687 = vmatprep.subr.mxu0 0.0
        %3688 = vmatpush1.msra.mxu0 0.0
        %3689 = vmatprep.subr.mxu0 0.0
        %3690 = vmatpush1.msra.mxu0 0.0
        %3691 = vmatprep.subr.mxu0 0.0
        %3692 = vmatpush1.msra.mxu0 0.0
        %3693 = vmatprep.subr.mxu0 0.0
        %3694 = vmatpush1.msra.mxu0 0.0
        %3695 = vmatprep.subr.mxu0 0.0
        %3696 = vmatpush1.msra.mxu0 0.0
        %3697 = vmatprep.subr.mxu0 0.0
        %3698 = vmatpush1.msra.mxu0 0.0
        %3699 = vmatprep.subr.mxu0 0.0
        %3700 = vmatpush1.msra.mxu0 0.0
        %3701 = vmatprep.subr.mxu0 0.0
        %3702 = vmatpush1.msra.mxu0 0.0
        %3703 = vmatprep.subr.mxu0 0.0
        %3704 = vmatpush1.msra.mxu0 0.0
        %3705 = vmatprep.subr.mxu0 0.0
        %3706 = vmatpush1.msra.mxu0 0.0
        %3707 = vmatprep.subr.mxu0 0.0
        %3708 = vmatpush1.msra.mxu0 0.0
        %3709 = vmatprep.subr.mxu0 0.0
        %3710 = vmatpush1.msra.mxu0 0.0
        %3711 = vmatprep.subr.mxu0 0.0
        %3712 = vmatpush1.msra.mxu0 0.0
        %3713 = vmatprep.subr.mxu0 0.0
        %3714 = vmatpush1.msra.mxu0 0.0
        %3715 = vmatprep.subr.mxu0 0.0
        %3716 = vmatpush1.msra.mxu0 0.0
        %3717 = vmatprep.subr.mxu0 0.0
        %3718 = vmatpush1.msra.mxu0 0.0
        %3719 = vmatprep.subr.mxu0 0.0
        %3720 = vmatpush1.msra.mxu0 0.0
        %3721 = vmatprep.subr.mxu0 0.0
        %3722 = vmatpush1.msra.mxu0 0.0
        %3723 = vmatprep.subr.mxu0 0.0
        %3724 = vmatpush1.msra.mxu0 0.0
        %3725 = vmatprep.subr.mxu0 0.0
        %3726 = vmatpush1.msra.mxu0 0.0
        %3727 = vmatprep.subr.mxu0 0.0
        %3728 = vmatpush1.msra.mxu0 0.0
        %3729 = vmatprep.subr.mxu0 0.0
        %3730 = vmatpush1.msra.mxu0 0.0
        %3731 = vmatprep.subr.mxu0 0.0
        %3732 = vmatpush1.msra.mxu0 0.0
        %3733 = vmatprep.subr.mxu0 0.0
        %3734 = vmatpush1.msra.mxu0 0.0
        %3735 = vmatprep.subr.mxu0 0.0
        %3736 = vmatpush1.msra.mxu0 0.0
        %3737 = vmatprep.subr.mxu0 0.0
        %3738 = vmatpush1.msra.mxu0 0.0
        %3739 = vmatprep.subr.mxu0 0.0
        %3740 = vmatpush1.msra.mxu0 0.0
        %3741 = vmatprep.subr.mxu0 0.0
        %3742 = vmatpush1.msra.mxu0 0.0
        %3743 = vmatprep.subr.mxu0 0.0
        %3744 = vmatpush1.msra.mxu0 0.0
        %3745 = vmatprep.subr.mxu0 0.0
        %3746 = vmatpush1.msra.mxu0 0.0
        %3747 = vmatprep.mubr.f32.mxu0 0.0
        %3748 = vmatmul.mubr.f32.gmra.mrb[0].mxu0 %v3660
        %v3749 = vpop.f32.mrb[0].mxu0
        %v3750 = vadd.f32 %v3622, %v3749
        %v3751 = vpop.f32.mrb[0].mxu0
        %3752 = vmatprep.mubr.f32.mxu0 0.0
        %3753 = vmatmul.mubr.f32.gmra.mrb[0].mxu0 %v3663
        %v3754 = vpop.f32.mrb[0].mxu0
        %v3755 = vadd.f32 %v3627, %v3754
        %v3756 = vpop.f32.mrb[0].mxu0
        %3757 = vmatprep.mubr.f32.mxu0 0.0
        %3758 = vmatmul.mubr.f32.gmra.mrb[0].mxu0 %v3666
        %v3759 = vpop.f32.mrb[0].mxu0
        %v3760 = vadd.f32 %v3632, %v3759
        %v3761 = vpop.f32.mrb[0].mxu0
        %3762 = vmatprep.mubr.f32.mxu0 0.0
        %3763 = vmatmul.mubr.f32.gmra.mrb[0].mxu0 %v3669
        %v3764 = vpop.f32.mrb[0].mxu0
        %v3765 = vadd.f32 %v3637, %v3764
        %v3766 = vpop.f32.mrb[0].mxu0
        %3767 = vmatprep.mubr.f32.mxu0 0.0
        %3768 = vmatmul.mubr.f32.gmra.mrb[0].mxu0 %v3672
        %v3769 = vpop.f32.mrb[0].mxu0
        %v3770 = vadd.f32 %v3642, %v3769
        %v3771 = vpop.f32.mrb[0].mxu0
        %3772 = vmatprep.mubr.f32.mxu0 0.0
        %3773 = vmatmul.mubr.f32.gmra.mrb[0].mxu0 %v3675
        %v3774 = vpop.f32.mrb[0].mxu0
        %v3775 = vadd.f32 %v3647, %v3774
        %v3776 = vpop.f32.mrb[0].mxu0
        %3777 = vmatprep.mubr.f32.mxu0 0.0
        %3778 = vmatmul.mubr.f32.gmra.mrb[0].mxu0 %v3678
        %v3779 = vpop.f32.mrb[0].mxu0
        %v3780 = vadd.f32 %v3652, %v3779
        %v3781 = vpop.f32.mrb[0].mxu0
        %3782 = vmatprep.mubr.f32.mxu0 0.0
        %3783 = vmatmul.mubr.f32.gmra.mrb[0].mxu0 %v3681
        %v3784 = vpop.f32.mrb[0].mxu0
        %v3785 = vadd.f32 %v3657, %v3784
        %v3786 = vpop.f32.mrb[0].mxu0
        %3787 = vdwg.mxu0
        %v3788 = vmax.f32 %v3750, 0.0
        %v3789 = vmax.f32 %v3755, 0.0
        %v3790 = vmax.f32 %v3760, 0.0
        %v3791 = vmax.f32 %v3765, 0.0
        %v3792 = vmax.f32 %v3770, 0.0
        %v3793 = vmax.f32 %v3775, 0.0
        %v3794 = vmax.f32 %v3780, 0.0
        %v3795 = vmax.f32 %v3785, 0.0
        %v3796 = vld [vmem:[#allocation7] sm:$0xff]
        %v3797 = vld [vmem:[#allocation7 + $0x8] sm:$0xff]
        %v3798 = vld [vmem:[#allocation7 + $0x10] sm:$0xff]
        %v3799 = vld [vmem:[#allocation7 + $0x18] sm:$0xff]
        %v3800 = vld [vmem:[#allocation7 + $0x20] sm:$0xff]
        %v3801 = vld [vmem:[#allocation7 + $0x28] sm:$0xff]
        %v3802 = vld [vmem:[#allocation7 + $0x30] sm:$0xff]
        %v3803 = vld [vmem:[#allocation7 + $0x38] sm:$0xff]
        %v3804 = vld [vmem:[#allocation7 + $0x40] sm:$0xff]
        %v3805 = vld [vmem:[#allocation7 + $0x48] sm:$0xff]
        %v3806 = vld [vmem:[#allocation7 + $0x50] sm:$0xff]
        %v3807 = vld [vmem:[#allocation7 + $0x58] sm:$0xff]
        %v3808 = vld [vmem:[#allocation7 + $0x60] sm:$0xff]
        %v3809 = vld [vmem:[#allocation7 + $0x68] sm:$0xff]
        %v3810 = vld [vmem:[#allocation7 + $0x70] sm:$0xff]
        %v3811 = vld [vmem:[#allocation7 + $0x78] sm:$0xff]
        %v3812 = vld [vmem:[%s23] sm:$0xff]
        %v3813 = vld [vmem:[%s23 + $0x8] sm:$0xff]
        %v3814 = vld [vmem:[%s23 + $0x10] sm:$0xff]
        %v3815 = vld [vmem:[%s23 + $0x18] sm:$0xff]
        %v3816 = vld [vmem:[%s23 + $0x20] sm:$0xff]
        %v3817 = vld [vmem:[%s23 + $0x28] sm:$0xff]
        %v3818 = vld [vmem:[%s23 + $0x30] sm:$0xff]
        %v3819 = vld [vmem:[%s23 + $0x38] sm:$0xff]
        %v3820 = vld [vmem:[%s23 + $0x40] sm:$0xff]
        %v3821 = vld [vmem:[%s23 + $0x48] sm:$0xff]
        %v3822 = vld [vmem:[%s23 + $0x50] sm:$0xff]
        %v3823 = vld [vmem:[%s23 + $0x58] sm:$0xff]
        %v3824 = vld [vmem:[%s23 + $0x60] sm:$0xff]
        %v3825 = vld [vmem:[%s23 + $0x68] sm:$0xff]
        %v3826 = vld [vmem:[%s23 + $0x70] sm:$0xff]
        %v3827 = vld [vmem:[%s23 + $0x78] sm:$0xff]
        %3829 = vset.pattern.permute.xlu0 0
        %3830 = vperm.xlu0 %3829, %v3812
        %v3831 = vpop.permute.xlu0 %3830
        %3834 = vset.pattern.permute.xlu0 0
        %3835 = vperm.xlu0 %3834, %v3813
        %v3836 = vpop.permute.xlu0 %3835
        %3839 = vset.pattern.permute.xlu0 0
        %3840 = vperm.xlu0 %3839, %v3814
        %v3841 = vpop.permute.xlu0 %3840
        %3844 = vset.pattern.permute.xlu0 0
        %3845 = vperm.xlu0 %3844, %v3815
        %v3846 = vpop.permute.xlu0 %3845
        %3849 = vset.pattern.permute.xlu0 0
        %3850 = vperm.xlu0 %3849, %v3816
        %v3851 = vpop.permute.xlu0 %3850
        %3854 = vset.pattern.permute.xlu0 0
        %3855 = vperm.xlu0 %3854, %v3817
        %v3856 = vpop.permute.xlu0 %3855
        %3859 = vset.pattern.permute.xlu0 0
        %3860 = vperm.xlu0 %3859, %v3818
        %v3861 = vpop.permute.xlu0 %3860
        %3864 = vset.pattern.permute.xlu0 0
        %3865 = vperm.xlu0 %3864, %v3819
        %v3866 = vpop.permute.xlu0 %3865
        %3869 = vset.pattern.permute.xlu0 0
        %3870 = vperm.xlu0 %3869, %v3820
        %v3871 = vpop.permute.xlu0 %3870
        %3874 = vset.pattern.permute.xlu0 0
        %3875 = vperm.xlu0 %3874, %v3821
        %v3876 = vpop.permute.xlu0 %3875
        %3879 = vset.pattern.permute.xlu0 0
        %3880 = vperm.xlu0 %3879, %v3822
        %v3881 = vpop.permute.xlu0 %3880
        %3884 = vset.pattern.permute.xlu0 0
        %3885 = vperm.xlu0 %3884, %v3823
        %v3886 = vpop.permute.xlu0 %3885
        %3889 = vset.pattern.permute.xlu0 0
        %3890 = vperm.xlu0 %3889, %v3824
        %v3891 = vpop.permute.xlu0 %3890
        %3894 = vset.pattern.permute.xlu0 0
        %3895 = vperm.xlu0 %3894, %v3825
        %v3896 = vpop.permute.xlu0 %3895
        %3899 = vset.pattern.permute.xlu0 0
        %3900 = vperm.xlu0 %3899, %v3826
        %v3901 = vpop.permute.xlu0 %3900
        %3904 = vset.pattern.permute.xlu0 0
        %3905 = vperm.xlu0 %3904, %v3827
        %v3906 = vpop.permute.xlu0 %3905
        %vm3908 = vcmask 523264
        %v3910 = vsel %vm3908, %v3796, 0
        %v3913 = vsel %vm3908, %v3797, 0
        %v3916 = vsel %vm3908, %v3798, 0
        %v3919 = vsel %vm3908, %v3799, 0
        %v3922 = vsel %vm3908, %v3800, 0
        %v3925 = vsel %vm3908, %v3801, 0
        %v3928 = vsel %vm3908, %v3802, 0
        %v3931 = vsel %vm3908, %v3803, 0
        %v3934 = vsel %vm3908, %v3804, 0
        %v3937 = vsel %vm3908, %v3805, 0
        %v3940 = vsel %vm3908, %v3806, 0
        %v3943 = vsel %vm3908, %v3807, 0
        %v3946 = vsel %vm3908, %v3808, 0
        %v3949 = vsel %vm3908, %v3809, 0
        %v3952 = vsel %vm3908, %v3810, 0
        %v3955 = vsel %vm3908, %v3811, 0
        %3957 = vmatprep.subr.mxu0 0.0
        %3958 = vmatpush1.msra.mxu0 %v3788
        %3959 = vmatprep.subr.mxu0 0.0
        %3960 = vmatpush1.msra.mxu0 %v3789
        %3961 = vmatprep.subr.mxu0 0.0
        %3962 = vmatpush1.msra.mxu0 %v3790
        %3963 = vmatprep.subr.mxu0 0.0
        %3964 = vmatpush1.msra.mxu0 %v3791
        %3965 = vmatprep.subr.mxu0 0.0
        %3966 = vmatpush1.msra.mxu0 %v3792
        %3967 = vmatprep.subr.mxu0 0.0
        %3968 = vmatpush1.msra.mxu0 %v3793
        %3969 = vmatprep.subr.mxu0 0.0
        %3970 = vmatpush1.msra.mxu0 %v3794
        %3971 = vmatprep.subr.mxu0 0.0
        %3972 = vmatpush1.msra.mxu0 %v3795
        %3973 = vmatprep.subr.mxu0 0.0
        %3974 = vmatpush1.msra.mxu0 0.0
        %3975 = vmatprep.subr.mxu0 0.0
        %3976 = vmatpush1.msra.mxu0 0.0
        %3977 = vmatprep.subr.mxu0 0.0
        %3978 = vmatpush1.msra.mxu0 0.0
        %3979 = vmatprep.subr.mxu0 0.0
        %3980 = vmatpush1.msra.mxu0 0.0
        %3981 = vmatprep.subr.mxu0 0.0
        %3982 = vmatpush1.msra.mxu0 0.0
        %3983 = vmatprep.subr.mxu0 0.0
        %3984 = vmatpush1.msra.mxu0 0.0
        %3985 = vmatprep.subr.mxu0 0.0
        %3986 = vmatpush1.msra.mxu0 0.0
        %3987 = vmatprep.subr.mxu0 0.0
        %3988 = vmatpush1.msra.mxu0 0.0
        %3989 = vmatprep.subr.mxu0 0.0
        %3990 = vmatpush1.msra.mxu0 0.0
        %3991 = vmatprep.subr.mxu0 0.0
        %3992 = vmatpush1.msra.mxu0 0.0
        %3993 = vmatprep.subr.mxu0 0.0
        %3994 = vmatpush1.msra.mxu0 0.0
        %3995 = vmatprep.subr.mxu0 0.0
        %3996 = vmatpush1.msra.mxu0 0.0
        %3997 = vmatprep.subr.mxu0 0.0
        %3998 = vmatpush1.msra.mxu0 0.0
        %3999 = vmatprep.subr.mxu0 0.0
        %4000 = vmatpush1.msra.mxu0 0.0
        %4001 = vmatprep.subr.mxu0 0.0
        %4002 = vmatpush1.msra.mxu0 0.0
        %4003 = vmatprep.subr.mxu0 0.0
        %4004 = vmatpush1.msra.mxu0 0.0
        %4005 = vmatprep.subr.mxu0 0.0
        %4006 = vmatpush1.msra.mxu0 0.0
        %4007 = vmatprep.subr.mxu0 0.0
        %4008 = vmatpush1.msra.mxu0 0.0
        %4009 = vmatprep.subr.mxu0 0.0
        %4010 = vmatpush1.msra.mxu0 0.0
        %4011 = vmatprep.subr.mxu0 0.0
        %4012 = vmatpush1.msra.mxu0 0.0
        %4013 = vmatprep.subr.mxu0 0.0
        %4014 = vmatpush1.msra.mxu0 0.0
        %4015 = vmatprep.subr.mxu0 0.0
        %4016 = vmatpush1.msra.mxu0 0.0
        %4017 = vmatprep.subr.mxu0 0.0
        %4018 = vmatpush1.msra.mxu0 0.0
        %4019 = vmatprep.subr.mxu0 0.0
        %4020 = vmatpush1.msra.mxu0 0.0
        %4021 = vmatprep.mubr.f32.mxu0 0.0
        %4022 = vmatmul.mubr.f32.gmra.mrb[0].mxu0 %v3910
        %v4023 = vpop.f32.mrb[0].mxu0
        %v4024 = vadd.f32 %v3831, %v4023
        %v4025 = vpop.f32.mrb[0].mxu0
        %4026 = vmatprep.mubr.f32.mxu0 0.0
        %4027 = vmatmul.mubr.f32.gmra.mrb[0].mxu0 %v3913
        %v4028 = vpop.f32.mrb[0].mxu0
        %v4029 = vadd.f32 %v3836, %v4028
        %v4030 = vpop.f32.mrb[0].mxu0
        %4031 = vmatprep.mubr.f32.mxu0 0.0
        %4032 = vmatmul.mubr.f32.gmra.mrb[0].mxu0 %v3916
        %v4033 = vpop.f32.mrb[0].mxu0
        %v4034 = vadd.f32 %v3841, %v4033
        %v4035 = vpop.f32.mrb[0].mxu0
        %4036 = vmatprep.mubr.f32.mxu0 0.0
        %4037 = vmatmul.mubr.f32.gmra.mrb[0].mxu0 %v3919
        %v4038 = vpop.f32.mrb[0].mxu0
        %v4039 = vadd.f32 %v3846, %v4038
        %v4040 = vpop.f32.mrb[0].mxu0
        %4041 = vmatprep.mubr.f32.mxu0 0.0
        %4042 = vmatmul.mubr.f32.gmra.mrb[0].mxu0 %v3922
        %v4043 = vpop.f32.mrb[0].mxu0
        %v4044 = vadd.f32 %v3851, %v4043
        %v4045 = vpop.f32.mrb[0].mxu0
        %4046 = vmatprep.mubr.f32.mxu0 0.0
        %4047 = vmatmul.mubr.f32.gmra.mrb[0].mxu0 %v3925
        %v4048 = vpop.f32.mrb[0].mxu0
        %v4049 = vadd.f32 %v3856, %v4048
        %v4050 = vpop.f32.mrb[0].mxu0
        %4051 = vmatprep.mubr.f32.mxu0 0.0
        %4052 = vmatmul.mubr.f32.gmra.mrb[0].mxu0 %v3928
        %v4053 = vpop.f32.mrb[0].mxu0
        %v4054 = vadd.f32 %v3861, %v4053
        %v4055 = vpop.f32.mrb[0].mxu0
        %4056 = vmatprep.mubr.f32.mxu0 0.0
        %4057 = vmatmul.mubr.f32.gmra.mrb[0].mxu0 %v3931
        %v4058 = vpop.f32.mrb[0].mxu0
        %v4059 = vadd.f32 %v3866, %v4058
        %v4060 = vpop.f32.mrb[0].mxu0
        %4061 = vmatprep.mubr.f32.mxu0 0.0
        %4062 = vmatmul.mubr.f32.gmra.mrb[0].mxu0 %v3934
        %v4063 = vpop.f32.mrb[0].mxu0
        %v4064 = vadd.f32 %v3871, %v4063
        %v4065 = vpop.f32.mrb[0].mxu0
        %4066 = vmatprep.mubr.f32.mxu0 0.0
        %4067 = vmatmul.mubr.f32.gmra.mrb[0].mxu0 %v3937
        %v4068 = vpop.f32.mrb[0].mxu0
        %v4069 = vadd.f32 %v3876, %v4068
        %v4070 = vpop.f32.mrb[0].mxu0
        %4071 = vmatprep.mubr.f32.mxu0 0.0
        %4072 = vmatmul.mubr.f32.gmra.mrb[0].mxu0 %v3940
        %v4073 = vpop.f32.mrb[0].mxu0
        %v4074 = vadd.f32 %v3881, %v4073
        %v4075 = vpop.f32.mrb[0].mxu0
        %4076 = vmatprep.mubr.f32.mxu0 0.0
        %4077 = vmatmul.mubr.f32.gmra.mrb[0].mxu0 %v3943
        %v4078 = vpop.f32.mrb[0].mxu0
        %v4079 = vadd.f32 %v3886, %v4078
        %v4080 = vpop.f32.mrb[0].mxu0
        %4081 = vmatprep.mubr.f32.mxu0 0.0
        %4082 = vmatmul.mubr.f32.gmra.mrb[0].mxu0 %v3946
        %v4083 = vpop.f32.mrb[0].mxu0
        %v4084 = vadd.f32 %v3891, %v4083
        %v4085 = vpop.f32.mrb[0].mxu0
        %4086 = vmatprep.mubr.f32.mxu0 0.0
        %4087 = vmatmul.mubr.f32.gmra.mrb[0].mxu0 %v3949
        %v4088 = vpop.f32.mrb[0].mxu0
        %v4089 = vadd.f32 %v3896, %v4088
        %v4090 = vpop.f32.mrb[0].mxu0
        %4091 = vmatprep.mubr.f32.mxu0 0.0
        %4092 = vmatmul.mubr.f32.gmra.mrb[0].mxu0 %v3952
        %v4093 = vpop.f32.mrb[0].mxu0
        %v4094 = vadd.f32 %v3901, %v4093
        %v4095 = vpop.f32.mrb[0].mxu0
        %4096 = vmatprep.mubr.f32.mxu0 0.0
        %4097 = vmatmul.mubr.f32.gmra.mrb[0].mxu0 %v3955
        %v4098 = vpop.f32.mrb[0].mxu0
        %v4099 = vadd.f32 %v3906, %v4098
        %v4100 = vpop.f32.mrb[0].mxu0
        %4101 = vdwg.mxu0
        %v4102 = vld [vmem:[#allocation18] sm:$0xff]
        %v4103 = vld [vmem:[#allocation18 + $0x8] sm:$0xff]
        %v4104 = vld [vmem:[#allocation18 + $0x10] sm:$0xff]
        %v4105 = vld [vmem:[#allocation18 + $0x18] sm:$0xff]
        %v4107 = vsel %vm3303, %v3597, 0
        %v4110 = vsel %vm3303, %v3598, 0
        %v4113 = vsel %vm3303, %v3599, 0
        %v4116 = vsel %vm3303, %v3600, 0
        %4118 = vmatprep.subr.mxu0 0.0
        %4119 = vmatpush1.msra.mxu0 %v4102
        %4120 = vmatprep.subr.mxu0 0.0
        %4121 = vmatpush1.msra.mxu0 %v4103
        %4122 = vmatprep.subr.mxu0 0.0
        %4123 = vmatpush1.msra.mxu0 %v4104
        %4124 = vmatprep.subr.mxu0 0.0
        %4125 = vmatpush1.msra.mxu0 %v4105
        %4126 = vmatprep.subr.mxu0 0.0
        %4127 = vmatpush1.msra.mxu0 0.0
        %4128 = vmatprep.subr.mxu0 0.0
        %4129 = vmatpush1.msra.mxu0 0.0
        %4130 = vmatprep.subr.mxu0 0.0
        %4131 = vmatpush1.msra.mxu0 0.0
        %4132 = vmatprep.subr.mxu0 0.0
        %4133 = vmatpush1.msra.mxu0 0.0
        %4134 = vmatprep.subr.mxu0 0.0
        %4135 = vmatpush1.msra.mxu0 0.0
        %4136 = vmatprep.subr.mxu0 0.0
        %4137 = vmatpush1.msra.mxu0 0.0
        %4138 = vmatprep.subr.mxu0 0.0
        %4139 = vmatpush1.msra.mxu0 0.0
        %4140 = vmatprep.subr.mxu0 0.0
        %4141 = vmatpush1.msra.mxu0 0.0
        %4142 = vmatprep.subr.mxu0 0.0
        %4143 = vmatpush1.msra.mxu0 0.0
        %4144 = vmatprep.subr.mxu0 0.0
        %4145 = vmatpush1.msra.mxu0 0.0
        %4146 = vmatprep.subr.mxu0 0.0
        %4147 = vmatpush1.msra.mxu0 0.0
        %4148 = vmatprep.subr.mxu0 0.0
        %4149 = vmatpush1.msra.mxu0 0.0
        %4150 = vmatprep.subr.mxu0 0.0
        %4151 = vmatpush1.msra.mxu0 0.0
        %4152 = vmatprep.subr.mxu0 0.0
        %4153 = vmatpush1.msra.mxu0 0.0
        %4154 = vmatprep.subr.mxu0 0.0
        %4155 = vmatpush1.msra.mxu0 0.0
        %4156 = vmatprep.subr.mxu0 0.0
        %4157 = vmatpush1.msra.mxu0 0.0
        %4158 = vmatprep.subr.mxu0 0.0
        %4159 = vmatpush1.msra.mxu0 0.0
        %4160 = vmatprep.subr.mxu0 0.0
        %4161 = vmatpush1.msra.mxu0 0.0
        %4162 = vmatprep.subr.mxu0 0.0
        %4163 = vmatpush1.msra.mxu0 0.0
        %4164 = vmatprep.subr.mxu0 0.0
        %4165 = vmatpush1.msra.mxu0 0.0
        %4166 = vmatprep.subr.mxu0 0.0
        %4167 = vmatpush1.msra.mxu0 0.0
        %4168 = vmatprep.subr.mxu0 0.0
        %4169 = vmatpush1.msra.mxu0 0.0
        %4170 = vmatprep.subr.mxu0 0.0
        %4171 = vmatpush1.msra.mxu0 0.0
        %4172 = vmatprep.subr.mxu0 0.0
        %4173 = vmatpush1.msra.mxu0 0.0
        %4174 = vmatprep.subr.mxu0 0.0
        %4175 = vmatpush1.msra.mxu0 0.0
        %4176 = vmatprep.subr.mxu0 0.0
        %4177 = vmatpush1.msra.mxu0 0.0
        %4178 = vmatprep.subr.mxu0 0.0
        %4179 = vmatpush1.msra.mxu0 0.0
        %4180 = vmatprep.subr.mxu0 0.0
        %4181 = vmatpush1.msra.mxu0 0.0
        %4182 = vmatprep.mubr.f32.mxu0 0.0
        %4183 = vmatmul.mubr.f32.gmra.mrb[0].mxu0 %v4107
        %v4184 = vpop.f32.mrb[0].mxu0
        %v4185 = vadd.f32 0.0, %v4184
        %v4186 = vpop.f32.mrb[0].mxu0
        %4187 = vmatprep.mubr.f32.mxu0 0.0
        %4188 = vmatmul.mubr.f32.gmra.mrb[0].mxu0 %v4110
        %v4189 = vpop.f32.mrb[0].mxu0
        %v4190 = vadd.f32 0.0, %v4189
        %v4191 = vpop.f32.mrb[0].mxu0
        %4192 = vmatprep.mubr.f32.mxu0 0.0
        %4193 = vmatmul.mubr.f32.gmra.mrb[0].mxu0 %v4113
        %v4194 = vpop.f32.mrb[0].mxu0
        %v4195 = vadd.f32 0.0, %v4194
        %v4196 = vpop.f32.mrb[0].mxu0
        %4197 = vmatprep.mubr.f32.mxu0 0.0
        %4198 = vmatmul.mubr.f32.gmra.mrb[0].mxu0 %v4116
        %v4199 = vpop.f32.mrb[0].mxu0
        %v4200 = vadd.f32 0.0, %v4199
        %v4201 = vpop.f32.mrb[0].mxu0
        %4202 = vdwg.mxu0
        %v4203 = vld [vmem:[%s25] sm:$0xff]
        %v4204 = vld [vmem:[%s25 + $0x8] sm:$0xff]
        %v4205 = vld [vmem:[%s25 + $0x10] sm:$0xff]
        %v4206 = vld [vmem:[%s25 + $0x18] sm:$0xff]
        %v4207 = vld [vmem:[%s25 + $0x20] sm:$0xff]
        %v4208 = vld [vmem:[%s25 + $0x28] sm:$0xff]
        %v4209 = vld [vmem:[%s25 + $0x30] sm:$0xff]
        %v4210 = vld [vmem:[%s25 + $0x38] sm:$0xff]
        %v4211 = vld [vmem:[%s25 + $0x40] sm:$0xff]
        %v4212 = vld [vmem:[%s25 + $0x48] sm:$0xff]
        %v4213 = vld [vmem:[%s25 + $0x50] sm:$0xff]
        %v4214 = vld [vmem:[%s25 + $0x58] sm:$0xff]
        %v4215 = vld [vmem:[%s27] sm:$0xff]
        %v4216 = vld [vmem:[%s27 + $0x8] sm:$0xff]
        %v4217 = vld [vmem:[%s27 + $0x10] sm:$0xff]
        %v4218 = vld [vmem:[%s27 + $0x18] sm:$0xff]
        %v4220 = vsel %vm3303, %v4185, 0
        %v4223 = vsel %vm3303, %v4190, 0
        %v4226 = vsel %vm3303, %v4195, 0
        %v4229 = vsel %vm3303, %v4200, 0
        %4231 = vmatprep.subr.mxu0 0.0
        %4232 = vmatpush1.msra.mxu0 %v1365
        %4233 = vmatprep.subr.mxu0 0.0
        %4234 = vmatpush1.msra.mxu0 %v1366
        %4235 = vmatprep.subr.mxu0 0.0
        %4236 = vmatpush1.msra.mxu0 %v1367
        %4237 = vmatprep.subr.mxu0 0.0
        %4238 = vmatpush1.msra.mxu0 %v1368
        %4239 = vmatprep.subr.mxu0 0.0
        %4240 = vmatpush1.msra.mxu0 0.0
        %4241 = vmatprep.subr.mxu0 0.0
        %4242 = vmatpush1.msra.mxu0 0.0
        %4243 = vmatprep.subr.mxu0 0.0
        %4244 = vmatpush1.msra.mxu0 0.0
        %4245 = vmatprep.subr.mxu0 0.0
        %4246 = vmatpush1.msra.mxu0 0.0
        %4247 = vmatprep.subr.mxu0 0.0
        %4248 = vmatpush1.msra.mxu0 0.0
        %4249 = vmatprep.subr.mxu0 0.0
        %4250 = vmatpush1.msra.mxu0 0.0
        %4251 = vmatprep.subr.mxu0 0.0
        %4252 = vmatpush1.msra.mxu0 0.0
        %4253 = vmatprep.subr.mxu0 0.0
        %4254 = vmatpush1.msra.mxu0 0.0
        %4255 = vmatprep.subr.mxu0 0.0
        %4256 = vmatpush1.msra.mxu0 0.0
        %4257 = vmatprep.subr.mxu0 0.0
        %4258 = vmatpush1.msra.mxu0 0.0
        %4259 = vmatprep.subr.mxu0 0.0
        %4260 = vmatpush1.msra.mxu0 0.0
        %4261 = vmatprep.subr.mxu0 0.0
        %4262 = vmatpush1.msra.mxu0 0.0
        %4263 = vmatprep.subr.mxu0 0.0
        %4264 = vmatpush1.msra.mxu0 0.0
        %4265 = vmatprep.subr.mxu0 0.0
        %4266 = vmatpush1.msra.mxu0 0.0
        %4267 = vmatprep.subr.mxu0 0.0
        %4268 = vmatpush1.msra.mxu0 0.0
        %4269 = vmatprep.subr.mxu0 0.0
        %4270 = vmatpush1.msra.mxu0 0.0
        %4271 = vmatprep.subr.mxu0 0.0
        %4272 = vmatpush1.msra.mxu0 0.0
        %4273 = vmatprep.subr.mxu0 0.0
        %4274 = vmatpush1.msra.mxu0 0.0
        %4275 = vmatprep.subr.mxu0 0.0
        %4276 = vmatpush1.msra.mxu0 0.0
        %4277 = vmatprep.subr.mxu0 0.0
        %4278 = vmatpush1.msra.mxu0 0.0
        %4279 = vmatprep.subr.mxu0 0.0
        %4280 = vmatpush1.msra.mxu0 0.0
        %4281 = vmatprep.subr.mxu0 0.0
        %4282 = vmatpush1.msra.mxu0 0.0
        %4283 = vmatprep.subr.mxu0 0.0
        %4284 = vmatpush1.msra.mxu0 0.0
        %4285 = vmatprep.subr.mxu0 0.0
        %4286 = vmatpush1.msra.mxu0 0.0
        %4287 = vmatprep.subr.mxu0 0.0
        %4288 = vmatpush1.msra.mxu0 0.0
        %4289 = vmatprep.subr.mxu0 0.0
        %4290 = vmatpush1.msra.mxu0 0.0
        %4291 = vmatprep.subr.mxu0 0.0
        %4292 = vmatpush1.msra.mxu0 0.0
        %4293 = vmatprep.subr.mxu0 0.0
        %4294 = vmatpush1.msra.mxu0 0.0
        %4295 = vmatprep.mubr.f32.mxu0 0.0
        %4296 = vmatmul.mubr.f32.gmra.mrb[0].mxu0 %v4220
        %v4297 = vpop.f32.mrb[0].mxu0
        %v4298 = vadd.f32 0.0, %v4297
        %v4299 = vpop.f32.mrb[0].mxu0
        %4300 = vmatprep.mubr.f32.mxu0 0.0
        %4301 = vmatmul.mubr.f32.gmra.mrb[0].mxu0 %v4223
        %v4302 = vpop.f32.mrb[0].mxu0
        %v4303 = vadd.f32 0.0, %v4302
        %v4304 = vpop.f32.mrb[0].mxu0
        %4305 = vmatprep.mubr.f32.mxu0 0.0
        %4306 = vmatmul.mubr.f32.gmra.mrb[0].mxu0 %v4226
        %v4307 = vpop.f32.mrb[0].mxu0
        %v4308 = vadd.f32 0.0, %v4307
        %v4309 = vpop.f32.mrb[0].mxu0
        %4310 = vmatprep.mubr.f32.mxu0 0.0
        %4311 = vmatmul.mubr.f32.gmra.mrb[0].mxu0 %v4229
        %v4312 = vpop.f32.mrb[0].mxu0
        %v4313 = vadd.f32 0.0, %v4312
        %v4314 = vpop.f32.mrb[0].mxu0
        %4315 = vdwg.mxu0
        %4316 = vmatprep.subr.mxu0 0.0
        %4317 = vmatpush1.msra.mxu0 %v1369
        %4318 = vmatprep.subr.mxu0 0.0
        %4319 = vmatpush1.msra.mxu0 %v1370
        %4320 = vmatprep.subr.mxu0 0.0
        %4321 = vmatpush1.msra.mxu0 %v1371
        %4322 = vmatprep.subr.mxu0 0.0
        %4323 = vmatpush1.msra.mxu0 %v1372
        %4324 = vmatprep.subr.mxu0 0.0
        %4325 = vmatpush1.msra.mxu0 0.0
        %4326 = vmatprep.subr.mxu0 0.0
        %4327 = vmatpush1.msra.mxu0 0.0
        %4328 = vmatprep.subr.mxu0 0.0
        %4329 = vmatpush1.msra.mxu0 0.0
        %4330 = vmatprep.subr.mxu0 0.0
        %4331 = vmatpush1.msra.mxu0 0.0
        %4332 = vmatprep.subr.mxu0 0.0
        %4333 = vmatpush1.msra.mxu0 0.0
        %4334 = vmatprep.subr.mxu0 0.0
        %4335 = vmatpush1.msra.mxu0 0.0
        %4336 = vmatprep.subr.mxu0 0.0
        %4337 = vmatpush1.msra.mxu0 0.0
        %4338 = vmatprep.subr.mxu0 0.0
        %4339 = vmatpush1.msra.mxu0 0.0
        %4340 = vmatprep.subr.mxu0 0.0
        %4341 = vmatpush1.msra.mxu0 0.0
        %4342 = vmatprep.subr.mxu0 0.0
        %4343 = vmatpush1.msra.mxu0 0.0
        %4344 = vmatprep.subr.mxu0 0.0
        %4345 = vmatpush1.msra.mxu0 0.0
        %4346 = vmatprep.subr.mxu0 0.0
        %4347 = vmatpush1.msra.mxu0 0.0
        %4348 = vmatprep.subr.mxu0 0.0
        %4349 = vmatpush1.msra.mxu0 0.0
        %4350 = vmatprep.subr.mxu0 0.0
        %4351 = vmatpush1.msra.mxu0 0.0
        %4352 = vmatprep.subr.mxu0 0.0
        %4353 = vmatpush1.msra.mxu0 0.0
        %4354 = vmatprep.subr.mxu0 0.0
        %4355 = vmatpush1.msra.mxu0 0.0
        %4356 = vmatprep.subr.mxu0 0.0
        %4357 = vmatpush1.msra.mxu0 0.0
        %4358 = vmatprep.subr.mxu0 0.0
        %4359 = vmatpush1.msra.mxu0 0.0
        %4360 = vmatprep.subr.mxu0 0.0
        %4361 = vmatpush1.msra.mxu0 0.0
        %4362 = vmatprep.subr.mxu0 0.0
        %4363 = vmatpush1.msra.mxu0 0.0
        %4364 = vmatprep.subr.mxu0 0.0
        %4365 = vmatpush1.msra.mxu0 0.0
        %4366 = vmatprep.subr.mxu0 0.0
        %4367 = vmatpush1.msra.mxu0 0.0
        %4368 = vmatprep.subr.mxu0 0.0
        %4369 = vmatpush1.msra.mxu0 0.0
        %4370 = vmatprep.subr.mxu0 0.0
        %4371 = vmatpush1.msra.mxu0 0.0
        %4372 = vmatprep.subr.mxu0 0.0
        %4373 = vmatpush1.msra.mxu0 0.0
        %4374 = vmatprep.subr.mxu0 0.0
        %4375 = vmatpush1.msra.mxu0 0.0
        %4376 = vmatprep.subr.mxu0 0.0
        %4377 = vmatpush1.msra.mxu0 0.0
        %4378 = vmatprep.subr.mxu0 0.0
        %4379 = vmatpush1.msra.mxu0 0.0
        %4380 = vmatprep.mubr.f32.mxu0 0.0
        %4381 = vmatmul.mubr.f32.gmra.mrb[0].mxu0 %v4220
        %v4382 = vpop.f32.mrb[0].mxu0
        %v4383 = vadd.f32 0.0, %v4382
        %v4384 = vpop.f32.mrb[0].mxu0
        %4385 = vmatprep.mubr.f32.mxu0 0.0
        %4386 = vmatmul.mubr.f32.gmra.mrb[0].mxu0 %v4223
        %v4387 = vpop.f32.mrb[0].mxu0
        %v4388 = vadd.f32 0.0, %v4387
        %v4389 = vpop.f32.mrb[0].mxu0
        %4390 = vmatprep.mubr.f32.mxu0 0.0
        %4391 = vmatmul.mubr.f32.gmra.mrb[0].mxu0 %v4226
        %v4392 = vpop.f32.mrb[0].mxu0
        %v4393 = vadd.f32 0.0, %v4392
        %v4394 = vpop.f32.mrb[0].mxu0
        %4395 = vmatprep.mubr.f32.mxu0 0.0
        %4396 = vmatmul.mubr.f32.gmra.mrb[0].mxu0 %v4229
        %v4397 = vpop.f32.mrb[0].mxu0
        %v4398 = vadd.f32 0.0, %v4397
        %v4399 = vpop.f32.mrb[0].mxu0
        %4400 = vdwg.mxu0
        %4401 = vmatprep.subr.mxu0 0.0
        %4402 = vmatpush1.msra.mxu0 %v1373
        %4403 = vmatprep.subr.mxu0 0.0
        %4404 = vmatpush1.msra.mxu0 %v1374
        %4405 = vmatprep.subr.mxu0 0.0
        %4406 = vmatpush1.msra.mxu0 %v1375
        %4407 = vmatprep.subr.mxu0 0.0
        %4408 = vmatpush1.msra.mxu0 %v1376
        %4409 = vmatprep.subr.mxu0 0.0
        %4410 = vmatpush1.msra.mxu0 0.0
        %4411 = vmatprep.subr.mxu0 0.0
        %4412 = vmatpush1.msra.mxu0 0.0
        %4413 = vmatprep.subr.mxu0 0.0
        %4414 = vmatpush1.msra.mxu0 0.0
        %4415 = vmatprep.subr.mxu0 0.0
        %4416 = vmatpush1.msra.mxu0 0.0
        %4417 = vmatprep.subr.mxu0 0.0
        %4418 = vmatpush1.msra.mxu0 0.0
        %4419 = vmatprep.subr.mxu0 0.0
        %4420 = vmatpush1.msra.mxu0 0.0
        %4421 = vmatprep.subr.mxu0 0.0
        %4422 = vmatpush1.msra.mxu0 0.0
        %4423 = vmatprep.subr.mxu0 0.0
        %4424 = vmatpush1.msra.mxu0 0.0
        %4425 = vmatprep.subr.mxu0 0.0
        %4426 = vmatpush1.msra.mxu0 0.0
        %4427 = vmatprep.subr.mxu0 0.0
        %4428 = vmatpush1.msra.mxu0 0.0
        %4429 = vmatprep.subr.mxu0 0.0
        %4430 = vmatpush1.msra.mxu0 0.0
        %4431 = vmatprep.subr.mxu0 0.0
        %4432 = vmatpush1.msra.mxu0 0.0
        %4433 = vmatprep.subr.mxu0 0.0
        %4434 = vmatpush1.msra.mxu0 0.0
        %4435 = vmatprep.subr.mxu0 0.0
        %4436 = vmatpush1.msra.mxu0 0.0
        %4437 = vmatprep.subr.mxu0 0.0
        %4438 = vmatpush1.msra.mxu0 0.0
        %4439 = vmatprep.subr.mxu0 0.0
        %4440 = vmatpush1.msra.mxu0 0.0
        %4441 = vmatprep.subr.mxu0 0.0
        %4442 = vmatpush1.msra.mxu0 0.0
        %4443 = vmatprep.subr.mxu0 0.0
        %4444 = vmatpush1.msra.mxu0 0.0
        %4445 = vmatprep.subr.mxu0 0.0
        %4446 = vmatpush1.msra.mxu0 0.0
        %4447 = vmatprep.subr.mxu0 0.0
        %4448 = vmatpush1.msra.mxu0 0.0
        %4449 = vmatprep.subr.mxu0 0.0
        %4450 = vmatpush1.msra.mxu0 0.0
        %4451 = vmatprep.subr.mxu0 0.0
        %4452 = vmatpush1.msra.mxu0 0.0
        %4453 = vmatprep.subr.mxu0 0.0
        %4454 = vmatpush1.msra.mxu0 0.0
        %4455 = vmatprep.subr.mxu0 0.0
        %4456 = vmatpush1.msra.mxu0 0.0
        %4457 = vmatprep.subr.mxu0 0.0
        %4458 = vmatpush1.msra.mxu0 0.0
        %4459 = vmatprep.subr.mxu0 0.0
        %4460 = vmatpush1.msra.mxu0 0.0
        %4461 = vmatprep.subr.mxu0 0.0
        %4462 = vmatpush1.msra.mxu0 0.0
        %4463 = vmatprep.subr.mxu0 0.0
        %4464 = vmatpush1.msra.mxu0 0.0
        %4465 = vmatprep.mubr.f32.mxu0 0.0
        %4466 = vmatmul.mubr.f32.gmra.mrb[0].mxu0 %v4220
        %v4467 = vpop.f32.mrb[0].mxu0
        %v4468 = vadd.f32 0.0, %v4467
        %v4469 = vpop.f32.mrb[0].mxu0
        %4470 = vmatprep.mubr.f32.mxu0 0.0
        %4471 = vmatmul.mubr.f32.gmra.mrb[0].mxu0 %v4223
        %v4472 = vpop.f32.mrb[0].mxu0
        %v4473 = vadd.f32 0.0, %v4472
        %v4474 = vpop.f32.mrb[0].mxu0
        %4475 = vmatprep.mubr.f32.mxu0 0.0
        %4476 = vmatmul.mubr.f32.gmra.mrb[0].mxu0 %v4226
        %v4477 = vpop.f32.mrb[0].mxu0
        %v4478 = vadd.f32 0.0, %v4477
        %v4479 = vpop.f32.mrb[0].mxu0
        %4480 = vmatprep.mubr.f32.mxu0 0.0
        %4481 = vmatmul.mubr.f32.gmra.mrb[0].mxu0 %v4229
        %v4482 = vpop.f32.mrb[0].mxu0
        %v4483 = vadd.f32 0.0, %v4482
        %v4484 = vpop.f32.mrb[0].mxu0
        %4485 = vdwg.mxu0
        %4486 = vmatprep.subr.mxu0 0.0
        %4487 = vmatpush1.msra.mxu0 %v1377
        %4488 = vmatprep.subr.mxu0 0.0
        %4489 = vmatpush1.msra.mxu0 %v1378
        %4490 = vmatprep.subr.mxu0 0.0
        %4491 = vmatpush1.msra.mxu0 %v1379
        %4492 = vmatprep.subr.mxu0 0.0
        %4493 = vmatpush1.msra.mxu0 %v1380
        %4494 = vmatprep.subr.mxu0 0.0
        %4495 = vmatpush1.msra.mxu0 0.0
        %4496 = vmatprep.subr.mxu0 0.0
        %4497 = vmatpush1.msra.mxu0 0.0
        %4498 = vmatprep.subr.mxu0 0.0
        %4499 = vmatpush1.msra.mxu0 0.0
        %4500 = vmatprep.subr.mxu0 0.0
        %4501 = vmatpush1.msra.mxu0 0.0
        %4502 = vmatprep.subr.mxu0 0.0
        %4503 = vmatpush1.msra.mxu0 0.0
        %4504 = vmatprep.subr.mxu0 0.0
        %4505 = vmatpush1.msra.mxu0 0.0
        %4506 = vmatprep.subr.mxu0 0.0
        %4507 = vmatpush1.msra.mxu0 0.0
        %4508 = vmatprep.subr.mxu0 0.0
        %4509 = vmatpush1.msra.mxu0 0.0
        %4510 = vmatprep.subr.mxu0 0.0
        %4511 = vmatpush1.msra.mxu0 0.0
        %4512 = vmatprep.subr.mxu0 0.0
        %4513 = vmatpush1.msra.mxu0 0.0
        %4514 = vmatprep.subr.mxu0 0.0
        %4515 = vmatpush1.msra.mxu0 0.0
        %4516 = vmatprep.subr.mxu0 0.0
        %4517 = vmatpush1.msra.mxu0 0.0
        %4518 = vmatprep.subr.mxu0 0.0
        %4519 = vmatpush1.msra.mxu0 0.0
        %4520 = vmatprep.subr.mxu0 0.0
        %4521 = vmatpush1.msra.mxu0 0.0
        %4522 = vmatprep.subr.mxu0 0.0
        %4523 = vmatpush1.msra.mxu0 0.0
        %4524 = vmatprep.subr.mxu0 0.0
        %4525 = vmatpush1.msra.mxu0 0.0
        %4526 = vmatprep.subr.mxu0 0.0
        %4527 = vmatpush1.msra.mxu0 0.0
        %4528 = vmatprep.subr.mxu0 0.0
        %4529 = vmatpush1.msra.mxu0 0.0
        %4530 = vmatprep.subr.mxu0 0.0
        %4531 = vmatpush1.msra.mxu0 0.0
        %4532 = vmatprep.subr.mxu0 0.0
        %4533 = vmatpush1.msra.mxu0 0.0
        %4534 = vmatprep.subr.mxu0 0.0
        %4535 = vmatpush1.msra.mxu0 0.0
        %4536 = vmatprep.subr.mxu0 0.0
        %4537 = vmatpush1.msra.mxu0 0.0
        %4538 = vmatprep.subr.mxu0 0.0
        %4539 = vmatpush1.msra.mxu0 0.0
        %4540 = vmatprep.subr.mxu0 0.0
        %4541 = vmatpush1.msra.mxu0 0.0
        %4542 = vmatprep.subr.mxu0 0.0
        %4543 = vmatpush1.msra.mxu0 0.0
        %4544 = vmatprep.subr.mxu0 0.0
        %4545 = vmatpush1.msra.mxu0 0.0
        %4546 = vmatprep.subr.mxu0 0.0
        %4547 = vmatpush1.msra.mxu0 0.0
        %4548 = vmatprep.subr.mxu0 0.0
        %4549 = vmatpush1.msra.mxu0 0.0
        %4550 = vmatprep.mubr.f32.mxu0 0.0
        %4551 = vmatmul.mubr.f32.gmra.mrb[0].mxu0 %v4220
        %v4552 = vpop.f32.mrb[0].mxu0
        %v4553 = vadd.f32 0.0, %v4552
        %v4554 = vpop.f32.mrb[0].mxu0
        %4555 = vmatprep.mubr.f32.mxu0 0.0
        %4556 = vmatmul.mubr.f32.gmra.mrb[0].mxu0 %v4223
        %v4557 = vpop.f32.mrb[0].mxu0
        %v4558 = vadd.f32 0.0, %v4557
        %v4559 = vpop.f32.mrb[0].mxu0
        %4560 = vmatprep.mubr.f32.mxu0 0.0
        %4561 = vmatmul.mubr.f32.gmra.mrb[0].mxu0 %v4226
        %v4562 = vpop.f32.mrb[0].mxu0
        %v4563 = vadd.f32 0.0, %v4562
        %v4564 = vpop.f32.mrb[0].mxu0
        %4565 = vmatprep.mubr.f32.mxu0 0.0
        %4566 = vmatmul.mubr.f32.gmra.mrb[0].mxu0 %v4229
        %v4567 = vpop.f32.mrb[0].mxu0
        %v4568 = vadd.f32 0.0, %v4567
        %v4569 = vpop.f32.mrb[0].mxu0
        %4570 = vdwg.mxu0
        %4571 = vmatprep.subr.mxu0 0.0
        %4572 = vmatpush1.msra.mxu0 %v1381
        %4573 = vmatprep.subr.mxu0 0.0
        %4574 = vmatpush1.msra.mxu0 %v1382
        %4575 = vmatprep.subr.mxu0 0.0
        %4576 = vmatpush1.msra.mxu0 %v1383
        %4577 = vmatprep.subr.mxu0 0.0
        %4578 = vmatpush1.msra.mxu0 %v1384
        %4579 = vmatprep.subr.mxu0 0.0
        %4580 = vmatpush1.msra.mxu0 0.0
        %4581 = vmatprep.subr.mxu0 0.0
        %4582 = vmatpush1.msra.mxu0 0.0
        %4583 = vmatprep.subr.mxu0 0.0
        %4584 = vmatpush1.msra.mxu0 0.0
        %4585 = vmatprep.subr.mxu0 0.0
        %4586 = vmatpush1.msra.mxu0 0.0
        %4587 = vmatprep.subr.mxu0 0.0
        %4588 = vmatpush1.msra.mxu0 0.0
        %4589 = vmatprep.subr.mxu0 0.0
        %4590 = vmatpush1.msra.mxu0 0.0
        %4591 = vmatprep.subr.mxu0 0.0
        %4592 = vmatpush1.msra.mxu0 0.0
        %4593 = vmatprep.subr.mxu0 0.0
        %4594 = vmatpush1.msra.mxu0 0.0
        %4595 = vmatprep.subr.mxu0 0.0
        %4596 = vmatpush1.msra.mxu0 0.0
        %4597 = vmatprep.subr.mxu0 0.0
        %4598 = vmatpush1.msra.mxu0 0.0
        %4599 = vmatprep.subr.mxu0 0.0
        %4600 = vmatpush1.msra.mxu0 0.0
        %4601 = vmatprep.subr.mxu0 0.0
        %4602 = vmatpush1.msra.mxu0 0.0
        %4603 = vmatprep.subr.mxu0 0.0
        %4604 = vmatpush1.msra.mxu0 0.0
        %4605 = vmatprep.subr.mxu0 0.0
        %4606 = vmatpush1.msra.mxu0 0.0
        %4607 = vmatprep.subr.mxu0 0.0
        %4608 = vmatpush1.msra.mxu0 0.0
        %4609 = vmatprep.subr.mxu0 0.0
        %4610 = vmatpush1.msra.mxu0 0.0
        %4611 = vmatprep.subr.mxu0 0.0
        %4612 = vmatpush1.msra.mxu0 0.0
        %4613 = vmatprep.subr.mxu0 0.0
        %4614 = vmatpush1.msra.mxu0 0.0
        %4615 = vmatprep.subr.mxu0 0.0
        %4616 = vmatpush1.msra.mxu0 0.0
        %4617 = vmatprep.subr.mxu0 0.0
        %4618 = vmatpush1.msra.mxu0 0.0
        %4619 = vmatprep.subr.mxu0 0.0
        %4620 = vmatpush1.msra.mxu0 0.0
        %4621 = vmatprep.subr.mxu0 0.0
        %4622 = vmatpush1.msra.mxu0 0.0
        %4623 = vmatprep.subr.mxu0 0.0
        %4624 = vmatpush1.msra.mxu0 0.0
        %4625 = vmatprep.subr.mxu0 0.0
        %4626 = vmatpush1.msra.mxu0 0.0
        %4627 = vmatprep.subr.mxu0 0.0
        %4628 = vmatpush1.msra.mxu0 0.0
        %4629 = vmatprep.subr.mxu0 0.0
        %4630 = vmatpush1.msra.mxu0 0.0
        %4631 = vmatprep.subr.mxu0 0.0
        %4632 = vmatpush1.msra.mxu0 0.0
        %4633 = vmatprep.subr.mxu0 0.0
        %4634 = vmatpush1.msra.mxu0 0.0
        %4635 = vmatprep.mubr.f32.mxu0 0.0
        %4636 = vmatmul.mubr.f32.gmra.mrb[0].mxu0 %v4220
        %v4637 = vpop.f32.mrb[0].mxu0
        %v4638 = vadd.f32 0.0, %v4637
        %v4639 = vpop.f32.mrb[0].mxu0
        %4640 = vmatprep.mubr.f32.mxu0 0.0
        %4641 = vmatmul.mubr.f32.gmra.mrb[0].mxu0 %v4223
        %v4642 = vpop.f32.mrb[0].mxu0
        %v4643 = vadd.f32 0.0, %v4642
        %v4644 = vpop.f32.mrb[0].mxu0
        %4645 = vmatprep.mubr.f32.mxu0 0.0
        %4646 = vmatmul.mubr.f32.gmra.mrb[0].mxu0 %v4226
        %v4647 = vpop.f32.mrb[0].mxu0
        %v4648 = vadd.f32 0.0, %v4647
        %v4649 = vpop.f32.mrb[0].mxu0
        %4650 = vmatprep.mubr.f32.mxu0 0.0
        %4651 = vmatmul.mubr.f32.gmra.mrb[0].mxu0 %v4229
        %v4652 = vpop.f32.mrb[0].mxu0
        %v4653 = vadd.f32 0.0, %v4652
        %v4654 = vpop.f32.mrb[0].mxu0
        %4655 = vdwg.mxu0
        %4656 = vmatprep.subr.mxu0 0.0
        %4657 = vmatpush1.msra.mxu0 %v1385
        %4658 = vmatprep.subr.mxu0 0.0
        %4659 = vmatpush1.msra.mxu0 %v1386
        %4660 = vmatprep.subr.mxu0 0.0
        %4661 = vmatpush1.msra.mxu0 %v1387
        %4662 = vmatprep.subr.mxu0 0.0
        %4663 = vmatpush1.msra.mxu0 %v1388
        %4664 = vmatprep.subr.mxu0 0.0
        %4665 = vmatpush1.msra.mxu0 0.0
        %4666 = vmatprep.subr.mxu0 0.0
        %4667 = vmatpush1.msra.mxu0 0.0
        %4668 = vmatprep.subr.mxu0 0.0
        %4669 = vmatpush1.msra.mxu0 0.0
        %4670 = vmatprep.subr.mxu0 0.0
        %4671 = vmatpush1.msra.mxu0 0.0
        %4672 = vmatprep.subr.mxu0 0.0
        %4673 = vmatpush1.msra.mxu0 0.0
        %4674 = vmatprep.subr.mxu0 0.0
        %4675 = vmatpush1.msra.mxu0 0.0
        %4676 = vmatprep.subr.mxu0 0.0
        %4677 = vmatpush1.msra.mxu0 0.0
        %4678 = vmatprep.subr.mxu0 0.0
        %4679 = vmatpush1.msra.mxu0 0.0
        %4680 = vmatprep.subr.mxu0 0.0
        %4681 = vmatpush1.msra.mxu0 0.0
        %4682 = vmatprep.subr.mxu0 0.0
        %4683 = vmatpush1.msra.mxu0 0.0
        %4684 = vmatprep.subr.mxu0 0.0
        %4685 = vmatpush1.msra.mxu0 0.0
        %4686 = vmatprep.subr.mxu0 0.0
        %4687 = vmatpush1.msra.mxu0 0.0
        %4688 = vmatprep.subr.mxu0 0.0
        %4689 = vmatpush1.msra.mxu0 0.0
        %4690 = vmatprep.subr.mxu0 0.0
        %4691 = vmatpush1.msra.mxu0 0.0
        %4692 = vmatprep.subr.mxu0 0.0
        %4693 = vmatpush1.msra.mxu0 0.0
        %4694 = vmatprep.subr.mxu0 0.0
        %4695 = vmatpush1.msra.mxu0 0.0
        %4696 = vmatprep.subr.mxu0 0.0
        %4697 = vmatpush1.msra.mxu0 0.0
        %4698 = vmatprep.subr.mxu0 0.0
        %4699 = vmatpush1.msra.mxu0 0.0
        %4700 = vmatprep.subr.mxu0 0.0
        %4701 = vmatpush1.msra.mxu0 0.0
        %4702 = vmatprep.subr.mxu0 0.0
        %4703 = vmatpush1.msra.mxu0 0.0
        %4704 = vmatprep.subr.mxu0 0.0
        %4705 = vmatpush1.msra.mxu0 0.0
        %4706 = vmatprep.subr.mxu0 0.0
        %4707 = vmatpush1.msra.mxu0 0.0
        %4708 = vmatprep.subr.mxu0 0.0
        %4709 = vmatpush1.msra.mxu0 0.0
        %4710 = vmatprep.subr.mxu0 0.0
        %4711 = vmatpush1.msra.mxu0 0.0
        %4712 = vmatprep.subr.mxu0 0.0
        %4713 = vmatpush1.msra.mxu0 0.0
        %4714 = vmatprep.subr.mxu0 0.0
        %4715 = vmatpush1.msra.mxu0 0.0
        %4716 = vmatprep.subr.mxu0 0.0
        %4717 = vmatpush1.msra.mxu0 0.0
        %4718 = vmatprep.subr.mxu0 0.0
        %4719 = vmatpush1.msra.mxu0 0.0
        %4720 = vmatprep.mubr.f32.mxu0 0.0
        %4721 = vmatmul.mubr.f32.gmra.mrb[0].mxu0 %v4220
        %v4722 = vpop.f32.mrb[0].mxu0
        %v4723 = vadd.f32 0.0, %v4722
        %v4724 = vpop.f32.mrb[0].mxu0
        %4725 = vmatprep.mubr.f32.mxu0 0.0
        %4726 = vmatmul.mubr.f32.gmra.mrb[0].mxu0 %v4223
        %v4727 = vpop.f32.mrb[0].mxu0
        %v4728 = vadd.f32 0.0, %v4727
        %v4729 = vpop.f32.mrb[0].mxu0
        %4730 = vmatprep.mubr.f32.mxu0 0.0
        %4731 = vmatmul.mubr.f32.gmra.mrb[0].mxu0 %v4226
        %v4732 = vpop.f32.mrb[0].mxu0
        %v4733 = vadd.f32 0.0, %v4732
        %v4734 = vpop.f32.mrb[0].mxu0
        %4735 = vmatprep.mubr.f32.mxu0 0.0
        %4736 = vmatmul.mubr.f32.gmra.mrb[0].mxu0 %v4229
        %v4737 = vpop.f32.mrb[0].mxu0
        %v4738 = vadd.f32 0.0, %v4737
        %v4739 = vpop.f32.mrb[0].mxu0
        %4740 = vdwg.mxu0
        %4741 = vmatprep.subr.mxu0 0.0
        %4742 = vmatpush1.msra.mxu0 %v1389
        %4743 = vmatprep.subr.mxu0 0.0
        %4744 = vmatpush1.msra.mxu0 %v1390
        %4745 = vmatprep.subr.mxu0 0.0
        %4746 = vmatpush1.msra.mxu0 %v1391
        %4747 = vmatprep.subr.mxu0 0.0
        %4748 = vmatpush1.msra.mxu0 %v1392
        %4749 = vmatprep.subr.mxu0 0.0
        %4750 = vmatpush1.msra.mxu0 0.0
        %4751 = vmatprep.subr.mxu0 0.0
        %4752 = vmatpush1.msra.mxu0 0.0
        %4753 = vmatprep.subr.mxu0 0.0
        %4754 = vmatpush1.msra.mxu0 0.0
        %4755 = vmatprep.subr.mxu0 0.0
        %4756 = vmatpush1.msra.mxu0 0.0
        %4757 = vmatprep.subr.mxu0 0.0
        %4758 = vmatpush1.msra.mxu0 0.0
        %4759 = vmatprep.subr.mxu0 0.0
        %4760 = vmatpush1.msra.mxu0 0.0
        %4761 = vmatprep.subr.mxu0 0.0
        %4762 = vmatpush1.msra.mxu0 0.0
        %4763 = vmatprep.subr.mxu0 0.0
        %4764 = vmatpush1.msra.mxu0 0.0
        %4765 = vmatprep.subr.mxu0 0.0
        %4766 = vmatpush1.msra.mxu0 0.0
        %4767 = vmatprep.subr.mxu0 0.0
        %4768 = vmatpush1.msra.mxu0 0.0
        %4769 = vmatprep.subr.mxu0 0.0
        %4770 = vmatpush1.msra.mxu0 0.0
        %4771 = vmatprep.subr.mxu0 0.0
        %4772 = vmatpush1.msra.mxu0 0.0
        %4773 = vmatprep.subr.mxu0 0.0
        %4774 = vmatpush1.msra.mxu0 0.0
        %4775 = vmatprep.subr.mxu0 0.0
        %4776 = vmatpush1.msra.mxu0 0.0
        %4777 = vmatprep.subr.mxu0 0.0
        %4778 = vmatpush1.msra.mxu0 0.0
        %4779 = vmatprep.subr.mxu0 0.0
        %4780 = vmatpush1.msra.mxu0 0.0
        %4781 = vmatprep.subr.mxu0 0.0
        %4782 = vmatpush1.msra.mxu0 0.0
        %4783 = vmatprep.subr.mxu0 0.0
        %4784 = vmatpush1.msra.mxu0 0.0
        %4785 = vmatprep.subr.mxu0 0.0
        %4786 = vmatpush1.msra.mxu0 0.0
        %4787 = vmatprep.subr.mxu0 0.0
        %4788 = vmatpush1.msra.mxu0 0.0
        %4789 = vmatprep.subr.mxu0 0.0
        %4790 = vmatpush1.msra.mxu0 0.0
        %4791 = vmatprep.subr.mxu0 0.0
        %4792 = vmatpush1.msra.mxu0 0.0
        %4793 = vmatprep.subr.mxu0 0.0
        %4794 = vmatpush1.msra.mxu0 0.0
        %4795 = vmatprep.subr.mxu0 0.0
        %4796 = vmatpush1.msra.mxu0 0.0
        %4797 = vmatprep.subr.mxu0 0.0
        %4798 = vmatpush1.msra.mxu0 0.0
        %4799 = vmatprep.subr.mxu0 0.0
        %4800 = vmatpush1.msra.mxu0 0.0
        %4801 = vmatprep.subr.mxu0 0.0
        %4802 = vmatpush1.msra.mxu0 0.0
        %4803 = vmatprep.subr.mxu0 0.0
        %4804 = vmatpush1.msra.mxu0 0.0
        %4805 = vmatprep.mubr.f32.mxu0 0.0
        %4806 = vmatmul.mubr.f32.gmra.mrb[0].mxu0 %v4220
        %v4807 = vpop.f32.mrb[0].mxu0
        %v4808 = vadd.f32 0.0, %v4807
        %v4809 = vpop.f32.mrb[0].mxu0
        %4810 = vmatprep.mubr.f32.mxu0 0.0
        %4811 = vmatmul.mubr.f32.gmra.mrb[0].mxu0 %v4223
        %v4812 = vpop.f32.mrb[0].mxu0
        %v4813 = vadd.f32 0.0, %v4812
        %v4814 = vpop.f32.mrb[0].mxu0
        %4815 = vmatprep.mubr.f32.mxu0 0.0
        %4816 = vmatmul.mubr.f32.gmra.mrb[0].mxu0 %v4226
        %v4817 = vpop.f32.mrb[0].mxu0
        %v4818 = vadd.f32 0.0, %v4817
        %v4819 = vpop.f32.mrb[0].mxu0
        %4820 = vmatprep.mubr.f32.mxu0 0.0
        %4821 = vmatmul.mubr.f32.gmra.mrb[0].mxu0 %v4229
        %v4822 = vpop.f32.mrb[0].mxu0
        %v4823 = vadd.f32 0.0, %v4822
        %v4824 = vpop.f32.mrb[0].mxu0
        %4825 = vdwg.mxu0
        %4826 = vmatprep.subr.mxu0 0.0
        %4827 = vmatpush1.msra.mxu0 %v1393
        %4828 = vmatprep.subr.mxu0 0.0
        %4829 = vmatpush1.msra.mxu0 %v1394
        %4830 = vmatprep.subr.mxu0 0.0
        %4831 = vmatpush1.msra.mxu0 %v1395
        %4832 = vmatprep.subr.mxu0 0.0
        %4833 = vmatpush1.msra.mxu0 %v1396
        %4834 = vmatprep.subr.mxu0 0.0
        %4835 = vmatpush1.msra.mxu0 0.0
        %4836 = vmatprep.subr.mxu0 0.0
        %4837 = vmatpush1.msra.mxu0 0.0
        %4838 = vmatprep.subr.mxu0 0.0
        %4839 = vmatpush1.msra.mxu0 0.0
        %4840 = vmatprep.subr.mxu0 0.0
        %4841 = vmatpush1.msra.mxu0 0.0
        %4842 = vmatprep.subr.mxu0 0.0
        %4843 = vmatpush1.msra.mxu0 0.0
        %4844 = vmatprep.subr.mxu0 0.0
        %4845 = vmatpush1.msra.mxu0 0.0
        %4846 = vmatprep.subr.mxu0 0.0
        %4847 = vmatpush1.msra.mxu0 0.0
        %4848 = vmatprep.subr.mxu0 0.0
        %4849 = vmatpush1.msra.mxu0 0.0
        %4850 = vmatprep.subr.mxu0 0.0
        %4851 = vmatpush1.msra.mxu0 0.0
        %4852 = vmatprep.subr.mxu0 0.0
        %4853 = vmatpush1.msra.mxu0 0.0
        %4854 = vmatprep.subr.mxu0 0.0
        %4855 = vmatpush1.msra.mxu0 0.0
        %4856 = vmatprep.subr.mxu0 0.0
        %4857 = vmatpush1.msra.mxu0 0.0
        %4858 = vmatprep.subr.mxu0 0.0
        %4859 = vmatpush1.msra.mxu0 0.0
        %4860 = vmatprep.subr.mxu0 0.0
        %4861 = vmatpush1.msra.mxu0 0.0
        %4862 = vmatprep.subr.mxu0 0.0
        %4863 = vmatpush1.msra.mxu0 0.0
        %4864 = vmatprep.subr.mxu0 0.0
        %4865 = vmatpush1.msra.mxu0 0.0
        %4866 = vmatprep.subr.mxu0 0.0
        %4867 = vmatpush1.msra.mxu0 0.0
        %4868 = vmatprep.subr.mxu0 0.0
        %4869 = vmatpush1.msra.mxu0 0.0
        %4870 = vmatprep.subr.mxu0 0.0
        %4871 = vmatpush1.msra.mxu0 0.0
        %4872 = vmatprep.subr.mxu0 0.0
        %4873 = vmatpush1.msra.mxu0 0.0
        %4874 = vmatprep.subr.mxu0 0.0
        %4875 = vmatpush1.msra.mxu0 0.0
        %4876 = vmatprep.subr.mxu0 0.0
        %4877 = vmatpush1.msra.mxu0 0.0
        %4878 = vmatprep.subr.mxu0 0.0
        %4879 = vmatpush1.msra.mxu0 0.0
        %4880 = vmatprep.subr.mxu0 0.0
        %4881 = vmatpush1.msra.mxu0 0.0
        %4882 = vmatprep.subr.mxu0 0.0
        %4883 = vmatpush1.msra.mxu0 0.0
        %4884 = vmatprep.subr.mxu0 0.0
        %4885 = vmatpush1.msra.mxu0 0.0
        %4886 = vmatprep.subr.mxu0 0.0
        %4887 = vmatpush1.msra.mxu0 0.0
        %4888 = vmatprep.subr.mxu0 0.0
        %4889 = vmatpush1.msra.mxu0 0.0
        %4890 = vmatprep.mubr.f32.mxu0 0.0
        %4891 = vmatmul.mubr.f32.gmra.mrb[0].mxu0 %v4220
        %v4892 = vpop.f32.mrb[0].mxu0
        %v4893 = vadd.f32 0.0, %v4892
        %v4894 = vpop.f32.mrb[0].mxu0
        %4895 = vmatprep.mubr.f32.mxu0 0.0
        %4896 = vmatmul.mubr.f32.gmra.mrb[0].mxu0 %v4223
        %v4897 = vpop.f32.mrb[0].mxu0
        %v4898 = vadd.f32 0.0, %v4897
        %v4899 = vpop.f32.mrb[0].mxu0
        %4900 = vmatprep.mubr.f32.mxu0 0.0
        %4901 = vmatmul.mubr.f32.gmra.mrb[0].mxu0 %v4226
        %v4902 = vpop.f32.mrb[0].mxu0
        %v4903 = vadd.f32 0.0, %v4902
        %v4904 = vpop.f32.mrb[0].mxu0
        %4905 = vmatprep.mubr.f32.mxu0 0.0
        %4906 = vmatmul.mubr.f32.gmra.mrb[0].mxu0 %v4229
        %v4907 = vpop.f32.mrb[0].mxu0
        %v4908 = vadd.f32 0.0, %v4907
        %v4909 = vpop.f32.mrb[0].mxu0
        %4910 = vdwg.mxu0
        %4911 = vmatprep.subr.mxu0 0.0
        %4912 = vmatpush1.msra.mxu0 %v1397
        %4913 = vmatprep.subr.mxu0 0.0
        %4914 = vmatpush1.msra.mxu0 %v1398
        %4915 = vmatprep.subr.mxu0 0.0
        %4916 = vmatpush1.msra.mxu0 %v1399
        %4917 = vmatprep.subr.mxu0 0.0
        %4918 = vmatpush1.msra.mxu0 %v1400
        %4919 = vmatprep.subr.mxu0 0.0
        %4920 = vmatpush1.msra.mxu0 0.0
        %4921 = vmatprep.subr.mxu0 0.0
        %4922 = vmatpush1.msra.mxu0 0.0
        %4923 = vmatprep.subr.mxu0 0.0
        %4924 = vmatpush1.msra.mxu0 0.0
        %4925 = vmatprep.subr.mxu0 0.0
        %4926 = vmatpush1.msra.mxu0 0.0
        %4927 = vmatprep.subr.mxu0 0.0
        %4928 = vmatpush1.msra.mxu0 0.0
        %4929 = vmatprep.subr.mxu0 0.0
        %4930 = vmatpush1.msra.mxu0 0.0
        %4931 = vmatprep.subr.mxu0 0.0
        %4932 = vmatpush1.msra.mxu0 0.0
        %4933 = vmatprep.subr.mxu0 0.0
        %4934 = vmatpush1.msra.mxu0 0.0
        %4935 = vmatprep.subr.mxu0 0.0
        %4936 = vmatpush1.msra.mxu0 0.0
        %4937 = vmatprep.subr.mxu0 0.0
        %4938 = vmatpush1.msra.mxu0 0.0
        %4939 = vmatprep.subr.mxu0 0.0
        %4940 = vmatpush1.msra.mxu0 0.0
        %4941 = vmatprep.subr.mxu0 0.0
        %4942 = vmatpush1.msra.mxu0 0.0
        %4943 = vmatprep.subr.mxu0 0.0
        %4944 = vmatpush1.msra.mxu0 0.0
        %4945 = vmatprep.subr.mxu0 0.0
        %4946 = vmatpush1.msra.mxu0 0.0
        %4947 = vmatprep.subr.mxu0 0.0
        %4948 = vmatpush1.msra.mxu0 0.0
        %4949 = vmatprep.subr.mxu0 0.0
        %4950 = vmatpush1.msra.mxu0 0.0
        %4951 = vmatprep.subr.mxu0 0.0
        %4952 = vmatpush1.msra.mxu0 0.0
        %4953 = vmatprep.subr.mxu0 0.0
        %4954 = vmatpush1.msra.mxu0 0.0
        %4955 = vmatprep.subr.mxu0 0.0
        %4956 = vmatpush1.msra.mxu0 0.0
        %4957 = vmatprep.subr.mxu0 0.0
        %4958 = vmatpush1.msra.mxu0 0.0
        %4959 = vmatprep.subr.mxu0 0.0
        %4960 = vmatpush1.msra.mxu0 0.0
        %4961 = vmatprep.subr.mxu0 0.0
        %4962 = vmatpush1.msra.mxu0 0.0
        %4963 = vmatprep.subr.mxu0 0.0
        %4964 = vmatpush1.msra.mxu0 0.0
        %4965 = vmatprep.subr.mxu0 0.0
        %4966 = vmatpush1.msra.mxu0 0.0
        %4967 = vmatprep.subr.mxu0 0.0
        %4968 = vmatpush1.msra.mxu0 0.0
        %4969 = vmatprep.subr.mxu0 0.0
        %4970 = vmatpush1.msra.mxu0 0.0
        %4971 = vmatprep.subr.mxu0 0.0
        %4972 = vmatpush1.msra.mxu0 0.0
        %4973 = vmatprep.subr.mxu0 0.0
        %4974 = vmatpush1.msra.mxu0 0.0
        %4975 = vmatprep.mubr.f32.mxu0 0.0
        %4976 = vmatmul.mubr.f32.gmra.mrb[0].mxu0 %v4220
        %v4977 = vpop.f32.mrb[0].mxu0
        %v4978 = vadd.f32 0.0, %v4977
        %v4979 = vpop.f32.mrb[0].mxu0
        %4980 = vmatprep.mubr.f32.mxu0 0.0
        %4981 = vmatmul.mubr.f32.gmra.mrb[0].mxu0 %v4223
        %v4982 = vpop.f32.mrb[0].mxu0
        %v4983 = vadd.f32 0.0, %v4982
        %v4984 = vpop.f32.mrb[0].mxu0
        %4985 = vmatprep.mubr.f32.mxu0 0.0
        %4986 = vmatmul.mubr.f32.gmra.mrb[0].mxu0 %v4226
        %v4987 = vpop.f32.mrb[0].mxu0
        %v4988 = vadd.f32 0.0, %v4987
        %v4989 = vpop.f32.mrb[0].mxu0
        %4990 = vmatprep.mubr.f32.mxu0 0.0
        %4991 = vmatmul.mubr.f32.gmra.mrb[0].mxu0 %v4229
        %v4992 = vpop.f32.mrb[0].mxu0
        %v4993 = vadd.f32 0.0, %v4992
        %v4994 = vpop.f32.mrb[0].mxu0
        %4995 = vdwg.mxu0
        %4997 = vset.pattern.permute.xlu0 0
        %4998 = vperm.xlu0 %4997, %v4215
        %v4999 = vpop.permute.xlu0 %4998
        %5002 = vset.pattern.permute.xlu0 0
        %5003 = vperm.xlu0 %5002, %v4216
        %v5004 = vpop.permute.xlu0 %5003
        %5007 = vset.pattern.permute.xlu0 0
        %5008 = vperm.xlu0 %5007, %v4217
        %v5009 = vpop.permute.xlu0 %5008
        %5012 = vset.pattern.permute.xlu0 0
        %5013 = vperm.xlu0 %5012, %v4218
        %v5014 = vpop.permute.xlu0 %5013
        %v5017 = vsel %vm3303, %v4205, 0
        %v5020 = vsel %vm3303, %v4208, 0
        %v5023 = vsel %vm3303, %v4211, 0
        %v5026 = vsel %vm3303, %v4214, 0
        %5028 = vmatprep.subr.mxu0 0.0
        %5029 = vmatpush1.msra.mxu0 %v4298
        %5030 = vmatprep.subr.mxu0 0.0
        %5031 = vmatpush1.msra.mxu0 %v4303
        %5032 = vmatprep.subr.mxu0 0.0
        %5033 = vmatpush1.msra.mxu0 %v4308
        %5034 = vmatprep.subr.mxu0 0.0
        %5035 = vmatpush1.msra.mxu0 %v4313
        %5036 = vmatprep.subr.mxu0 0.0
        %5037 = vmatpush1.msra.mxu0 %v4383
        %5038 = vmatprep.subr.mxu0 0.0
        %5039 = vmatpush1.msra.mxu0 %v4388
        %5040 = vmatprep.subr.mxu0 0.0
        %5041 = vmatpush1.msra.mxu0 %v4393
        %5042 = vmatprep.subr.mxu0 0.0
        %5043 = vmatpush1.msra.mxu0 %v4398
        %5044 = vmatprep.subr.mxu0 0.0
        %5045 = vmatpush1.msra.mxu0 %v4468
        %5046 = vmatprep.subr.mxu0 0.0
        %5047 = vmatpush1.msra.mxu0 %v4473
        %5048 = vmatprep.subr.mxu0 0.0
        %5049 = vmatpush1.msra.mxu0 %v4478
        %5050 = vmatprep.subr.mxu0 0.0
        %5051 = vmatpush1.msra.mxu0 %v4483
        %5052 = vmatprep.subr.mxu0 0.0
        %5053 = vmatpush1.msra.mxu0 %v4553
        %5054 = vmatprep.subr.mxu0 0.0
        %5055 = vmatpush1.msra.mxu0 %v4558
        %5056 = vmatprep.subr.mxu0 0.0
        %5057 = vmatpush1.msra.mxu0 %v4563
        %5058 = vmatprep.subr.mxu0 0.0
        %5059 = vmatpush1.msra.mxu0 %v4568
        %5060 = vmatprep.subr.mxu0 0.0
        %5061 = vmatpush1.msra.mxu0 %v4638
        %5062 = vmatprep.subr.mxu0 0.0
        %5063 = vmatpush1.msra.mxu0 %v4643
        %5064 = vmatprep.subr.mxu0 0.0
        %5065 = vmatpush1.msra.mxu0 %v4648
        %5066 = vmatprep.subr.mxu0 0.0
        %5067 = vmatpush1.msra.mxu0 %v4653
        %5068 = vmatprep.subr.mxu0 0.0
        %5069 = vmatpush1.msra.mxu0 %v4723
        %5070 = vmatprep.subr.mxu0 0.0
        %5071 = vmatpush1.msra.mxu0 %v4728
        %5072 = vmatprep.subr.mxu0 0.0
        %5073 = vmatpush1.msra.mxu0 %v4733
        %5074 = vmatprep.subr.mxu0 0.0
        %5075 = vmatpush1.msra.mxu0 %v4738
        %5076 = vmatprep.subr.mxu0 0.0
        %5077 = vmatpush1.msra.mxu0 %v4808
        %5078 = vmatprep.subr.mxu0 0.0
        %5079 = vmatpush1.msra.mxu0 %v4813
        %5080 = vmatprep.subr.mxu0 0.0
        %5081 = vmatpush1.msra.mxu0 %v4818
        %5082 = vmatprep.subr.mxu0 0.0
        %5083 = vmatpush1.msra.mxu0 %v4823
        %5084 = vmatprep.subr.mxu0 0.0
        %5085 = vmatpush1.msra.mxu0 %v4893
        %5086 = vmatprep.subr.mxu0 0.0
        %5087 = vmatpush1.msra.mxu0 %v4898
        %5088 = vmatprep.subr.mxu0 0.0
        %5089 = vmatpush1.msra.mxu0 %v4903
        %5090 = vmatprep.subr.mxu0 0.0
        %5091 = vmatpush1.msra.mxu0 %v4908
        %5092 = vmatprep.mubr.f32.mxu0 %v4204
        %5093 = vmatmul.mubr.f32.gmra.mrb[0].mxu0 %v4203
        %v5094 = vpop.f32.mrb[0].mxu0
        %v5095 = vadd.f32 %v4999, %v5094
        %v5096 = vpop.f32.mrb[0].mxu0
        %5097 = vmatprep.mubr.f32.mxu0 %v4207
        %5098 = vmatmul.mubr.f32.gmra.mrb[0].mxu0 %v4206
        %v5099 = vpop.f32.mrb[0].mxu0
        %v5100 = vadd.f32 %v5004, %v5099
        %v5101 = vpop.f32.mrb[0].mxu0
        %5102 = vmatprep.mubr.f32.mxu0 %v4210
        %5103 = vmatmul.mubr.f32.gmra.mrb[0].mxu0 %v4209
        %v5104 = vpop.f32.mrb[0].mxu0
        %v5105 = vadd.f32 %v5009, %v5104
        %v5106 = vpop.f32.mrb[0].mxu0
        %5107 = vmatprep.mubr.f32.mxu0 %v4213
        %5108 = vmatmul.mubr.f32.gmra.mrb[0].mxu0 %v4212
        %v5109 = vpop.f32.mrb[0].mxu0
        %v5110 = vadd.f32 %v5014, %v5109
        %v5111 = vpop.f32.mrb[0].mxu0
        %5112 = vdwg.mxu0
        %5113 = vmatprep.subr.mxu0 0.0
        %5114 = vmatpush1.msra.mxu0 %v4978
        %5115 = vmatprep.subr.mxu0 0.0
        %5116 = vmatpush1.msra.mxu0 %v4983
        %5117 = vmatprep.subr.mxu0 0.0
        %5118 = vmatpush1.msra.mxu0 %v4988
        %5119 = vmatprep.subr.mxu0 0.0
        %5120 = vmatpush1.msra.mxu0 %v4993
        %5121 = vmatprep.subr.mxu0 0.0
        %5122 = vmatpush1.msra.mxu0 0.0
        %5123 = vmatprep.subr.mxu0 0.0
        %5124 = vmatpush1.msra.mxu0 0.0
        %5125 = vmatprep.subr.mxu0 0.0
        %5126 = vmatpush1.msra.mxu0 0.0
        %5127 = vmatprep.subr.mxu0 0.0
        %5128 = vmatpush1.msra.mxu0 0.0
        %5129 = vmatprep.subr.mxu0 0.0
        %5130 = vmatpush1.msra.mxu0 0.0
        %5131 = vmatprep.subr.mxu0 0.0
        %5132 = vmatpush1.msra.mxu0 0.0
        %5133 = vmatprep.subr.mxu0 0.0
        %5134 = vmatpush1.msra.mxu0 0.0
        %5135 = vmatprep.subr.mxu0 0.0
        %5136 = vmatpush1.msra.mxu0 0.0
        %5137 = vmatprep.subr.mxu0 0.0
        %5138 = vmatpush1.msra.mxu0 0.0
        %5139 = vmatprep.subr.mxu0 0.0
        %5140 = vmatpush1.msra.mxu0 0.0
        %5141 = vmatprep.subr.mxu0 0.0
        %5142 = vmatpush1.msra.mxu0 0.0
        %5143 = vmatprep.subr.mxu0 0.0
        %5144 = vmatpush1.msra.mxu0 0.0
        %5145 = vmatprep.subr.mxu0 0.0
        %5146 = vmatpush1.msra.mxu0 0.0
        %5147 = vmatprep.subr.mxu0 0.0
        %5148 = vmatpush1.msra.mxu0 0.0
        %5149 = vmatprep.subr.mxu0 0.0
        %5150 = vmatpush1.msra.mxu0 0.0
        %5151 = vmatprep.subr.mxu0 0.0
        %5152 = vmatpush1.msra.mxu0 0.0
        %5153 = vmatprep.subr.mxu0 0.0
        %5154 = vmatpush1.msra.mxu0 0.0
        %5155 = vmatprep.subr.mxu0 0.0
        %5156 = vmatpush1.msra.mxu0 0.0
        %5157 = vmatprep.subr.mxu0 0.0
        %5158 = vmatpush1.msra.mxu0 0.0
        %5159 = vmatprep.subr.mxu0 0.0
        %5160 = vmatpush1.msra.mxu0 0.0
        %5161 = vmatprep.subr.mxu0 0.0
        %5162 = vmatpush1.msra.mxu0 0.0
        %5163 = vmatprep.subr.mxu0 0.0
        %5164 = vmatpush1.msra.mxu0 0.0
        %5165 = vmatprep.subr.mxu0 0.0
        %5166 = vmatpush1.msra.mxu0 0.0
        %5167 = vmatprep.subr.mxu0 0.0
        %5168 = vmatpush1.msra.mxu0 0.0
        %5169 = vmatprep.subr.mxu0 0.0
        %5170 = vmatpush1.msra.mxu0 0.0
        %5171 = vmatprep.subr.mxu0 0.0
        %5172 = vmatpush1.msra.mxu0 0.0
        %5173 = vmatprep.subr.mxu0 0.0
        %5174 = vmatpush1.msra.mxu0 0.0
        %5175 = vmatprep.subr.mxu0 0.0
        %5176 = vmatpush1.msra.mxu0 0.0
        %5177 = vmatprep.mubr.f32.mxu0 0.0
        %5178 = vmatmul.mubr.f32.gmra.mrb[0].mxu0 %v5017
        %v5179 = vpop.f32.mrb[0].mxu0
        %v5180 = vadd.f32 %v5095, %v5179
        %v5181 = vpop.f32.mrb[0].mxu0
        %5182 = vmatprep.mubr.f32.mxu0 0.0
        %5183 = vmatmul.mubr.f32.gmra.mrb[0].mxu0 %v5020
        %v5184 = vpop.f32.mrb[0].mxu0
        %v5185 = vadd.f32 %v5100, %v5184
        %v5186 = vpop.f32.mrb[0].mxu0
        %5187 = vmatprep.mubr.f32.mxu0 0.0
        %5188 = vmatmul.mubr.f32.gmra.mrb[0].mxu0 %v5023
        %v5189 = vpop.f32.mrb[0].mxu0
        %v5190 = vadd.f32 %v5105, %v5189
        %v5191 = vpop.f32.mrb[0].mxu0
        %5192 = vmatprep.mubr.f32.mxu0 0.0
        %5193 = vmatmul.mubr.f32.gmra.mrb[0].mxu0 %v5026
        %v5194 = vpop.f32.mrb[0].mxu0
        %v5195 = vadd.f32 %v5110, %v5194
        %v5196 = vpop.f32.mrb[0].mxu0
        %5197 = vdwg.mxu0
        %v5198 = vmul.f32 %v5180, %v5180
        %v5199 = vmul.f32 %v5185, %v5185
        %v5200 = vmul.f32 %v5190, %v5190
        %v5201 = vmul.f32 %v5195, %v5195
        %v5203 = vsel %vm3303, %v5180, 0
        %v5206 = vsel %vm3303, %v5185, 0
        %v5209 = vsel %vm3303, %v5190, 0
        %v5212 = vsel %vm3303, %v5195, 0
        %v5215 = vsel %vm3303, %v5198, 0
        %v5218 = vsel %vm3303, %v5199, 0
        %v5221 = vsel %vm3303, %v5200, 0
        %v5224 = vsel %vm3303, %v5201, 0
        %5226 = vmatprep.subr.mxu0 0.0
        %5227 = vmatpush1.msra.mxu0 %v1483
        %5228 = vmatprep.subr.mxu0 0.0
        %5229 = vmatpush1.msra.mxu0 %v1484
        %5230 = vmatprep.subr.mxu0 0.0
        %5231 = vmatpush1.msra.mxu0 %v1485
        %5232 = vmatprep.subr.mxu0 0.0
        %5233 = vmatpush1.msra.mxu0 %v1486
        %5234 = vmatprep.subr.mxu0 0.0
        %5235 = vmatpush1.msra.mxu0 0.0
        %5236 = vmatprep.subr.mxu0 0.0
        %5237 = vmatpush1.msra.mxu0 0.0
        %5238 = vmatprep.subr.mxu0 0.0
        %5239 = vmatpush1.msra.mxu0 0.0
        %5240 = vmatprep.subr.mxu0 0.0
        %5241 = vmatpush1.msra.mxu0 0.0
        %5242 = vmatprep.subr.mxu0 0.0
        %5243 = vmatpush1.msra.mxu0 0.0
        %5244 = vmatprep.subr.mxu0 0.0
        %5245 = vmatpush1.msra.mxu0 0.0
        %5246 = vmatprep.subr.mxu0 0.0
        %5247 = vmatpush1.msra.mxu0 0.0
        %5248 = vmatprep.subr.mxu0 0.0
        %5249 = vmatpush1.msra.mxu0 0.0
        %5250 = vmatprep.subr.mxu0 0.0
        %5251 = vmatpush1.msra.mxu0 0.0
        %5252 = vmatprep.subr.mxu0 0.0
        %5253 = vmatpush1.msra.mxu0 0.0
        %5254 = vmatprep.subr.mxu0 0.0
        %5255 = vmatpush1.msra.mxu0 0.0
        %5256 = vmatprep.subr.mxu0 0.0
        %5257 = vmatpush1.msra.mxu0 0.0
        %5258 = vmatprep.subr.mxu0 0.0
        %5259 = vmatpush1.msra.mxu0 0.0
        %5260 = vmatprep.subr.mxu0 0.0
        %5261 = vmatpush1.msra.mxu0 0.0
        %5262 = vmatprep.subr.mxu0 0.0
        %5263 = vmatpush1.msra.mxu0 0.0
        %5264 = vmatprep.subr.mxu0 0.0
        %5265 = vmatpush1.msra.mxu0 0.0
        %5266 = vmatprep.subr.mxu0 0.0
        %5267 = vmatpush1.msra.mxu0 0.0
        %5268 = vmatprep.subr.mxu0 0.0
        %5269 = vmatpush1.msra.mxu0 0.0
        %5270 = vmatprep.subr.mxu0 0.0
        %5271 = vmatpush1.msra.mxu0 0.0
        %5272 = vmatprep.subr.mxu0 0.0
        %5273 = vmatpush1.msra.mxu0 0.0
        %5274 = vmatprep.subr.mxu0 0.0
        %5275 = vmatpush1.msra.mxu0 0.0
        %5276 = vmatprep.subr.mxu0 0.0
        %5277 = vmatpush1.msra.mxu0 0.0
        %5278 = vmatprep.subr.mxu0 0.0
        %5279 = vmatpush1.msra.mxu0 0.0
        %5280 = vmatprep.subr.mxu0 0.0
        %5281 = vmatpush1.msra.mxu0 0.0
        %5282 = vmatprep.subr.mxu0 0.0
        %5283 = vmatpush1.msra.mxu0 0.0
        %5284 = vmatprep.subr.mxu0 0.0
        %5285 = vmatpush1.msra.mxu0 0.0
        %5286 = vmatprep.subr.mxu0 0.0
        %5287 = vmatpush1.msra.mxu0 0.0
        %5288 = vmatprep.subr.mxu0 0.0
        %5289 = vmatpush1.msra.mxu0 0.0
        %5290 = vmatprep.mubr.f32.mxu0 0.0
        %5291 = vmatmul.mubr.f32.gmra.mrb[0].mxu0 %v5203
        %v5292 = vpop.f32.mrb[0].mxu0
        %v5293 = vadd.f32 0.0, %v5292
        %v5294 = vpop.f32.mrb[0].mxu0
        %5295 = vmatprep.mubr.f32.mxu0 0.0
        %5296 = vmatmul.mubr.f32.gmra.mrb[0].mxu0 %v5206
        %v5297 = vpop.f32.mrb[0].mxu0
        %v5298 = vadd.f32 0.0, %v5297
        %v5299 = vpop.f32.mrb[0].mxu0
        %5300 = vmatprep.mubr.f32.mxu0 0.0
        %5301 = vmatmul.mubr.f32.gmra.mrb[0].mxu0 %v5209
        %v5302 = vpop.f32.mrb[0].mxu0
        %v5303 = vadd.f32 0.0, %v5302
        %v5304 = vpop.f32.mrb[0].mxu0
        %5305 = vmatprep.mubr.f32.mxu0 0.0
        %5306 = vmatmul.mubr.f32.gmra.mrb[0].mxu0 %v5212
        %v5307 = vpop.f32.mrb[0].mxu0
        %v5308 = vadd.f32 0.0, %v5307
        %v5309 = vpop.f32.mrb[0].mxu0
        %5310 = vmatprep.mubr.f32.mxu0 0.0
        %5311 = vmatmul.mubr.f32.gmra.mrb[0].mxu0 %v5215
        %v5312 = vpop.f32.mrb[0].mxu0
        %v5313 = vadd.f32 0.0, %v5312
        %v5314 = vpop.f32.mrb[0].mxu0
        %5315 = vmatprep.mubr.f32.mxu0 0.0
        %5316 = vmatmul.mubr.f32.gmra.mrb[0].mxu0 %v5218
        %v5317 = vpop.f32.mrb[0].mxu0
        %v5318 = vadd.f32 0.0, %v5317
        %v5319 = vpop.f32.mrb[0].mxu0
        %5320 = vmatprep.mubr.f32.mxu0 0.0
        %5321 = vmatmul.mubr.f32.gmra.mrb[0].mxu0 %v5221
        %v5322 = vpop.f32.mrb[0].mxu0
        %v5323 = vadd.f32 0.0, %v5322
        %v5324 = vpop.f32.mrb[0].mxu0
        %5325 = vmatprep.mubr.f32.mxu0 0.0
        %5326 = vmatmul.mubr.f32.gmra.mrb[0].mxu0 %v5224
        %v5327 = vpop.f32.mrb[0].mxu0
        %v5328 = vadd.f32 0.0, %v5327
        %v5329 = vpop.f32.mrb[0].mxu0
        %5330 = vdwg.mxu0
        %v5331 = vmul.f32 %v5293, %v5293
        %v5332 = vmul.f32 %v5298, %v5298
        %v5333 = vmul.f32 %v5303, %v5303
        %v5334 = vmul.f32 %v5308, %v5308
        %v5335 = vsub.f32 %v5313, %v5331
        %v5336 = vsub.f32 %v5318, %v5332
        %v5337 = vsub.f32 %v5323, %v5333
        %v5338 = vsub.f32 %v5328, %v5334
        %v5339 = vadd.f32 %v5335, 1e-05
        %v5340 = vadd.f32 %v5336, 1e-05
        %v5341 = vadd.f32 %v5337, 1e-05
        %v5342 = vadd.f32 %v5338, 1e-05
        %v5343 = vrsqrt.pop %v5339
        %v5344 = vrsqrt.pop %v5340
        %v5345 = vrsqrt.pop %v5341
        %v5346 = vrsqrt.pop %v5342
        %v5347 = vmul.f32 %v5343, %v4024
        %v5348 = vmul.f32 %v5344, %v4029
        %v5349 = vmul.f32 %v5345, %v4034
        %v5350 = vmul.f32 %v5346, %v4039
        %v5351 = vmul.f32 %v5293, %v5347
        %v5352 = vmul.f32 %v5298, %v5348
        %v5353 = vmul.f32 %v5303, %v5349
        %v5354 = vmul.f32 %v5308, %v5350
        %v5355 = vsub.f32 %v4044, %v5351
        %v5356 = vsub.f32 %v4049, %v5352
        %v5357 = vsub.f32 %v4054, %v5353
        %v5358 = vsub.f32 %v4059, %v5354
        %v5360 = vsel %vm2085, %v5347, 0
        %v5363 = vsel %vm2085, %v5348, 0
        %v5366 = vsel %vm2085, %v5349, 0
        %v5369 = vsel %vm2085, %v5350, 0
        %v5372 = vsel %vm2085, %v5355, 0
        %v5375 = vsel %vm2085, %v5356, 0
        %v5378 = vsel %vm2085, %v5357, 0
        %v5381 = vsel %vm2085, %v5358, 0
        %5383 = vmatprep.subr.mxu0 0.0
        %5384 = vmatpush1.msra.mxu0 %v3482
        %5385 = vmatprep.subr.mxu0 0.0
        %5386 = vmatpush1.msra.mxu0 0.0
        %5387 = vmatprep.subr.mxu0 0.0
        %5388 = vmatpush1.msra.mxu0 0.0
        %5389 = vmatprep.subr.mxu0 0.0
        %5390 = vmatpush1.msra.mxu0 0.0
        %5391 = vmatprep.subr.mxu0 0.0
        %5392 = vmatpush1.msra.mxu0 0.0
        %5393 = vmatprep.subr.mxu0 0.0
        %5394 = vmatpush1.msra.mxu0 0.0
        %5395 = vmatprep.subr.mxu0 0.0
        %5396 = vmatpush1.msra.mxu0 0.0
        %5397 = vmatprep.subr.mxu0 0.0
        %5398 = vmatpush1.msra.mxu0 0.0
        %5399 = vmatprep.subr.mxu0 0.0
        %5400 = vmatpush1.msra.mxu0 0.0
        %5401 = vmatprep.subr.mxu0 0.0
        %5402 = vmatpush1.msra.mxu0 0.0
        %5403 = vmatprep.subr.mxu0 0.0
        %5404 = vmatpush1.msra.mxu0 0.0
        %5405 = vmatprep.subr.mxu0 0.0
        %5406 = vmatpush1.msra.mxu0 0.0
        %5407 = vmatprep.subr.mxu0 0.0
        %5408 = vmatpush1.msra.mxu0 0.0
        %5409 = vmatprep.subr.mxu0 0.0
        %5410 = vmatpush1.msra.mxu0 0.0
        %5411 = vmatprep.subr.mxu0 0.0
        %5412 = vmatpush1.msra.mxu0 0.0
        %5413 = vmatprep.subr.mxu0 0.0
        %5414 = vmatpush1.msra.mxu0 0.0
        %5415 = vmatprep.subr.mxu0 0.0
        %5416 = vmatpush1.msra.mxu0 0.0
        %5417 = vmatprep.subr.mxu0 0.0
        %5418 = vmatpush1.msra.mxu0 0.0
        %5419 = vmatprep.subr.mxu0 0.0
        %5420 = vmatpush1.msra.mxu0 0.0
        %5421 = vmatprep.subr.mxu0 0.0
        %5422 = vmatpush1.msra.mxu0 0.0
        %5423 = vmatprep.subr.mxu0 0.0
        %5424 = vmatpush1.msra.mxu0 0.0
        %5425 = vmatprep.subr.mxu0 0.0
        %5426 = vmatpush1.msra.mxu0 0.0
        %5427 = vmatprep.subr.mxu0 0.0
        %5428 = vmatpush1.msra.mxu0 0.0
        %5429 = vmatprep.subr.mxu0 0.0
        %5430 = vmatpush1.msra.mxu0 0.0
        %5431 = vmatprep.subr.mxu0 0.0
        %5432 = vmatpush1.msra.mxu0 0.0
        %5433 = vmatprep.subr.mxu0 0.0
        %5434 = vmatpush1.msra.mxu0 0.0
        %5435 = vmatprep.subr.mxu0 0.0
        %5436 = vmatpush1.msra.mxu0 0.0
        %5437 = vmatprep.subr.mxu0 0.0
        %5438 = vmatpush1.msra.mxu0 0.0
        %5439 = vmatprep.subr.mxu0 0.0
        %5440 = vmatpush1.msra.mxu0 0.0
        %5441 = vmatprep.subr.mxu0 0.0
        %5442 = vmatpush1.msra.mxu0 0.0
        %5443 = vmatprep.subr.mxu0 0.0
        %5444 = vmatpush1.msra.mxu0 0.0
        %5445 = vmatprep.subr.mxu0 0.0
        %5446 = vmatpush1.msra.mxu0 0.0
        %5447 = vmatprep.mubr.f32.mxu0 0.0
        %5448 = vmatmul.mubr.f32.gmra.mrb[0].mxu0 %v5360
        %v5449 = vpop.f32.mrb[0].mxu0
        %v5450 = vadd.f32 0.0, %v5449
        %v5451 = vpop.f32.mrb[0].mxu0
        %5452 = vmatprep.mubr.f32.mxu0 0.0
        %5453 = vmatmul.mubr.f32.gmra.mrb[0].mxu0 %v5363
        %v5454 = vpop.f32.mrb[0].mxu0
        %v5455 = vadd.f32 0.0, %v5454
        %v5456 = vpop.f32.mrb[0].mxu0
        %5457 = vmatprep.mubr.f32.mxu0 0.0
        %5458 = vmatmul.mubr.f32.gmra.mrb[0].mxu0 %v5366
        %v5459 = vpop.f32.mrb[0].mxu0
        %v5460 = vadd.f32 0.0, %v5459
        %v5461 = vpop.f32.mrb[0].mxu0
        %5462 = vmatprep.mubr.f32.mxu0 0.0
        %5463 = vmatmul.mubr.f32.gmra.mrb[0].mxu0 %v5369
        %v5464 = vpop.f32.mrb[0].mxu0
        %v5465 = vadd.f32 0.0, %v5464
        %v5466 = vpop.f32.mrb[0].mxu0
        %5467 = vmatprep.mubr.f32.mxu0 0.0
        %5468 = vmatmul.mubr.f32.gmra.mrb[0].mxu0 %v5372
        %v5469 = vpop.f32.mrb[0].mxu0
        %v5470 = vadd.f32 0.0, %v5469
        %v5471 = vpop.f32.mrb[0].mxu0
        %5472 = vmatprep.mubr.f32.mxu0 0.0
        %5473 = vmatmul.mubr.f32.gmra.mrb[0].mxu0 %v5375
        %v5474 = vpop.f32.mrb[0].mxu0
        %v5475 = vadd.f32 0.0, %v5474
        %v5476 = vpop.f32.mrb[0].mxu0
        %5477 = vmatprep.mubr.f32.mxu0 0.0
        %5478 = vmatmul.mubr.f32.gmra.mrb[0].mxu0 %v5378
        %v5479 = vpop.f32.mrb[0].mxu0
        %v5480 = vadd.f32 0.0, %v5479
        %v5481 = vpop.f32.mrb[0].mxu0
        %5482 = vmatprep.mubr.f32.mxu0 0.0
        %5483 = vmatmul.mubr.f32.gmra.mrb[0].mxu0 %v5381
        %v5484 = vpop.f32.mrb[0].mxu0
        %v5485 = vadd.f32 0.0, %v5484
        %v5486 = vpop.f32.mrb[0].mxu0
        %5487 = vdwg.mxu0
        %v5488 = vmul.f32 %v5180, %v5450
        %v5489 = vmul.f32 %v5185, %v5455
        %v5490 = vmul.f32 %v5190, %v5460
        %v5491 = vmul.f32 %v5195, %v5465
        %v5492 = vadd.f32 %v5488, %v5470
        %v5493 = vadd.f32 %v5489, %v5475
        %v5494 = vadd.f32 %v5490, %v5480
        %v5495 = vadd.f32 %v5491, %v5485
        %v5496 = vmax.f32 %v5492, 0.0
        %v5497 = vmax.f32 %v5493, 0.0
        %v5498 = vmax.f32 %v5494, 0.0
        %v5499 = vmax.f32 %v5495, 0.0
        %v5500 = vld [vmem:[#allocation9] sm:$0xff]
        %v5501 = vld [vmem:[#allocation9 + $0x8] sm:$0xff]
        %v5502 = vld [vmem:[#allocation9 + $0x10] sm:$0xff]
        %v5503 = vld [vmem:[#allocation9 + $0x18] sm:$0xff]
        %v5504 = vld [vmem:[#allocation9 + $0x20] sm:$0xff]
        %v5505 = vld [vmem:[#allocation9 + $0x28] sm:$0xff]
        %v5506 = vld [vmem:[#allocation9 + $0x30] sm:$0xff]
        %v5507 = vld [vmem:[#allocation9 + $0x38] sm:$0xff]
        %v5508 = vld [vmem:[#allocation9 + $0x40] sm:$0xff]
        %v5509 = vld [vmem:[#allocation9 + $0x48] sm:$0xff]
        %v5510 = vld [vmem:[#allocation9 + $0x50] sm:$0xff]
        %v5511 = vld [vmem:[#allocation9 + $0x58] sm:$0xff]
        %v5512 = vld [vmem:[%s31] sm:$0xff]
        %v5513 = vld [vmem:[%s31 + $0x8] sm:$0xff]
        %v5514 = vld [vmem:[%s31 + $0x10] sm:$0xff]
        %v5515 = vld [vmem:[%s31 + $0x18] sm:$0xff]
        %v5517 = vsel %vm3303, %v5496, 0
        %v5520 = vsel %vm3303, %v5497, 0
        %v5523 = vsel %vm3303, %v5498, 0
        %v5526 = vsel %vm3303, %v5499, 0
        %5528 = vmatprep.subr.mxu0 0.0
        %5529 = vmatpush1.msra.mxu0 %v1365
        %5530 = vmatprep.subr.mxu0 0.0
        %5531 = vmatpush1.msra.mxu0 %v1366
        %5532 = vmatprep.subr.mxu0 0.0
        %5533 = vmatpush1.msra.mxu0 %v1367
        %5534 = vmatprep.subr.mxu0 0.0
        %5535 = vmatpush1.msra.mxu0 %v1368
        %5536 = vmatprep.subr.mxu0 0.0
        %5537 = vmatpush1.msra.mxu0 0.0
        %5538 = vmatprep.subr.mxu0 0.0
        %5539 = vmatpush1.msra.mxu0 0.0
        %5540 = vmatprep.subr.mxu0 0.0
        %5541 = vmatpush1.msra.mxu0 0.0
        %5542 = vmatprep.subr.mxu0 0.0
        %5543 = vmatpush1.msra.mxu0 0.0
        %5544 = vmatprep.subr.mxu0 0.0
        %5545 = vmatpush1.msra.mxu0 0.0
        %5546 = vmatprep.subr.mxu0 0.0
        %5547 = vmatpush1.msra.mxu0 0.0
        %5548 = vmatprep.subr.mxu0 0.0
        %5549 = vmatpush1.msra.mxu0 0.0
        %5550 = vmatprep.subr.mxu0 0.0
        %5551 = vmatpush1.msra.mxu0 0.0
        %5552 = vmatprep.subr.mxu0 0.0
        %5553 = vmatpush1.msra.mxu0 0.0
        %5554 = vmatprep.subr.mxu0 0.0
        %5555 = vmatpush1.msra.mxu0 0.0
        %5556 = vmatprep.subr.mxu0 0.0
        %5557 = vmatpush1.msra.mxu0 0.0
        %5558 = vmatprep.subr.mxu0 0.0
        %5559 = vmatpush1.msra.mxu0 0.0
        %5560 = vmatprep.subr.mxu0 0.0
        %5561 = vmatpush1.msra.mxu0 0.0
        %5562 = vmatprep.subr.mxu0 0.0
        %5563 = vmatpush1.msra.mxu0 0.0
        %5564 = vmatprep.subr.mxu0 0.0
        %5565 = vmatpush1.msra.mxu0 0.0
        %5566 = vmatprep.subr.mxu0 0.0
        %5567 = vmatpush1.msra.mxu0 0.0
        %5568 = vmatprep.subr.mxu0 0.0
        %5569 = vmatpush1.msra.mxu0 0.0
        %5570 = vmatprep.subr.mxu0 0.0
        %5571 = vmatpush1.msra.mxu0 0.0
        %5572 = vmatprep.subr.mxu0 0.0
        %5573 = vmatpush1.msra.mxu0 0.0
        %5574 = vmatprep.subr.mxu0 0.0
        %5575 = vmatpush1.msra.mxu0 0.0
        %5576 = vmatprep.subr.mxu0 0.0
        %5577 = vmatpush1.msra.mxu0 0.0
        %5578 = vmatprep.subr.mxu0 0.0
        %5579 = vmatpush1.msra.mxu0 0.0
        %5580 = vmatprep.subr.mxu0 0.0
        %5581 = vmatpush1.msra.mxu0 0.0
        %5582 = vmatprep.subr.mxu0 0.0
        %5583 = vmatpush1.msra.mxu0 0.0
        %5584 = vmatprep.subr.mxu0 0.0
        %5585 = vmatpush1.msra.mxu0 0.0
        %5586 = vmatprep.subr.mxu0 0.0
        %5587 = vmatpush1.msra.mxu0 0.0
        %5588 = vmatprep.subr.mxu0 0.0
        %5589 = vmatpush1.msra.mxu0 0.0
        %5590 = vmatprep.subr.mxu0 0.0
        %5591 = vmatpush1.msra.mxu0 0.0
        %5592 = vmatprep.mubr.f32.mxu0 0.0
        %5593 = vmatmul.mubr.f32.gmra.mrb[0].mxu0 %v5517
        %v5594 = vpop.f32.mrb[0].mxu0
        %v5595 = vadd.f32 0.0, %v5594
        %v5596 = vpop.f32.mrb[0].mxu0
        %5597 = vmatprep.mubr.f32.mxu0 0.0
        %5598 = vmatmul.mubr.f32.gmra.mrb[0].mxu0 %v5520
        %v5599 = vpop.f32.mrb[0].mxu0
        %v5600 = vadd.f32 0.0, %v5599
        %v5601 = vpop.f32.mrb[0].mxu0
        %5602 = vmatprep.mubr.f32.mxu0 0.0
        %5603 = vmatmul.mubr.f32.gmra.mrb[0].mxu0 %v5523
        %v5604 = vpop.f32.mrb[0].mxu0
        %v5605 = vadd.f32 0.0, %v5604
        %v5606 = vpop.f32.mrb[0].mxu0
        %5607 = vmatprep.mubr.f32.mxu0 0.0
        %5608 = vmatmul.mubr.f32.gmra.mrb[0].mxu0 %v5526
        %v5609 = vpop.f32.mrb[0].mxu0
        %v5610 = vadd.f32 0.0, %v5609
        %v5611 = vpop.f32.mrb[0].mxu0
        %5612 = vdwg.mxu0
        %5613 = vmatprep.subr.mxu0 0.0
        %5614 = vmatpush1.msra.mxu0 %v1369
        %5615 = vmatprep.subr.mxu0 0.0
        %5616 = vmatpush1.msra.mxu0 %v1370
        %5617 = vmatprep.subr.mxu0 0.0
        %5618 = vmatpush1.msra.mxu0 %v1371
        %5619 = vmatprep.subr.mxu0 0.0
        %5620 = vmatpush1.msra.mxu0 %v1372
        %5621 = vmatprep.subr.mxu0 0.0
        %5622 = vmatpush1.msra.mxu0 0.0
        %5623 = vmatprep.subr.mxu0 0.0
        %5624 = vmatpush1.msra.mxu0 0.0
        %5625 = vmatprep.subr.mxu0 0.0
        %5626 = vmatpush1.msra.mxu0 0.0
        %5627 = vmatprep.subr.mxu0 0.0
        %5628 = vmatpush1.msra.mxu0 0.0
        %5629 = vmatprep.subr.mxu0 0.0
        %5630 = vmatpush1.msra.mxu0 0.0
        %5631 = vmatprep.subr.mxu0 0.0
        %5632 = vmatpush1.msra.mxu0 0.0
        %5633 = vmatprep.subr.mxu0 0.0
        %5634 = vmatpush1.msra.mxu0 0.0
        %5635 = vmatprep.subr.mxu0 0.0
        %5636 = vmatpush1.msra.mxu0 0.0
        %5637 = vmatprep.subr.mxu0 0.0
        %5638 = vmatpush1.msra.mxu0 0.0
        %5639 = vmatprep.subr.mxu0 0.0
        %5640 = vmatpush1.msra.mxu0 0.0
        %5641 = vmatprep.subr.mxu0 0.0
        %5642 = vmatpush1.msra.mxu0 0.0
        %5643 = vmatprep.subr.mxu0 0.0
        %5644 = vmatpush1.msra.mxu0 0.0
        %5645 = vmatprep.subr.mxu0 0.0
        %5646 = vmatpush1.msra.mxu0 0.0
        %5647 = vmatprep.subr.mxu0 0.0
        %5648 = vmatpush1.msra.mxu0 0.0
        %5649 = vmatprep.subr.mxu0 0.0
        %5650 = vmatpush1.msra.mxu0 0.0
        %5651 = vmatprep.subr.mxu0 0.0
        %5652 = vmatpush1.msra.mxu0 0.0
        %5653 = vmatprep.subr.mxu0 0.0
        %5654 = vmatpush1.msra.mxu0 0.0
        %5655 = vmatprep.subr.mxu0 0.0
        %5656 = vmatpush1.msra.mxu0 0.0
        %5657 = vmatprep.subr.mxu0 0.0
        %5658 = vmatpush1.msra.mxu0 0.0
        %5659 = vmatprep.subr.mxu0 0.0
        %5660 = vmatpush1.msra.mxu0 0.0
        %5661 = vmatprep.subr.mxu0 0.0
        %5662 = vmatpush1.msra.mxu0 0.0
        %5663 = vmatprep.subr.mxu0 0.0
        %5664 = vmatpush1.msra.mxu0 0.0
        %5665 = vmatprep.subr.mxu0 0.0
        %5666 = vmatpush1.msra.mxu0 0.0
        %5667 = vmatprep.subr.mxu0 0.0
        %5668 = vmatpush1.msra.mxu0 0.0
        %5669 = vmatprep.subr.mxu0 0.0
        %5670 = vmatpush1.msra.mxu0 0.0
        %5671 = vmatprep.subr.mxu0 0.0
        %5672 = vmatpush1.msra.mxu0 0.0
        %5673 = vmatprep.subr.mxu0 0.0
        %5674 = vmatpush1.msra.mxu0 0.0
        %5675 = vmatprep.subr.mxu0 0.0
        %5676 = vmatpush1.msra.mxu0 0.0
        %5677 = vmatprep.mubr.f32.mxu0 0.0
        %5678 = vmatmul.mubr.f32.gmra.mrb[0].mxu0 %v5517
        %v5679 = vpop.f32.mrb[0].mxu0
        %v5680 = vadd.f32 0.0, %v5679
        %v5681 = vpop.f32.mrb[0].mxu0
        %5682 = vmatprep.mubr.f32.mxu0 0.0
        %5683 = vmatmul.mubr.f32.gmra.mrb[0].mxu0 %v5520
        %v5684 = vpop.f32.mrb[0].mxu0
        %v5685 = vadd.f32 0.0, %v5684
        %v5686 = vpop.f32.mrb[0].mxu0
        %5687 = vmatprep.mubr.f32.mxu0 0.0
        %5688 = vmatmul.mubr.f32.gmra.mrb[0].mxu0 %v5523
        %v5689 = vpop.f32.mrb[0].mxu0
        %v5690 = vadd.f32 0.0, %v5689
        %v5691 = vpop.f32.mrb[0].mxu0
        %5692 = vmatprep.mubr.f32.mxu0 0.0
        %5693 = vmatmul.mubr.f32.gmra.mrb[0].mxu0 %v5526
        %v5694 = vpop.f32.mrb[0].mxu0
        %v5695 = vadd.f32 0.0, %v5694
        %v5696 = vpop.f32.mrb[0].mxu0
        %5697 = vdwg.mxu0
        %5698 = vmatprep.subr.mxu0 0.0
        %5699 = vmatpush1.msra.mxu0 %v1373
        %5700 = vmatprep.subr.mxu0 0.0
        %5701 = vmatpush1.msra.mxu0 %v1374
        %5702 = vmatprep.subr.mxu0 0.0
        %5703 = vmatpush1.msra.mxu0 %v1375
        %5704 = vmatprep.subr.mxu0 0.0
        %5705 = vmatpush1.msra.mxu0 %v1376
        %5706 = vmatprep.subr.mxu0 0.0
        %5707 = vmatpush1.msra.mxu0 0.0
        %5708 = vmatprep.subr.mxu0 0.0
        %5709 = vmatpush1.msra.mxu0 0.0
        %5710 = vmatprep.subr.mxu0 0.0
        %5711 = vmatpush1.msra.mxu0 0.0
        %5712 = vmatprep.subr.mxu0 0.0
        %5713 = vmatpush1.msra.mxu0 0.0
        %5714 = vmatprep.subr.mxu0 0.0
        %5715 = vmatpush1.msra.mxu0 0.0
        %5716 = vmatprep.subr.mxu0 0.0
        %5717 = vmatpush1.msra.mxu0 0.0
        %5718 = vmatprep.subr.mxu0 0.0
        %5719 = vmatpush1.msra.mxu0 0.0
        %5720 = vmatprep.subr.mxu0 0.0
        %5721 = vmatpush1.msra.mxu0 0.0
        %5722 = vmatprep.subr.mxu0 0.0
        %5723 = vmatpush1.msra.mxu0 0.0
        %5724 = vmatprep.subr.mxu0 0.0
        %5725 = vmatpush1.msra.mxu0 0.0
        %5726 = vmatprep.subr.mxu0 0.0
        %5727 = vmatpush1.msra.mxu0 0.0
        %5728 = vmatprep.subr.mxu0 0.0
        %5729 = vmatpush1.msra.mxu0 0.0
        %5730 = vmatprep.subr.mxu0 0.0
        %5731 = vmatpush1.msra.mxu0 0.0
        %5732 = vmatprep.subr.mxu0 0.0
        %5733 = vmatpush1.msra.mxu0 0.0
        %5734 = vmatprep.subr.mxu0 0.0
        %5735 = vmatpush1.msra.mxu0 0.0
        %5736 = vmatprep.subr.mxu0 0.0
        %5737 = vmatpush1.msra.mxu0 0.0
        %5738 = vmatprep.subr.mxu0 0.0
        %5739 = vmatpush1.msra.mxu0 0.0
        %5740 = vmatprep.subr.mxu0 0.0
        %5741 = vmatpush1.msra.mxu0 0.0
        %5742 = vmatprep.subr.mxu0 0.0
        %5743 = vmatpush1.msra.mxu0 0.0
        %5744 = vmatprep.subr.mxu0 0.0
        %5745 = vmatpush1.msra.mxu0 0.0
        %5746 = vmatprep.subr.mxu0 0.0
        %5747 = vmatpush1.msra.mxu0 0.0
        %5748 = vmatprep.subr.mxu0 0.0
        %5749 = vmatpush1.msra.mxu0 0.0
        %5750 = vmatprep.subr.mxu0 0.0
        %5751 = vmatpush1.msra.mxu0 0.0
        %5752 = vmatprep.subr.mxu0 0.0
        %5753 = vmatpush1.msra.mxu0 0.0
        %5754 = vmatprep.subr.mxu0 0.0
        %5755 = vmatpush1.msra.mxu0 0.0
        %5756 = vmatprep.subr.mxu0 0.0
        %5757 = vmatpush1.msra.mxu0 0.0
        %5758 = vmatprep.subr.mxu0 0.0
        %5759 = vmatpush1.msra.mxu0 0.0
        %5760 = vmatprep.subr.mxu0 0.0
        %5761 = vmatpush1.msra.mxu0 0.0
        %5762 = vmatprep.mubr.f32.mxu0 0.0
        %5763 = vmatmul.mubr.f32.gmra.mrb[0].mxu0 %v5517
        %v5764 = vpop.f32.mrb[0].mxu0
        %v5765 = vadd.f32 0.0, %v5764
        %v5766 = vpop.f32.mrb[0].mxu0
        %5767 = vmatprep.mubr.f32.mxu0 0.0
        %5768 = vmatmul.mubr.f32.gmra.mrb[0].mxu0 %v5520
        %v5769 = vpop.f32.mrb[0].mxu0
        %v5770 = vadd.f32 0.0, %v5769
        %v5771 = vpop.f32.mrb[0].mxu0
        %5772 = vmatprep.mubr.f32.mxu0 0.0
        %5773 = vmatmul.mubr.f32.gmra.mrb[0].mxu0 %v5523
        %v5774 = vpop.f32.mrb[0].mxu0
        %v5775 = vadd.f32 0.0, %v5774
        %v5776 = vpop.f32.mrb[0].mxu0
        %5777 = vmatprep.mubr.f32.mxu0 0.0
        %5778 = vmatmul.mubr.f32.gmra.mrb[0].mxu0 %v5526
        %v5779 = vpop.f32.mrb[0].mxu0
        %v5780 = vadd.f32 0.0, %v5779
        %v5781 = vpop.f32.mrb[0].mxu0
        %5782 = vdwg.mxu0
        %5783 = vmatprep.subr.mxu0 0.0
        %5784 = vmatpush1.msra.mxu0 %v1377
        %5785 = vmatprep.subr.mxu0 0.0
        %5786 = vmatpush1.msra.mxu0 %v1378
        %5787 = vmatprep.subr.mxu0 0.0
        %5788 = vmatpush1.msra.mxu0 %v1379
        %5789 = vmatprep.subr.mxu0 0.0
        %5790 = vmatpush1.msra.mxu0 %v1380
        %5791 = vmatprep.subr.mxu0 0.0
        %5792 = vmatpush1.msra.mxu0 0.0
        %5793 = vmatprep.subr.mxu0 0.0
        %5794 = vmatpush1.msra.mxu0 0.0
        %5795 = vmatprep.subr.mxu0 0.0
        %5796 = vmatpush1.msra.mxu0 0.0
        %5797 = vmatprep.subr.mxu0 0.0
        %5798 = vmatpush1.msra.mxu0 0.0
        %5799 = vmatprep.subr.mxu0 0.0
        %5800 = vmatpush1.msra.mxu0 0.0
        %5801 = vmatprep.subr.mxu0 0.0
        %5802 = vmatpush1.msra.mxu0 0.0
        %5803 = vmatprep.subr.mxu0 0.0
        %5804 = vmatpush1.msra.mxu0 0.0
        %5805 = vmatprep.subr.mxu0 0.0
        %5806 = vmatpush1.msra.mxu0 0.0
        %5807 = vmatprep.subr.mxu0 0.0
        %5808 = vmatpush1.msra.mxu0 0.0
        %5809 = vmatprep.subr.mxu0 0.0
        %5810 = vmatpush1.msra.mxu0 0.0
        %5811 = vmatprep.subr.mxu0 0.0
        %5812 = vmatpush1.msra.mxu0 0.0
        %5813 = vmatprep.subr.mxu0 0.0
        %5814 = vmatpush1.msra.mxu0 0.0
        %5815 = vmatprep.subr.mxu0 0.0
        %5816 = vmatpush1.msra.mxu0 0.0
        %5817 = vmatprep.subr.mxu0 0.0
        %5818 = vmatpush1.msra.mxu0 0.0
        %5819 = vmatprep.subr.mxu0 0.0
        %5820 = vmatpush1.msra.mxu0 0.0
        %5821 = vmatprep.subr.mxu0 0.0
        %5822 = vmatpush1.msra.mxu0 0.0
        %5823 = vmatprep.subr.mxu0 0.0
        %5824 = vmatpush1.msra.mxu0 0.0
        %5825 = vmatprep.subr.mxu0 0.0
        %5826 = vmatpush1.msra.mxu0 0.0
        %5827 = vmatprep.subr.mxu0 0.0
        %5828 = vmatpush1.msra.mxu0 0.0
        %5829 = vmatprep.subr.mxu0 0.0
        %5830 = vmatpush1.msra.mxu0 0.0
        %5831 = vmatprep.subr.mxu0 0.0
        %5832 = vmatpush1.msra.mxu0 0.0
        %5833 = vmatprep.subr.mxu0 0.0
        %5834 = vmatpush1.msra.mxu0 0.0
        %5835 = vmatprep.subr.mxu0 0.0
        %5836 = vmatpush1.msra.mxu0 0.0
        %5837 = vmatprep.subr.mxu0 0.0
        %5838 = vmatpush1.msra.mxu0 0.0
        %5839 = vmatprep.subr.mxu0 0.0
        %5840 = vmatpush1.msra.mxu0 0.0
        %5841 = vmatprep.subr.mxu0 0.0
        %5842 = vmatpush1.msra.mxu0 0.0
        %5843 = vmatprep.subr.mxu0 0.0
        %5844 = vmatpush1.msra.mxu0 0.0
        %5845 = vmatprep.subr.mxu0 0.0
        %5846 = vmatpush1.msra.mxu0 0.0
        %5847 = vmatprep.mubr.f32.mxu0 0.0
        %5848 = vmatmul.mubr.f32.gmra.mrb[0].mxu0 %v5517
        %v5849 = vpop.f32.mrb[0].mxu0
        %v5850 = vadd.f32 0.0, %v5849
        %v5851 = vpop.f32.mrb[0].mxu0
        %5852 = vmatprep.mubr.f32.mxu0 0.0
        %5853 = vmatmul.mubr.f32.gmra.mrb[0].mxu0 %v5520
        %v5854 = vpop.f32.mrb[0].mxu0
        %v5855 = vadd.f32 0.0, %v5854
        %v5856 = vpop.f32.mrb[0].mxu0
        %5857 = vmatprep.mubr.f32.mxu0 0.0
        %5858 = vmatmul.mubr.f32.gmra.mrb[0].mxu0 %v5523
        %v5859 = vpop.f32.mrb[0].mxu0
        %v5860 = vadd.f32 0.0, %v5859
        %v5861 = vpop.f32.mrb[0].mxu0
        %5862 = vmatprep.mubr.f32.mxu0 0.0
        %5863 = vmatmul.mubr.f32.gmra.mrb[0].mxu0 %v5526
        %v5864 = vpop.f32.mrb[0].mxu0
        %v5865 = vadd.f32 0.0, %v5864
        %v5866 = vpop.f32.mrb[0].mxu0
        %5867 = vdwg.mxu0
        %5868 = vmatprep.subr.mxu0 0.0
        %5869 = vmatpush1.msra.mxu0 %v1381
        %5870 = vmatprep.subr.mxu0 0.0
        %5871 = vmatpush1.msra.mxu0 %v1382
        %5872 = vmatprep.subr.mxu0 0.0
        %5873 = vmatpush1.msra.mxu0 %v1383
        %5874 = vmatprep.subr.mxu0 0.0
        %5875 = vmatpush1.msra.mxu0 %v1384
        %5876 = vmatprep.subr.mxu0 0.0
        %5877 = vmatpush1.msra.mxu0 0.0
        %5878 = vmatprep.subr.mxu0 0.0
        %5879 = vmatpush1.msra.mxu0 0.0
        %5880 = vmatprep.subr.mxu0 0.0
        %5881 = vmatpush1.msra.mxu0 0.0
        %5882 = vmatprep.subr.mxu0 0.0
        %5883 = vmatpush1.msra.mxu0 0.0
        %5884 = vmatprep.subr.mxu0 0.0
        %5885 = vmatpush1.msra.mxu0 0.0
        %5886 = vmatprep.subr.mxu0 0.0
        %5887 = vmatpush1.msra.mxu0 0.0
        %5888 = vmatprep.subr.mxu0 0.0
        %5889 = vmatpush1.msra.mxu0 0.0
        %5890 = vmatprep.subr.mxu0 0.0
        %5891 = vmatpush1.msra.mxu0 0.0
        %5892 = vmatprep.subr.mxu0 0.0
        %5893 = vmatpush1.msra.mxu0 0.0
        %5894 = vmatprep.subr.mxu0 0.0
        %5895 = vmatpush1.msra.mxu0 0.0
        %5896 = vmatprep.subr.mxu0 0.0
        %5897 = vmatpush1.msra.mxu0 0.0
        %5898 = vmatprep.subr.mxu0 0.0
        %5899 = vmatpush1.msra.mxu0 0.0
        %5900 = vmatprep.subr.mxu0 0.0
        %5901 = vmatpush1.msra.mxu0 0.0
        %5902 = vmatprep.subr.mxu0 0.0
        %5903 = vmatpush1.msra.mxu0 0.0
        %5904 = vmatprep.subr.mxu0 0.0
        %5905 = vmatpush1.msra.mxu0 0.0
        %5906 = vmatprep.subr.mxu0 0.0
        %5907 = vmatpush1.msra.mxu0 0.0
        %5908 = vmatprep.subr.mxu0 0.0
        %5909 = vmatpush1.msra.mxu0 0.0
        %5910 = vmatprep.subr.mxu0 0.0
        %5911 = vmatpush1.msra.mxu0 0.0
        %5912 = vmatprep.subr.mxu0 0.0
        %5913 = vmatpush1.msra.mxu0 0.0
        %5914 = vmatprep.subr.mxu0 0.0
        %5915 = vmatpush1.msra.mxu0 0.0
        %5916 = vmatprep.subr.mxu0 0.0
        %5917 = vmatpush1.msra.mxu0 0.0
        %5918 = vmatprep.subr.mxu0 0.0
        %5919 = vmatpush1.msra.mxu0 0.0
        %5920 = vmatprep.subr.mxu0 0.0
        %5921 = vmatpush1.msra.mxu0 0.0
        %5922 = vmatprep.subr.mxu0 0.0
        %5923 = vmatpush1.msra.mxu0 0.0
        %5924 = vmatprep.subr.mxu0 0.0
        %5925 = vmatpush1.msra.mxu0 0.0
        %5926 = vmatprep.subr.mxu0 0.0
        %5927 = vmatpush1.msra.mxu0 0.0
        %5928 = vmatprep.subr.mxu0 0.0
        %5929 = vmatpush1.msra.mxu0 0.0
        %5930 = vmatprep.subr.mxu0 0.0
        %5931 = vmatpush1.msra.mxu0 0.0
        %5932 = vmatprep.mubr.f32.mxu0 0.0
        %5933 = vmatmul.mubr.f32.gmra.mrb[0].mxu0 %v5517
        %v5934 = vpop.f32.mrb[0].mxu0
        %v5935 = vadd.f32 0.0, %v5934
        %v5936 = vpop.f32.mrb[0].mxu0
        %5937 = vmatprep.mubr.f32.mxu0 0.0
        %5938 = vmatmul.mubr.f32.gmra.mrb[0].mxu0 %v5520
        %v5939 = vpop.f32.mrb[0].mxu0
        %v5940 = vadd.f32 0.0, %v5939
        %v5941 = vpop.f32.mrb[0].mxu0
        %5942 = vmatprep.mubr.f32.mxu0 0.0
        %5943 = vmatmul.mubr.f32.gmra.mrb[0].mxu0 %v5523
        %v5944 = vpop.f32.mrb[0].mxu0
        %v5945 = vadd.f32 0.0, %v5944
        %v5946 = vpop.f32.mrb[0].mxu0
        %5947 = vmatprep.mubr.f32.mxu0 0.0
        %5948 = vmatmul.mubr.f32.gmra.mrb[0].mxu0 %v5526
        %v5949 = vpop.f32.mrb[0].mxu0
        %v5950 = vadd.f32 0.0, %v5949
        %v5951 = vpop.f32.mrb[0].mxu0
        %5952 = vdwg.mxu0
        %5953 = vmatprep.subr.mxu0 0.0
        %5954 = vmatpush1.msra.mxu0 %v1385
        %5955 = vmatprep.subr.mxu0 0.0
        %5956 = vmatpush1.msra.mxu0 %v1386
        %5957 = vmatprep.subr.mxu0 0.0
        %5958 = vmatpush1.msra.mxu0 %v1387
        %5959 = vmatprep.subr.mxu0 0.0
        %5960 = vmatpush1.msra.mxu0 %v1388
        %5961 = vmatprep.subr.mxu0 0.0
        %5962 = vmatpush1.msra.mxu0 0.0
        %5963 = vmatprep.subr.mxu0 0.0
        %5964 = vmatpush1.msra.mxu0 0.0
        %5965 = vmatprep.subr.mxu0 0.0
        %5966 = vmatpush1.msra.mxu0 0.0
        %5967 = vmatprep.subr.mxu0 0.0
        %5968 = vmatpush1.msra.mxu0 0.0
        %5969 = vmatprep.subr.mxu0 0.0
        %5970 = vmatpush1.msra.mxu0 0.0
        %5971 = vmatprep.subr.mxu0 0.0
        %5972 = vmatpush1.msra.mxu0 0.0
        %5973 = vmatprep.subr.mxu0 0.0
        %5974 = vmatpush1.msra.mxu0 0.0
        %5975 = vmatprep.subr.mxu0 0.0
        %5976 = vmatpush1.msra.mxu0 0.0
        %5977 = vmatprep.subr.mxu0 0.0
        %5978 = vmatpush1.msra.mxu0 0.0
        %5979 = vmatprep.subr.mxu0 0.0
        %5980 = vmatpush1.msra.mxu0 0.0
        %5981 = vmatprep.subr.mxu0 0.0
        %5982 = vmatpush1.msra.mxu0 0.0
        %5983 = vmatprep.subr.mxu0 0.0
        %5984 = vmatpush1.msra.mxu0 0.0
        %5985 = vmatprep.subr.mxu0 0.0
        %5986 = vmatpush1.msra.mxu0 0.0
        %5987 = vmatprep.subr.mxu0 0.0
        %5988 = vmatpush1.msra.mxu0 0.0
        %5989 = vmatprep.subr.mxu0 0.0
        %5990 = vmatpush1.msra.mxu0 0.0
        %5991 = vmatprep.subr.mxu0 0.0
        %5992 = vmatpush1.msra.mxu0 0.0
        %5993 = vmatprep.subr.mxu0 0.0
        %5994 = vmatpush1.msra.mxu0 0.0
        %5995 = vmatprep.subr.mxu0 0.0
        %5996 = vmatpush1.msra.mxu0 0.0
        %5997 = vmatprep.subr.mxu0 0.0
        %5998 = vmatpush1.msra.mxu0 0.0
        %5999 = vmatprep.subr.mxu0 0.0
        %6000 = vmatpush1.msra.mxu0 0.0
        %6001 = vmatprep.subr.mxu0 0.0
        %6002 = vmatpush1.msra.mxu0 0.0
        %6003 = vmatprep.subr.mxu0 0.0
        %6004 = vmatpush1.msra.mxu0 0.0
        %6005 = vmatprep.subr.mxu0 0.0
        %6006 = vmatpush1.msra.mxu0 0.0
        %6007 = vmatprep.subr.mxu0 0.0
        %6008 = vmatpush1.msra.mxu0 0.0
        %6009 = vmatprep.subr.mxu0 0.0
        %6010 = vmatpush1.msra.mxu0 0.0
        %6011 = vmatprep.subr.mxu0 0.0
        %6012 = vmatpush1.msra.mxu0 0.0
        %6013 = vmatprep.subr.mxu0 0.0
        %6014 = vmatpush1.msra.mxu0 0.0
        %6015 = vmatprep.subr.mxu0 0.0
        %6016 = vmatpush1.msra.mxu0 0.0
        %6017 = vmatprep.mubr.f32.mxu0 0.0
        %6018 = vmatmul.mubr.f32.gmra.mrb[0].mxu0 %v5517
        %v6019 = vpop.f32.mrb[0].mxu0
        %v6020 = vadd.f32 0.0, %v6019
        %v6021 = vpop.f32.mrb[0].mxu0
        %6022 = vmatprep.mubr.f32.mxu0 0.0
        %6023 = vmatmul.mubr.f32.gmra.mrb[0].mxu0 %v5520
        %v6024 = vpop.f32.mrb[0].mxu0
        %v6025 = vadd.f32 0.0, %v6024
        %v6026 = vpop.f32.mrb[0].mxu0
        %6027 = vmatprep.mubr.f32.mxu0 0.0
        %6028 = vmatmul.mubr.f32.gmra.mrb[0].mxu0 %v5523
        %v6029 = vpop.f32.mrb[0].mxu0
        %v6030 = vadd.f32 0.0, %v6029
        %v6031 = vpop.f32.mrb[0].mxu0
        %6032 = vmatprep.mubr.f32.mxu0 0.0
        %6033 = vmatmul.mubr.f32.gmra.mrb[0].mxu0 %v5526
        %v6034 = vpop.f32.mrb[0].mxu0
        %v6035 = vadd.f32 0.0, %v6034
        %v6036 = vpop.f32.mrb[0].mxu0
        %6037 = vdwg.mxu0
        %6038 = vmatprep.subr.mxu0 0.0
        %6039 = vmatpush1.msra.mxu0 %v1389
        %6040 = vmatprep.subr.mxu0 0.0
        %6041 = vmatpush1.msra.mxu0 %v1390
        %6042 = vmatprep.subr.mxu0 0.0
        %6043 = vmatpush1.msra.mxu0 %v1391
        %6044 = vmatprep.subr.mxu0 0.0
        %6045 = vmatpush1.msra.mxu0 %v1392
        %6046 = vmatprep.subr.mxu0 0.0
        %6047 = vmatpush1.msra.mxu0 0.0
        %6048 = vmatprep.subr.mxu0 0.0
        %6049 = vmatpush1.msra.mxu0 0.0
        %6050 = vmatprep.subr.mxu0 0.0
        %6051 = vmatpush1.msra.mxu0 0.0
        %6052 = vmatprep.subr.mxu0 0.0
        %6053 = vmatpush1.msra.mxu0 0.0
        %6054 = vmatprep.subr.mxu0 0.0
        %6055 = vmatpush1.msra.mxu0 0.0
        %6056 = vmatprep.subr.mxu0 0.0
        %6057 = vmatpush1.msra.mxu0 0.0
        %6058 = vmatprep.subr.mxu0 0.0
        %6059 = vmatpush1.msra.mxu0 0.0
        %6060 = vmatprep.subr.mxu0 0.0
        %6061 = vmatpush1.msra.mxu0 0.0
        %6062 = vmatprep.subr.mxu0 0.0
        %6063 = vmatpush1.msra.mxu0 0.0
        %6064 = vmatprep.subr.mxu0 0.0
        %6065 = vmatpush1.msra.mxu0 0.0
        %6066 = vmatprep.subr.mxu0 0.0
        %6067 = vmatpush1.msra.mxu0 0.0
        %6068 = vmatprep.subr.mxu0 0.0
        %6069 = vmatpush1.msra.mxu0 0.0
        %6070 = vmatprep.subr.mxu0 0.0
        %6071 = vmatpush1.msra.mxu0 0.0
        %6072 = vmatprep.subr.mxu0 0.0
        %6073 = vmatpush1.msra.mxu0 0.0
        %6074 = vmatprep.subr.mxu0 0.0
        %6075 = vmatpush1.msra.mxu0 0.0
        %6076 = vmatprep.subr.mxu0 0.0
        %6077 = vmatpush1.msra.mxu0 0.0
        %6078 = vmatprep.subr.mxu0 0.0
        %6079 = vmatpush1.msra.mxu0 0.0
        %6080 = vmatprep.subr.mxu0 0.0
        %6081 = vmatpush1.msra.mxu0 0.0
        %6082 = vmatprep.subr.mxu0 0.0
        %6083 = vmatpush1.msra.mxu0 0.0
        %6084 = vmatprep.subr.mxu0 0.0
        %6085 = vmatpush1.msra.mxu0 0.0
        %6086 = vmatprep.subr.mxu0 0.0
        %6087 = vmatpush1.msra.mxu0 0.0
        %6088 = vmatprep.subr.mxu0 0.0
        %6089 = vmatpush1.msra.mxu0 0.0
        %6090 = vmatprep.subr.mxu0 0.0
        %6091 = vmatpush1.msra.mxu0 0.0
        %6092 = vmatprep.subr.mxu0 0.0
        %6093 = vmatpush1.msra.mxu0 0.0
        %6094 = vmatprep.subr.mxu0 0.0
        %6095 = vmatpush1.msra.mxu0 0.0
        %6096 = vmatprep.subr.mxu0 0.0
        %6097 = vmatpush1.msra.mxu0 0.0
        %6098 = vmatprep.subr.mxu0 0.0
        %6099 = vmatpush1.msra.mxu0 0.0
        %6100 = vmatprep.subr.mxu0 0.0
        %6101 = vmatpush1.msra.mxu0 0.0
        %6102 = vmatprep.mubr.f32.mxu0 0.0
        %6103 = vmatmul.mubr.f32.gmra.mrb[0].mxu0 %v5517
        %v6104 = vpop.f32.mrb[0].mxu0
        %v6105 = vadd.f32 0.0, %v6104
        %v6106 = vpop.f32.mrb[0].mxu0
        %6107 = vmatprep.mubr.f32.mxu0 0.0
        %6108 = vmatmul.mubr.f32.gmra.mrb[0].mxu0 %v5520
        %v6109 = vpop.f32.mrb[0].mxu0
        %v6110 = vadd.f32 0.0, %v6109
        %v6111 = vpop.f32.mrb[0].mxu0
        %6112 = vmatprep.mubr.f32.mxu0 0.0
        %6113 = vmatmul.mubr.f32.gmra.mrb[0].mxu0 %v5523
        %v6114 = vpop.f32.mrb[0].mxu0
        %v6115 = vadd.f32 0.0, %v6114
        %v6116 = vpop.f32.mrb[0].mxu0
        %6117 = vmatprep.mubr.f32.mxu0 0.0
        %6118 = vmatmul.mubr.f32.gmra.mrb[0].mxu0 %v5526
        %v6119 = vpop.f32.mrb[0].mxu0
        %v6120 = vadd.f32 0.0, %v6119
        %v6121 = vpop.f32.mrb[0].mxu0
        %6122 = vdwg.mxu0
        %6123 = vmatprep.subr.mxu0 0.0
        %6124 = vmatpush1.msra.mxu0 %v1393
        %6125 = vmatprep.subr.mxu0 0.0
        %6126 = vmatpush1.msra.mxu0 %v1394
        %6127 = vmatprep.subr.mxu0 0.0
        %6128 = vmatpush1.msra.mxu0 %v1395
        %6129 = vmatprep.subr.mxu0 0.0
        %6130 = vmatpush1.msra.mxu0 %v1396
        %6131 = vmatprep.subr.mxu0 0.0
        %6132 = vmatpush1.msra.mxu0 0.0
        %6133 = vmatprep.subr.mxu0 0.0
        %6134 = vmatpush1.msra.mxu0 0.0
        %6135 = vmatprep.subr.mxu0 0.0
        %6136 = vmatpush1.msra.mxu0 0.0
        %6137 = vmatprep.subr.mxu0 0.0
        %6138 = vmatpush1.msra.mxu0 0.0
        %6139 = vmatprep.subr.mxu0 0.0
        %6140 = vmatpush1.msra.mxu0 0.0
        %6141 = vmatprep.subr.mxu0 0.0
        %6142 = vmatpush1.msra.mxu0 0.0
        %6143 = vmatprep.subr.mxu0 0.0
        %6144 = vmatpush1.msra.mxu0 0.0
        %6145 = vmatprep.subr.mxu0 0.0
        %6146 = vmatpush1.msra.mxu0 0.0
        %6147 = vmatprep.subr.mxu0 0.0
        %6148 = vmatpush1.msra.mxu0 0.0
        %6149 = vmatprep.subr.mxu0 0.0
        %6150 = vmatpush1.msra.mxu0 0.0
        %6151 = vmatprep.subr.mxu0 0.0
        %6152 = vmatpush1.msra.mxu0 0.0
        %6153 = vmatprep.subr.mxu0 0.0
        %6154 = vmatpush1.msra.mxu0 0.0
        %6155 = vmatprep.subr.mxu0 0.0
        %6156 = vmatpush1.msra.mxu0 0.0
        %6157 = vmatprep.subr.mxu0 0.0
        %6158 = vmatpush1.msra.mxu0 0.0
        %6159 = vmatprep.subr.mxu0 0.0
        %6160 = vmatpush1.msra.mxu0 0.0
        %6161 = vmatprep.subr.mxu0 0.0
        %6162 = vmatpush1.msra.mxu0 0.0
        %6163 = vmatprep.subr.mxu0 0.0
        %6164 = vmatpush1.msra.mxu0 0.0
        %6165 = vmatprep.subr.mxu0 0.0
        %6166 = vmatpush1.msra.mxu0 0.0
        %6167 = vmatprep.subr.mxu0 0.0
        %6168 = vmatpush1.msra.mxu0 0.0
        %6169 = vmatprep.subr.mxu0 0.0
        %6170 = vmatpush1.msra.mxu0 0.0
        %6171 = vmatprep.subr.mxu0 0.0
        %6172 = vmatpush1.msra.mxu0 0.0
        %6173 = vmatprep.subr.mxu0 0.0
        %6174 = vmatpush1.msra.mxu0 0.0
        %6175 = vmatprep.subr.mxu0 0.0
        %6176 = vmatpush1.msra.mxu0 0.0
        %6177 = vmatprep.subr.mxu0 0.0
        %6178 = vmatpush1.msra.mxu0 0.0
        %6179 = vmatprep.subr.mxu0 0.0
        %6180 = vmatpush1.msra.mxu0 0.0
        %6181 = vmatprep.subr.mxu0 0.0
        %6182 = vmatpush1.msra.mxu0 0.0
        %6183 = vmatprep.subr.mxu0 0.0
        %6184 = vmatpush1.msra.mxu0 0.0
        %6185 = vmatprep.subr.mxu0 0.0
        %6186 = vmatpush1.msra.mxu0 0.0
        %6187 = vmatprep.mubr.f32.mxu0 0.0
        %6188 = vmatmul.mubr.f32.gmra.mrb[0].mxu0 %v5517
        %v6189 = vpop.f32.mrb[0].mxu0
        %v6190 = vadd.f32 0.0, %v6189
        %v6191 = vpop.f32.mrb[0].mxu0
        %6192 = vmatprep.mubr.f32.mxu0 0.0
        %6193 = vmatmul.mubr.f32.gmra.mrb[0].mxu0 %v5520
        %v6194 = vpop.f32.mrb[0].mxu0
        %v6195 = vadd.f32 0.0, %v6194
        %v6196 = vpop.f32.mrb[0].mxu0
        %6197 = vmatprep.mubr.f32.mxu0 0.0
        %6198 = vmatmul.mubr.f32.gmra.mrb[0].mxu0 %v5523
        %v6199 = vpop.f32.mrb[0].mxu0
        %v6200 = vadd.f32 0.0, %v6199
        %v6201 = vpop.f32.mrb[0].mxu0
        %6202 = vmatprep.mubr.f32.mxu0 0.0
        %6203 = vmatmul.mubr.f32.gmra.mrb[0].mxu0 %v5526
        %v6204 = vpop.f32.mrb[0].mxu0
        %v6205 = vadd.f32 0.0, %v6204
        %v6206 = vpop.f32.mrb[0].mxu0
        %6207 = vdwg.mxu0
        %6208 = vmatprep.subr.mxu0 0.0
        %6209 = vmatpush1.msra.mxu0 %v1397
        %6210 = vmatprep.subr.mxu0 0.0
        %6211 = vmatpush1.msra.mxu0 %v1398
        %6212 = vmatprep.subr.mxu0 0.0
        %6213 = vmatpush1.msra.mxu0 %v1399
        %6214 = vmatprep.subr.mxu0 0.0
        %6215 = vmatpush1.msra.mxu0 %v1400
        %6216 = vmatprep.subr.mxu0 0.0
        %6217 = vmatpush1.msra.mxu0 0.0
        %6218 = vmatprep.subr.mxu0 0.0
        %6219 = vmatpush1.msra.mxu0 0.0
        %6220 = vmatprep.subr.mxu0 0.0
        %6221 = vmatpush1.msra.mxu0 0.0
        %6222 = vmatprep.subr.mxu0 0.0
        %6223 = vmatpush1.msra.mxu0 0.0
        %6224 = vmatprep.subr.mxu0 0.0
        %6225 = vmatpush1.msra.mxu0 0.0
        %6226 = vmatprep.subr.mxu0 0.0
        %6227 = vmatpush1.msra.mxu0 0.0
        %6228 = vmatprep.subr.mxu0 0.0
        %6229 = vmatpush1.msra.mxu0 0.0
        %6230 = vmatprep.subr.mxu0 0.0
        %6231 = vmatpush1.msra.mxu0 0.0
        %6232 = vmatprep.subr.mxu0 0.0
        %6233 = vmatpush1.msra.mxu0 0.0
        %6234 = vmatprep.subr.mxu0 0.0
        %6235 = vmatpush1.msra.mxu0 0.0
        %6236 = vmatprep.subr.mxu0 0.0
        %6237 = vmatpush1.msra.mxu0 0.0
        %6238 = vmatprep.subr.mxu0 0.0
        %6239 = vmatpush1.msra.mxu0 0.0
        %6240 = vmatprep.subr.mxu0 0.0
        %6241 = vmatpush1.msra.mxu0 0.0
        %6242 = vmatprep.subr.mxu0 0.0
        %6243 = vmatpush1.msra.mxu0 0.0
        %6244 = vmatprep.subr.mxu0 0.0
        %6245 = vmatpush1.msra.mxu0 0.0
        %6246 = vmatprep.subr.mxu0 0.0
        %6247 = vmatpush1.msra.mxu0 0.0
        %6248 = vmatprep.subr.mxu0 0.0
        %6249 = vmatpush1.msra.mxu0 0.0
        %6250 = vmatprep.subr.mxu0 0.0
        %6251 = vmatpush1.msra.mxu0 0.0
        %6252 = vmatprep.subr.mxu0 0.0
        %6253 = vmatpush1.msra.mxu0 0.0
        %6254 = vmatprep.subr.mxu0 0.0
        %6255 = vmatpush1.msra.mxu0 0.0
        %6256 = vmatprep.subr.mxu0 0.0
        %6257 = vmatpush1.msra.mxu0 0.0
        %6258 = vmatprep.subr.mxu0 0.0
        %6259 = vmatpush1.msra.mxu0 0.0
        %6260 = vmatprep.subr.mxu0 0.0
        %6261 = vmatpush1.msra.mxu0 0.0
        %6262 = vmatprep.subr.mxu0 0.0
        %6263 = vmatpush1.msra.mxu0 0.0
        %6264 = vmatprep.subr.mxu0 0.0
        %6265 = vmatpush1.msra.mxu0 0.0
        %6266 = vmatprep.subr.mxu0 0.0
        %6267 = vmatpush1.msra.mxu0 0.0
        %6268 = vmatprep.subr.mxu0 0.0
        %6269 = vmatpush1.msra.mxu0 0.0
        %6270 = vmatprep.subr.mxu0 0.0
        %6271 = vmatpush1.msra.mxu0 0.0
        %6272 = vmatprep.mubr.f32.mxu0 0.0
        %6273 = vmatmul.mubr.f32.gmra.mrb[0].mxu0 %v5517
        %v6274 = vpop.f32.mrb[0].mxu0
        %v6275 = vadd.f32 0.0, %v6274
        %v6276 = vpop.f32.mrb[0].mxu0
        %6277 = vmatprep.mubr.f32.mxu0 0.0
        %6278 = vmatmul.mubr.f32.gmra.mrb[0].mxu0 %v5520
        %v6279 = vpop.f32.mrb[0].mxu0
        %v6280 = vadd.f32 0.0, %v6279
        %v6281 = vpop.f32.mrb[0].mxu0
        %6282 = vmatprep.mubr.f32.mxu0 0.0
        %6283 = vmatmul.mubr.f32.gmra.mrb[0].mxu0 %v5523
        %v6284 = vpop.f32.mrb[0].mxu0
        %v6285 = vadd.f32 0.0, %v6284
        %v6286 = vpop.f32.mrb[0].mxu0
        %6287 = vmatprep.mubr.f32.mxu0 0.0
        %6288 = vmatmul.mubr.f32.gmra.mrb[0].mxu0 %v5526
        %v6289 = vpop.f32.mrb[0].mxu0
        %v6290 = vadd.f32 0.0, %v6289
        %v6291 = vpop.f32.mrb[0].mxu0
        %6292 = vdwg.mxu0
        %6294 = vset.pattern.permute.xlu0 0
        %6295 = vperm.xlu0 %6294, %v5512
        %v6296 = vpop.permute.xlu0 %6295
        %6299 = vset.pattern.permute.xlu0 0
        %6300 = vperm.xlu0 %6299, %v5513
        %v6301 = vpop.permute.xlu0 %6300
        %6304 = vset.pattern.permute.xlu0 0
        %6305 = vperm.xlu0 %6304, %v5514
        %v6306 = vpop.permute.xlu0 %6305
        %6309 = vset.pattern.permute.xlu0 0
        %6310 = vperm.xlu0 %6309, %v5515
        %v6311 = vpop.permute.xlu0 %6310
        %v6314 = vsel %vm3303, %v5502, 0
        %v6317 = vsel %vm3303, %v5505, 0
        %v6320 = vsel %vm3303, %v5508, 0
        %v6323 = vsel %vm3303, %v5511, 0
        %6325 = vmatprep.subr.mxu0 0.0
        %6326 = vmatpush1.msra.mxu0 %v5595
        %6327 = vmatprep.subr.mxu0 0.0
        %6328 = vmatpush1.msra.mxu0 %v5600
        %6329 = vmatprep.subr.mxu0 0.0
        %6330 = vmatpush1.msra.mxu0 %v5605
        %6331 = vmatprep.subr.mxu0 0.0
        %6332 = vmatpush1.msra.mxu0 %v5610
        %6333 = vmatprep.subr.mxu0 0.0
        %6334 = vmatpush1.msra.mxu0 %v5680
        %6335 = vmatprep.subr.mxu0 0.0
        %6336 = vmatpush1.msra.mxu0 %v5685
        %6337 = vmatprep.subr.mxu0 0.0
        %6338 = vmatpush1.msra.mxu0 %v5690
        %6339 = vmatprep.subr.mxu0 0.0
        %6340 = vmatpush1.msra.mxu0 %v5695
        %6341 = vmatprep.subr.mxu0 0.0
        %6342 = vmatpush1.msra.mxu0 %v5765
        %6343 = vmatprep.subr.mxu0 0.0
        %6344 = vmatpush1.msra.mxu0 %v5770
        %6345 = vmatprep.subr.mxu0 0.0
        %6346 = vmatpush1.msra.mxu0 %v5775
        %6347 = vmatprep.subr.mxu0 0.0
        %6348 = vmatpush1.msra.mxu0 %v5780
        %6349 = vmatprep.subr.mxu0 0.0
        %6350 = vmatpush1.msra.mxu0 %v5850
        %6351 = vmatprep.subr.mxu0 0.0
        %6352 = vmatpush1.msra.mxu0 %v5855
        %6353 = vmatprep.subr.mxu0 0.0
        %6354 = vmatpush1.msra.mxu0 %v5860
        %6355 = vmatprep.subr.mxu0 0.0
        %6356 = vmatpush1.msra.mxu0 %v5865
        %6357 = vmatprep.subr.mxu0 0.0
        %6358 = vmatpush1.msra.mxu0 %v5935
        %6359 = vmatprep.subr.mxu0 0.0
        %6360 = vmatpush1.msra.mxu0 %v5940
        %6361 = vmatprep.subr.mxu0 0.0
        %6362 = vmatpush1.msra.mxu0 %v5945
        %6363 = vmatprep.subr.mxu0 0.0
        %6364 = vmatpush1.msra.mxu0 %v5950
        %6365 = vmatprep.subr.mxu0 0.0
        %6366 = vmatpush1.msra.mxu0 %v6020
        %6367 = vmatprep.subr.mxu0 0.0
        %6368 = vmatpush1.msra.mxu0 %v6025
        %6369 = vmatprep.subr.mxu0 0.0
        %6370 = vmatpush1.msra.mxu0 %v6030
        %6371 = vmatprep.subr.mxu0 0.0
        %6372 = vmatpush1.msra.mxu0 %v6035
        %6373 = vmatprep.subr.mxu0 0.0
        %6374 = vmatpush1.msra.mxu0 %v6105
        %6375 = vmatprep.subr.mxu0 0.0
        %6376 = vmatpush1.msra.mxu0 %v6110
        %6377 = vmatprep.subr.mxu0 0.0
        %6378 = vmatpush1.msra.mxu0 %v6115
        %6379 = vmatprep.subr.mxu0 0.0
        %6380 = vmatpush1.msra.mxu0 %v6120
        %6381 = vmatprep.subr.mxu0 0.0
        %6382 = vmatpush1.msra.mxu0 %v6190
        %6383 = vmatprep.subr.mxu0 0.0
        %6384 = vmatpush1.msra.mxu0 %v6195
        %6385 = vmatprep.subr.mxu0 0.0
        %6386 = vmatpush1.msra.mxu0 %v6200
        %6387 = vmatprep.subr.mxu0 0.0
        %6388 = vmatpush1.msra.mxu0 %v6205
        %6389 = vmatprep.mubr.f32.mxu0 %v5501
        %6390 = vmatmul.mubr.f32.gmra.mrb[0].mxu0 %v5500
        %v6391 = vpop.f32.mrb[0].mxu0
        %v6392 = vadd.f32 %v6296, %v6391
        %v6393 = vpop.f32.mrb[0].mxu0
        %6394 = vmatprep.mubr.f32.mxu0 %v5504
        %6395 = vmatmul.mubr.f32.gmra.mrb[0].mxu0 %v5503
        %v6396 = vpop.f32.mrb[0].mxu0
        %v6397 = vadd.f32 %v6301, %v6396
        %v6398 = vpop.f32.mrb[0].mxu0
        %6399 = vmatprep.mubr.f32.mxu0 %v5507
        %6400 = vmatmul.mubr.f32.gmra.mrb[0].mxu0 %v5506
        %v6401 = vpop.f32.mrb[0].mxu0
        %v6402 = vadd.f32 %v6306, %v6401
        %v6403 = vpop.f32.mrb[0].mxu0
        %6404 = vmatprep.mubr.f32.mxu0 %v5510
        %6405 = vmatmul.mubr.f32.gmra.mrb[0].mxu0 %v5509
        %v6406 = vpop.f32.mrb[0].mxu0
        %v6407 = vadd.f32 %v6311, %v6406
        %v6408 = vpop.f32.mrb[0].mxu0
        %6409 = vdwg.mxu0
        %6410 = vmatprep.subr.mxu0 0.0
        %6411 = vmatpush1.msra.mxu0 %v6275
        %6412 = vmatprep.subr.mxu0 0.0
        %6413 = vmatpush1.msra.mxu0 %v6280
        %6414 = vmatprep.subr.mxu0 0.0
        %6415 = vmatpush1.msra.mxu0 %v6285
        %6416 = vmatprep.subr.mxu0 0.0
        %6417 = vmatpush1.msra.mxu0 %v6290
        %6418 = vmatprep.subr.mxu0 0.0
        %6419 = vmatpush1.msra.mxu0 0.0
        %6420 = vmatprep.subr.mxu0 0.0
        %6421 = vmatpush1.msra.mxu0 0.0
        %6422 = vmatprep.subr.mxu0 0.0
        %6423 = vmatpush1.msra.mxu0 0.0
        %6424 = vmatprep.subr.mxu0 0.0
        %6425 = vmatpush1.msra.mxu0 0.0
        %6426 = vmatprep.subr.mxu0 0.0
        %6427 = vmatpush1.msra.mxu0 0.0
        %6428 = vmatprep.subr.mxu0 0.0
        %6429 = vmatpush1.msra.mxu0 0.0
        %6430 = vmatprep.subr.mxu0 0.0
        %6431 = vmatpush1.msra.mxu0 0.0
        %6432 = vmatprep.subr.mxu0 0.0
        %6433 = vmatpush1.msra.mxu0 0.0
        %6434 = vmatprep.subr.mxu0 0.0
        %6435 = vmatpush1.msra.mxu0 0.0
        %6436 = vmatprep.subr.mxu0 0.0
        %6437 = vmatpush1.msra.mxu0 0.0
        %6438 = vmatprep.subr.mxu0 0.0
        %6439 = vmatpush1.msra.mxu0 0.0
        %6440 = vmatprep.subr.mxu0 0.0
        %6441 = vmatpush1.msra.mxu0 0.0
        %6442 = vmatprep.subr.mxu0 0.0
        %6443 = vmatpush1.msra.mxu0 0.0
        %6444 = vmatprep.subr.mxu0 0.0
        %6445 = vmatpush1.msra.mxu0 0.0
        %6446 = vmatprep.subr.mxu0 0.0
        %6447 = vmatpush1.msra.mxu0 0.0
        %6448 = vmatprep.subr.mxu0 0.0
        %6449 = vmatpush1.msra.mxu0 0.0
        %6450 = vmatprep.subr.mxu0 0.0
        %6451 = vmatpush1.msra.mxu0 0.0
        %6452 = vmatprep.subr.mxu0 0.0
        %6453 = vmatpush1.msra.mxu0 0.0
        %6454 = vmatprep.subr.mxu0 0.0
        %6455 = vmatpush1.msra.mxu0 0.0
        %6456 = vmatprep.subr.mxu0 0.0
        %6457 = vmatpush1.msra.mxu0 0.0
        %6458 = vmatprep.subr.mxu0 0.0
        %6459 = vmatpush1.msra.mxu0 0.0
        %6460 = vmatprep.subr.mxu0 0.0
        %6461 = vmatpush1.msra.mxu0 0.0
        %6462 = vmatprep.subr.mxu0 0.0
        %6463 = vmatpush1.msra.mxu0 0.0
        %6464 = vmatprep.subr.mxu0 0.0
        %6465 = vmatpush1.msra.mxu0 0.0
        %6466 = vmatprep.subr.mxu0 0.0
        %6467 = vmatpush1.msra.mxu0 0.0
        %6468 = vmatprep.subr.mxu0 0.0
        %6469 = vmatpush1.msra.mxu0 0.0
        %6470 = vmatprep.subr.mxu0 0.0
        %6471 = vmatpush1.msra.mxu0 0.0
        %6472 = vmatprep.subr.mxu0 0.0
        %6473 = vmatpush1.msra.mxu0 0.0
        %6474 = vmatprep.mubr.f32.mxu0 0.0
        %6475 = vmatmul.mubr.f32.gmra.mrb[0].mxu0 %v6314
        %v6476 = vpop.f32.mrb[0].mxu0
        %v6477 = vadd.f32 %v6392, %v6476
        %v6478 = vpop.f32.mrb[0].mxu0
        %6479 = vmatprep.mubr.f32.mxu0 0.0
        %6480 = vmatmul.mubr.f32.gmra.mrb[0].mxu0 %v6317
        %v6481 = vpop.f32.mrb[0].mxu0
        %v6482 = vadd.f32 %v6397, %v6481
        %v6483 = vpop.f32.mrb[0].mxu0
        %6484 = vmatprep.mubr.f32.mxu0 0.0
        %6485 = vmatmul.mubr.f32.gmra.mrb[0].mxu0 %v6320
        %v6486 = vpop.f32.mrb[0].mxu0
        %v6487 = vadd.f32 %v6402, %v6486
        %v6488 = vpop.f32.mrb[0].mxu0
        %6489 = vmatprep.mubr.f32.mxu0 0.0
        %6490 = vmatmul.mubr.f32.gmra.mrb[0].mxu0 %v6323
        %v6491 = vpop.f32.mrb[0].mxu0
        %v6492 = vadd.f32 %v6407, %v6491
        %v6493 = vpop.f32.mrb[0].mxu0
        %6494 = vdwg.mxu0
        %v6495 = vmul.f32 %v6477, %v6477
        %v6496 = vmul.f32 %v6482, %v6482
        %v6497 = vmul.f32 %v6487, %v6487
        %v6498 = vmul.f32 %v6492, %v6492
        %v6500 = vsel %vm3303, %v6477, 0
        %v6503 = vsel %vm3303, %v6482, 0
        %v6506 = vsel %vm3303, %v6487, 0
        %v6509 = vsel %vm3303, %v6492, 0
        %v6512 = vsel %vm3303, %v6495, 0
        %v6515 = vsel %vm3303, %v6496, 0
        %v6518 = vsel %vm3303, %v6497, 0
        %v6521 = vsel %vm3303, %v6498, 0
        %6523 = vmatprep.subr.mxu0 0.0
        %6524 = vmatpush1.msra.mxu0 %v1483
        %6525 = vmatprep.subr.mxu0 0.0
        %6526 = vmatpush1.msra.mxu0 %v1484
        %6527 = vmatprep.subr.mxu0 0.0
        %6528 = vmatpush1.msra.mxu0 %v1485
        %6529 = vmatprep.subr.mxu0 0.0
        %6530 = vmatpush1.msra.mxu0 %v1486
        %6531 = vmatprep.subr.mxu0 0.0
        %6532 = vmatpush1.msra.mxu0 0.0
        %6533 = vmatprep.subr.mxu0 0.0
        %6534 = vmatpush1.msra.mxu0 0.0
        %6535 = vmatprep.subr.mxu0 0.0
        %6536 = vmatpush1.msra.mxu0 0.0
        %6537 = vmatprep.subr.mxu0 0.0
        %6538 = vmatpush1.msra.mxu0 0.0
        %6539 = vmatprep.subr.mxu0 0.0
        %6540 = vmatpush1.msra.mxu0 0.0
        %6541 = vmatprep.subr.mxu0 0.0
        %6542 = vmatpush1.msra.mxu0 0.0
        %6543 = vmatprep.subr.mxu0 0.0
        %6544 = vmatpush1.msra.mxu0 0.0
        %6545 = vmatprep.subr.mxu0 0.0
        %6546 = vmatpush1.msra.mxu0 0.0
        %6547 = vmatprep.subr.mxu0 0.0
        %6548 = vmatpush1.msra.mxu0 0.0
        %6549 = vmatprep.subr.mxu0 0.0
        %6550 = vmatpush1.msra.mxu0 0.0
        %6551 = vmatprep.subr.mxu0 0.0
        %6552 = vmatpush1.msra.mxu0 0.0
        %6553 = vmatprep.subr.mxu0 0.0
        %6554 = vmatpush1.msra.mxu0 0.0
        %6555 = vmatprep.subr.mxu0 0.0
        %6556 = vmatpush1.msra.mxu0 0.0
        %6557 = vmatprep.subr.mxu0 0.0
        %6558 = vmatpush1.msra.mxu0 0.0
        %6559 = vmatprep.subr.mxu0 0.0
        %6560 = vmatpush1.msra.mxu0 0.0
        %6561 = vmatprep.subr.mxu0 0.0
        %6562 = vmatpush1.msra.mxu0 0.0
        %6563 = vmatprep.subr.mxu0 0.0
        %6564 = vmatpush1.msra.mxu0 0.0
        %6565 = vmatprep.subr.mxu0 0.0
        %6566 = vmatpush1.msra.mxu0 0.0
        %6567 = vmatprep.subr.mxu0 0.0
        %6568 = vmatpush1.msra.mxu0 0.0
        %6569 = vmatprep.subr.mxu0 0.0
        %6570 = vmatpush1.msra.mxu0 0.0
        %6571 = vmatprep.subr.mxu0 0.0
        %6572 = vmatpush1.msra.mxu0 0.0
        %6573 = vmatprep.subr.mxu0 0.0
        %6574 = vmatpush1.msra.mxu0 0.0
        %6575 = vmatprep.subr.mxu0 0.0
        %6576 = vmatpush1.msra.mxu0 0.0
        %6577 = vmatprep.subr.mxu0 0.0
        %6578 = vmatpush1.msra.mxu0 0.0
        %6579 = vmatprep.subr.mxu0 0.0
        %6580 = vmatpush1.msra.mxu0 0.0
        %6581 = vmatprep.subr.mxu0 0.0
        %6582 = vmatpush1.msra.mxu0 0.0
        %6583 = vmatprep.subr.mxu0 0.0
        %6584 = vmatpush1.msra.mxu0 0.0
        %6585 = vmatprep.subr.mxu0 0.0
        %6586 = vmatpush1.msra.mxu0 0.0
        %6587 = vmatprep.mubr.f32.mxu0 0.0
        %6588 = vmatmul.mubr.f32.gmra.mrb[0].mxu0 %v6500
        %v6589 = vpop.f32.mrb[0].mxu0
        %v6590 = vadd.f32 0.0, %v6589
        %v6591 = vpop.f32.mrb[0].mxu0
        %6592 = vmatprep.mubr.f32.mxu0 0.0
        %6593 = vmatmul.mubr.f32.gmra.mrb[0].mxu0 %v6503
        %v6594 = vpop.f32.mrb[0].mxu0
        %v6595 = vadd.f32 0.0, %v6594
        %v6596 = vpop.f32.mrb[0].mxu0
        %6597 = vmatprep.mubr.f32.mxu0 0.0
        %6598 = vmatmul.mubr.f32.gmra.mrb[0].mxu0 %v6506
        %v6599 = vpop.f32.mrb[0].mxu0
        %v6600 = vadd.f32 0.0, %v6599
        %v6601 = vpop.f32.mrb[0].mxu0
        %6602 = vmatprep.mubr.f32.mxu0 0.0
        %6603 = vmatmul.mubr.f32.gmra.mrb[0].mxu0 %v6509
        %v6604 = vpop.f32.mrb[0].mxu0
        %v6605 = vadd.f32 0.0, %v6604
        %v6606 = vpop.f32.mrb[0].mxu0
        %6607 = vmatprep.mubr.f32.mxu0 0.0
        %6608 = vmatmul.mubr.f32.gmra.mrb[0].mxu0 %v6512
        %v6609 = vpop.f32.mrb[0].mxu0
        %v6610 = vadd.f32 0.0, %v6609
        %v6611 = vpop.f32.mrb[0].mxu0
        %6612 = vmatprep.mubr.f32.mxu0 0.0
        %6613 = vmatmul.mubr.f32.gmra.mrb[0].mxu0 %v6515
        %v6614 = vpop.f32.mrb[0].mxu0
        %v6615 = vadd.f32 0.0, %v6614
        %v6616 = vpop.f32.mrb[0].mxu0
        %6617 = vmatprep.mubr.f32.mxu0 0.0
        %6618 = vmatmul.mubr.f32.gmra.mrb[0].mxu0 %v6518
        %v6619 = vpop.f32.mrb[0].mxu0
        %v6620 = vadd.f32 0.0, %v6619
        %v6621 = vpop.f32.mrb[0].mxu0
        %6622 = vmatprep.mubr.f32.mxu0 0.0
        %6623 = vmatmul.mubr.f32.gmra.mrb[0].mxu0 %v6521
        %v6624 = vpop.f32.mrb[0].mxu0
        %v6625 = vadd.f32 0.0, %v6624
        %v6626 = vpop.f32.mrb[0].mxu0
        %6627 = vdwg.mxu0
        %v6628 = vmul.f32 %v6590, %v6590
        %v6629 = vmul.f32 %v6595, %v6595
        %v6630 = vmul.f32 %v6600, %v6600
        %v6631 = vmul.f32 %v6605, %v6605
        %v6632 = vsub.f32 %v6610, %v6628
        %v6633 = vsub.f32 %v6615, %v6629
        %v6634 = vsub.f32 %v6620, %v6630
        %v6635 = vsub.f32 %v6625, %v6631
        %v6636 = vadd.f32 %v6632, 1e-05
        %v6637 = vadd.f32 %v6633, 1e-05
        %v6638 = vadd.f32 %v6634, 1e-05
        %v6639 = vadd.f32 %v6635, 1e-05
        %v6640 = vrsqrt.pop %v6636
        %v6641 = vrsqrt.pop %v6637
        %v6642 = vrsqrt.pop %v6638
        %v6643 = vrsqrt.pop %v6639
        %v6644 = vmul.f32 %v6640, %v4064
        %v6645 = vmul.f32 %v6641, %v4069
        %v6646 = vmul.f32 %v6642, %v4074
        %v6647 = vmul.f32 %v6643, %v4079
        %v6648 = vmul.f32 %v6590, %v6644
        %v6649 = vmul.f32 %v6595, %v6645
        %v6650 = vmul.f32 %v6600, %v6646
        %v6651 = vmul.f32 %v6605, %v6647
        %v6652 = vsub.f32 %v4084, %v6648
        %v6653 = vsub.f32 %v4089, %v6649
        %v6654 = vsub.f32 %v4094, %v6650
        %v6655 = vsub.f32 %v4099, %v6651
        %v6657 = vsel %vm2085, %v6644, 0
        %v6660 = vsel %vm2085, %v6645, 0
        %v6663 = vsel %vm2085, %v6646, 0
        %v6666 = vsel %vm2085, %v6647, 0
        %v6669 = vsel %vm2085, %v6652, 0
        %v6672 = vsel %vm2085, %v6653, 0
        %v6675 = vsel %vm2085, %v6654, 0
        %v6678 = vsel %vm2085, %v6655, 0
        %6680 = vmatprep.subr.mxu0 0.0
        %6681 = vmatpush1.msra.mxu0 %v3482
        %6682 = vmatprep.subr.mxu0 0.0
        %6683 = vmatpush1.msra.mxu0 0.0
        %6684 = vmatprep.subr.mxu0 0.0
        %6685 = vmatpush1.msra.mxu0 0.0
        %6686 = vmatprep.subr.mxu0 0.0
        %6687 = vmatpush1.msra.mxu0 0.0
        %6688 = vmatprep.subr.mxu0 0.0
        %6689 = vmatpush1.msra.mxu0 0.0
        %6690 = vmatprep.subr.mxu0 0.0
        %6691 = vmatpush1.msra.mxu0 0.0
        %6692 = vmatprep.subr.mxu0 0.0
        %6693 = vmatpush1.msra.mxu0 0.0
        %6694 = vmatprep.subr.mxu0 0.0
        %6695 = vmatpush1.msra.mxu0 0.0
        %6696 = vmatprep.subr.mxu0 0.0
        %6697 = vmatpush1.msra.mxu0 0.0
        %6698 = vmatprep.subr.mxu0 0.0
        %6699 = vmatpush1.msra.mxu0 0.0
        %6700 = vmatprep.subr.mxu0 0.0
        %6701 = vmatpush1.msra.mxu0 0.0
        %6702 = vmatprep.subr.mxu0 0.0
        %6703 = vmatpush1.msra.mxu0 0.0
        %6704 = vmatprep.subr.mxu0 0.0
        %6705 = vmatpush1.msra.mxu0 0.0
        %6706 = vmatprep.subr.mxu0 0.0
        %6707 = vmatpush1.msra.mxu0 0.0
        %6708 = vmatprep.subr.mxu0 0.0
        %6709 = vmatpush1.msra.mxu0 0.0
        %6710 = vmatprep.subr.mxu0 0.0
        %6711 = vmatpush1.msra.mxu0 0.0
        %6712 = vmatprep.subr.mxu0 0.0
        %6713 = vmatpush1.msra.mxu0 0.0
        %6714 = vmatprep.subr.mxu0 0.0
        %6715 = vmatpush1.msra.mxu0 0.0
        %6716 = vmatprep.subr.mxu0 0.0
        %6717 = vmatpush1.msra.mxu0 0.0
        %6718 = vmatprep.subr.mxu0 0.0
        %6719 = vmatpush1.msra.mxu0 0.0
        %6720 = vmatprep.subr.mxu0 0.0
        %6721 = vmatpush1.msra.mxu0 0.0
        %6722 = vmatprep.subr.mxu0 0.0
        %6723 = vmatpush1.msra.mxu0 0.0
        %6724 = vmatprep.subr.mxu0 0.0
        %6725 = vmatpush1.msra.mxu0 0.0
        %6726 = vmatprep.subr.mxu0 0.0
        %6727 = vmatpush1.msra.mxu0 0.0
        %6728 = vmatprep.subr.mxu0 0.0
        %6729 = vmatpush1.msra.mxu0 0.0
        %6730 = vmatprep.subr.mxu0 0.0
        %6731 = vmatpush1.msra.mxu0 0.0
        %6732 = vmatprep.subr.mxu0 0.0
        %6733 = vmatpush1.msra.mxu0 0.0
        %6734 = vmatprep.subr.mxu0 0.0
        %6735 = vmatpush1.msra.mxu0 0.0
        %6736 = vmatprep.subr.mxu0 0.0
        %6737 = vmatpush1.msra.mxu0 0.0
        %6738 = vmatprep.subr.mxu0 0.0
        %6739 = vmatpush1.msra.mxu0 0.0
        %6740 = vmatprep.subr.mxu0 0.0
        %6741 = vmatpush1.msra.mxu0 0.0
        %6742 = vmatprep.subr.mxu0 0.0
        %6743 = vmatpush1.msra.mxu0 0.0
        %6744 = vmatprep.mubr.f32.mxu0 0.0
        %6745 = vmatmul.mubr.f32.gmra.mrb[0].mxu0 %v6657
        %v6746 = vpop.f32.mrb[0].mxu0
        %v6747 = vadd.f32 0.0, %v6746
        %v6748 = vpop.f32.mrb[0].mxu0
        %6749 = vmatprep.mubr.f32.mxu0 0.0
        %6750 = vmatmul.mubr.f32.gmra.mrb[0].mxu0 %v6660
        %v6751 = vpop.f32.mrb[0].mxu0
        %v6752 = vadd.f32 0.0, %v6751
        %v6753 = vpop.f32.mrb[0].mxu0
        %6754 = vmatprep.mubr.f32.mxu0 0.0
        %6755 = vmatmul.mubr.f32.gmra.mrb[0].mxu0 %v6663
        %v6756 = vpop.f32.mrb[0].mxu0
        %v6757 = vadd.f32 0.0, %v6756
        %v6758 = vpop.f32.mrb[0].mxu0
        %6759 = vmatprep.mubr.f32.mxu0 0.0
        %6760 = vmatmul.mubr.f32.gmra.mrb[0].mxu0 %v6666
        %v6761 = vpop.f32.mrb[0].mxu0
        %v6762 = vadd.f32 0.0, %v6761
        %v6763 = vpop.f32.mrb[0].mxu0
        %6764 = vmatprep.mubr.f32.mxu0 0.0
        %6765 = vmatmul.mubr.f32.gmra.mrb[0].mxu0 %v6669
        %v6766 = vpop.f32.mrb[0].mxu0
        %v6767 = vadd.f32 0.0, %v6766
        %v6768 = vpop.f32.mrb[0].mxu0
        %6769 = vmatprep.mubr.f32.mxu0 0.0
        %6770 = vmatmul.mubr.f32.gmra.mrb[0].mxu0 %v6672
        %v6771 = vpop.f32.mrb[0].mxu0
        %v6772 = vadd.f32 0.0, %v6771
        %v6773 = vpop.f32.mrb[0].mxu0
        %6774 = vmatprep.mubr.f32.mxu0 0.0
        %6775 = vmatmul.mubr.f32.gmra.mrb[0].mxu0 %v6675
        %v6776 = vpop.f32.mrb[0].mxu0
        %v6777 = vadd.f32 0.0, %v6776
        %v6778 = vpop.f32.mrb[0].mxu0
        %6779 = vmatprep.mubr.f32.mxu0 0.0
        %6780 = vmatmul.mubr.f32.gmra.mrb[0].mxu0 %v6678
        %v6781 = vpop.f32.mrb[0].mxu0
        %v6782 = vadd.f32 0.0, %v6781
        %v6783 = vpop.f32.mrb[0].mxu0
        %6784 = vdwg.mxu0
        %v6785 = vmul.f32 %v6477, %v6747
        %v6786 = vmul.f32 %v6482, %v6752
        %v6787 = vmul.f32 %v6487, %v6757
        %v6788 = vmul.f32 %v6492, %v6762
        %v6789 = vadd.f32 %v6785, %v6767
        %v6790 = vadd.f32 %v6786, %v6772
        %v6791 = vadd.f32 %v6787, %v6777
        %v6792 = vadd.f32 %v6788, %v6782
        %v6793 = vadd.f32 %v6789, %v4185
        %v6794 = vadd.f32 %v6790, %v4190
        %v6795 = vadd.f32 %v6791, %v4195
        %v6796 = vadd.f32 %v6792, %v4200
        %v6797 = vld [vmem:[#allocation27] sm:$0xff]
        %v6798 = vld [vmem:[#allocation27 + $0x8] sm:$0xff]
        %v6799 = vld [vmem:[#allocation27 + $0x10] sm:$0xff]
        %v6800 = vld [vmem:[#allocation27 + $0x18] sm:$0xff]
        %v6802 = vsel %vm3303, %v6793, 0
        %v6805 = vsel %vm3303, %v6794, 0
        %v6808 = vsel %vm3303, %v6795, 0
        %v6811 = vsel %vm3303, %v6796, 0
        %6813 = vmatprep.subr.mxu0 0.0
        %6814 = vmatpush1.msra.mxu0 %v6797
        %6815 = vmatprep.subr.mxu0 0.0
        %6816 = vmatpush1.msra.mxu0 %v6798
        %6817 = vmatprep.subr.mxu0 0.0
        %6818 = vmatpush1.msra.mxu0 %v6799
        %6819 = vmatprep.subr.mxu0 0.0
        %6820 = vmatpush1.msra.mxu0 %v6800
        %6821 = vmatprep.subr.mxu0 0.0
        %6822 = vmatpush1.msra.mxu0 0.0
        %6823 = vmatprep.subr.mxu0 0.0
        %6824 = vmatpush1.msra.mxu0 0.0
        %6825 = vmatprep.subr.mxu0 0.0
        %6826 = vmatpush1.msra.mxu0 0.0
        %6827 = vmatprep.subr.mxu0 0.0
        %6828 = vmatpush1.msra.mxu0 0.0
        %6829 = vmatprep.subr.mxu0 0.0
        %6830 = vmatpush1.msra.mxu0 0.0
        %6831 = vmatprep.subr.mxu0 0.0
        %6832 = vmatpush1.msra.mxu0 0.0
        %6833 = vmatprep.subr.mxu0 0.0
        %6834 = vmatpush1.msra.mxu0 0.0
        %6835 = vmatprep.subr.mxu0 0.0
        %6836 = vmatpush1.msra.mxu0 0.0
        %6837 = vmatprep.subr.mxu0 0.0
        %6838 = vmatpush1.msra.mxu0 0.0
        %6839 = vmatprep.subr.mxu0 0.0
        %6840 = vmatpush1.msra.mxu0 0.0
        %6841 = vmatprep.subr.mxu0 0.0
        %6842 = vmatpush1.msra.mxu0 0.0
        %6843 = vmatprep.subr.mxu0 0.0
        %6844 = vmatpush1.msra.mxu0 0.0
        %6845 = vmatprep.subr.mxu0 0.0
        %6846 = vmatpush1.msra.mxu0 0.0
        %6847 = vmatprep.subr.mxu0 0.0
        %6848 = vmatpush1.msra.mxu0 0.0
        %6849 = vmatprep.subr.mxu0 0.0
        %6850 = vmatpush1.msra.mxu0 0.0
        %6851 = vmatprep.subr.mxu0 0.0
        %6852 = vmatpush1.msra.mxu0 0.0
        %6853 = vmatprep.subr.mxu0 0.0
        %6854 = vmatpush1.msra.mxu0 0.0
        %6855 = vmatprep.subr.mxu0 0.0
        %6856 = vmatpush1.msra.mxu0 0.0
        %6857 = vmatprep.subr.mxu0 0.0
        %6858 = vmatpush1.msra.mxu0 0.0
        %6859 = vmatprep.subr.mxu0 0.0
        %6860 = vmatpush1.msra.mxu0 0.0
        %6861 = vmatprep.subr.mxu0 0.0
        %6862 = vmatpush1.msra.mxu0 0.0
        %6863 = vmatprep.subr.mxu0 0.0
        %6864 = vmatpush1.msra.mxu0 0.0
        %6865 = vmatprep.subr.mxu0 0.0
        %6866 = vmatpush1.msra.mxu0 0.0
        %6867 = vmatprep.subr.mxu0 0.0
        %6868 = vmatpush1.msra.mxu0 0.0
        %6869 = vmatprep.subr.mxu0 0.0
        %6870 = vmatpush1.msra.mxu0 0.0
        %6871 = vmatprep.subr.mxu0 0.0
        %6872 = vmatpush1.msra.mxu0 0.0
        %6873 = vmatprep.subr.mxu0 0.0
        %6874 = vmatpush1.msra.mxu0 0.0
        %6875 = vmatprep.subr.mxu0 0.0
        %6876 = vmatpush1.msra.mxu0 0.0
        %6877 = vmatprep.mubr.f32.mxu0 0.0
        %6878 = vmatmul.mubr.f32.gmra.mrb[0].mxu0 %v6802
        %v6879 = vpop.f32.mrb[0].mxu0
        %v6880 = vadd.f32 0.0, %v6879
        %v6881 = vpop.f32.mrb[0].mxu0
        %6882 = vmatprep.mubr.f32.mxu0 0.0
        %6883 = vmatmul.mubr.f32.gmra.mrb[0].mxu0 %v6805
        %v6884 = vpop.f32.mrb[0].mxu0
        %v6885 = vadd.f32 0.0, %v6884
        %v6886 = vpop.f32.mrb[0].mxu0
        %6887 = vmatprep.mubr.f32.mxu0 0.0
        %6888 = vmatmul.mubr.f32.gmra.mrb[0].mxu0 %v6808
        %v6889 = vpop.f32.mrb[0].mxu0
        %v6890 = vadd.f32 0.0, %v6889
        %v6891 = vpop.f32.mrb[0].mxu0
        %6892 = vmatprep.mubr.f32.mxu0 0.0
        %6893 = vmatmul.mubr.f32.gmra.mrb[0].mxu0 %v6811
        %v6894 = vpop.f32.mrb[0].mxu0
        %v6895 = vadd.f32 0.0, %v6894
        %v6896 = vpop.f32.mrb[0].mxu0
        %6897 = vdwg.mxu0
        %v6898 = vld [vmem:[#allocation10] sm:$0xff]
        %v6899 = vld [vmem:[#allocation10 + $0x8] sm:$0xff]
        %v6900 = vld [vmem:[#allocation10 + $0x10] sm:$0xff]
        %v6901 = vld [vmem:[#allocation10 + $0x18] sm:$0xff]
        %v6902 = vld [vmem:[#allocation10 + $0x20] sm:$0xff]
        %v6903 = vld [vmem:[#allocation10 + $0x28] sm:$0xff]
        %v6904 = vld [vmem:[%s35] sm:$0xff]
        %v6905 = vld [vmem:[%s35 + $0x8] sm:$0xff]
        %6906 = vrot.lane.b32.xlu0 %v6880, 9
        %v6907 = vpop.permute.xlu0 %6906
        %6908 = vrot.lane.b32.xlu0 %v6885, 9
        %v6909 = vpop.permute.xlu0 %6908
        %6910 = vrot.lane.b32.xlu0 %v6890, 9
        %v6911 = vpop.permute.xlu0 %6910
        %6912 = vrot.lane.b32.xlu0 %v6895, 9
        %v6913 = vpop.permute.xlu0 %6912
        %v6914 = vmul.f32 %v6907, %v3007
        %v6915 = vmul.f32 %v6909, %v3007
        %v6916 = vmul.f32 %v6911, %v3007
        %v6917 = vmul.f32 %v6913, %v3007
        %6918 = vrot.lane.b32.xlu0 %v6880, 8
        %v6919 = vpop.permute.xlu0 %6918
        %6920 = vrot.lane.b32.xlu0 %v6885, 8
        %v6921 = vpop.permute.xlu0 %6920
        %6922 = vrot.lane.b32.xlu0 %v6890, 8
        %v6923 = vpop.permute.xlu0 %6922
        %6924 = vrot.lane.b32.xlu0 %v6895, 8
        %v6925 = vpop.permute.xlu0 %6924
        %v6926 = vmul.f32 %v6919, %v3017
        %v6927 = vmul.f32 %v6921, %v3017
        %v6928 = vmul.f32 %v6923, %v3017
        %v6929 = vmul.f32 %v6925, %v3017
        %6930 = vrot.lane.b32.xlu0 %v6880, 7
        %v6931 = vpop.permute.xlu0 %6930
        %6932 = vrot.lane.b32.xlu0 %v6885, 7
        %v6933 = vpop.permute.xlu0 %6932
        %6934 = vrot.lane.b32.xlu0 %v6890, 7
        %v6935 = vpop.permute.xlu0 %6934
        %6936 = vrot.lane.b32.xlu0 %v6895, 7
        %v6937 = vpop.permute.xlu0 %6936
        %v6938 = vmul.f32 %v6931, %v3027
        %v6939 = vmul.f32 %v6933, %v3027
        %v6940 = vmul.f32 %v6935, %v3027
        %v6941 = vmul.f32 %v6937, %v3027
        %6942 = vrot.lane.b32.xlu0 %v6880, 1
        %v6943 = vpop.permute.xlu0 %6942
        %6944 = vrot.lane.b32.xlu0 %v6885, 1
        %v6945 = vpop.permute.xlu0 %6944
        %6946 = vrot.lane.b32.xlu0 %v6890, 1
        %v6947 = vpop.permute.xlu0 %6946
        %6948 = vrot.lane.b32.xlu0 %v6895, 1
        %v6949 = vpop.permute.xlu0 %6948
        %v6950 = vmul.f32 %v6943, %v3037
        %v6951 = vmul.f32 %v6945, %v3037
        %v6952 = vmul.f32 %v6947, %v3037
        %v6953 = vmul.f32 %v6949, %v3037
        %6954 = vrot.lane.b32.xlu0 %v6880, 127
        %v6955 = vpop.permute.xlu0 %6954
        %6956 = vrot.lane.b32.xlu0 %v6885, 127
        %v6957 = vpop.permute.xlu0 %6956
        %6958 = vrot.lane.b32.xlu0 %v6890, 127
        %v6959 = vpop.permute.xlu0 %6958
        %6960 = vrot.lane.b32.xlu0 %v6895, 127
        %v6961 = vpop.permute.xlu0 %6960
        %v6962 = vmul.f32 %v6955, %v3047
        %v6963 = vmul.f32 %v6957, %v3047
        %v6964 = vmul.f32 %v6959, %v3047
        %v6965 = vmul.f32 %v6961, %v3047
        %6966 = vrot.lane.b32.xlu0 %v6880, 121
        %v6967 = vpop.permute.xlu0 %6966
        %6968 = vrot.lane.b32.xlu0 %v6885, 121
        %v6969 = vpop.permute.xlu0 %6968
        %6970 = vrot.lane.b32.xlu0 %v6890, 121
        %v6971 = vpop.permute.xlu0 %6970
        %6972 = vrot.lane.b32.xlu0 %v6895, 121
        %v6973 = vpop.permute.xlu0 %6972
        %v6974 = vmul.f32 %v6967, %v3057
        %v6975 = vmul.f32 %v6969, %v3057
        %v6976 = vmul.f32 %v6971, %v3057
        %v6977 = vmul.f32 %v6973, %v3057
        %6978 = vrot.lane.b32.xlu0 %v6880, 120
        %v6979 = vpop.permute.xlu0 %6978
        %6980 = vrot.lane.b32.xlu0 %v6885, 120
        %v6981 = vpop.permute.xlu0 %6980
        %6982 = vrot.lane.b32.xlu0 %v6890, 120
        %v6983 = vpop.permute.xlu0 %6982
        %6984 = vrot.lane.b32.xlu0 %v6895, 120
        %v6985 = vpop.permute.xlu0 %6984
        %v6986 = vmul.f32 %v6979, %v3067
        %v6987 = vmul.f32 %v6981, %v3067
        %v6988 = vmul.f32 %v6983, %v3067
        %v6989 = vmul.f32 %v6985, %v3067
        %6990 = vrot.lane.b32.xlu0 %v6880, 119
        %v6991 = vpop.permute.xlu0 %6990
        %6992 = vrot.lane.b32.xlu0 %v6885, 119
        %v6993 = vpop.permute.xlu0 %6992
        %6994 = vrot.lane.b32.xlu0 %v6890, 119
        %v6995 = vpop.permute.xlu0 %6994
        %6996 = vrot.lane.b32.xlu0 %v6895, 119
        %v6997 = vpop.permute.xlu0 %6996
        %v6998 = vmul.f32 %v6991, %v3077
        %v6999 = vmul.f32 %v6993, %v3077
        %v7000 = vmul.f32 %v6995, %v3077
        %v7001 = vmul.f32 %v6997, %v3077
        %7003 = vset.pattern.permute.xlu0 0
        %7004 = vperm.xlu0 %7003, %v6904
        %v7005 = vpop.permute.xlu0 %7004
        %7008 = vset.pattern.permute.xlu0 0
        %7009 = vperm.xlu0 %7008, %v6905
        %v7010 = vpop.permute.xlu0 %7009
        %v7013 = vsel %vm3303, %v6900, 0
        %v7016 = vsel %vm3303, %v6903, 0
        %7018 = vmatprep.subr.mxu0 0.0
        %7019 = vmatpush1.msra.mxu0 %v6914
        %7020 = vmatprep.subr.mxu0 0.0
        %7021 = vmatpush1.msra.mxu0 %v6915
        %7022 = vmatprep.subr.mxu0 0.0
        %7023 = vmatpush1.msra.mxu0 %v6916
        %7024 = vmatprep.subr.mxu0 0.0
        %7025 = vmatpush1.msra.mxu0 %v6917
        %7026 = vmatprep.subr.mxu0 0.0
        %7027 = vmatpush1.msra.mxu0 %v6926
        %7028 = vmatprep.subr.mxu0 0.0
        %7029 = vmatpush1.msra.mxu0 %v6927
        %7030 = vmatprep.subr.mxu0 0.0
        %7031 = vmatpush1.msra.mxu0 %v6928
        %7032 = vmatprep.subr.mxu0 0.0
        %7033 = vmatpush1.msra.mxu0 %v6929
        %7034 = vmatprep.subr.mxu0 0.0
        %7035 = vmatpush1.msra.mxu0 %v6938
        %7036 = vmatprep.subr.mxu0 0.0
        %7037 = vmatpush1.msra.mxu0 %v6939
        %7038 = vmatprep.subr.mxu0 0.0
        %7039 = vmatpush1.msra.mxu0 %v6940
        %7040 = vmatprep.subr.mxu0 0.0
        %7041 = vmatpush1.msra.mxu0 %v6941
        %7042 = vmatprep.subr.mxu0 0.0
        %7043 = vmatpush1.msra.mxu0 %v6950
        %7044 = vmatprep.subr.mxu0 0.0
        %7045 = vmatpush1.msra.mxu0 %v6951
        %7046 = vmatprep.subr.mxu0 0.0
        %7047 = vmatpush1.msra.mxu0 %v6952
        %7048 = vmatprep.subr.mxu0 0.0
        %7049 = vmatpush1.msra.mxu0 %v6953
        %7050 = vmatprep.subr.mxu0 0.0
        %7051 = vmatpush1.msra.mxu0 %v6880
        %7052 = vmatprep.subr.mxu0 0.0
        %7053 = vmatpush1.msra.mxu0 %v6885
        %7054 = vmatprep.subr.mxu0 0.0
        %7055 = vmatpush1.msra.mxu0 %v6890
        %7056 = vmatprep.subr.mxu0 0.0
        %7057 = vmatpush1.msra.mxu0 %v6895
        %7058 = vmatprep.subr.mxu0 0.0
        %7059 = vmatpush1.msra.mxu0 %v6962
        %7060 = vmatprep.subr.mxu0 0.0
        %7061 = vmatpush1.msra.mxu0 %v6963
        %7062 = vmatprep.subr.mxu0 0.0
        %7063 = vmatpush1.msra.mxu0 %v6964
        %7064 = vmatprep.subr.mxu0 0.0
        %7065 = vmatpush1.msra.mxu0 %v6965
        %7066 = vmatprep.subr.mxu0 0.0
        %7067 = vmatpush1.msra.mxu0 %v6974
        %7068 = vmatprep.subr.mxu0 0.0
        %7069 = vmatpush1.msra.mxu0 %v6975
        %7070 = vmatprep.subr.mxu0 0.0
        %7071 = vmatpush1.msra.mxu0 %v6976
        %7072 = vmatprep.subr.mxu0 0.0
        %7073 = vmatpush1.msra.mxu0 %v6977
        %7074 = vmatprep.subr.mxu0 0.0
        %7075 = vmatpush1.msra.mxu0 %v6986
        %7076 = vmatprep.subr.mxu0 0.0
        %7077 = vmatpush1.msra.mxu0 %v6987
        %7078 = vmatprep.subr.mxu0 0.0
        %7079 = vmatpush1.msra.mxu0 %v6988
        %7080 = vmatprep.subr.mxu0 0.0
        %7081 = vmatpush1.msra.mxu0 %v6989
        %7082 = vmatprep.mubr.f32.mxu0 %v6899
        %7083 = vmatmul.mubr.f32.gmra.mrb[0].mxu0 %v6898
        %v7084 = vpop.f32.mrb[0].mxu0
        %v7085 = vadd.f32 %v7005, %v7084
        %v7086 = vpop.f32.mrb[0].mxu0
        %7087 = vmatprep.mubr.f32.mxu0 %v6902
        %7088 = vmatmul.mubr.f32.gmra.mrb[0].mxu0 %v6901
        %v7089 = vpop.f32.mrb[0].mxu0
        %v7090 = vadd.f32 %v7010, %v7089
        %v7091 = vpop.f32.mrb[0].mxu0
        %7092 = vdwg.mxu0
        %7093 = vmatprep.subr.mxu0 0.0
        %7094 = vmatpush1.msra.mxu0 %v6998
        %7095 = vmatprep.subr.mxu0 0.0
        %7096 = vmatpush1.msra.mxu0 %v6999
        %7097 = vmatprep.subr.mxu0 0.0
        %7098 = vmatpush1.msra.mxu0 %v7000
        %7099 = vmatprep.subr.mxu0 0.0
        %7100 = vmatpush1.msra.mxu0 %v7001
        %7101 = vmatprep.subr.mxu0 0.0
        %7102 = vmatpush1.msra.mxu0 0.0
        %7103 = vmatprep.subr.mxu0 0.0
        %7104 = vmatpush1.msra.mxu0 0.0
        %7105 = vmatprep.subr.mxu0 0.0
        %7106 = vmatpush1.msra.mxu0 0.0
        %7107 = vmatprep.subr.mxu0 0.0
        %7108 = vmatpush1.msra.mxu0 0.0
        %7109 = vmatprep.subr.mxu0 0.0
        %7110 = vmatpush1.msra.mxu0 0.0
        %7111 = vmatprep.subr.mxu0 0.0
        %7112 = vmatpush1.msra.mxu0 0.0
        %7113 = vmatprep.subr.mxu0 0.0
        %7114 = vmatpush1.msra.mxu0 0.0
        %7115 = vmatprep.subr.mxu0 0.0
        %7116 = vmatpush1.msra.mxu0 0.0
        %7117 = vmatprep.subr.mxu0 0.0
        %7118 = vmatpush1.msra.mxu0 0.0
        %7119 = vmatprep.subr.mxu0 0.0
        %7120 = vmatpush1.msra.mxu0 0.0
        %7121 = vmatprep.subr.mxu0 0.0
        %7122 = vmatpush1.msra.mxu0 0.0
        %7123 = vmatprep.subr.mxu0 0.0
        %7124 = vmatpush1.msra.mxu0 0.0
        %7125 = vmatprep.subr.mxu0 0.0
        %7126 = vmatpush1.msra.mxu0 0.0
        %7127 = vmatprep.subr.mxu0 0.0
        %7128 = vmatpush1.msra.mxu0 0.0
        %7129 = vmatprep.subr.mxu0 0.0
        %7130 = vmatpush1.msra.mxu0 0.0
        %7131 = vmatprep.subr.mxu0 0.0
        %7132 = vmatpush1.msra.mxu0 0.0
        %7133 = vmatprep.subr.mxu0 0.0
        %7134 = vmatpush1.msra.mxu0 0.0
        %7135 = vmatprep.subr.mxu0 0.0
        %7136 = vmatpush1.msra.mxu0 0.0
        %7137 = vmatprep.subr.mxu0 0.0
        %7138 = vmatpush1.msra.mxu0 0.0
        %7139 = vmatprep.subr.mxu0 0.0
        %7140 = vmatpush1.msra.mxu0 0.0
        %7141 = vmatprep.subr.mxu0 0.0
        %7142 = vmatpush1.msra.mxu0 0.0
        %7143 = vmatprep.subr.mxu0 0.0
        %7144 = vmatpush1.msra.mxu0 0.0
        %7145 = vmatprep.subr.mxu0 0.0
        %7146 = vmatpush1.msra.mxu0 0.0
        %7147 = vmatprep.subr.mxu0 0.0
        %7148 = vmatpush1.msra.mxu0 0.0
        %7149 = vmatprep.subr.mxu0 0.0
        %7150 = vmatpush1.msra.mxu0 0.0
        %7151 = vmatprep.subr.mxu0 0.0
        %7152 = vmatpush1.msra.mxu0 0.0
        %7153 = vmatprep.subr.mxu0 0.0
        %7154 = vmatpush1.msra.mxu0 0.0
        %7155 = vmatprep.subr.mxu0 0.0
        %7156 = vmatpush1.msra.mxu0 0.0
        %7157 = vmatprep.mubr.f32.mxu0 0.0
        %7158 = vmatmul.mubr.f32.gmra.mrb[0].mxu0 %v7013
        %v7159 = vpop.f32.mrb[0].mxu0
        %v7160 = vadd.f32 %v7085, %v7159
        %v7161 = vpop.f32.mrb[0].mxu0
        %7162 = vmatprep.mubr.f32.mxu0 0.0
        %7163 = vmatmul.mubr.f32.gmra.mrb[0].mxu0 %v7016
        %v7164 = vpop.f32.mrb[0].mxu0
        %v7165 = vadd.f32 %v7090, %v7164
        %v7166 = vpop.f32.mrb[0].mxu0
        %7167 = vdwg.mxu0
        %v7168 = vmul.f32 %v7160, %v7160
        %v7169 = vmul.f32 %v7165, %v7165
        %7170 = vmatprep.subr.mxu0 0.0
        %7171 = vmatpush1.msra.mxu0 %v1466
        %7172 = vmatprep.subr.mxu0 0.0
        %7173 = vmatpush1.msra.mxu0 %v1467
        %7174 = vmatprep.subr.mxu0 0.0
        %7175 = vmatpush1.msra.mxu0 %v1468
        %7176 = vmatprep.subr.mxu0 0.0
        %7177 = vmatpush1.msra.mxu0 %v1469
        %7178 = vmatprep.subr.mxu0 0.0
        %7179 = vmatpush1.msra.mxu0 %v1470
        %7180 = vmatprep.subr.mxu0 0.0
        %7181 = vmatpush1.msra.mxu0 %v1471
        %7182 = vmatprep.subr.mxu0 0.0
        %7183 = vmatpush1.msra.mxu0 %v1472
        %7184 = vmatprep.subr.mxu0 0.0
        %7185 = vmatpush1.msra.mxu0 %v1473
        %7186 = vmatprep.subr.mxu0 0.0
        %7187 = vmatpush1.msra.mxu0 %v1474
        %7188 = vmatprep.subr.mxu0 0.0
        %7189 = vmatpush1.msra.mxu0 %v1475
        %7190 = vmatprep.subr.mxu0 0.0
        %7191 = vmatpush1.msra.mxu0 %v1476
        %7192 = vmatprep.subr.mxu0 0.0
        %7193 = vmatpush1.msra.mxu0 %v1477
        %7194 = vmatprep.subr.mxu0 0.0
        %7195 = vmatpush1.msra.mxu0 %v1478
        %7196 = vmatprep.subr.mxu0 0.0
        %7197 = vmatpush1.msra.mxu0 %v1479
        %7198 = vmatprep.subr.mxu0 0.0
        %7199 = vmatpush1.msra.mxu0 %v1480
        %7200 = vmatprep.subr.mxu0 0.0
        %7201 = vmatpush1.msra.mxu0 %v1481
        %7202 = vmatprep.subr.mxu0 0.0
        %7203 = vmatpush1.msra.mxu0 0.0
        %7204 = vmatprep.subr.mxu0 0.0
        %7205 = vmatpush1.msra.mxu0 0.0
        %7206 = vmatprep.subr.mxu0 0.0
        %7207 = vmatpush1.msra.mxu0 0.0
        %7208 = vmatprep.subr.mxu0 0.0
        %7209 = vmatpush1.msra.mxu0 0.0
        %7210 = vmatprep.subr.mxu0 0.0
        %7211 = vmatpush1.msra.mxu0 0.0
        %7212 = vmatprep.subr.mxu0 0.0
        %7213 = vmatpush1.msra.mxu0 0.0
        %7214 = vmatprep.subr.mxu0 0.0
        %7215 = vmatpush1.msra.mxu0 0.0
        %7216 = vmatprep.subr.mxu0 0.0
        %7217 = vmatpush1.msra.mxu0 0.0
        %7218 = vmatprep.subr.mxu0 0.0
        %7219 = vmatpush1.msra.mxu0 0.0
        %7220 = vmatprep.subr.mxu0 0.0
        %7221 = vmatpush1.msra.mxu0 0.0
        %7222 = vmatprep.subr.mxu0 0.0
        %7223 = vmatpush1.msra.mxu0 0.0
        %7224 = vmatprep.subr.mxu0 0.0
        %7225 = vmatpush1.msra.mxu0 0.0
        %7226 = vmatprep.subr.mxu0 0.0
        %7227 = vmatpush1.msra.mxu0 0.0
        %7228 = vmatprep.subr.mxu0 0.0
        %7229 = vmatpush1.msra.mxu0 0.0
        %7230 = vmatprep.subr.mxu0 0.0
        %7231 = vmatpush1.msra.mxu0 0.0
        %7232 = vmatprep.subr.mxu0 0.0
        %7233 = vmatpush1.msra.mxu0 0.0
        %7234 = vmatprep.mubr.f32.mxu0 0.0
        %7235 = vmatmul.mubr.f32.gmra.mrb[0].mxu0 %v7160
        %v7236 = vpop.f32.mrb[0].mxu0
        %v7237 = vadd.f32 0.0, %v7236
        %v7238 = vpop.f32.mrb[0].mxu0
        %7239 = vmatprep.mubr.f32.mxu0 0.0
        %7240 = vmatmul.mubr.f32.gmra.mrb[0].mxu0 %v7165
        %v7241 = vpop.f32.mrb[0].mxu0
        %v7242 = vadd.f32 0.0, %v7241
        %v7243 = vpop.f32.mrb[0].mxu0
        %7244 = vmatprep.mubr.f32.mxu0 0.0
        %7245 = vmatmul.mubr.f32.gmra.mrb[0].mxu0 %v7168
        %v7246 = vpop.f32.mrb[0].mxu0
        %v7247 = vadd.f32 0.0, %v7246
        %v7248 = vpop.f32.mrb[0].mxu0
        %7249 = vmatprep.mubr.f32.mxu0 0.0
        %7250 = vmatmul.mubr.f32.gmra.mrb[0].mxu0 %v7169
        %v7251 = vpop.f32.mrb[0].mxu0
        %v7252 = vadd.f32 0.0, %v7251
        %v7253 = vpop.f32.mrb[0].mxu0
        %7254 = vdwg.mxu0
        %v7255 = vmul.f32 %v7237, %v7237
        %v7256 = vmul.f32 %v7242, %v7242
        %v7257 = vsub.f32 %v7247, %v7255
        %v7258 = vsub.f32 %v7252, %v7256
        %v7259 = vadd.f32 %v7257, 1e-05
        %v7260 = vadd.f32 %v7258, 1e-05
        %v7261 = vrsqrt.pop %v7259
        %v7262 = vrsqrt.pop %v7260
        %v7263 = vsub.f32 0.0, %v7237
        %v7264 = vsub.f32 0.0, %v7242
        %v7265 = vmul.f32 %v7263, %v7261
        %v7266 = vmul.f32 %v7264, %v7262
        %v7268 = vsel %vm2085, %v7261, 0
        %v7271 = vsel %vm2085, %v7262, 0
        %v7274 = vsel %vm2085, %v7265, 0
        %v7277 = vsel %vm2085, %v7266, 0
        %7279 = vmatprep.subr.mxu0 0.0
        %7280 = vmatpush1.msra.mxu0 %v2895
        %7281 = vmatprep.subr.mxu0 0.0
        %7282 = vmatpush1.msra.mxu0 0.0
        %7283 = vmatprep.subr.mxu0 0.0
        %7284 = vmatpush1.msra.mxu0 0.0
        %7285 = vmatprep.subr.mxu0 0.0
        %7286 = vmatpush1.msra.mxu0 0.0
        %7287 = vmatprep.subr.mxu0 0.0
        %7288 = vmatpush1.msra.mxu0 0.0
        %7289 = vmatprep.subr.mxu0 0.0
        %7290 = vmatpush1.msra.mxu0 0.0
        %7291 = vmatprep.subr.mxu0 0.0
        %7292 = vmatpush1.msra.mxu0 0.0
        %7293 = vmatprep.subr.mxu0 0.0
        %7294 = vmatpush1.msra.mxu0 0.0
        %7295 = vmatprep.subr.mxu0 0.0
        %7296 = vmatpush1.msra.mxu0 0.0
        %7297 = vmatprep.subr.mxu0 0.0
        %7298 = vmatpush1.msra.mxu0 0.0
        %7299 = vmatprep.subr.mxu0 0.0
        %7300 = vmatpush1.msra.mxu0 0.0
        %7301 = vmatprep.subr.mxu0 0.0
        %7302 = vmatpush1.msra.mxu0 0.0
        %7303 = vmatprep.subr.mxu0 0.0
        %7304 = vmatpush1.msra.mxu0 0.0
        %7305 = vmatprep.subr.mxu0 0.0
        %7306 = vmatpush1.msra.mxu0 0.0
        %7307 = vmatprep.subr.mxu0 0.0
        %7308 = vmatpush1.msra.mxu0 0.0
        %7309 = vmatprep.subr.mxu0 0.0
        %7310 = vmatpush1.msra.mxu0 0.0
        %7311 = vmatprep.subr.mxu0 0.0
        %7312 = vmatpush1.msra.mxu0 0.0
        %7313 = vmatprep.subr.mxu0 0.0
        %7314 = vmatpush1.msra.mxu0 0.0
        %7315 = vmatprep.subr.mxu0 0.0
        %7316 = vmatpush1.msra.mxu0 0.0
        %7317 = vmatprep.subr.mxu0 0.0
        %7318 = vmatpush1.msra.mxu0 0.0
        %7319 = vmatprep.subr.mxu0 0.0
        %7320 = vmatpush1.msra.mxu0 0.0
        %7321 = vmatprep.subr.mxu0 0.0
        %7322 = vmatpush1.msra.mxu0 0.0
        %7323 = vmatprep.subr.mxu0 0.0
        %7324 = vmatpush1.msra.mxu0 0.0
        %7325 = vmatprep.subr.mxu0 0.0
        %7326 = vmatpush1.msra.mxu0 0.0
        %7327 = vmatprep.subr.mxu0 0.0
        %7328 = vmatpush1.msra.mxu0 0.0
        %7329 = vmatprep.subr.mxu0 0.0
        %7330 = vmatpush1.msra.mxu0 0.0
        %7331 = vmatprep.subr.mxu0 0.0
        %7332 = vmatpush1.msra.mxu0 0.0
        %7333 = vmatprep.subr.mxu0 0.0
        %7334 = vmatpush1.msra.mxu0 0.0
        %7335 = vmatprep.subr.mxu0 0.0
        %7336 = vmatpush1.msra.mxu0 0.0
        %7337 = vmatprep.subr.mxu0 0.0
        %7338 = vmatpush1.msra.mxu0 0.0
        %7339 = vmatprep.subr.mxu0 0.0
        %7340 = vmatpush1.msra.mxu0 0.0
        %7341 = vmatprep.subr.mxu0 0.0
        %7342 = vmatpush1.msra.mxu0 0.0
        %7343 = vmatprep.mubr.f32.mxu0 0.0
        %7344 = vmatmul.mubr.f32.gmra.mrb[0].mxu0 %v7268
        %v7345 = vpop.f32.mrb[0].mxu0
        %v7346 = vadd.f32 0.0, %v7345
        %v7347 = vpop.f32.mrb[0].mxu0
        %7348 = vmatprep.mubr.f32.mxu0 0.0
        %7349 = vmatmul.mubr.f32.gmra.mrb[0].mxu0 %v7271
        %v7350 = vpop.f32.mrb[0].mxu0
        %v7351 = vadd.f32 0.0, %v7350
        %v7352 = vpop.f32.mrb[0].mxu0
        %7353 = vmatprep.mubr.f32.mxu0 0.0
        %7354 = vmatmul.mubr.f32.gmra.mrb[0].mxu0 %v7274
        %v7355 = vpop.f32.mrb[0].mxu0
        %v7356 = vadd.f32 0.0, %v7355
        %v7357 = vpop.f32.mrb[0].mxu0
        %7358 = vmatprep.mubr.f32.mxu0 0.0
        %7359 = vmatmul.mubr.f32.gmra.mrb[0].mxu0 %v7277
        %v7360 = vpop.f32.mrb[0].mxu0
        %v7361 = vadd.f32 0.0, %v7360
        %v7362 = vpop.f32.mrb[0].mxu0
        %7363 = vdwg.mxu0
        %v7364 = vmul.f32 %v7160, %v7346
        %v7365 = vmul.f32 %v7165, %v7351
        %v7366 = vadd.f32 %v7364, %v7356
        %v7367 = vadd.f32 %v7365, %v7361
        %v7368 = vmax.f32 %v7366, 0.0
        %v7369 = vmax.f32 %v7367, 0.0
        %v7370 = vld [vmem:[%s71] sm:$0xff]
        %v7371 = vld [vmem:[%s71 + $0x8] sm:$0xff]
        %v7372 = vld [vmem:[%s71 + $0x10] sm:$0xff]
        %v7373 = vld [vmem:[%s71 + $0x18] sm:$0xff]
        %v7374 = vld [vmem:[%s71 + $0x20] sm:$0xff]
        %v7375 = vld [vmem:[%s71 + $0x28] sm:$0xff]
        %v7376 = vld [vmem:[%s71 + $0x30] sm:$0xff]
        %v7377 = vld [vmem:[%s71 + $0x38] sm:$0xff]
        %v7378 = vld [vmem:[%s71 + $0x40] sm:$0xff]
        %v7379 = vld [vmem:[%s71 + $0x48] sm:$0xff]
        %v7380 = vld [vmem:[%s71 + $0x50] sm:$0xff]
        %v7381 = vld [vmem:[%s71 + $0x58] sm:$0xff]
        %v7382 = vld [vmem:[%s71 + $0x60] sm:$0xff]
        %v7383 = vld [vmem:[%s71 + $0x68] sm:$0xff]
        %v7384 = vld [vmem:[%s71 + $0x70] sm:$0xff]
        %v7385 = vld [vmem:[%s71 + $0x78] sm:$0xff]
        %v7386 = vld [vmem:[%s71 + $0x80] sm:$0xff]
        %v7387 = vld [vmem:[%s71 + $0x88] sm:$0xff]
        %v7388 = vld [vmem:[%s71 + $0x90] sm:$0xff]
        %v7389 = vld [vmem:[%s71 + $0x98] sm:$0xff]
        %v7390 = vld [vmem:[%s71 + $0xa0] sm:$0xff]
        %v7391 = vld [vmem:[%s71 + $0xa8] sm:$0xff]
        %v7392 = vld [vmem:[%s71 + $0xb0] sm:$0xff]
        %v7393 = vld [vmem:[%s71 + $0xb8] sm:$0xff]
        %v7394 = vld [vmem:[%s71 + $0xc0] sm:$0xff]
        %v7395 = vld [vmem:[%s71 + $0xc8] sm:$0xff]
        %v7396 = vld [vmem:[%s71 + $0xd0] sm:$0xff]
        %v7397 = vld [vmem:[%s71 + $0xd8] sm:$0xff]
        %v7398 = vld [vmem:[%s71 + $0xe0] sm:$0xff]
        %v7399 = vld [vmem:[%s71 + $0xe8] sm:$0xff]
        %v7400 = vld [vmem:[%s71 + $0xf0] sm:$0xff]
        %v7401 = vld [vmem:[%s71 + $0xf8] sm:$0xff]
        %v7402 = vld [vmem:[%s71 + $0x100] sm:$0xff]
        %v7403 = vld [vmem:[%s71 + $0x108] sm:$0xff]
        %v7404 = vld [vmem:[%s71 + $0x110] sm:$0xff]
        %v7405 = vld [vmem:[%s71 + $0x118] sm:$0xff]
        %v7406 = vld [vmem:[%s71 + $0x120] sm:$0xff]
        %v7407 = vld [vmem:[%s71 + $0x128] sm:$0xff]
        %v7408 = vld [vmem:[%s71 + $0x130] sm:$0xff]
        %v7409 = vld [vmem:[%s71 + $0x138] sm:$0xff]
        %v7410 = vld [vmem:[%s71 + $0x140] sm:$0xff]
        %v7411 = vld [vmem:[%s71 + $0x148] sm:$0xff]
        %v7412 = vld [vmem:[%s71 + $0x150] sm:$0xff]
        %v7413 = vld [vmem:[%s71 + $0x158] sm:$0xff]
        %v7414 = vld [vmem:[%s71 + $0x160] sm:$0xff]
        %v7415 = vld [vmem:[%s71 + $0x168] sm:$0xff]
        %v7416 = vld [vmem:[%s71 + $0x170] sm:$0xff]
        %v7417 = vld [vmem:[%s71 + $0x178] sm:$0xff]
        %v7418 = vld [vmem:[%s71 + $0x180] sm:$0xff]
        %v7419 = vld [vmem:[%s71 + $0x188] sm:$0xff]
        %v7420 = vld [vmem:[%s71 + $0x190] sm:$0xff]
        %v7421 = vld [vmem:[%s71 + $0x198] sm:$0xff]
        %v7422 = vld [vmem:[%s71 + $0x1a0] sm:$0xff]
        %v7423 = vld [vmem:[%s71 + $0x1a8] sm:$0xff]
        %v7424 = vld [vmem:[%s71 + $0x1b0] sm:$0xff]
        %v7425 = vld [vmem:[%s71 + $0x1b8] sm:$0xff]
        %v7426 = vld [vmem:[%s71 + $0x1c0] sm:$0xff]
        %v7427 = vld [vmem:[%s71 + $0x1c8] sm:$0xff]
        %v7428 = vld [vmem:[%s71 + $0x1d0] sm:$0xff]
        %v7429 = vld [vmem:[%s71 + $0x1d8] sm:$0xff]
        %v7430 = vld [vmem:[%s71 + $0x1e0] sm:$0xff]
        %v7431 = vld [vmem:[%s71 + $0x1e8] sm:$0xff]
        %v7432 = vld [vmem:[%s71 + $0x1f0] sm:$0xff]
        %v7433 = vld [vmem:[%s71 + $0x1f8] sm:$0xff]
        %7434 = vmatprep.subr.mxu0 %v7371
        %7435 = vmatpush1.msra.mxu0 %v7370
        %7436 = vmatprep.subr.mxu0 %v7375
        %7437 = vmatpush1.msra.mxu0 %v7374
        %7438 = vmatprep.subr.mxu0 %v7379
        %7439 = vmatpush1.msra.mxu0 %v7378
        %7440 = vmatprep.subr.mxu0 %v7383
        %7441 = vmatpush1.msra.mxu0 %v7382
        %7442 = vmatprep.subr.mxu0 %v7387
        %7443 = vmatpush1.msra.mxu0 %v7386
        %7444 = vmatprep.subr.mxu0 %v7391
        %7445 = vmatpush1.msra.mxu0 %v7390
        %7446 = vmatprep.subr.mxu0 %v7395
        %7447 = vmatpush1.msra.mxu0 %v7394
        %7448 = vmatprep.subr.mxu0 %v7399
        %7449 = vmatpush1.msra.mxu0 %v7398
        %7450 = vmatprep.subr.mxu0 %v7403
        %7451 = vmatpush1.msra.mxu0 %v7402
        %7452 = vmatprep.subr.mxu0 %v7407
        %7453 = vmatpush1.msra.mxu0 %v7406
        %7454 = vmatprep.subr.mxu0 %v7411
        %7455 = vmatpush1.msra.mxu0 %v7410
        %7456 = vmatprep.subr.mxu0 %v7415
        %7457 = vmatpush1.msra.mxu0 %v7414
        %7458 = vmatprep.subr.mxu0 %v7419
        %7459 = vmatpush1.msra.mxu0 %v7418
        %7460 = vmatprep.subr.mxu0 %v7423
        %7461 = vmatpush1.msra.mxu0 %v7422
        %7462 = vmatprep.subr.mxu0 %v7427
        %7463 = vmatpush1.msra.mxu0 %v7426
        %7464 = vmatprep.subr.mxu0 %v7431
        %7465 = vmatpush1.msra.mxu0 %v7430
        %7466 = vmatprep.subr.mxu0 0.0
        %7467 = vmatpush1.msra.mxu0 0.0
        %7468 = vmatprep.subr.mxu0 0.0
        %7469 = vmatpush1.msra.mxu0 0.0
        %7470 = vmatprep.subr.mxu0 0.0
        %7471 = vmatpush1.msra.mxu0 0.0
        %7472 = vmatprep.subr.mxu0 0.0
        %7473 = vmatpush1.msra.mxu0 0.0
        %7474 = vmatprep.subr.mxu0 0.0
        %7475 = vmatpush1.msra.mxu0 0.0
        %7476 = vmatprep.subr.mxu0 0.0
        %7477 = vmatpush1.msra.mxu0 0.0
        %7478 = vmatprep.subr.mxu0 0.0
        %7479 = vmatpush1.msra.mxu0 0.0
        %7480 = vmatprep.subr.mxu0 0.0
        %7481 = vmatpush1.msra.mxu0 0.0
        %7482 = vmatprep.subr.mxu0 0.0
        %7483 = vmatpush1.msra.mxu0 0.0
        %7484 = vmatprep.subr.mxu0 0.0
        %7485 = vmatpush1.msra.mxu0 0.0
        %7486 = vmatprep.subr.mxu0 0.0
        %7487 = vmatpush1.msra.mxu0 0.0
        %7488 = vmatprep.subr.mxu0 0.0
        %7489 = vmatpush1.msra.mxu0 0.0
        %7490 = vmatprep.subr.mxu0 0.0
        %7491 = vmatpush1.msra.mxu0 0.0
        %7492 = vmatprep.subr.mxu0 0.0
        %7493 = vmatpush1.msra.mxu0 0.0
        %7494 = vmatprep.subr.mxu0 0.0
        %7495 = vmatpush1.msra.mxu0 0.0
        %7496 = vmatprep.subr.mxu0 0.0
        %7497 = vmatpush1.msra.mxu0 0.0
        %7498 = vmatprep.mubr.f32.mxu0 0.0
        %7499 = vmatmul.mubr.f32.gmra.mrb[0].mxu0 %v7368
        %v7500 = vpop.f32.mrb[0].mxu0
        %v7501 = vadd.f32 0.0, %v7500
        %v7502 = vpop.f32.mrb[0].mxu0
        %v7503 = vadd.f32 0.0, %v7502
        %7504 = vmatprep.mubr.f32.mxu0 0.0
        %7505 = vmatmul.mubr.f32.gmra.mrb[0].mxu0 %v7369
        %v7506 = vpop.f32.mrb[0].mxu0
        %v7507 = vadd.f32 0.0, %v7506
        %v7508 = vpop.f32.mrb[0].mxu0
        %v7509 = vadd.f32 0.0, %v7508
        %7510 = vdwg.mxu0
        %7511 = vmatprep.subr.mxu0 %v7373
        %7512 = vmatpush1.msra.mxu0 %v7372
        %7513 = vmatprep.subr.mxu0 %v7377
        %7514 = vmatpush1.msra.mxu0 %v7376
        %7515 = vmatprep.subr.mxu0 %v7381
        %7516 = vmatpush1.msra.mxu0 %v7380
        %7517 = vmatprep.subr.mxu0 %v7385
        %7518 = vmatpush1.msra.mxu0 %v7384
        %7519 = vmatprep.subr.mxu0 %v7389
        %7520 = vmatpush1.msra.mxu0 %v7388
        %7521 = vmatprep.subr.mxu0 %v7393
        %7522 = vmatpush1.msra.mxu0 %v7392
        %7523 = vmatprep.subr.mxu0 %v7397
        %7524 = vmatpush1.msra.mxu0 %v7396
        %7525 = vmatprep.subr.mxu0 %v7401
        %7526 = vmatpush1.msra.mxu0 %v7400
        %7527 = vmatprep.subr.mxu0 %v7405
        %7528 = vmatpush1.msra.mxu0 %v7404
        %7529 = vmatprep.subr.mxu0 %v7409
        %7530 = vmatpush1.msra.mxu0 %v7408
        %7531 = vmatprep.subr.mxu0 %v7413
        %7532 = vmatpush1.msra.mxu0 %v7412
        %7533 = vmatprep.subr.mxu0 %v7417
        %7534 = vmatpush1.msra.mxu0 %v7416
        %7535 = vmatprep.subr.mxu0 %v7421
        %7536 = vmatpush1.msra.mxu0 %v7420
        %7537 = vmatprep.subr.mxu0 %v7425
        %7538 = vmatpush1.msra.mxu0 %v7424
        %7539 = vmatprep.subr.mxu0 %v7429
        %7540 = vmatpush1.msra.mxu0 %v7428
        %7541 = vmatprep.subr.mxu0 %v7433
        %7542 = vmatpush1.msra.mxu0 %v7432
        %7543 = vmatprep.subr.mxu0 0.0
        %7544 = vmatpush1.msra.mxu0 0.0
        %7545 = vmatprep.subr.mxu0 0.0
        %7546 = vmatpush1.msra.mxu0 0.0
        %7547 = vmatprep.subr.mxu0 0.0
        %7548 = vmatpush1.msra.mxu0 0.0
        %7549 = vmatprep.subr.mxu0 0.0
        %7550 = vmatpush1.msra.mxu0 0.0
        %7551 = vmatprep.subr.mxu0 0.0
        %7552 = vmatpush1.msra.mxu0 0.0
        %7553 = vmatprep.subr.mxu0 0.0
        %7554 = vmatpush1.msra.mxu0 0.0
        %7555 = vmatprep.subr.mxu0 0.0
        %7556 = vmatpush1.msra.mxu0 0.0
        %7557 = vmatprep.subr.mxu0 0.0
        %7558 = vmatpush1.msra.mxu0 0.0
        %7559 = vmatprep.subr.mxu0 0.0
        %7560 = vmatpush1.msra.mxu0 0.0
        %7561 = vmatprep.subr.mxu0 0.0
        %7562 = vmatpush1.msra.mxu0 0.0
        %7563 = vmatprep.subr.mxu0 0.0
        %7564 = vmatpush1.msra.mxu0 0.0
        %7565 = vmatprep.subr.mxu0 0.0
        %7566 = vmatpush1.msra.mxu0 0.0
        %7567 = vmatprep.subr.mxu0 0.0
        %7568 = vmatpush1.msra.mxu0 0.0
        %7569 = vmatprep.subr.mxu0 0.0
        %7570 = vmatpush1.msra.mxu0 0.0
        %7571 = vmatprep.subr.mxu0 0.0
        %7572 = vmatpush1.msra.mxu0 0.0
        %7573 = vmatprep.subr.mxu0 0.0
        %7574 = vmatpush1.msra.mxu0 0.0
        %7575 = vmatprep.mubr.f32.mxu0 0.0
        %7576 = vmatmul.mubr.f32.gmra.mrb[0].mxu0 %v7368
        %v7577 = vpop.f32.mrb[0].mxu0
        %v7578 = vadd.f32 0.0, %v7577
        %v7579 = vpop.f32.mrb[0].mxu0
        %v7580 = vadd.f32 0.0, %v7579
        %7581 = vmatprep.mubr.f32.mxu0 0.0
        %7582 = vmatmul.mubr.f32.gmra.mrb[0].mxu0 %v7369
        %v7583 = vpop.f32.mrb[0].mxu0
        %v7584 = vadd.f32 0.0, %v7583
        %v7585 = vpop.f32.mrb[0].mxu0
        %v7586 = vadd.f32 0.0, %v7585
        %7587 = vdwg.mxu0
        %v7588 = vld [vmem:[#allocation12] sm:$0xff]
        %v7589 = vld [vmem:[#allocation12 + $0x8] sm:$0xff]
        %v7590 = vld [vmem:[%s39] sm:$0xff]
        %7591 = vrot.lane.b32.xlu0 %v7501, 17
        %v7592 = vpop.permute.xlu0 %7591
        %7593 = vrot.lane.b32.xlu0 %v7507, 17
        %v7594 = vpop.permute.xlu0 %7593
        %7595 = vrot.lane.b32.xlu0 %v7503, 17
        %v7596 = vpop.permute.xlu0 %7595
        %7597 = vrot.lane.b32.xlu0 %v7509, 17
        %v7598 = vpop.permute.xlu0 %7597
        %7599 = vrot.lane.b32.xlu0 %v7578, 17
        %v7600 = vpop.permute.xlu0 %7599
        %7601 = vrot.lane.b32.xlu0 %v7584, 17
        %v7602 = vpop.permute.xlu0 %7601
        %7603 = vrot.lane.b32.xlu0 %v7580, 17
        %v7604 = vpop.permute.xlu0 %7603
        %7605 = vrot.lane.b32.xlu0 %v7586, 17
        %v7606 = vpop.permute.xlu0 %7605
        %v7607 = vsel %vm1500, %v7600, %v7604
        %v7608 = vsel %vm1500, %v7602, %v7606
        %v7609 = vsel %vm1500, %v7596, %v7600
        %v7610 = vsel %vm1500, %v7598, %v7602
        %v7611 = vsel %vm1500, %v7592, %v7596
        %v7612 = vsel %vm1500, %v7594, %v7598
        %v7613 = vsel %vm1500, %v7604, %v7592
        %v7614 = vsel %vm1500, %v7606, %v7594
        %v7615 = vmul.f32 %v7613, %v1508
        %v7616 = vmul.f32 %v7611, %v1512
        %v7617 = vmul.f32 %v7609, %v1516
        %v7618 = vmul.f32 %v7607, %v1520
        %v7619 = vmul.f32 %v7614, %v1508
        %v7620 = vmul.f32 %v7612, %v1512
        %v7621 = vmul.f32 %v7610, %v1516
        %v7622 = vmul.f32 %v7608, %v1520
        %7623 = vrot.lane.b32.xlu0 %v7501, 16
        %v7624 = vpop.permute.xlu0 %7623
        %7625 = vrot.lane.b32.xlu0 %v7507, 16
        %v7626 = vpop.permute.xlu0 %7625
        %7627 = vrot.lane.b32.xlu0 %v7503, 16
        %v7628 = vpop.permute.xlu0 %7627
        %7629 = vrot.lane.b32.xlu0 %v7509, 16
        %v7630 = vpop.permute.xlu0 %7629
        %7631 = vrot.lane.b32.xlu0 %v7578, 16
        %v7632 = vpop.permute.xlu0 %7631
        %7633 = vrot.lane.b32.xlu0 %v7584, 16
        %v7634 = vpop.permute.xlu0 %7633
        %7635 = vrot.lane.b32.xlu0 %v7580, 16
        %v7636 = vpop.permute.xlu0 %7635
        %7637 = vrot.lane.b32.xlu0 %v7586, 16
        %v7638 = vpop.permute.xlu0 %7637
        %v7639 = vsel %vm1533, %v7632, %v7636
        %v7640 = vsel %vm1533, %v7634, %v7638
        %v7641 = vsel %vm1533, %v7628, %v7632
        %v7642 = vsel %vm1533, %v7630, %v7634
        %v7643 = vsel %vm1533, %v7624, %v7628
        %v7644 = vsel %vm1533, %v7626, %v7630
        %v7645 = vsel %vm1533, %v7636, %v7624
        %v7646 = vsel %vm1533, %v7638, %v7626
        %v7647 = vmul.f32 %v7645, %v1541
        %v7648 = vmul.f32 %v7643, %v1545
        %v7649 = vmul.f32 %v7641, %v1549
        %v7650 = vmul.f32 %v7639, %v1553
        %v7651 = vmul.f32 %v7646, %v1541
        %v7652 = vmul.f32 %v7644, %v1545
        %v7653 = vmul.f32 %v7642, %v1549
        %v7654 = vmul.f32 %v7640, %v1553
        %7655 = vrot.lane.b32.xlu0 %v7501, 15
        %v7656 = vpop.permute.xlu0 %7655
        %7657 = vrot.lane.b32.xlu0 %v7507, 15
        %v7658 = vpop.permute.xlu0 %7657
        %7659 = vrot.lane.b32.xlu0 %v7503, 15
        %v7660 = vpop.permute.xlu0 %7659
        %7661 = vrot.lane.b32.xlu0 %v7509, 15
        %v7662 = vpop.permute.xlu0 %7661
        %7663 = vrot.lane.b32.xlu0 %v7578, 15
        %v7664 = vpop.permute.xlu0 %7663
        %7665 = vrot.lane.b32.xlu0 %v7584, 15
        %v7666 = vpop.permute.xlu0 %7665
        %7667 = vrot.lane.b32.xlu0 %v7580, 15
        %v7668 = vpop.permute.xlu0 %7667
        %7669 = vrot.lane.b32.xlu0 %v7586, 15
        %v7670 = vpop.permute.xlu0 %7669
        %v7671 = vsel %vm1566, %v7664, %v7668
        %v7672 = vsel %vm1566, %v7666, %v7670
        %v7673 = vsel %vm1566, %v7660, %v7664
        %v7674 = vsel %vm1566, %v7662, %v7666
        %v7675 = vsel %vm1566, %v7656, %v7660
        %v7676 = vsel %vm1566, %v7658, %v7662
        %v7677 = vsel %vm1566, %v7668, %v7656
        %v7678 = vsel %vm1566, %v7670, %v7658
        %v7679 = vmul.f32 %v7677, %v1574
        %v7680 = vmul.f32 %v7675, %v1578
        %v7681 = vmul.f32 %v7673, %v1582
        %v7682 = vmul.f32 %v7671, %v1586
        %v7683 = vmul.f32 %v7678, %v1574
        %v7684 = vmul.f32 %v7676, %v1578
        %v7685 = vmul.f32 %v7674, %v1582
        %v7686 = vmul.f32 %v7672, %v1586
        %7687 = vrot.lane.b32.xlu0 %v7501, 1
        %v7688 = vpop.permute.xlu0 %7687
        %7689 = vrot.lane.b32.xlu0 %v7507, 1
        %v7690 = vpop.permute.xlu0 %7689
        %7691 = vrot.lane.b32.xlu0 %v7503, 1
        %v7692 = vpop.permute.xlu0 %7691
        %7693 = vrot.lane.b32.xlu0 %v7509, 1
        %v7694 = vpop.permute.xlu0 %7693
        %7695 = vrot.lane.b32.xlu0 %v7578, 1
        %v7696 = vpop.permute.xlu0 %7695
        %7697 = vrot.lane.b32.xlu0 %v7584, 1
        %v7698 = vpop.permute.xlu0 %7697
        %7699 = vrot.lane.b32.xlu0 %v7580, 1
        %v7700 = vpop.permute.xlu0 %7699
        %7701 = vrot.lane.b32.xlu0 %v7586, 1
        %v7702 = vpop.permute.xlu0 %7701
        %v7703 = vsel %vm1599, %v7696, %v7700
        %v7704 = vsel %vm1599, %v7698, %v7702
        %v7705 = vsel %vm1599, %v7692, %v7696
        %v7706 = vsel %vm1599, %v7694, %v7698
        %v7707 = vsel %vm1599, %v7688, %v7692
        %v7708 = vsel %vm1599, %v7690, %v7694
        %v7709 = vsel %vm1599, %v7700, %v7688
        %v7710 = vsel %vm1599, %v7702, %v7690
        %v7711 = vmul.f32 %v7709, %v1607
        %v7712 = vmul.f32 %v7707, %v1611
        %v7713 = vmul.f32 %v7705, %v1615
        %v7714 = vmul.f32 %v7703, %v1619
        %v7715 = vmul.f32 %v7710, %v1607
        %v7716 = vmul.f32 %v7708, %v1611
        %v7717 = vmul.f32 %v7706, %v1615
        %v7718 = vmul.f32 %v7704, %v1619
        %7719 = vrot.lane.b32.xlu0 %v7501, 127
        %v7720 = vpop.permute.xlu0 %7719
        %7721 = vrot.lane.b32.xlu0 %v7507, 127
        %v7722 = vpop.permute.xlu0 %7721
        %7723 = vrot.lane.b32.xlu0 %v7503, 127
        %v7724 = vpop.permute.xlu0 %7723
        %7725 = vrot.lane.b32.xlu0 %v7509, 127
        %v7726 = vpop.permute.xlu0 %7725
        %7727 = vrot.lane.b32.xlu0 %v7578, 127
        %v7728 = vpop.permute.xlu0 %7727
        %7729 = vrot.lane.b32.xlu0 %v7584, 127
        %v7730 = vpop.permute.xlu0 %7729
        %7731 = vrot.lane.b32.xlu0 %v7580, 127
        %v7732 = vpop.permute.xlu0 %7731
        %7733 = vrot.lane.b32.xlu0 %v7586, 127
        %v7734 = vpop.permute.xlu0 %7733
        %v7735 = vsel %vm1632, %v7728, %v7732
        %v7736 = vsel %vm1632, %v7730, %v7734
        %v7737 = vsel %vm1632, %v7724, %v7728
        %v7738 = vsel %vm1632, %v7726, %v7730
        %v7739 = vsel %vm1632, %v7720, %v7724
        %v7740 = vsel %vm1632, %v7722, %v7726
        %v7741 = vsel %vm1632, %v7732, %v7720
        %v7742 = vsel %vm1632, %v7734, %v7722
        %v7743 = vmul.f32 %v7739, %v1640
        %v7744 = vmul.f32 %v7737, %v1644
        %v7745 = vmul.f32 %v7735, %v1648
        %v7746 = vmul.f32 %v7741, %v1652
        %v7747 = vmul.f32 %v7740, %v1640
        %v7748 = vmul.f32 %v7738, %v1644
        %v7749 = vmul.f32 %v7736, %v1648
        %v7750 = vmul.f32 %v7742, %v1652
        %7751 = vrot.lane.b32.xlu0 %v7501, 113
        %v7752 = vpop.permute.xlu0 %7751
        %7753 = vrot.lane.b32.xlu0 %v7507, 113
        %v7754 = vpop.permute.xlu0 %7753
        %7755 = vrot.lane.b32.xlu0 %v7503, 113
        %v7756 = vpop.permute.xlu0 %7755
        %7757 = vrot.lane.b32.xlu0 %v7509, 113
        %v7758 = vpop.permute.xlu0 %7757
        %7759 = vrot.lane.b32.xlu0 %v7578, 113
        %v7760 = vpop.permute.xlu0 %7759
        %7761 = vrot.lane.b32.xlu0 %v7584, 113
        %v7762 = vpop.permute.xlu0 %7761
        %7763 = vrot.lane.b32.xlu0 %v7580, 113
        %v7764 = vpop.permute.xlu0 %7763
        %7765 = vrot.lane.b32.xlu0 %v7586, 113
        %v7766 = vpop.permute.xlu0 %7765
        %v7767 = vsel %vm1665, %v7760, %v7764
        %v7768 = vsel %vm1665, %v7762, %v7766
        %v7769 = vsel %vm1665, %v7756, %v7760
        %v7770 = vsel %vm1665, %v7758, %v7762
        %v7771 = vsel %vm1665, %v7752, %v7756
        %v7772 = vsel %vm1665, %v7754, %v7758
        %v7773 = vsel %vm1665, %v7764, %v7752
        %v7774 = vsel %vm1665, %v7766, %v7754
        %v7775 = vmul.f32 %v7771, %v1673
        %v7776 = vmul.f32 %v7769, %v1677
        %v7777 = vmul.f32 %v7767, %v1681
        %v7778 = vmul.f32 %v7773, %v1685
        %v7779 = vmul.f32 %v7772, %v1673
        %v7780 = vmul.f32 %v7770, %v1677
        %v7781 = vmul.f32 %v7768, %v1681
        %v7782 = vmul.f32 %v7774, %v1685
        %7783 = vrot.lane.b32.xlu0 %v7501, 112
        %v7784 = vpop.permute.xlu0 %7783
        %7785 = vrot.lane.b32.xlu0 %v7507, 112
        %v7786 = vpop.permute.xlu0 %7785
        %7787 = vrot.lane.b32.xlu0 %v7503, 112
        %v7788 = vpop.permute.xlu0 %7787
        %7789 = vrot.lane.b32.xlu0 %v7509, 112
        %v7790 = vpop.permute.xlu0 %7789
        %7791 = vrot.lane.b32.xlu0 %v7578, 112
        %v7792 = vpop.permute.xlu0 %7791
        %7793 = vrot.lane.b32.xlu0 %v7584, 112
        %v7794 = vpop.permute.xlu0 %7793
        %7795 = vrot.lane.b32.xlu0 %v7580, 112
        %v7796 = vpop.permute.xlu0 %7795
        %7797 = vrot.lane.b32.xlu0 %v7586, 112
        %v7798 = vpop.permute.xlu0 %7797
        %v7799 = vsel %vm1698, %v7792, %v7796
        %v7800 = vsel %vm1698, %v7794, %v7798
        %v7801 = vsel %vm1698, %v7788, %v7792
        %v7802 = vsel %vm1698, %v7790, %v7794
        %v7803 = vsel %vm1698, %v7784, %v7788
        %v7804 = vsel %vm1698, %v7786, %v7790
        %v7805 = vsel %vm1698, %v7796, %v7784
        %v7806 = vsel %vm1698, %v7798, %v7786
        %v7807 = vmul.f32 %v7803, %v1706
        %v7808 = vmul.f32 %v7801, %v1710
        %v7809 = vmul.f32 %v7799, %v1714
        %v7810 = vmul.f32 %v7805, %v1718
        %v7811 = vmul.f32 %v7804, %v1706
        %v7812 = vmul.f32 %v7802, %v1710
        %v7813 = vmul.f32 %v7800, %v1714
        %v7814 = vmul.f32 %v7806, %v1718
        %7815 = vrot.lane.b32.xlu0 %v7501, 111
        %v7816 = vpop.permute.xlu0 %7815
        %7817 = vrot.lane.b32.xlu0 %v7507, 111
        %v7818 = vpop.permute.xlu0 %7817
        %7819 = vrot.lane.b32.xlu0 %v7503, 111
        %v7820 = vpop.permute.xlu0 %7819
        %7821 = vrot.lane.b32.xlu0 %v7509, 111
        %v7822 = vpop.permute.xlu0 %7821
        %7823 = vrot.lane.b32.xlu0 %v7578, 111
        %v7824 = vpop.permute.xlu0 %7823
        %7825 = vrot.lane.b32.xlu0 %v7584, 111
        %v7826 = vpop.permute.xlu0 %7825
        %7827 = vrot.lane.b32.xlu0 %v7580, 111
        %v7828 = vpop.permute.xlu0 %7827
        %7829 = vrot.lane.b32.xlu0 %v7586, 111
        %v7830 = vpop.permute.xlu0 %7829
        %v7831 = vsel %vm1731, %v7824, %v7828
        %v7832 = vsel %vm1731, %v7826, %v7830
        %v7833 = vsel %vm1731, %v7820, %v7824
        %v7834 = vsel %vm1731, %v7822, %v7826
        %v7835 = vsel %vm1731, %v7816, %v7820
        %v7836 = vsel %vm1731, %v7818, %v7822
        %v7837 = vsel %vm1731, %v7828, %v7816
        %v7838 = vsel %vm1731, %v7830, %v7818
        %v7839 = vmul.f32 %v7835, %v1739
        %v7840 = vmul.f32 %v7833, %v1743
        %v7841 = vmul.f32 %v7831, %v1747
        %v7842 = vmul.f32 %v7837, %v1751
        %v7843 = vmul.f32 %v7836, %v1739
        %v7844 = vmul.f32 %v7834, %v1743
        %v7845 = vmul.f32 %v7832, %v1747
        %v7846 = vmul.f32 %v7838, %v1751
        %7848 = vset.pattern.permute.xlu0 0
        %7849 = vperm.xlu0 %7848, %v7590
        %v7850 = vpop.permute.xlu0 %7849
        %v7853 = vsel %vm3100, %v7589, 0
        %7855 = vmatprep.subr.mxu0 %v7616
        %7856 = vmatpush1.msra.mxu0 %v7615
        %7857 = vmatprep.subr.mxu0 %v7620
        %7858 = vmatpush1.msra.mxu0 %v7619
        %7859 = vmatprep.subr.mxu0 %v7648
        %7860 = vmatpush1.msra.mxu0 %v7647
        %7861 = vmatprep.subr.mxu0 %v7652
        %7862 = vmatpush1.msra.mxu0 %v7651
        %7863 = vmatprep.subr.mxu0 %v7680
        %7864 = vmatpush1.msra.mxu0 %v7679
        %7865 = vmatprep.subr.mxu0 %v7684
        %7866 = vmatpush1.msra.mxu0 %v7683
        %7867 = vmatprep.subr.mxu0 %v7712
        %7868 = vmatpush1.msra.mxu0 %v7711
        %7869 = vmatprep.subr.mxu0 %v7716
        %7870 = vmatpush1.msra.mxu0 %v7715
        %7871 = vmatprep.subr.mxu0 %v7503
        %7872 = vmatpush1.msra.mxu0 %v7501
        %7873 = vmatprep.subr.mxu0 %v7509
        %7874 = vmatpush1.msra.mxu0 %v7507
        %7875 = vmatprep.subr.mxu0 %v7744
        %7876 = vmatpush1.msra.mxu0 %v7743
        %7877 = vmatprep.subr.mxu0 %v7748
        %7878 = vmatpush1.msra.mxu0 %v7747
        %7879 = vmatprep.subr.mxu0 %v7776
        %7880 = vmatpush1.msra.mxu0 %v7775
        %7881 = vmatprep.subr.mxu0 %v7780
        %7882 = vmatpush1.msra.mxu0 %v7779
        %7883 = vmatprep.subr.mxu0 %v7808
        %7884 = vmatpush1.msra.mxu0 %v7807
        %7885 = vmatprep.subr.mxu0 %v7812
        %7886 = vmatpush1.msra.mxu0 %v7811
        %7887 = vmatprep.subr.mxu0 %v7840
        %7888 = vmatpush1.msra.mxu0 %v7839
        %7889 = vmatprep.subr.mxu0 %v7844
        %7890 = vmatpush1.msra.mxu0 %v7843
        %7891 = vmatprep.subr.mxu0 0.0
        %7892 = vmatpush1.msra.mxu0 0.0
        %7893 = vmatprep.subr.mxu0 0.0
        %7894 = vmatpush1.msra.mxu0 0.0
        %7895 = vmatprep.subr.mxu0 0.0
        %7896 = vmatpush1.msra.mxu0 0.0
        %7897 = vmatprep.subr.mxu0 0.0
        %7898 = vmatpush1.msra.mxu0 0.0
        %7899 = vmatprep.subr.mxu0 0.0
        %7900 = vmatpush1.msra.mxu0 0.0
        %7901 = vmatprep.subr.mxu0 0.0
        %7902 = vmatpush1.msra.mxu0 0.0
        %7903 = vmatprep.subr.mxu0 0.0
        %7904 = vmatpush1.msra.mxu0 0.0
        %7905 = vmatprep.subr.mxu0 0.0
        %7906 = vmatpush1.msra.mxu0 0.0
        %7907 = vmatprep.subr.mxu0 0.0
        %7908 = vmatpush1.msra.mxu0 0.0
        %7909 = vmatprep.subr.mxu0 0.0
        %7910 = vmatpush1.msra.mxu0 0.0
        %7911 = vmatprep.subr.mxu0 0.0
        %7912 = vmatpush1.msra.mxu0 0.0
        %7913 = vmatprep.subr.mxu0 0.0
        %7914 = vmatpush1.msra.mxu0 0.0
        %7915 = vmatprep.subr.mxu0 0.0
        %7916 = vmatpush1.msra.mxu0 0.0
        %7917 = vmatprep.subr.mxu0 0.0
        %7918 = vmatpush1.msra.mxu0 0.0
        %7919 = vmatprep.mubr.f32.mxu0 %v7853
        %7920 = vmatmul.mubr.f32.gmra.mrb[0].mxu0 %v7588
        %v7921 = vpop.f32.mrb[0].mxu0
        %v7922 = vadd.f32 %v7850, %v7921
        %v7923 = vpop.f32.mrb[0].mxu0
        %v7924 = vadd.f32 %v7850, %v7923
        %7925 = vdwg.mxu0
        %7926 = vmatprep.subr.mxu0 %v7618
        %7927 = vmatpush1.msra.mxu0 %v7617
        %7928 = vmatprep.subr.mxu0 %v7622
        %7929 = vmatpush1.msra.mxu0 %v7621
        %7930 = vmatprep.subr.mxu0 %v7650
        %7931 = vmatpush1.msra.mxu0 %v7649
        %7932 = vmatprep.subr.mxu0 %v7654
        %7933 = vmatpush1.msra.mxu0 %v7653
        %7934 = vmatprep.subr.mxu0 %v7682
        %7935 = vmatpush1.msra.mxu0 %v7681
        %7936 = vmatprep.subr.mxu0 %v7686
        %7937 = vmatpush1.msra.mxu0 %v7685
        %7938 = vmatprep.subr.mxu0 %v7714
        %7939 = vmatpush1.msra.mxu0 %v7713
        %7940 = vmatprep.subr.mxu0 %v7718
        %7941 = vmatpush1.msra.mxu0 %v7717
        %7942 = vmatprep.subr.mxu0 %v7580
        %7943 = vmatpush1.msra.mxu0 %v7578
        %7944 = vmatprep.subr.mxu0 %v7586
        %7945 = vmatpush1.msra.mxu0 %v7584
        %7946 = vmatprep.subr.mxu0 %v7746
        %7947 = vmatpush1.msra.mxu0 %v7745
        %7948 = vmatprep.subr.mxu0 %v7750
        %7949 = vmatpush1.msra.mxu0 %v7749
        %7950 = vmatprep.subr.mxu0 %v7778
        %7951 = vmatpush1.msra.mxu0 %v7777
        %7952 = vmatprep.subr.mxu0 %v7782
        %7953 = vmatpush1.msra.mxu0 %v7781
        %7954 = vmatprep.subr.mxu0 %v7810
        %7955 = vmatpush1.msra.mxu0 %v7809
        %7956 = vmatprep.subr.mxu0 %v7814
        %7957 = vmatpush1.msra.mxu0 %v7813
        %7958 = vmatprep.subr.mxu0 %v7842
        %7959 = vmatpush1.msra.mxu0 %v7841
        %7960 = vmatprep.subr.mxu0 %v7846
        %7961 = vmatpush1.msra.mxu0 %v7845
        %7962 = vmatprep.subr.mxu0 0.0
        %7963 = vmatpush1.msra.mxu0 0.0
        %7964 = vmatprep.subr.mxu0 0.0
        %7965 = vmatpush1.msra.mxu0 0.0
        %7966 = vmatprep.subr.mxu0 0.0
        %7967 = vmatpush1.msra.mxu0 0.0
        %7968 = vmatprep.subr.mxu0 0.0
        %7969 = vmatpush1.msra.mxu0 0.0
        %7970 = vmatprep.subr.mxu0 0.0
        %7971 = vmatpush1.msra.mxu0 0.0
        %7972 = vmatprep.subr.mxu0 0.0
        %7973 = vmatpush1.msra.mxu0 0.0
        %7974 = vmatprep.subr.mxu0 0.0
        %7975 = vmatpush1.msra.mxu0 0.0
        %7976 = vmatprep.subr.mxu0 0.0
        %7977 = vmatpush1.msra.mxu0 0.0
        %7978 = vmatprep.subr.mxu0 0.0
        %7979 = vmatpush1.msra.mxu0 0.0
        %7980 = vmatprep.subr.mxu0 0.0
        %7981 = vmatpush1.msra.mxu0 0.0
        %7982 = vmatprep.subr.mxu0 0.0
        %7983 = vmatpush1.msra.mxu0 0.0
        %7984 = vmatprep.subr.mxu0 0.0
        %7985 = vmatpush1.msra.mxu0 0.0
        %7986 = vmatprep.subr.mxu0 0.0
        %7987 = vmatpush1.msra.mxu0 0.0
        %7988 = vmatprep.subr.mxu0 0.0
        %7989 = vmatpush1.msra.mxu0 0.0
        %7990 = vmatprep.mubr.f32.mxu0 %v7853
        %7991 = vmatmul.mubr.f32.gmra.mrb[0].mxu0 %v7588
        %v7992 = vpop.f32.mrb[0].mxu0
        %v7993 = vadd.f32 %v7850, %v7992
        %v7994 = vpop.f32.mrb[0].mxu0
        %v7995 = vadd.f32 %v7850, %v7994
        %7996 = vdwg.mxu0
        %v7997 = vmul.f32 %v7922, %v7922
        %v7998 = vmul.f32 %v7924, %v7924
        %v7999 = vmul.f32 %v7993, %v7993
        %v8000 = vmul.f32 %v7995, %v7995
        %8001 = vmatprep.subr.mxu0 0.0
        %8002 = vmatpush1.msra.mxu0 %v1401
        %8003 = vmatprep.subr.mxu0 0.0
        %8004 = vmatpush1.msra.mxu0 %v1402
        %8005 = vmatprep.subr.mxu0 0.0
        %8006 = vmatpush1.msra.mxu0 %v1403
        %8007 = vmatprep.subr.mxu0 0.0
        %8008 = vmatpush1.msra.mxu0 %v1404
        %8009 = vmatprep.subr.mxu0 0.0
        %8010 = vmatpush1.msra.mxu0 %v1405
        %8011 = vmatprep.subr.mxu0 0.0
        %8012 = vmatpush1.msra.mxu0 %v1406
        %8013 = vmatprep.subr.mxu0 0.0
        %8014 = vmatpush1.msra.mxu0 %v1407
        %8015 = vmatprep.subr.mxu0 0.0
        %8016 = vmatpush1.msra.mxu0 %v1408
        %8017 = vmatprep.subr.mxu0 0.0
        %8018 = vmatpush1.msra.mxu0 %v1409
        %8019 = vmatprep.subr.mxu0 0.0
        %8020 = vmatpush1.msra.mxu0 %v1410
        %8021 = vmatprep.subr.mxu0 0.0
        %8022 = vmatpush1.msra.mxu0 %v1411
        %8023 = vmatprep.subr.mxu0 0.0
        %8024 = vmatpush1.msra.mxu0 %v1412
        %8025 = vmatprep.subr.mxu0 0.0
        %8026 = vmatpush1.msra.mxu0 %v1413
        %8027 = vmatprep.subr.mxu0 0.0
        %8028 = vmatpush1.msra.mxu0 %v1414
        %8029 = vmatprep.subr.mxu0 0.0
        %8030 = vmatpush1.msra.mxu0 %v1415
        %8031 = vmatprep.subr.mxu0 0.0
        %8032 = vmatpush1.msra.mxu0 %v1416
        %8033 = vmatprep.subr.mxu0 0.0
        %8034 = vmatpush1.msra.mxu0 %v1417
        %8035 = vmatprep.subr.mxu0 0.0
        %8036 = vmatpush1.msra.mxu0 %v1418
        %8037 = vmatprep.subr.mxu0 0.0
        %8038 = vmatpush1.msra.mxu0 %v1419
        %8039 = vmatprep.subr.mxu0 0.0
        %8040 = vmatpush1.msra.mxu0 %v1420
        %8041 = vmatprep.subr.mxu0 0.0
        %8042 = vmatpush1.msra.mxu0 %v1421
        %8043 = vmatprep.subr.mxu0 0.0
        %8044 = vmatpush1.msra.mxu0 %v1422
        %8045 = vmatprep.subr.mxu0 0.0
        %8046 = vmatpush1.msra.mxu0 %v1423
        %8047 = vmatprep.subr.mxu0 0.0
        %8048 = vmatpush1.msra.mxu0 %v1424
        %8049 = vmatprep.subr.mxu0 0.0
        %8050 = vmatpush1.msra.mxu0 %v1425
        %8051 = vmatprep.subr.mxu0 0.0
        %8052 = vmatpush1.msra.mxu0 %v1426
        %8053 = vmatprep.subr.mxu0 0.0
        %8054 = vmatpush1.msra.mxu0 %v1427
        %8055 = vmatprep.subr.mxu0 0.0
        %8056 = vmatpush1.msra.mxu0 %v1428
        %8057 = vmatprep.subr.mxu0 0.0
        %8058 = vmatpush1.msra.mxu0 %v1429
        %8059 = vmatprep.subr.mxu0 0.0
        %8060 = vmatpush1.msra.mxu0 %v1430
        %8061 = vmatprep.subr.mxu0 0.0
        %8062 = vmatpush1.msra.mxu0 %v1431
        %8063 = vmatprep.subr.mxu0 0.0
        %8064 = vmatpush1.msra.mxu0 %v1432
        %8065 = vmatprep.mubr.f32.mxu0 %v7924
        %8066 = vmatmul.mubr.f32.gmra.mrb[0].mxu0 %v7922
        %v8067 = vpop.f32.mrb[0].mxu0
        %v8068 = vadd.f32 0.0, %v8067
        %v8069 = vpop.f32.mrb[0].mxu0
        %8070 = vmatprep.mubr.f32.mxu0 %v7998
        %8071 = vmatmul.mubr.f32.gmra.mrb[0].mxu0 %v7997
        %v8072 = vpop.f32.mrb[0].mxu0
        %v8073 = vadd.f32 0.0, %v8072
        %v8074 = vpop.f32.mrb[0].mxu0
        %8075 = vdwg.mxu0
        %8076 = vmatprep.subr.mxu0 0.0
        %8077 = vmatpush1.msra.mxu0 %v1433
        %8078 = vmatprep.subr.mxu0 0.0
        %8079 = vmatpush1.msra.mxu0 %v1434
        %8080 = vmatprep.subr.mxu0 0.0
        %8081 = vmatpush1.msra.mxu0 %v1435
        %8082 = vmatprep.subr.mxu0 0.0
        %8083 = vmatpush1.msra.mxu0 %v1436
        %8084 = vmatprep.subr.mxu0 0.0
        %8085 = vmatpush1.msra.mxu0 %v1437
        %8086 = vmatprep.subr.mxu0 0.0
        %8087 = vmatpush1.msra.mxu0 %v1438
        %8088 = vmatprep.subr.mxu0 0.0
        %8089 = vmatpush1.msra.mxu0 %v1439
        %8090 = vmatprep.subr.mxu0 0.0
        %8091 = vmatpush1.msra.mxu0 %v1440
        %8092 = vmatprep.subr.mxu0 0.0
        %8093 = vmatpush1.msra.mxu0 %v1441
        %8094 = vmatprep.subr.mxu0 0.0
        %8095 = vmatpush1.msra.mxu0 %v1442
        %8096 = vmatprep.subr.mxu0 0.0
        %8097 = vmatpush1.msra.mxu0 %v1443
        %8098 = vmatprep.subr.mxu0 0.0
        %8099 = vmatpush1.msra.mxu0 %v1444
        %8100 = vmatprep.subr.mxu0 0.0
        %8101 = vmatpush1.msra.mxu0 %v1445
        %8102 = vmatprep.subr.mxu0 0.0
        %8103 = vmatpush1.msra.mxu0 %v1446
        %8104 = vmatprep.subr.mxu0 0.0
        %8105 = vmatpush1.msra.mxu0 %v1447
        %8106 = vmatprep.subr.mxu0 0.0
        %8107 = vmatpush1.msra.mxu0 %v1448
        %8108 = vmatprep.subr.mxu0 0.0
        %8109 = vmatpush1.msra.mxu0 %v1449
        %8110 = vmatprep.subr.mxu0 0.0
        %8111 = vmatpush1.msra.mxu0 %v1450
        %8112 = vmatprep.subr.mxu0 0.0
        %8113 = vmatpush1.msra.mxu0 %v1451
        %8114 = vmatprep.subr.mxu0 0.0
        %8115 = vmatpush1.msra.mxu0 %v1452
        %8116 = vmatprep.subr.mxu0 0.0
        %8117 = vmatpush1.msra.mxu0 %v1453
        %8118 = vmatprep.subr.mxu0 0.0
        %8119 = vmatpush1.msra.mxu0 %v1454
        %8120 = vmatprep.subr.mxu0 0.0
        %8121 = vmatpush1.msra.mxu0 %v1455
        %8122 = vmatprep.subr.mxu0 0.0
        %8123 = vmatpush1.msra.mxu0 %v1456
        %8124 = vmatprep.subr.mxu0 0.0
        %8125 = vmatpush1.msra.mxu0 %v1457
        %8126 = vmatprep.subr.mxu0 0.0
        %8127 = vmatpush1.msra.mxu0 %v1458
        %8128 = vmatprep.subr.mxu0 0.0
        %8129 = vmatpush1.msra.mxu0 %v1459
        %8130 = vmatprep.subr.mxu0 0.0
        %8131 = vmatpush1.msra.mxu0 %v1460
        %8132 = vmatprep.subr.mxu0 0.0
        %8133 = vmatpush1.msra.mxu0 %v1461
        %8134 = vmatprep.subr.mxu0 0.0
        %8135 = vmatpush1.msra.mxu0 %v1462
        %8136 = vmatprep.subr.mxu0 0.0
        %8137 = vmatpush1.msra.mxu0 %v1463
        %8138 = vmatprep.subr.mxu0 0.0
        %8139 = vmatpush1.msra.mxu0 %v1464
        %8140 = vmatprep.mubr.f32.mxu0 %v7995
        %8141 = vmatmul.mubr.f32.gmra.mrb[0].mxu0 %v7993
        %v8142 = vpop.f32.mrb[0].mxu0
        %v8143 = vadd.f32 %v8068, %v8142
        %v8144 = vpop.f32.mrb[0].mxu0
        %8145 = vmatprep.mubr.f32.mxu0 %v8000
        %8146 = vmatmul.mubr.f32.gmra.mrb[0].mxu0 %v7999
        %v8147 = vpop.f32.mrb[0].mxu0
        %v8148 = vadd.f32 %v8073, %v8147
        %v8149 = vpop.f32.mrb[0].mxu0
        %8150 = vdwg.mxu0
        %v8151 = vmul.f32 %v8143, %v8143
        %v8152 = vsub.f32 %v8148, %v8151
        %v8153 = vadd.f32 %v8152, 1e-05
        %v8154 = vrsqrt.pop %v8153
        %v8155 = vsub.f32 0.0, %v8143
        %v8156 = vmul.f32 %v8155, %v8154
        %v8158 = vsel %vm2085, %v8154, 0
        %v8161 = vsel %vm2085, %v8156, 0
        %8163 = vmatprep.subr.mxu0 %v2095
        %8164 = vmatpush1.msra.mxu0 %v2093
        %8165 = vmatprep.subr.mxu0 0.0
        %8166 = vmatpush1.msra.mxu0 0.0
        %8167 = vmatprep.subr.mxu0 0.0
        %8168 = vmatpush1.msra.mxu0 0.0
        %8169 = vmatprep.subr.mxu0 0.0
        %8170 = vmatpush1.msra.mxu0 0.0
        %8171 = vmatprep.subr.mxu0 0.0
        %8172 = vmatpush1.msra.mxu0 0.0
        %8173 = vmatprep.subr.mxu0 0.0
        %8174 = vmatpush1.msra.mxu0 0.0
        %8175 = vmatprep.subr.mxu0 0.0
        %8176 = vmatpush1.msra.mxu0 0.0
        %8177 = vmatprep.subr.mxu0 0.0
        %8178 = vmatpush1.msra.mxu0 0.0
        %8179 = vmatprep.subr.mxu0 0.0
        %8180 = vmatpush1.msra.mxu0 0.0
        %8181 = vmatprep.subr.mxu0 0.0
        %8182 = vmatpush1.msra.mxu0 0.0
        %8183 = vmatprep.subr.mxu0 0.0
        %8184 = vmatpush1.msra.mxu0 0.0
        %8185 = vmatprep.subr.mxu0 0.0
        %8186 = vmatpush1.msra.mxu0 0.0
        %8187 = vmatprep.subr.mxu0 0.0
        %8188 = vmatpush1.msra.mxu0 0.0
        %8189 = vmatprep.subr.mxu0 0.0
        %8190 = vmatpush1.msra.mxu0 0.0
        %8191 = vmatprep.subr.mxu0 0.0
        %8192 = vmatpush1.msra.mxu0 0.0
        %8193 = vmatprep.subr.mxu0 0.0
        %8194 = vmatpush1.msra.mxu0 0.0
        %8195 = vmatprep.subr.mxu0 0.0
        %8196 = vmatpush1.msra.mxu0 0.0
        %8197 = vmatprep.subr.mxu0 0.0
        %8198 = vmatpush1.msra.mxu0 0.0
        %8199 = vmatprep.subr.mxu0 0.0
        %8200 = vmatpush1.msra.mxu0 0.0
        %8201 = vmatprep.subr.mxu0 0.0
        %8202 = vmatpush1.msra.mxu0 0.0
        %8203 = vmatprep.subr.mxu0 0.0
        %8204 = vmatpush1.msra.mxu0 0.0
        %8205 = vmatprep.subr.mxu0 0.0
        %8206 = vmatpush1.msra.mxu0 0.0
        %8207 = vmatprep.subr.mxu0 0.0
        %8208 = vmatpush1.msra.mxu0 0.0
        %8209 = vmatprep.subr.mxu0 0.0
        %8210 = vmatpush1.msra.mxu0 0.0
        %8211 = vmatprep.subr.mxu0 0.0
        %8212 = vmatpush1.msra.mxu0 0.0
        %8213 = vmatprep.subr.mxu0 0.0
        %8214 = vmatpush1.msra.mxu0 0.0
        %8215 = vmatprep.subr.mxu0 0.0
        %8216 = vmatpush1.msra.mxu0 0.0
        %8217 = vmatprep.subr.mxu0 0.0
        %8218 = vmatpush1.msra.mxu0 0.0
        %8219 = vmatprep.subr.mxu0 0.0
        %8220 = vmatpush1.msra.mxu0 0.0
        %8221 = vmatprep.subr.mxu0 0.0
        %8222 = vmatpush1.msra.mxu0 0.0
        %8223 = vmatprep.subr.mxu0 0.0
        %8224 = vmatpush1.msra.mxu0 0.0
        %8225 = vmatprep.subr.mxu0 0.0
        %8226 = vmatpush1.msra.mxu0 0.0
        %8227 = vmatprep.mubr.f32.mxu0 0.0
        %8228 = vmatmul.mubr.f32.gmra.mrb[0].mxu0 %v8158
        %v8229 = vpop.f32.mrb[0].mxu0
        %v8230 = vadd.f32 0.0, %v8229
        %v8231 = vpop.f32.mrb[0].mxu0
        %v8232 = vadd.f32 0.0, %v8231
        %8233 = vmatprep.mubr.f32.mxu0 0.0
        %8234 = vmatmul.mubr.f32.gmra.mrb[0].mxu0 %v8161
        %v8235 = vpop.f32.mrb[0].mxu0
        %v8236 = vadd.f32 0.0, %v8235
        %v8237 = vpop.f32.mrb[0].mxu0
        %v8238 = vadd.f32 0.0, %v8237
        %8239 = vdwg.mxu0
        %8240 = vmatprep.subr.mxu0 %v2099
        %8241 = vmatpush1.msra.mxu0 %v2097
        %8242 = vmatprep.subr.mxu0 0.0
        %8243 = vmatpush1.msra.mxu0 0.0
        %8244 = vmatprep.subr.mxu0 0.0
        %8245 = vmatpush1.msra.mxu0 0.0
        %8246 = vmatprep.subr.mxu0 0.0
        %8247 = vmatpush1.msra.mxu0 0.0
        %8248 = vmatprep.subr.mxu0 0.0
        %8249 = vmatpush1.msra.mxu0 0.0
        %8250 = vmatprep.subr.mxu0 0.0
        %8251 = vmatpush1.msra.mxu0 0.0
        %8252 = vmatprep.subr.mxu0 0.0
        %8253 = vmatpush1.msra.mxu0 0.0
        %8254 = vmatprep.subr.mxu0 0.0
        %8255 = vmatpush1.msra.mxu0 0.0
        %8256 = vmatprep.subr.mxu0 0.0
        %8257 = vmatpush1.msra.mxu0 0.0
        %8258 = vmatprep.subr.mxu0 0.0
        %8259 = vmatpush1.msra.mxu0 0.0
        %8260 = vmatprep.subr.mxu0 0.0
        %8261 = vmatpush1.msra.mxu0 0.0
        %8262 = vmatprep.subr.mxu0 0.0
        %8263 = vmatpush1.msra.mxu0 0.0
        %8264 = vmatprep.subr.mxu0 0.0
        %8265 = vmatpush1.msra.mxu0 0.0
        %8266 = vmatprep.subr.mxu0 0.0
        %8267 = vmatpush1.msra.mxu0 0.0
        %8268 = vmatprep.subr.mxu0 0.0
        %8269 = vmatpush1.msra.mxu0 0.0
        %8270 = vmatprep.subr.mxu0 0.0
        %8271 = vmatpush1.msra.mxu0 0.0
        %8272 = vmatprep.subr.mxu0 0.0
        %8273 = vmatpush1.msra.mxu0 0.0
        %8274 = vmatprep.subr.mxu0 0.0
        %8275 = vmatpush1.msra.mxu0 0.0
        %8276 = vmatprep.subr.mxu0 0.0
        %8277 = vmatpush1.msra.mxu0 0.0
        %8278 = vmatprep.subr.mxu0 0.0
        %8279 = vmatpush1.msra.mxu0 0.0
        %8280 = vmatprep.subr.mxu0 0.0
        %8281 = vmatpush1.msra.mxu0 0.0
        %8282 = vmatprep.subr.mxu0 0.0
        %8283 = vmatpush1.msra.mxu0 0.0
        %8284 = vmatprep.subr.mxu0 0.0
        %8285 = vmatpush1.msra.mxu0 0.0
        %8286 = vmatprep.subr.mxu0 0.0
        %8287 = vmatpush1.msra.mxu0 0.0
        %8288 = vmatprep.subr.mxu0 0.0
        %8289 = vmatpush1.msra.mxu0 0.0
        %8290 = vmatprep.subr.mxu0 0.0
        %8291 = vmatpush1.msra.mxu0 0.0
        %8292 = vmatprep.subr.mxu0 0.0
        %8293 = vmatpush1.msra.mxu0 0.0
        %8294 = vmatprep.subr.mxu0 0.0
        %8295 = vmatpush1.msra.mxu0 0.0
        %8296 = vmatprep.subr.mxu0 0.0
        %8297 = vmatpush1.msra.mxu0 0.0
        %8298 = vmatprep.subr.mxu0 0.0
        %8299 = vmatpush1.msra.mxu0 0.0
        %8300 = vmatprep.subr.mxu0 0.0
        %8301 = vmatpush1.msra.mxu0 0.0
        %8302 = vmatprep.subr.mxu0 0.0
        %8303 = vmatpush1.msra.mxu0 0.0
        %8304 = vmatprep.mubr.f32.mxu0 0.0
        %8305 = vmatmul.mubr.f32.gmra.mrb[0].mxu0 %v8158
        %v8306 = vpop.f32.mrb[0].mxu0
        %v8307 = vadd.f32 0.0, %v8306
        %v8308 = vpop.f32.mrb[0].mxu0
        %v8309 = vadd.f32 0.0, %v8308
        %8310 = vmatprep.mubr.f32.mxu0 0.0
        %8311 = vmatmul.mubr.f32.gmra.mrb[0].mxu0 %v8161
        %v8312 = vpop.f32.mrb[0].mxu0
        %v8313 = vadd.f32 0.0, %v8312
        %v8314 = vpop.f32.mrb[0].mxu0
        %v8315 = vadd.f32 0.0, %v8314
        %8316 = vdwg.mxu0
        %v8317 = vmul.f32 %v7922, %v8230
        %v8318 = vmul.f32 %v7924, %v8232
        %v8319 = vmul.f32 %v7993, %v8307
        %v8320 = vmul.f32 %v7995, %v8309
        %v8321 = vadd.f32 %v8317, %v8236
        %v8322 = vadd.f32 %v8318, %v8238
        %v8323 = vadd.f32 %v8319, %v8313
        %v8324 = vadd.f32 %v8320, %v8315
        %v8325 = vmax.f32 %v8321, 0.0
        %v8326 = vmax.f32 %v8322, 0.0
        %v8327 = vmax.f32 %v8323, 0.0
        %v8328 = vmax.f32 %v8324, 0.0
        %v8329 = vld [vmem:[%s41] sm:$0x7]
        %v8330 = vld [vmem:[%s43] sm:$0x7]
        %8331 = vrot.lane.b32.xlu0 %v8325, 17
        %v8332 = vpop.permute.xlu0 %8331
        %8333 = vrot.lane.b32.xlu0 %v8326, 17
        %v8334 = vpop.permute.xlu0 %8333
        %8335 = vrot.lane.b32.xlu0 %v8327, 17
        %v8336 = vpop.permute.xlu0 %8335
        %8337 = vrot.lane.b32.xlu0 %v8328, 17
        %v8338 = vpop.permute.xlu0 %8337
        %v8339 = vsel %vm1500, %v8336, %v8338
        %v8340 = vsel %vm1500, %v8334, %v8336
        %v8341 = vsel %vm1500, %v8332, %v8334
        %v8342 = vsel %vm1500, %v8338, %v8332
        %v8343 = vmul.f32 %v8342, %v1508
        %v8344 = vmul.f32 %v8341, %v1512
        %v8345 = vmul.f32 %v8340, %v1516
        %v8346 = vmul.f32 %v8339, %v1520
        %8347 = vrot.lane.b32.xlu0 %v8325, 16
        %v8348 = vpop.permute.xlu0 %8347
        %8349 = vrot.lane.b32.xlu0 %v8326, 16
        %v8350 = vpop.permute.xlu0 %8349
        %8351 = vrot.lane.b32.xlu0 %v8327, 16
        %v8352 = vpop.permute.xlu0 %8351
        %8353 = vrot.lane.b32.xlu0 %v8328, 16
        %v8354 = vpop.permute.xlu0 %8353
        %v8355 = vsel %vm1533, %v8352, %v8354
        %v8356 = vsel %vm1533, %v8350, %v8352
        %v8357 = vsel %vm1533, %v8348, %v8350
        %v8358 = vsel %vm1533, %v8354, %v8348
        %v8359 = vmul.f32 %v8358, %v1541
        %v8360 = vmul.f32 %v8357, %v1545
        %v8361 = vmul.f32 %v8356, %v1549
        %v8362 = vmul.f32 %v8355, %v1553
        %8363 = vrot.lane.b32.xlu0 %v8325, 15
        %v8364 = vpop.permute.xlu0 %8363
        %8365 = vrot.lane.b32.xlu0 %v8326, 15
        %v8366 = vpop.permute.xlu0 %8365
        %8367 = vrot.lane.b32.xlu0 %v8327, 15
        %v8368 = vpop.permute.xlu0 %8367
        %8369 = vrot.lane.b32.xlu0 %v8328, 15
        %v8370 = vpop.permute.xlu0 %8369
        %v8371 = vsel %vm1566, %v8368, %v8370
        %v8372 = vsel %vm1566, %v8366, %v8368
        %v8373 = vsel %vm1566, %v8364, %v8366
        %v8374 = vsel %vm1566, %v8370, %v8364
        %v8375 = vmul.f32 %v8374, %v1574
        %v8376 = vmul.f32 %v8373, %v1578
        %v8377 = vmul.f32 %v8372, %v1582
        %v8378 = vmul.f32 %v8371, %v1586
        %8379 = vrot.lane.b32.xlu0 %v8325, 1
        %v8380 = vpop.permute.xlu0 %8379
        %8381 = vrot.lane.b32.xlu0 %v8326, 1
        %v8382 = vpop.permute.xlu0 %8381
        %8383 = vrot.lane.b32.xlu0 %v8327, 1
        %v8384 = vpop.permute.xlu0 %8383
        %8385 = vrot.lane.b32.xlu0 %v8328, 1
        %v8386 = vpop.permute.xlu0 %8385
        %v8387 = vsel %vm1599, %v8384, %v8386
        %v8388 = vsel %vm1599, %v8382, %v8384
        %v8389 = vsel %vm1599, %v8380, %v8382
        %v8390 = vsel %vm1599, %v8386, %v8380
        %v8391 = vmul.f32 %v8390, %v1607
        %v8392 = vmul.f32 %v8389, %v1611
        %v8393 = vmul.f32 %v8388, %v1615
        %v8394 = vmul.f32 %v8387, %v1619
        %8395 = vrot.lane.b32.xlu0 %v8325, 127
        %v8396 = vpop.permute.xlu0 %8395
        %8397 = vrot.lane.b32.xlu0 %v8326, 127
        %v8398 = vpop.permute.xlu0 %8397
        %8399 = vrot.lane.b32.xlu0 %v8327, 127
        %v8400 = vpop.permute.xlu0 %8399
        %8401 = vrot.lane.b32.xlu0 %v8328, 127
        %v8402 = vpop.permute.xlu0 %8401
        %v8403 = vsel %vm1632, %v8400, %v8402
        %v8404 = vsel %vm1632, %v8398, %v8400
        %v8405 = vsel %vm1632, %v8396, %v8398
        %v8406 = vsel %vm1632, %v8402, %v8396
        %v8407 = vmul.f32 %v8405, %v1640
        %v8408 = vmul.f32 %v8404, %v1644
        %v8409 = vmul.f32 %v8403, %v1648
        %v8410 = vmul.f32 %v8406, %v1652
        %8411 = vrot.lane.b32.xlu0 %v8325, 113
        %v8412 = vpop.permute.xlu0 %8411
        %8413 = vrot.lane.b32.xlu0 %v8326, 113
        %v8414 = vpop.permute.xlu0 %8413
        %8415 = vrot.lane.b32.xlu0 %v8327, 113
        %v8416 = vpop.permute.xlu0 %8415
        %8417 = vrot.lane.b32.xlu0 %v8328, 113
        %v8418 = vpop.permute.xlu0 %8417
        %v8419 = vsel %vm1665, %v8416, %v8418
        %v8420 = vsel %vm1665, %v8414, %v8416
        %v8421 = vsel %vm1665, %v8412, %v8414
        %v8422 = vsel %vm1665, %v8418, %v8412
        %v8423 = vmul.f32 %v8421, %v1673
        %v8424 = vmul.f32 %v8420, %v1677
        %v8425 = vmul.f32 %v8419, %v1681
        %v8426 = vmul.f32 %v8422, %v1685
        %8427 = vrot.lane.b32.xlu0 %v8325, 112
        %v8428 = vpop.permute.xlu0 %8427
        %8429 = vrot.lane.b32.xlu0 %v8326, 112
        %v8430 = vpop.permute.xlu0 %8429
        %8431 = vrot.lane.b32.xlu0 %v8327, 112
        %v8432 = vpop.permute.xlu0 %8431
        %8433 = vrot.lane.b32.xlu0 %v8328, 112
        %v8434 = vpop.permute.xlu0 %8433
        %v8435 = vsel %vm1698, %v8432, %v8434
        %v8436 = vsel %vm1698, %v8430, %v8432
        %v8437 = vsel %vm1698, %v8428, %v8430
        %v8438 = vsel %vm1698, %v8434, %v8428
        %v8439 = vmul.f32 %v8437, %v1706
        %v8440 = vmul.f32 %v8436, %v1710
        %v8441 = vmul.f32 %v8435, %v1714
        %v8442 = vmul.f32 %v8438, %v1718
        %8443 = vrot.lane.b32.xlu0 %v8325, 111
        %v8444 = vpop.permute.xlu0 %8443
        %8445 = vrot.lane.b32.xlu0 %v8326, 111
        %v8446 = vpop.permute.xlu0 %8445
        %8447 = vrot.lane.b32.xlu0 %v8327, 111
        %v8448 = vpop.permute.xlu0 %8447
        %8449 = vrot.lane.b32.xlu0 %v8328, 111
        %v8450 = vpop.permute.xlu0 %8449
        %v8451 = vsel %vm1731, %v8448, %v8450
        %v8452 = vsel %vm1731, %v8446, %v8448
        %v8453 = vsel %vm1731, %v8444, %v8446
        %v8454 = vsel %vm1731, %v8450, %v8444
        %v8455 = vmul.f32 %v8453, %v1739
        %v8456 = vmul.f32 %v8452, %v1743
        %v8457 = vmul.f32 %v8451, %v1747
        %v8458 = vmul.f32 %v8454, %v1751
        %8460 = vset.pattern.permute.xlu0 0
        %8461 = vperm.xlu0 %8460, %v8330
        %v8462 = vpop.permute.xlu0 %8461
        %v8465 = vsel %vm1761, %v8329, 0
        %8467 = vmatprep.subr.mxu0 %v8344
        %8468 = vmatpush1.msra.mxu0 %v8343
        %8469 = vmatprep.subr.mxu0 %v8360
        %8470 = vmatpush1.msra.mxu0 %v8359
        %8471 = vmatprep.subr.mxu0 %v8376
        %8472 = vmatpush1.msra.mxu0 %v8375
        %8473 = vmatprep.subr.mxu0 %v8392
        %8474 = vmatpush1.msra.mxu0 %v8391
        %8475 = vmatprep.subr.mxu0 %v8326
        %8476 = vmatpush1.msra.mxu0 %v8325
        %8477 = vmatprep.subr.mxu0 %v8408
        %8478 = vmatpush1.msra.mxu0 %v8407
        %8479 = vmatprep.subr.mxu0 %v8424
        %8480 = vmatpush1.msra.mxu0 %v8423
        %8481 = vmatprep.subr.mxu0 %v8440
        %8482 = vmatpush1.msra.mxu0 %v8439
        %8483 = vmatprep.subr.mxu0 %v8456
        %8484 = vmatpush1.msra.mxu0 %v8455
        %8485 = vmatprep.subr.mxu0 0.0
        %8486 = vmatpush1.msra.mxu0 0.0
        %8487 = vmatprep.subr.mxu0 0.0
        %8488 = vmatpush1.msra.mxu0 0.0
        %8489 = vmatprep.subr.mxu0 0.0
        %8490 = vmatpush1.msra.mxu0 0.0
        %8491 = vmatprep.subr.mxu0 0.0
        %8492 = vmatpush1.msra.mxu0 0.0
        %8493 = vmatprep.subr.mxu0 0.0
        %8494 = vmatpush1.msra.mxu0 0.0
        %8495 = vmatprep.subr.mxu0 0.0
        %8496 = vmatpush1.msra.mxu0 0.0
        %8497 = vmatprep.subr.mxu0 0.0
        %8498 = vmatpush1.msra.mxu0 0.0
        %8499 = vmatprep.subr.mxu0 0.0
        %8500 = vmatpush1.msra.mxu0 0.0
        %8501 = vmatprep.subr.mxu0 0.0
        %8502 = vmatpush1.msra.mxu0 0.0
        %8503 = vmatprep.subr.mxu0 0.0
        %8504 = vmatpush1.msra.mxu0 0.0
        %8505 = vmatprep.subr.mxu0 0.0
        %8506 = vmatpush1.msra.mxu0 0.0
        %8507 = vmatprep.subr.mxu0 0.0
        %8508 = vmatpush1.msra.mxu0 0.0
        %8509 = vmatprep.subr.mxu0 0.0
        %8510 = vmatpush1.msra.mxu0 0.0
        %8511 = vmatprep.subr.mxu0 0.0
        %8512 = vmatpush1.msra.mxu0 0.0
        %8513 = vmatprep.subr.mxu0 0.0
        %8514 = vmatpush1.msra.mxu0 0.0
        %8515 = vmatprep.subr.mxu0 0.0
        %8516 = vmatpush1.msra.mxu0 0.0
        %8517 = vmatprep.subr.mxu0 0.0
        %8518 = vmatpush1.msra.mxu0 0.0
        %8519 = vmatprep.subr.mxu0 0.0
        %8520 = vmatpush1.msra.mxu0 0.0
        %8521 = vmatprep.subr.mxu0 0.0
        %8522 = vmatpush1.msra.mxu0 0.0
        %8523 = vmatprep.subr.mxu0 0.0
        %8524 = vmatpush1.msra.mxu0 0.0
        %8525 = vmatprep.subr.mxu0 0.0
        %8526 = vmatpush1.msra.mxu0 0.0
        %8527 = vmatprep.subr.mxu0 0.0
        %8528 = vmatpush1.msra.mxu0 0.0
        %8529 = vmatprep.subr.mxu0 0.0
        %8530 = vmatpush1.msra.mxu0 0.0
        %8531 = vmatprep.mubr.f32.mxu0 0.0
        %8532 = vmatmul.mubr.f32.gmra.mrb[0].mxu0 %v8465
        %v8533 = vpop.f32.mrb[0].mxu0
        %v8534 = vadd.f32 %v8462, %v8533
        %v8535 = vpop.f32.mrb[0].mxu0
        %v8536 = vadd.f32 %v8462, %v8535
        %8537 = vdwg.mxu0
        %8538 = vmatprep.subr.mxu0 %v8346
        %8539 = vmatpush1.msra.mxu0 %v8345
        %8540 = vmatprep.subr.mxu0 %v8362
        %8541 = vmatpush1.msra.mxu0 %v8361
        %8542 = vmatprep.subr.mxu0 %v8378
        %8543 = vmatpush1.msra.mxu0 %v8377
        %8544 = vmatprep.subr.mxu0 %v8394
        %8545 = vmatpush1.msra.mxu0 %v8393
        %8546 = vmatprep.subr.mxu0 %v8328
        %8547 = vmatpush1.msra.mxu0 %v8327
        %8548 = vmatprep.subr.mxu0 %v8410
        %8549 = vmatpush1.msra.mxu0 %v8409
        %8550 = vmatprep.subr.mxu0 %v8426
        %8551 = vmatpush1.msra.mxu0 %v8425
        %8552 = vmatprep.subr.mxu0 %v8442
        %8553 = vmatpush1.msra.mxu0 %v8441
        %8554 = vmatprep.subr.mxu0 %v8458
        %8555 = vmatpush1.msra.mxu0 %v8457
        %8556 = vmatprep.subr.mxu0 0.0
        %8557 = vmatpush1.msra.mxu0 0.0
        %8558 = vmatprep.subr.mxu0 0.0
        %8559 = vmatpush1.msra.mxu0 0.0
        %8560 = vmatprep.subr.mxu0 0.0
        %8561 = vmatpush1.msra.mxu0 0.0
        %8562 = vmatprep.subr.mxu0 0.0
        %8563 = vmatpush1.msra.mxu0 0.0
        %8564 = vmatprep.subr.mxu0 0.0
        %8565 = vmatpush1.msra.mxu0 0.0
        %8566 = vmatprep.subr.mxu0 0.0
        %8567 = vmatpush1.msra.mxu0 0.0
        %8568 = vmatprep.subr.mxu0 0.0
        %8569 = vmatpush1.msra.mxu0 0.0
        %8570 = vmatprep.subr.mxu0 0.0
        %8571 = vmatpush1.msra.mxu0 0.0
        %8572 = vmatprep.subr.mxu0 0.0
        %8573 = vmatpush1.msra.mxu0 0.0
        %8574 = vmatprep.subr.mxu0 0.0
        %8575 = vmatpush1.msra.mxu0 0.0
        %8576 = vmatprep.subr.mxu0 0.0
        %8577 = vmatpush1.msra.mxu0 0.0
        %8578 = vmatprep.subr.mxu0 0.0
        %8579 = vmatpush1.msra.mxu0 0.0
        %8580 = vmatprep.subr.mxu0 0.0
        %8581 = vmatpush1.msra.mxu0 0.0
        %8582 = vmatprep.subr.mxu0 0.0
        %8583 = vmatpush1.msra.mxu0 0.0
        %8584 = vmatprep.subr.mxu0 0.0
        %8585 = vmatpush1.msra.mxu0 0.0
        %8586 = vmatprep.subr.mxu0 0.0
        %8587 = vmatpush1.msra.mxu0 0.0
        %8588 = vmatprep.subr.mxu0 0.0
        %8589 = vmatpush1.msra.mxu0 0.0
        %8590 = vmatprep.subr.mxu0 0.0
        %8591 = vmatpush1.msra.mxu0 0.0
        %8592 = vmatprep.subr.mxu0 0.0
        %8593 = vmatpush1.msra.mxu0 0.0
        %8594 = vmatprep.subr.mxu0 0.0
        %8595 = vmatpush1.msra.mxu0 0.0
        %8596 = vmatprep.subr.mxu0 0.0
        %8597 = vmatpush1.msra.mxu0 0.0
        %8598 = vmatprep.subr.mxu0 0.0
        %8599 = vmatpush1.msra.mxu0 0.0
        %8600 = vmatprep.subr.mxu0 0.0
        %8601 = vmatpush1.msra.mxu0 0.0
        %8602 = vmatprep.mubr.f32.mxu0 0.0
        %8603 = vmatmul.mubr.f32.gmra.mrb[0].mxu0 %v8465
        %v8604 = vpop.f32.mrb[0].mxu0
        %v8605 = vadd.f32 %v8462, %v8604
        %v8606 = vpop.f32.mrb[0].mxu0
        %v8607 = vadd.f32 %v8462, %v8606
        %8608 = vdwg.mxu0
        %v8609 = vtanh.pop %v8534
        %v8610 = vtanh.pop %v8536
        %v8611 = vtanh.pop %v8605
        %v8612 = vtanh.pop %v8607
        %v8617 = vcombine.low %v8609, %v8610
        %v8618 = vcombine.low %v8611, %v8612
        %8621 = vst [vmem:[%s1355] sm:$0x77] %v8617
        %8622 = vst [vmem:[%s1355 + $0x8] sm:$0x77] %v8618
        %p8623 = scmp.lt.s32.totalorder %s93, 1
        %s8624 = scalar_select %p8623, %s93, 1
        %s8625 = smul.addr %s8624, 4
        %s8626 = smul.addr %s8625, 4
        %s8627 = scalar_lea.vmem %s73, %s8626
        // Predicated region
        $region233: #{forward.1} parent=163 // pred_check
          %p8628 = pneg %p877
        $region234: #{forward.1} parent=163 // pred_check_branch
          %8630 = sbr.rel (%p8628) target = $region236
        $region235: #{forward.1} parent=163 // pred_region
          _
        $region236: #{forward.1} parent=163 // pred_fallthru
          _
      $region164: #{forward.1} parent=5 // pred_fallthru
        _
      %p8631 = scmp.le.s32.totalorder 2, %s88
      // Predicated region
      $region237: #{forward.1} parent=5 // pred_check
        %p8632 = pneg %p8631
      $region238: #{forward.1} parent=5 // pred_check_branch
        %8634 = sbr.rel (%p8632) target = $region240
      $region239: #{forward.1} parent=5 // pred_region
        %s8635 = ssub.s32 %s88, 2
        // Predicated region
        $region241: #{forward.1} parent=239 // pred_check
          %p8636 = pneg %p883
        $region242: #{forward.1} parent=239 // pred_check_branch
          %8638 = sbr.rel (%p8636) target = $region244
        $region243: #{forward.1} parent=239 // pred_region
          %p8639 = scmp.lt.s32.totalorder %s94, 1
          %s8640 = scalar_select %p8639, %s94, 1
          %s8641 = smul.addr %s8640, 4
          %s8642 = smul.addr %s8641, 4
          %s8643 = scalar_lea.vmem %s73, %s8642
        $region244: #{forward.1} parent=239 // pred_fallthru
          _
      $region240: #{forward.1} parent=5 // pred_fallthru
        _
    $region6: #{forward.1} parent=1 // loop_footer
      %s92 = sadd.s32 1, %s88
    $region7: #{forward.1} parent=1 // loop_footer_branch
      %87 = sbr.rel target = $region3
    $region8: #{forward.1} parent=1 // loop_exit
      _
    %8644 = vsyncpa [#allocation3], 1
    %s8645 = scalar_lea.sflag [#allocation3], 1
    %8646 = vsyncpa %s8645, 1
    %8647 = vsyncpa [#allocation5], 1
    %8648 = vsyncpa [#allocation8], 1
    %8649 = vsyncpa [#allocation11], 1
    %8650 = vsyncpa [#allocation14], 1
    %8651 = vsyncpa [#allocation17], 1
    %8652 = vsyncpa [#allocation20], 1
    %8653 = vsyncpa [#allocation23], 1
    %8654 = vsyncpa [#allocation26], 1

</llo_original>
